<compile_context>
chip_gen: v5e
topology: v5e:2x2
jax: 0.10.0
libtpu: 0.0.40
codegen_flags: <defaults>
</compile_context>

<pallas_src>
import functools

import jax
import jax.numpy as jnp
from jax.experimental import pallas as pl
from jax.experimental.pallas import tpu as pltpu

BN_EPS = 1e-5
C_MID = 32        # channel count of all three convs
CIN_PAD = 8       # single input channel zero-padded to 8 (zero weight rows)


# ----------------------------------------------------------------------------
# Kernels
# ----------------------------------------------------------------------------
def _fused_conv_kernel(xp_ref, sel_ref, w1_ref, b1_ref, w2_ref, b2_ref,
                       w3_ref, b3_ref, o_ref, act_ref, patch_ref, *, H, W):
    """c1->relu->c2->relu->c3(stride 2)->relu for ONE image, fully in VMEM.

    xp_ref   : (H+2, W+2, CIN_PAD)   spatially padded input (ch 0 real, rest 0)
    sel_ref  : (Ho*Wo, H*W)          precomputed 0/1 stride-2 row selector
    w1_ref   : (9*CIN_PAD, 32)       c1 weight in im2col layout (tap-major)
    w2_ref   : (9*32, 32)            c2 weight
    w3_ref   : (9*32, 32)            c3 weight
    b*_ref   : (1, 32)
    o_ref    : (Ho*Wo, 32)           stride-2 c3 output, NHWC-flattened
    act_ref  : (H+2, W+2, 32)        scratch: padded intermediate activation
    patch_ref: (H*W, 9*32)           scratch: im2col patch buffer
    """
    HW = H * W

    def build_patch(src_ref, cin):
        # Pack the 9 shifted tap views into contiguous lane blocks of patch_ref.
        for k in range(9):                       # static unroll
            dh, dw = divmod(k, 3)
            patch_ref[:, k * cin:(k + 1) * cin] = (
                src_ref[dh:dh + H, dw:dw + W, :].reshape(HW, cin))

    def conv_matmul(cin, w_ref):
        p = patch_ref[:, :9 * cin]               # (HW, 9*cin)
        return jnp.dot(p, w_ref[...], preferred_element_type=jnp.float32)

    # ---- c1 ----
    build_patch(xp_ref, CIN_PAD)
    y = jnp.maximum(conv_matmul(CIN_PAD, w1_ref) + b1_ref[...], 0.0)

    # ---- c2 ---- (zero the halo once; interior is overwritten each time)
    act_ref[...] = jnp.zeros_like(act_ref)
    act_ref[1:H + 1, 1:W + 1, :] = y.reshape(H, W, C_MID)
    build_patch(act_ref, C_MID)
    y = jnp.maximum(conv_matmul(C_MID, w2_ref) + b2_ref[...], 0.0)

    # ---- c3 (stride 2) ----
    act_ref[1:H + 1, 1:W + 1, :] = y.reshape(H, W, C_MID)
    build_patch(act_ref, C_MID)
    y = conv_matmul(C_MID, w3_ref)               # stride-1, pre-bias, (HW, 32)
    # out_s2[ho, wo] == out_s1[2*ho, 2*wo]: pick even rows/cols with the
    # precomputed 0/1 selector (pure MXU, stays in VMEM).  Row-selection commutes
    # with the per-channel bias and with ReLU, so apply them on the small tile.
    ysel = jnp.dot(sel_ref[...], y, preferred_element_type=jnp.float32)
    o_ref[...] = jnp.maximum(ysel + b3_ref[...], 0.0)      # (Ho*Wo, 32)


def _dense_stage_kernel(x_ref, w1_ref, b1_ref, g1_ref, bt1_ref,
                        w2_ref, b2_ref, g2_ref, bt2_ref,
                        wh_ref, bh_ref, mu_ref, sg_ref, *, latent_dim):
    """fc1 DenseBlock -> fc2 DenseBlock -> fused [mu | sigma] heads."""

    def dense_block(x, w_ref, b_ref, g_ref, bt_ref):
        y = jnp.dot(x, w_ref[...], preferred_element_type=jnp.float32) + b_ref[...]
        m = jnp.mean(y, axis=0, keepdims=True)
        v = jnp.mean(jnp.square(y - m), axis=0, keepdims=True)   # biased variance
        y = (y - m) * jax.lax.rsqrt(v + BN_EPS) * g_ref[...] + bt_ref[...]
        # TODO(synk): F.dropout(p=0.2, training=True) omitted (identity) -- it
        # depends on PyTorch's RNG stream and cannot be reproduced bit-exactly.
        return jnp.maximum(y, 0.0)

    h = dense_block(x_ref[...], w1_ref, b1_ref, g1_ref, bt1_ref)
    h = dense_block(h, w2_ref, b2_ref, g2_ref, bt2_ref)
    out = jnp.dot(h, wh_ref[...], preferred_element_type=jnp.float32) + bh_ref[...]
    mu_ref[...] = out[:, :latent_dim]
    sg_ref[...] = out[:, latent_dim:]


# ----------------------------------------------------------------------------
# Pallas wrappers
# ----------------------------------------------------------------------------
def conv_stage(x_nchw, kp):
    N, C, H, W = x_nchw.shape
    assert C == 1
    Ho, Wo = H // 2, W // 2
    x = x_nchw.reshape(N, H, W, 1)                                   # C == 1
    xp = jnp.pad(x, ((0, 0), (1, 1), (1, 1), (0, CIN_PAD - 1)))      # halo + ch pad
    return pl.pallas_call(
        functools.partial(_fused_conv_kernel, H=H, W=W),
        out_shape=jax.ShapeDtypeStruct((N, Ho * Wo, C_MID), jnp.float32),
        grid=(N,),
        in_specs=[
            pl.BlockSpec((None, H + 2, W + 2, CIN_PAD), lambda n: (n, 0, 0, 0)),
            pl.BlockSpec((Ho * Wo, H * W), lambda n: (0, 0)),
            pl.BlockSpec((9 * CIN_PAD, C_MID), lambda n: (0, 0)),
            pl.BlockSpec((1, C_MID), lambda n: (0, 0)),
            pl.BlockSpec((9 * C_MID, C_MID), lambda n: (0, 0)),
            pl.BlockSpec((1, C_MID), lambda n: (0, 0)),
            pl.BlockSpec((9 * C_MID, C_MID), lambda n: (0, 0)),
            pl.BlockSpec((1, C_MID), lambda n: (0, 0)),
        ],
        out_specs=pl.BlockSpec((None, Ho * Wo, C_MID), lambda n: (n, 0, 0)),
        scratch_shapes=[
            pltpu.VMEM((H + 2, W + 2, C_MID), jnp.float32),   # padded activation
            pltpu.VMEM((H * W, 9 * C_MID), jnp.float32),      # im2col patch
        ],
        compiler_params=pltpu.CompilerParams(
            dimension_semantics=("parallel",),
            vmem_limit_bytes=32 * 1024 * 1024),
    )(xp, kp["sel"], kp["c1_w"], kp["c1_b"], kp["c2_w"], kp["c2_b"],
      kp["c3_w"], kp["c3_b"])


def dense_stage(flat, kp):
    N = flat.shape[0]
    latent_dim = kp["head_w"].shape[1] // 2
    return pl.pallas_call(
        functools.partial(_dense_stage_kernel, latent_dim=latent_dim),
        out_shape=(jax.ShapeDtypeStruct((N, latent_dim), jnp.float32),
                   jax.ShapeDtypeStruct((N, latent_dim), jnp.float32)),
        compiler_params=pltpu.CompilerParams(vmem_limit_bytes=32 * 1024 * 1024),
    )(flat, kp["fc1_w"], kp["fc1_b"], kp["fc1_g"], kp["fc1_beta"],
      kp["fc2_w"], kp["fc2_b"], kp["fc2_g"], kp["fc2_beta"],
      kp["head_w"], kp["head_b"])


def encoder_forward(x_nchw, kp):
    """Full Encoder forward.  x_nchw: (N, 1, H, W) float32 -> (mu, sigma)."""
    h = conv_stage(x_nchw, kp)                 # (N, Ho*Wo, 32), NHWC order
    flat = h.reshape(h.shape[0], -1)           # NHWC flatten; fc1_w permuted to match
    mu, sigma = dense_stage(flat, kp)
    return mu, sigma


# ----------------------------------------------------------------------------
# Deterministic parameter init + pure-JAX reference
# ----------------------------------------------------------------------------
def make_stride2_selector(H, W):
    """0/1 matrix S s.t. (S @ y_stride1)[ho*Wo+wo] == y_stride1[(2ho)*W + 2wo]."""
    Ho, Wo = H // 2, W // 2
    r = jnp.arange(Ho * Wo)
    src = (r // Wo) * (2 * W) + (r % Wo) * 2
    return (jnp.arange(H * W)[None, :] == src[:, None]).astype(jnp.float32)


def init_params(key, hidden_dim, latent_dim, input_width, input_height):
    Ho, Wo = input_width // 2, input_height // 2
    conv_out_dim = C_MID * Ho * Wo
    ks = jax.random.split(key, 16)
    n = lambda k, s, sc=0.1: (sc * jax.random.normal(k, s)).astype(jnp.float32)
    raw = {
        "c1_w": n(ks[0], (32, 1, 3, 3)),  "c1_b": n(ks[1], (32,)),
        "c2_w": n(ks[2], (32, 32, 3, 3)), "c2_b": n(ks[3], (32,)),
        "c3_w": n(ks[4], (32, 32, 3, 3)), "c3_b": n(ks[5], (32,)),
        "fc1_w": n(ks[6], (hidden_dim, conv_out_dim), 0.02), "fc1_b": n(ks[7], (hidden_dim,)),
        "fc1_g": 1.0 + n(ks[8], (hidden_dim,)),  "fc1_beta": n(ks[9], (hidden_dim,)),
        "fc2_w": n(ks[10], (hidden_dim, hidden_dim)),         "fc2_b": n(ks[11], (hidden_dim,)),
        "fc2_g": 1.0 + n(ks[12], (hidden_dim,)), "fc2_beta": n(ks[13], (hidden_dim,)),
        "mu_w": n(ks[14], (latent_dim, hidden_dim)), "mu_b": jnp.zeros((latent_dim,), jnp.float32),
        "sg_w": n(ks[15], (latent_dim, hidden_dim)), "sg_b": jnp.zeros((latent_dim,), jnp.float32),
    }

    def conv_to_mat(w_oihw, pad_cin_to=None):
        w = jnp.transpose(w_oihw, (2, 3, 1, 0))          # OIHW -> (KH, KW, Cin, Cout)
        if pad_cin_to is not None:
            w = jnp.pad(w, ((0, 0), (0, 0), (0, pad_cin_to - w.shape[2]), (0, 0)))
        kh, kw, ci, co = w.shape
        return w.reshape(kh * kw * ci, co)               # row = (dh*3+dw)*ci + c

    def pack_fc1(w):
        # PyTorch consumes the NCHW flatten (c*Ho*Wo + h*Wo + w); the conv kernel
        # emits the NHWC flatten ((h*Wo + w)*C + c).  Fold the permutation into W.
        w4 = w.reshape(hidden_dim, C_MID, Ho, Wo)
        w4 = jnp.transpose(w4, (0, 2, 3, 1))             # -> (hidden, Ho, Wo, C)
        return w4.reshape(hidden_dim, Ho * Wo * C_MID).T  # (conv_out_dim, hidden)

    kernel = {
        "sel": make_stride2_selector(input_width, input_height),
        "c1_w": conv_to_mat(raw["c1_w"], pad_cin_to=CIN_PAD), "c1_b": raw["c1_b"].reshape(1, -1),
        "c2_w": conv_to_mat(raw["c2_w"]),                     "c2_b": raw["c2_b"].reshape(1, -1),
        "c3_w": conv_to_mat(raw["c3_w"]),                     "c3_b": raw["c3_b"].reshape(1, -1),
        "fc1_w": pack_fc1(raw["fc1_w"]),
        "fc1_b": raw["fc1_b"].reshape(1, -1), "fc1_g": raw["fc1_g"].reshape(1, -1),
        "fc1_beta": raw["fc1_beta"].reshape(1, -1),
        "fc2_w": raw["fc2_w"].T,
        "fc2_b": raw["fc2_b"].reshape(1, -1), "fc2_g": raw["fc2_g"].reshape(1, -1),
        "fc2_beta": raw["fc2_beta"].reshape(1, -1),
        "head_w": jnp.concatenate([raw["mu_w"].T, raw["sg_w"].T], axis=1),   # (hidden, 2L)
        "head_b": jnp.concatenate([raw["mu_b"], raw["sg_b"]]).reshape(1, -1),
    }
    return raw, kernel


def reference_forward(x_nchw, raw):
    """Pure-JAX reference with PyTorch semantics (dropout as identity)."""
    def conv(x, w, b, stride):
        y = jax.lax.conv_general_dilated(
            x, w, (stride, stride), [(1, 1), (1, 1)],
            dimension_numbers=("NCHW", "OIHW", "NCHW"))
        return y + b[None, :, None, None]

    def dense(h, w, b, g, bt):
        y = h @ w.T + b
        m = y.mean(0, keepdims=True)
        v = jnp.square(y - m).mean(0, keepdims=True)
        y = (y - m) / jnp.sqrt(v + BN_EPS) * g + bt
        return jax.nn.relu(y)

    h = jax.nn.relu(conv(x_nchw, raw["c1_w"], raw["c1_b"], 1))
    h = jax.nn.relu(conv(h, raw["c2_w"], raw["c2_b"], 1))
    h = jax.nn.relu(conv(h, raw["c3_w"], raw["c3_b"], 2))
    h = h.reshape(h.shape[0], -1)
    h = dense(h, raw["fc1_w"], raw["fc1_b"], raw["fc1_g"], raw["fc1_beta"])
    h = dense(h, raw["fc2_w"], raw["fc2_b"], raw["fc2_g"], raw["fc2_beta"])
    mu = h @ raw["mu_w"].T + raw["mu_b"]
    sigma = h @ raw["sg_w"].T + raw["sg_b"]
    return mu, sigma


# ----------------------------------------------------------------------------
if __name__ == "__main__":
    batch, input_width, input_height = 2, 16, 16
    hidden_dim, latent_dim = 32, 8

    key = jax.random.PRNGKey(0)
    kx, kparam = jax.random.split(key)
    x = jax.random.normal(kx, (batch, 1, input_width, input_height), jnp.float32)

    raw_params, kernel_params = init_params(kparam, hidden_dim, latent_dim,
                                            input_width, input_height)

    mu, sigma = jax.jit(encoder_forward)(x, kernel_params)
    jax.block_until_ready((mu, sigma))

    mu_ref, sigma_ref = reference_forward(x, raw_params)
    assert mu.shape == (batch, latent_dim) and sigma.shape == (batch, latent_dim)
    assert jnp.allclose(mu, mu_ref, rtol=1e-3, atol=1e-3), "mu mismatch"
    assert jnp.allclose(sigma, sigma_ref, rtol=1e-3, atol=1e-3), "sigma mismatch"

    print("KERNEL_OK")
</pallas_src>

<mosaic_0001>
module attributes {stable_mosaic.version = 11 : i64} {
  func.func @_fused_conv_kernel(%arg0: i32, %arg1: memref<1x18x18x8xf32, #tpu.memory_space<vmem>>, %arg2: memref<64x256xf32, #tpu.memory_space<vmem>>, %arg3: memref<72x32xf32, #tpu.memory_space<vmem>>, %arg4: memref<1x32xf32, #tpu.memory_space<vmem>>, %arg5: memref<288x32xf32, #tpu.memory_space<vmem>>, %arg6: memref<1x32xf32, #tpu.memory_space<vmem>>, %arg7: memref<288x32xf32, #tpu.memory_space<vmem>>, %arg8: memref<1x32xf32, #tpu.memory_space<vmem>>, %arg9: memref<1x64x32xf32, #tpu.memory_space<vmem>>, %arg10: memref<18x18x32xf32, #tpu.memory_space<vmem>>, %arg11: memref<256x288xf32, #tpu.memory_space<vmem>>) attributes {dimension_semantics = [#tpu.dimension_semantics<parallel>], iteration_bounds = array<i64: 2>, scalar_prefetch = 0 : i64, scratch_operands = 2 : i64, tpu.core_type = #tpu.core_type<tc>, window_params = [{transform_indices = @transform_0, window_bounds = array<i64: 1, 18, 18, 8>}, {pipeline_mode = #tpu.pipeline_mode<synchronous>, transform_indices = @transform_1, window_bounds = array<i64: 64, 256>}, {pipeline_mode = #tpu.pipeline_mode<synchronous>, transform_indices = @transform_2, window_bounds = array<i64: 72, 32>}, {pipeline_mode = #tpu.pipeline_mode<synchronous>, transform_indices = @transform_3, window_bounds = array<i64: 1, 32>}, {pipeline_mode = #tpu.pipeline_mode<synchronous>, transform_indices = @transform_4, window_bounds = array<i64: 288, 32>}, {pipeline_mode = #tpu.pipeline_mode<synchronous>, transform_indices = @transform_5, window_bounds = array<i64: 1, 32>}, {pipeline_mode = #tpu.pipeline_mode<synchronous>, transform_indices = @transform_6, window_bounds = array<i64: 288, 32>}, {pipeline_mode = #tpu.pipeline_mode<synchronous>, transform_indices = @transform_7, window_bounds = array<i64: 1, 32>}, {transform_indices = @transform_8, window_bounds = array<i64: 1, 64, 32>}]} {
    %c0 = arith.constant 0 : index
    %c0_0 = arith.constant 0 : index
    %c0_1 = arith.constant 0 : index
    %c0_2 = arith.constant 0 : index
    %0 = vector.load %arg1[%c0, %c0_0, %c0_1, %c0_2] : memref<1x18x18x8xf32, #tpu.memory_space<vmem>>, vector<1x16x16x8xf32>
    %1 = vector.shape_cast %0 : vector<1x16x16x8xf32> to vector<16x16x8xf32>
    %2 = vector.shape_cast %1 : vector<16x16x8xf32> to vector<256x8xf32>
    %c0_3 = arith.constant 0 : index
    %c0_4 = arith.constant 0 : index
    %3 = vector.load %arg11[%c0_3, %c0_4] : memref<256x288xf32, #tpu.memory_space<vmem>>, vector<256x8xf32>
    tpu.vector_store %arg11[%c0_3, %c0_4], %2 {strides = array<i32>} : memref<256x288xf32, #tpu.memory_space<vmem>>, vector<256x8xf32>,
    %c0_5 = arith.constant 0 : index
    %c0_6 = arith.constant 0 : index
    %c1 = arith.constant 1 : index
    %c0_7 = arith.constant 0 : index
    %4 = vector.load %arg1[%c0_5, %c0_6, %c1, %c0_7] : memref<1x18x18x8xf32, #tpu.memory_space<vmem>>, vector<1x16x16x8xf32>
    %5 = vector.shape_cast %4 : vector<1x16x16x8xf32> to vector<16x16x8xf32>
    %6 = vector.shape_cast %5 : vector<16x16x8xf32> to vector<256x8xf32>
    %c0_8 = arith.constant 0 : index
    %c8 = arith.constant 8 : index
    %7 = vector.load %arg11[%c0_8, %c8] : memref<256x288xf32, #tpu.memory_space<vmem>>, vector<256x8xf32>
    tpu.vector_store %arg11[%c0_8, %c8], %6 {strides = array<i32>} : memref<256x288xf32, #tpu.memory_space<vmem>>, vector<256x8xf32>,
    %c0_9 = arith.constant 0 : index
    %c0_10 = arith.constant 0 : index
    %c2 = arith.constant 2 : index
    %c0_11 = arith.constant 0 : index
    %8 = vector.load %arg1[%c0_9, %c0_10, %c2, %c0_11] : memref<1x18x18x8xf32, #tpu.memory_space<vmem>>, vector<1x16x16x8xf32>
    %9 = vector.shape_cast %8 : vector<1x16x16x8xf32> to vector<16x16x8xf32>
    %10 = vector.shape_cast %9 : vector<16x16x8xf32> to vector<256x8xf32>
    %c0_12 = arith.constant 0 : index
    %c16 = arith.constant 16 : index
    %11 = vector.load %arg11[%c0_12, %c16] : memref<256x288xf32, #tpu.memory_space<vmem>>, vector<256x8xf32>
    tpu.vector_store %arg11[%c0_12, %c16], %10 {strides = array<i32>} : memref<256x288xf32, #tpu.memory_space<vmem>>, vector<256x8xf32>,
    %c0_13 = arith.constant 0 : index
    %c1_14 = arith.constant 1 : index
    %c0_15 = arith.constant 0 : index
    %c0_16 = arith.constant 0 : index
    %12 = vector.load %arg1[%c0_13, %c1_14, %c0_15, %c0_16] : memref<1x18x18x8xf32, #tpu.memory_space<vmem>>, vector<1x16x16x8xf32>
    %13 = vector.shape_cast %12 : vector<1x16x16x8xf32> to vector<16x16x8xf32>
    %14 = vector.shape_cast %13 : vector<16x16x8xf32> to vector<256x8xf32>
    %c0_17 = arith.constant 0 : index
    %c24 = arith.constant 24 : index
    %15 = vector.load %arg11[%c0_17, %c24] : memref<256x288xf32, #tpu.memory_space<vmem>>, vector<256x8xf32>
    tpu.vector_store %arg11[%c0_17, %c24], %14 {strides = array<i32>} : memref<256x288xf32, #tpu.memory_space<vmem>>, vector<256x8xf32>,
    %c0_18 = arith.constant 0 : index
    %c1_19 = arith.constant 1 : index
    %c1_20 = arith.constant 1 : index
    %c0_21 = arith.constant 0 : index
    %16 = vector.load %arg1[%c0_18, %c1_19, %c1_20, %c0_21] : memref<1x18x18x8xf32, #tpu.memory_space<vmem>>, vector<1x16x16x8xf32>
    %17 = vector.shape_cast %16 : vector<1x16x16x8xf32> to vector<16x16x8xf32>
    %18 = vector.shape_cast %17 : vector<16x16x8xf32> to vector<256x8xf32>
    %c0_22 = arith.constant 0 : index
    %c32 = arith.constant 32 : index
    %19 = vector.load %arg11[%c0_22, %c32] : memref<256x288xf32, #tpu.memory_space<vmem>>, vector<256x8xf32>
    tpu.vector_store %arg11[%c0_22, %c32], %18 {strides = array<i32>} : memref<256x288xf32, #tpu.memory_space<vmem>>, vector<256x8xf32>,
    %c0_23 = arith.constant 0 : index
    %c1_24 = arith.constant 1 : index
    %c2_25 = arith.constant 2 : index
    %c0_26 = arith.constant 0 : index
    %20 = vector.load %arg1[%c0_23, %c1_24, %c2_25, %c0_26] : memref<1x18x18x8xf32, #tpu.memory_space<vmem>>, vector<1x16x16x8xf32>
    %21 = vector.shape_cast %20 : vector<1x16x16x8xf32> to vector<16x16x8xf32>
    %22 = vector.shape_cast %21 : vector<16x16x8xf32> to vector<256x8xf32>
    %c0_27 = arith.constant 0 : index
    %c40 = arith.constant 40 : index
    %23 = vector.load %arg11[%c0_27, %c40] : memref<256x288xf32, #tpu.memory_space<vmem>>, vector<256x8xf32>
    tpu.vector_store %arg11[%c0_27, %c40], %22 {strides = array<i32>} : memref<256x288xf32, #tpu.memory_space<vmem>>, vector<256x8xf32>,
    %c0_28 = arith.constant 0 : index
    %c2_29 = arith.constant 2 : index
    %c0_30 = arith.constant 0 : index
    %c0_31 = arith.constant 0 : index
    %24 = vector.load %arg1[%c0_28, %c2_29, %c0_30, %c0_31] : memref<1x18x18x8xf32, #tpu.memory_space<vmem>>, vector<1x16x16x8xf32>
    %25 = vector.shape_cast %24 : vector<1x16x16x8xf32> to vector<16x16x8xf32>
    %26 = vector.shape_cast %25 : vector<16x16x8xf32> to vector<256x8xf32>
    %c0_32 = arith.constant 0 : index
    %c48 = arith.constant 48 : index
    %27 = vector.load %arg11[%c0_32, %c48] : memref<256x288xf32, #tpu.memory_space<vmem>>, vector<256x8xf32>
    tpu.vector_store %arg11[%c0_32, %c48], %26 {strides = array<i32>} : memref<256x288xf32, #tpu.memory_space<vmem>>, vector<256x8xf32>,
    %c0_33 = arith.constant 0 : index
    %c2_34 = arith.constant 2 : index
    %c1_35 = arith.constant 1 : index
    %c0_36 = arith.constant 0 : index
    %28 = vector.load %arg1[%c0_33, %c2_34, %c1_35, %c0_36] : memref<1x18x18x8xf32, #tpu.memory_space<vmem>>, vector<1x16x16x8xf32>
    %29 = vector.shape_cast %28 : vector<1x16x16x8xf32> to vector<16x16x8xf32>
    %30 = vector.shape_cast %29 : vector<16x16x8xf32> to vector<256x8xf32>
    %c0_37 = arith.constant 0 : index
    %c56 = arith.constant 56 : index
    %31 = vector.load %arg11[%c0_37, %c56] : memref<256x288xf32, #tpu.memory_space<vmem>>, vector<256x8xf32>
    tpu.vector_store %arg11[%c0_37, %c56], %30 {strides = array<i32>} : memref<256x288xf32, #tpu.memory_space<vmem>>, vector<256x8xf32>,
    %c0_38 = arith.constant 0 : index
    %c2_39 = arith.constant 2 : index
    %c2_40 = arith.constant 2 : index
    %c0_41 = arith.constant 0 : index
    %32 = vector.load %arg1[%c0_38, %c2_39, %c2_40, %c0_41] : memref<1x18x18x8xf32, #tpu.memory_space<vmem>>, vector<1x16x16x8xf32>
    %33 = vector.shape_cast %32 : vector<1x16x16x8xf32> to vector<16x16x8xf32>
    %34 = vector.shape_cast %33 : vector<16x16x8xf32> to vector<256x8xf32>
    %c0_42 = arith.constant 0 : index
    %c64 = arith.constant 64 : index
    %35 = vector.load %arg11[%c0_42, %c64] : memref<256x288xf32, #tpu.memory_space<vmem>>, vector<256x8xf32>
    tpu.vector_store %arg11[%c0_42, %c64], %34 {strides = array<i32>} : memref<256x288xf32, #tpu.memory_space<vmem>>, vector<256x8xf32>,
    %c0_43 = arith.constant 0 : index
    %c0_44 = arith.constant 0 : index
    %36 = vector.load %arg11[%c0_43, %c0_44] : memref<256x288xf32, #tpu.memory_space<vmem>>, vector<256x72xf32>
    %c0_45 = arith.constant 0 : index
    %c0_46 = arith.constant 0 : index
    %37 = vector.load %arg3[%c0_45, %c0_46] : memref<72x32xf32, #tpu.memory_space<vmem>>, vector<72x32xf32>
    %cst = arith.constant dense<0.000000e+00> : vector<256x32xf32>
    %38 = tpu.matmul %36, %37, %cst {dimension_numbers = #tpu.dot_dimension_numbers<[1], [0], [0], [1], [0, 0, 1, 1], [], []>} : vector<256x72xf32>, vector<72x32xf32>, vector<256x32xf32> -> vector<256x32xf32>
    %c0_47 = arith.constant 0 : index
    %c0_48 = arith.constant 0 : index
    %39 = vector.load %arg4[%c0_47, %c0_48] : memref<1x32xf32, #tpu.memory_space<vmem>>, vector<1x32xf32>
    %40 = vector.broadcast %39 : vector<1x32xf32> to vector<256x32xf32>
    %41 = arith.addf %38, %40 : vector<256x32xf32>
    %cst_49 = arith.constant 0.000000e+00 : f32
    %42 = vector.broadcast %cst_49 : f32 to vector<256x32xf32>
    %43 = arith.maximumf %41, %42 : vector<256x32xf32>
    %cst_50 = arith.constant 0.000000e+00 : f32
    %44 = vector.broadcast %cst_50 : f32 to vector<18x18x32xf32>
    %c0_51 = arith.constant 0 : index
    %c0_52 = arith.constant 0 : index
    %c0_53 = arith.constant 0 : index
    %45 = vector.load %arg10[%c0_51, %c0_52, %c0_53] : memref<18x18x32xf32, #tpu.memory_space<vmem>>, vector<18x18x32xf32>
    tpu.vector_store %arg10[%c0_51, %c0_52, %c0_53], %44 {strides = array<i32>} : memref<18x18x32xf32, #tpu.memory_space<vmem>>, vector<18x18x32xf32>,
    %46 = vector.shape_cast %43 : vector<256x32xf32> to vector<16x16x32xf32>
    %c1_54 = arith.constant 1 : index
    %c1_55 = arith.constant 1 : index
    %c0_56 = arith.constant 0 : index
    %47 = vector.load %arg10[%c1_54, %c1_55, %c0_56] : memref<18x18x32xf32, #tpu.memory_space<vmem>>, vector<16x16x32xf32>
    tpu.vector_store %arg10[%c1_54, %c1_55, %c0_56], %46 {strides = array<i32>} : memref<18x18x32xf32, #tpu.memory_space<vmem>>, vector<16x16x32xf32>,
    %c0_57 = arith.constant 0 : index
    %c0_58 = arith.constant 0 : index
    %c0_59 = arith.constant 0 : index
    %48 = vector.load %arg10[%c0_57, %c0_58, %c0_59] : memref<18x18x32xf32, #tpu.memory_space<vmem>>, vector<16x16x32xf32>
    %49 = vector.shape_cast %48 : vector<16x16x32xf32> to vector<256x32xf32>
    %c0_60 = arith.constant 0 : index
    %c0_61 = arith.constant 0 : index
    %50 = vector.load %arg11[%c0_60, %c0_61] : memref<256x288xf32, #tpu.memory_space<vmem>>, vector<256x32xf32>
    tpu.vector_store %arg11[%c0_60, %c0_61], %49 {strides = array<i32>} : memref<256x288xf32, #tpu.memory_space<vmem>>, vector<256x32xf32>,
    %c0_62 = arith.constant 0 : index
    %c1_63 = arith.constant 1 : index
    %c0_64 = arith.constant 0 : index
    %51 = vector.load %arg10[%c0_62, %c1_63, %c0_64] : memref<18x18x32xf32, #tpu.memory_space<vmem>>, vector<16x16x32xf32>
    %52 = vector.shape_cast %51 : vector<16x16x32xf32> to vector<256x32xf32>
    %c0_65 = arith.constant 0 : index
    %c32_66 = arith.constant 32 : index
    %53 = vector.load %arg11[%c0_65, %c32_66] : memref<256x288xf32, #tpu.memory_space<vmem>>, vector<256x32xf32>
    tpu.vector_store %arg11[%c0_65, %c32_66], %52 {strides = array<i32>} : memref<256x288xf32, #tpu.memory_space<vmem>>, vector<256x32xf32>,
    %c0_67 = arith.constant 0 : index
    %c2_68 = arith.constant 2 : index
    %c0_69 = arith.constant 0 : index
    %54 = vector.load %arg10[%c0_67, %c2_68, %c0_69] : memref<18x18x32xf32, #tpu.memory_space<vmem>>, vector<16x16x32xf32>
    %55 = vector.shape_cast %54 : vector<16x16x32xf32> to vector<256x32xf32>
    %c0_70 = arith.constant 0 : index
    %c64_71 = arith.constant 64 : index
    %56 = vector.load %arg11[%c0_70, %c64_71] : memref<256x288xf32, #tpu.memory_space<vmem>>, vector<256x32xf32>
    tpu.vector_store %arg11[%c0_70, %c64_71], %55 {strides = array<i32>} : memref<256x288xf32, #tpu.memory_space<vmem>>, vector<256x32xf32>,
    %c1_72 = arith.constant 1 : index
    %c0_73 = arith.constant 0 : index
    %c0_74 = arith.constant 0 : index
    %57 = vector.load %arg10[%c1_72, %c0_73, %c0_74] : memref<18x18x32xf32, #tpu.memory_space<vmem>>, vector<16x16x32xf32>
    %58 = vector.shape_cast %57 : vector<16x16x32xf32> to vector<256x32xf32>
    %c0_75 = arith.constant 0 : index
    %c96 = arith.constant 96 : index
    %59 = vector.load %arg11[%c0_75, %c96] : memref<256x288xf32, #tpu.memory_space<vmem>>, vector<256x32xf32>
    tpu.vector_store %arg11[%c0_75, %c96], %58 {strides = array<i32>} : memref<256x288xf32, #tpu.memory_space<vmem>>, vector<256x32xf32>,
    %c1_76 = arith.constant 1 : index
    %c1_77 = arith.constant 1 : index
    %c0_78 = arith.constant 0 : index
    %60 = vector.load %arg10[%c1_76, %c1_77, %c0_78] : memref<18x18x32xf32, #tpu.memory_space<vmem>>, vector<16x16x32xf32>
    %61 = vector.shape_cast %60 : vector<16x16x32xf32> to vector<256x32xf32>
    %c0_79 = arith.constant 0 : index
    %c128 = arith.constant 128 : index
    %62 = vector.load %arg11[%c0_79, %c128] : memref<256x288xf32, #tpu.memory_space<vmem>>, vector<256x32xf32>
    tpu.vector_store %arg11[%c0_79, %c128], %61 {strides = array<i32>} : memref<256x288xf32, #tpu.memory_space<vmem>>, vector<256x32xf32>,
    %c1_80 = arith.constant 1 : index
    %c2_81 = arith.constant 2 : index
    %c0_82 = arith.constant 0 : index
    %63 = vector.load %arg10[%c1_80, %c2_81, %c0_82] : memref<18x18x32xf32, #tpu.memory_space<vmem>>, vector<16x16x32xf32>
    %64 = vector.shape_cast %63 : vector<16x16x32xf32> to vector<256x32xf32>
    %c0_83 = arith.constant 0 : index
    %c160 = arith.constant 160 : index
    %65 = vector.load %arg11[%c0_83, %c160] : memref<256x288xf32, #tpu.memory_space<vmem>>, vector<256x32xf32>
    tpu.vector_store %arg11[%c0_83, %c160], %64 {strides = array<i32>} : memref<256x288xf32, #tpu.memory_space<vmem>>, vector<256x32xf32>,
    %c2_84 = arith.constant 2 : index
    %c0_85 = arith.constant 0 : index
    %c0_86 = arith.constant 0 : index
    %66 = vector.load %arg10[%c2_84, %c0_85, %c0_86] : memref<18x18x32xf32, #tpu.memory_space<vmem>>, vector<16x16x32xf32>
    %67 = vector.shape_cast %66 : vector<16x16x32xf32> to vector<256x32xf32>
    %c0_87 = arith.constant 0 : index
    %c192 = arith.constant 192 : index
    %68 = vector.load %arg11[%c0_87, %c192] : memref<256x288xf32, #tpu.memory_space<vmem>>, vector<256x32xf32>
    tpu.vector_store %arg11[%c0_87, %c192], %67 {strides = array<i32>} : memref<256x288xf32, #tpu.memory_space<vmem>>, vector<256x32xf32>,
    %c2_88 = arith.constant 2 : index
    %c1_89 = arith.constant 1 : index
    %c0_90 = arith.constant 0 : index
    %69 = vector.load %arg10[%c2_88, %c1_89, %c0_90] : memref<18x18x32xf32, #tpu.memory_space<vmem>>, vector<16x16x32xf32>
    %70 = vector.shape_cast %69 : vector<16x16x32xf32> to vector<256x32xf32>
    %c0_91 = arith.constant 0 : index
    %c224 = arith.constant 224 : index
    %71 = vector.load %arg11[%c0_91, %c224] : memref<256x288xf32, #tpu.memory_space<vmem>>, vector<256x32xf32>
    tpu.vector_store %arg11[%c0_91, %c224], %70 {strides = array<i32>} : memref<256x288xf32, #tpu.memory_space<vmem>>, vector<256x32xf32>,
    %c2_92 = arith.constant 2 : index
    %c2_93 = arith.constant 2 : index
    %c0_94 = arith.constant 0 : index
    %72 = vector.load %arg10[%c2_92, %c2_93, %c0_94] : memref<18x18x32xf32, #tpu.memory_space<vmem>>, vector<16x16x32xf32>
    %73 = vector.shape_cast %72 : vector<16x16x32xf32> to vector<256x32xf32>
    %c0_95 = arith.constant 0 : index
    %c256 = arith.constant 256 : index
    %74 = vector.load %arg11[%c0_95, %c256] : memref<256x288xf32, #tpu.memory_space<vmem>>, vector<256x32xf32>
    tpu.vector_store %arg11[%c0_95, %c256], %73 {strides = array<i32>} : memref<256x288xf32, #tpu.memory_space<vmem>>, vector<256x32xf32>,
    %c0_96 = arith.constant 0 : index
    %c0_97 = arith.constant 0 : index
    %75 = vector.load %arg11[%c0_96, %c0_97] : memref<256x288xf32, #tpu.memory_space<vmem>>, vector<256x288xf32>
    %c0_98 = arith.constant 0 : index
    %c0_99 = arith.constant 0 : index
    %76 = vector.load %arg5[%c0_98, %c0_99] : memref<288x32xf32, #tpu.memory_space<vmem>>, vector<288x32xf32>
    %cst_100 = arith.constant dense<0.000000e+00> : vector<256x32xf32>
    %77 = tpu.matmul %75, %76, %cst_100 {dimension_numbers = #tpu.dot_dimension_numbers<[1], [0], [0], [1], [0, 0, 1, 1], [], []>} : vector<256x288xf32>, vector<288x32xf32>, vector<256x32xf32> -> vector<256x32xf32>
    %c0_101 = arith.constant 0 : index
    %c0_102 = arith.constant 0 : index
    %78 = vector.load %arg6[%c0_101, %c0_102] : memref<1x32xf32, #tpu.memory_space<vmem>>, vector<1x32xf32>
    %79 = vector.broadcast %78 : vector<1x32xf32> to vector<256x32xf32>
    %80 = arith.addf %77, %79 : vector<256x32xf32>
    %cst_103 = arith.constant 0.000000e+00 : f32
    %81 = vector.broadcast %cst_103 : f32 to vector<256x32xf32>
    %82 = arith.maximumf %80, %81 : vector<256x32xf32>
    %83 = vector.shape_cast %82 : vector<256x32xf32> to vector<16x16x32xf32>
    %c1_104 = arith.constant 1 : index
    %c1_105 = arith.constant 1 : index
    %c0_106 = arith.constant 0 : index
    %84 = vector.load %arg10[%c1_104, %c1_105, %c0_106] : memref<18x18x32xf32, #tpu.memory_space<vmem>>, vector<16x16x32xf32>
    tpu.vector_store %arg10[%c1_104, %c1_105, %c0_106], %83 {strides = array<i32>} : memref<18x18x32xf32, #tpu.memory_space<vmem>>, vector<16x16x32xf32>,
    %c0_107 = arith.constant 0 : index
    %c0_108 = arith.constant 0 : index
    %c0_109 = arith.constant 0 : index
    %85 = vector.load %arg10[%c0_107, %c0_108, %c0_109] : memref<18x18x32xf32, #tpu.memory_space<vmem>>, vector<16x16x32xf32>
    %86 = vector.shape_cast %85 : vector<16x16x32xf32> to vector<256x32xf32>
    %c0_110 = arith.constant 0 : index
    %c0_111 = arith.constant 0 : index
    %87 = vector.load %arg11[%c0_110, %c0_111] : memref<256x288xf32, #tpu.memory_space<vmem>>, vector<256x32xf32>
    tpu.vector_store %arg11[%c0_110, %c0_111], %86 {strides = array<i32>} : memref<256x288xf32, #tpu.memory_space<vmem>>, vector<256x32xf32>,
    %c0_112 = arith.constant 0 : index
    %c1_113 = arith.constant 1 : index
    %c0_114 = arith.constant 0 : index
    %88 = vector.load %arg10[%c0_112, %c1_113, %c0_114] : memref<18x18x32xf32, #tpu.memory_space<vmem>>, vector<16x16x32xf32>
    %89 = vector.shape_cast %88 : vector<16x16x32xf32> to vector<256x32xf32>
    %c0_115 = arith.constant 0 : index
    %c32_116 = arith.constant 32 : index
    %90 = vector.load %arg11[%c0_115, %c32_116] : memref<256x288xf32, #tpu.memory_space<vmem>>, vector<256x32xf32>
    tpu.vector_store %arg11[%c0_115, %c32_116], %89 {strides = array<i32>} : memref<256x288xf32, #tpu.memory_space<vmem>>, vector<256x32xf32>,
    %c0_117 = arith.constant 0 : index
    %c2_118 = arith.constant 2 : index
    %c0_119 = arith.constant 0 : index
    %91 = vector.load %arg10[%c0_117, %c2_118, %c0_119] : memref<18x18x32xf32, #tpu.memory_space<vmem>>, vector<16x16x32xf32>
    %92 = vector.shape_cast %91 : vector<16x16x32xf32> to vector<256x32xf32>
    %c0_120 = arith.constant 0 : index
    %c64_121 = arith.constant 64 : index
    %93 = vector.load %arg11[%c0_120, %c64_121] : memref<256x288xf32, #tpu.memory_space<vmem>>, vector<256x32xf32>
    tpu.vector_store %arg11[%c0_120, %c64_121], %92 {strides = array<i32>} : memref<256x288xf32, #tpu.memory_space<vmem>>, vector<256x32xf32>,
    %c1_122 = arith.constant 1 : index
    %c0_123 = arith.constant 0 : index
    %c0_124 = arith.constant 0 : index
    %94 = vector.load %arg10[%c1_122, %c0_123, %c0_124] : memref<18x18x32xf32, #tpu.memory_space<vmem>>, vector<16x16x32xf32>
    %95 = vector.shape_cast %94 : vector<16x16x32xf32> to vector<256x32xf32>
    %c0_125 = arith.constant 0 : index
    %c96_126 = arith.constant 96 : index
    %96 = vector.load %arg11[%c0_125, %c96_126] : memref<256x288xf32, #tpu.memory_space<vmem>>, vector<256x32xf32>
    tpu.vector_store %arg11[%c0_125, %c96_126], %95 {strides = array<i32>} : memref<256x288xf32, #tpu.memory_space<vmem>>, vector<256x32xf32>,
    %c1_127 = arith.constant 1 : index
    %c1_128 = arith.constant 1 : index
    %c0_129 = arith.constant 0 : index
    %97 = vector.load %arg10[%c1_127, %c1_128, %c0_129] : memref<18x18x32xf32, #tpu.memory_space<vmem>>, vector<16x16x32xf32>
    %98 = vector.shape_cast %97 : vector<16x16x32xf32> to vector<256x32xf32>
    %c0_130 = arith.constant 0 : index
    %c128_131 = arith.constant 128 : index
    %99 = vector.load %arg11[%c0_130, %c128_131] : memref<256x288xf32, #tpu.memory_space<vmem>>, vector<256x32xf32>
    tpu.vector_store %arg11[%c0_130, %c128_131], %98 {strides = array<i32>} : memref<256x288xf32, #tpu.memory_space<vmem>>, vector<256x32xf32>,
    %c1_132 = arith.constant 1 : index
    %c2_133 = arith.constant 2 : index
    %c0_134 = arith.constant 0 : index
    %100 = vector.load %arg10[%c1_132, %c2_133, %c0_134] : memref<18x18x32xf32, #tpu.memory_space<vmem>>, vector<16x16x32xf32>
    %101 = vector.shape_cast %100 : vector<16x16x32xf32> to vector<256x32xf32>
    %c0_135 = arith.constant 0 : index
    %c160_136 = arith.constant 160 : index
    %102 = vector.load %arg11[%c0_135, %c160_136] : memref<256x288xf32, #tpu.memory_space<vmem>>, vector<256x32xf32>
    tpu.vector_store %arg11[%c0_135, %c160_136], %101 {strides = array<i32>} : memref<256x288xf32, #tpu.memory_space<vmem>>, vector<256x32xf32>,
    %c2_137 = arith.constant 2 : index
    %c0_138 = arith.constant 0 : index
    %c0_139 = arith.constant 0 : index
    %103 = vector.load %arg10[%c2_137, %c0_138, %c0_139] : memref<18x18x32xf32, #tpu.memory_space<vmem>>, vector<16x16x32xf32>
    %104 = vector.shape_cast %103 : vector<16x16x32xf32> to vector<256x32xf32>
    %c0_140 = arith.constant 0 : index
    %c192_141 = arith.constant 192 : index
    %105 = vector.load %arg11[%c0_140, %c192_141] : memref<256x288xf32, #tpu.memory_space<vmem>>, vector<256x32xf32>
    tpu.vector_store %arg11[%c0_140, %c192_141], %104 {strides = array<i32>} : memref<256x288xf32, #tpu.memory_space<vmem>>, vector<256x32xf32>,
    %c2_142 = arith.constant 2 : index
    %c1_143 = arith.constant 1 : index
    %c0_144 = arith.constant 0 : index
    %106 = vector.load %arg10[%c2_142, %c1_143, %c0_144] : memref<18x18x32xf32, #tpu.memory_space<vmem>>, vector<16x16x32xf32>
    %107 = vector.shape_cast %106 : vector<16x16x32xf32> to vector<256x32xf32>
    %c0_145 = arith.constant 0 : index
    %c224_146 = arith.constant 224 : index
    %108 = vector.load %arg11[%c0_145, %c224_146] : memref<256x288xf32, #tpu.memory_space<vmem>>, vector<256x32xf32>
    tpu.vector_store %arg11[%c0_145, %c224_146], %107 {strides = array<i32>} : memref<256x288xf32, #tpu.memory_space<vmem>>, vector<256x32xf32>,
    %c2_147 = arith.constant 2 : index
    %c2_148 = arith.constant 2 : index
    %c0_149 = arith.constant 0 : index
    %109 = vector.load %arg10[%c2_147, %c2_148, %c0_149] : memref<18x18x32xf32, #tpu.memory_space<vmem>>, vector<16x16x32xf32>
    %110 = vector.shape_cast %109 : vector<16x16x32xf32> to vector<256x32xf32>
    %c0_150 = arith.constant 0 : index
    %c256_151 = arith.constant 256 : index
    %111 = vector.load %arg11[%c0_150, %c256_151] : memref<256x288xf32, #tpu.memory_space<vmem>>, vector<256x32xf32>
    tpu.vector_store %arg11[%c0_150, %c256_151], %110 {strides = array<i32>} : memref<256x288xf32, #tpu.memory_space<vmem>>, vector<256x32xf32>,
    %c0_152 = arith.constant 0 : index
    %c0_153 = arith.constant 0 : index
    %112 = vector.load %arg11[%c0_152, %c0_153] : memref<256x288xf32, #tpu.memory_space<vmem>>, vector<256x288xf32>
    %c0_154 = arith.constant 0 : index
    %c0_155 = arith.constant 0 : index
    %113 = vector.load %arg7[%c0_154, %c0_155] : memref<288x32xf32, #tpu.memory_space<vmem>>, vector<288x32xf32>
    %cst_156 = arith.constant dense<0.000000e+00> : vector<256x32xf32>
    %114 = tpu.matmul %112, %113, %cst_156 {dimension_numbers = #tpu.dot_dimension_numbers<[1], [0], [0], [1], [0, 0, 1, 1], [], []>} : vector<256x288xf32>, vector<288x32xf32>, vector<256x32xf32> -> vector<256x32xf32>
    %c0_157 = arith.constant 0 : index
    %c0_158 = arith.constant 0 : index
    %115 = vector.load %arg2[%c0_157, %c0_158] : memref<64x256xf32, #tpu.memory_space<vmem>>, vector<64x256xf32>
    %cst_159 = arith.constant dense<0.000000e+00> : vector<64x32xf32>
    %116 = tpu.matmul %115, %114, %cst_159 {dimension_numbers = #tpu.dot_dimension_numbers<[1], [0], [0], [1], [0, 0, 1, 1], [], []>} : vector<64x256xf32>, vector<256x32xf32>, vector<64x32xf32> -> vector<64x32xf32>
    %c0_160 = arith.constant 0 : index
    %c0_161 = arith.constant 0 : index
    %117 = vector.load %arg8[%c0_160, %c0_161] : memref<1x32xf32, #tpu.memory_space<vmem>>, vector<1x32xf32>
    %118 = vector.broadcast %117 : vector<1x32xf32> to vector<64x32xf32>
    %119 = arith.addf %116, %118 : vector<64x32xf32>
    %cst_162 = arith.constant 0.000000e+00 : f32
    %120 = vector.broadcast %cst_162 : f32 to vector<64x32xf32>
    %121 = arith.maximumf %119, %120 : vector<64x32xf32>
    %c0_163 = arith.constant 0 : index
    %c0_164 = arith.constant 0 : index
    %c0_165 = arith.constant 0 : index
    %122 = vector.load %arg9[%c0_163, %c0_164, %c0_165] : memref<1x64x32xf32, #tpu.memory_space<vmem>>, vector<1x64x32xf32>
    %123 = vector.shape_cast %122 : vector<1x64x32xf32> to vector<64x32xf32>
    %124 = vector.shape_cast %121 : vector<64x32xf32> to vector<1x64x32xf32>
    tpu.vector_store %arg9[%c0_163, %c0_164, %c0_165], %124 {strides = array<i32>} : memref<1x64x32xf32, #tpu.memory_space<vmem>>, vector<1x64x32xf32>,
    return
  }
  func.func @transform_0(%arg0: i32) -> (i32, i32, i32, i32) {
    %c0_i32 = arith.constant 0 : i32
    %c0_i32_0 = arith.constant 0 : i32
    %c0_i32_1 = arith.constant 0 : i32
    %c0_i32_2 = arith.constant 0 : i32
    return %arg0, %c0_i32, %c0_i32_0, %c0_i32_1 : i32, i32, i32, i32
  }
  func.func @transform_1(%arg0: i32) -> (i32, i32) {
    %c0_i32 = arith.constant 0 : i32
    %c0_i32_0 = arith.constant 0 : i32
    %c0_i32_1 = arith.constant 0 : i32
    return %c0_i32, %c0_i32_0 : i32, i32
  }
  func.func @transform_2(%arg0: i32) -> (i32, i32) {
    %c0_i32 = arith.constant 0 : i32
    %c0_i32_0 = arith.constant 0 : i32
    %c0_i32_1 = arith.constant 0 : i32
    return %c0_i32, %c0_i32_0 : i32, i32
  }
  func.func @transform_3(%arg0: i32) -> (i32, i32) {
    %c0_i32 = arith.constant 0 : i32
    %c0_i32_0 = arith.constant 0 : i32
    %c0_i32_1 = arith.constant 0 : i32
    return %c0_i32, %c0_i32_0 : i32, i32
  }
  func.func @transform_4(%arg0: i32) -> (i32, i32) {
    %c0_i32 = arith.constant 0 : i32
    %c0_i32_0 = arith.constant 0 : i32
    %c0_i32_1 = arith.constant 0 : i32
    return %c0_i32, %c0_i32_0 : i32, i32
  }
  func.func @transform_5(%arg0: i32) -> (i32, i32) {
    %c0_i32 = arith.constant 0 : i32
    %c0_i32_0 = arith.constant 0 : i32
    %c0_i32_1 = arith.constant 0 : i32
    return %c0_i32, %c0_i32_0 : i32, i32
  }
  func.func @transform_6(%arg0: i32) -> (i32, i32) {
    %c0_i32 = arith.constant 0 : i32
    %c0_i32_0 = arith.constant 0 : i32
    %c0_i32_1 = arith.constant 0 : i32
    return %c0_i32, %c0_i32_0 : i32, i32
  }
  func.func @transform_7(%arg0: i32) -> (i32, i32) {
    %c0_i32 = arith.constant 0 : i32
    %c0_i32_0 = arith.constant 0 : i32
    %c0_i32_1 = arith.constant 0 : i32
    return %c0_i32, %c0_i32_0 : i32, i32
  }
  func.func @transform_8(%arg0: i32) -> (i32, i32, i32) {
    %c0_i32 = arith.constant 0 : i32
    %c0_i32_0 = arith.constant 0 : i32
    %c0_i32_1 = arith.constant 0 : i32
    return %arg0, %c0_i32, %c0_i32_0 : i32, i32, i32
  }
}

module attributes {stable_mosaic.version = 11 : i64} {
  func.func @_dense_stage_kernel(%arg0: memref<2x2048xf32, #tpu.memory_space<vmem>>, %arg1: memref<2048x32xf32, #tpu.memory_space<vmem>>, %arg2: memref<1x32xf32, #tpu.memory_space<vmem>>, %arg3: memref<1x32xf32, #tpu.memory_space<vmem>>, %arg4: memref<1x32xf32, #tpu.memory_space<vmem>>, %arg5: memref<32x32xf32, #tpu.memory_space<vmem>>, %arg6: memref<1x32xf32, #tpu.memory_space<vmem>>, %arg7: memref<1x32xf32, #tpu.memory_space<vmem>>, %arg8: memref<1x32xf32, #tpu.memory_space<vmem>>, %arg9: memref<32x16xf32, #tpu.memory_space<vmem>>, %arg10: memref<1x16xf32, #tpu.memory_space<vmem>>, %arg11: memref<2x8xf32, #tpu.memory_space<vmem>>, %arg12: memref<2x8xf32, #tpu.memory_space<vmem>>) attributes {dimension_semantics = [], scalar_prefetch = 0 : i64, scratch_operands = 0 : i64, tpu.core_type = #tpu.core_type<tc>} {
    %c0 = arith.constant 0 : index
    %c0_0 = arith.constant 0 : index
    %0 = vector.load %arg0[%c0, %c0_0] : memref<2x2048xf32, #tpu.memory_space<vmem>>, vector<2x2048xf32>
    %c0_1 = arith.constant 0 : index
    %c0_2 = arith.constant 0 : index
    %1 = vector.load %arg1[%c0_1, %c0_2] : memref<2048x32xf32, #tpu.memory_space<vmem>>, vector<2048x32xf32>
    %cst = arith.constant dense<0.000000e+00> : vector<2x32xf32>
    %2 = tpu.matmul %0, %1, %cst {dimension_numbers = #tpu.dot_dimension_numbers<[1], [0], [0], [1], [0, 0, 1, 1], [], []>} : vector<2x2048xf32>, vector<2048x32xf32>, vector<2x32xf32> -> vector<2x32xf32>
    %c0_3 = arith.constant 0 : index
    %c0_4 = arith.constant 0 : index
    %3 = vector.load %arg2[%c0_3, %c0_4] : memref<1x32xf32, #tpu.memory_space<vmem>>, vector<1x32xf32>
    %4 = vector.broadcast %3 : vector<1x32xf32> to vector<2x32xf32>
    %5 = arith.addf %2, %4 : vector<2x32xf32>
    %cst_5 = arith.constant dense<0.000000e+00> : vector<32xf32>
    %6 = vector.multi_reduction <add>, %5, %cst_5 [0] : vector<2x32xf32> to vector<32xf32>
    %7 = vector.shape_cast %6 : vector<32xf32> to vector<1x32xf32>
    %cst_6 = arith.constant 2.000000e+00 : f32
    %8 = vector.broadcast %cst_6 : f32 to vector<1x32xf32>
    %9 = arith.divf %7, %8 : vector<1x32xf32>
    %10 = vector.broadcast %9 : vector<1x32xf32> to vector<2x32xf32>
    %11 = arith.subf %5, %10 : vector<2x32xf32>
    %12 = arith.mulf %11, %11 : vector<2x32xf32>
    %cst_7 = arith.constant dense<0.000000e+00> : vector<32xf32>
    %13 = vector.multi_reduction <add>, %12, %cst_7 [0] : vector<2x32xf32> to vector<32xf32>
    %14 = vector.shape_cast %13 : vector<32xf32> to vector<1x32xf32>
    %cst_8 = arith.constant 2.000000e+00 : f32
    %15 = vector.broadcast %cst_8 : f32 to vector<1x32xf32>
    %16 = arith.divf %14, %15 : vector<1x32xf32>
    %17 = vector.broadcast %9 : vector<1x32xf32> to vector<2x32xf32>
    %18 = arith.subf %5, %17 : vector<2x32xf32>
    %cst_9 = arith.constant 9.99999974E-6 : f32
    %19 = vector.broadcast %cst_9 : f32 to vector<1x32xf32>
    %20 = arith.addf %16, %19 : vector<1x32xf32>
    %21 = math.rsqrt %20 : vector<1x32xf32>
    %22 = vector.broadcast %21 : vector<1x32xf32> to vector<2x32xf32>
    %23 = arith.mulf %18, %22 : vector<2x32xf32>
    %c0_10 = arith.constant 0 : index
    %c0_11 = arith.constant 0 : index
    %24 = vector.load %arg3[%c0_10, %c0_11] : memref<1x32xf32, #tpu.memory_space<vmem>>, vector<1x32xf32>
    %25 = vector.broadcast %24 : vector<1x32xf32> to vector<2x32xf32>
    %26 = arith.mulf %23, %25 : vector<2x32xf32>
    %c0_12 = arith.constant 0 : index
    %c0_13 = arith.constant 0 : index
    %27 = vector.load %arg4[%c0_12, %c0_13] : memref<1x32xf32, #tpu.memory_space<vmem>>, vector<1x32xf32>
    %28 = vector.broadcast %27 : vector<1x32xf32> to vector<2x32xf32>
    %29 = arith.addf %26, %28 : vector<2x32xf32>
    %cst_14 = arith.constant 0.000000e+00 : f32
    %30 = vector.broadcast %cst_14 : f32 to vector<2x32xf32>
    %31 = arith.maximumf %29, %30 : vector<2x32xf32>
    %c0_15 = arith.constant 0 : index
    %c0_16 = arith.constant 0 : index
    %32 = vector.load %arg5[%c0_15, %c0_16] : memref<32x32xf32, #tpu.memory_space<vmem>>, vector<32x32xf32>
    %cst_17 = arith.constant dense<0.000000e+00> : vector<2x32xf32>
    %33 = tpu.matmul %31, %32, %cst_17 {dimension_numbers = #tpu.dot_dimension_numbers<[1], [0], [0], [1], [0, 0, 1, 1], [], []>} : vector<2x32xf32>, vector<32x32xf32>, vector<2x32xf32> -> vector<2x32xf32>
    %c0_18 = arith.constant 0 : index
    %c0_19 = arith.constant 0 : index
    %34 = vector.load %arg6[%c0_18, %c0_19] : memref<1x32xf32, #tpu.memory_space<vmem>>, vector<1x32xf32>
    %35 = vector.broadcast %34 : vector<1x32xf32> to vector<2x32xf32>
    %36 = arith.addf %33, %35 : vector<2x32xf32>
    %cst_20 = arith.constant dense<0.000000e+00> : vector<32xf32>
    %37 = vector.multi_reduction <add>, %36, %cst_20 [0] : vector<2x32xf32> to vector<32xf32>
    %38 = vector.shape_cast %37 : vector<32xf32> to vector<1x32xf32>
    %cst_21 = arith.constant 2.000000e+00 : f32
    %39 = vector.broadcast %cst_21 : f32 to vector<1x32xf32>
    %40 = arith.divf %38, %39 : vector<1x32xf32>
    %41 = vector.broadcast %40 : vector<1x32xf32> to vector<2x32xf32>
    %42 = arith.subf %36, %41 : vector<2x32xf32>
    %43 = arith.mulf %42, %42 : vector<2x32xf32>
    %cst_22 = arith.constant dense<0.000000e+00> : vector<32xf32>
    %44 = vector.multi_reduction <add>, %43, %cst_22 [0] : vector<2x32xf32> to vector<32xf32>
    %45 = vector.shape_cast %44 : vector<32xf32> to vector<1x32xf32>
    %cst_23 = arith.constant 2.000000e+00 : f32
    %46 = vector.broadcast %cst_23 : f32 to vector<1x32xf32>
    %47 = arith.divf %45, %46 : vector<1x32xf32>
    %48 = vector.broadcast %40 : vector<1x32xf32> to vector<2x32xf32>
    %49 = arith.subf %36, %48 : vector<2x32xf32>
    %cst_24 = arith.constant 9.99999974E-6 : f32
    %50 = vector.broadcast %cst_24 : f32 to vector<1x32xf32>
    %51 = arith.addf %47, %50 : vector<1x32xf32>
    %52 = math.rsqrt %51 : vector<1x32xf32>
    %53 = vector.broadcast %52 : vector<1x32xf32> to vector<2x32xf32>
    %54 = arith.mulf %49, %53 : vector<2x32xf32>
    %c0_25 = arith.constant 0 : index
    %c0_26 = arith.constant 0 : index
    %55 = vector.load %arg7[%c0_25, %c0_26] : memref<1x32xf32, #tpu.memory_space<vmem>>, vector<1x32xf32>
    %56 = vector.broadcast %55 : vector<1x32xf32> to vector<2x32xf32>
    %57 = arith.mulf %54, %56 : vector<2x32xf32>
    %c0_27 = arith.constant 0 : index
    %c0_28 = arith.constant 0 : index
    %58 = vector.load %arg8[%c0_27, %c0_28] : memref<1x32xf32, #tpu.memory_space<vmem>>, vector<1x32xf32>
    %59 = vector.broadcast %58 : vector<1x32xf32> to vector<2x32xf32>
    %60 = arith.addf %57, %59 : vector<2x32xf32>
    %cst_29 = arith.constant 0.000000e+00 : f32
    %61 = vector.broadcast %cst_29 : f32 to vector<2x32xf32>
    %62 = arith.maximumf %60, %61 : vector<2x32xf32>
    %c0_30 = arith.constant 0 : index
    %c0_31 = arith.constant 0 : index
    %63 = vector.load %arg9[%c0_30, %c0_31] : memref<32x16xf32, #tpu.memory_space<vmem>>, vector<32x16xf32>
    %cst_32 = arith.constant dense<0.000000e+00> : vector<2x16xf32>
    %64 = tpu.matmul %62, %63, %cst_32 {dimension_numbers = #tpu.dot_dimension_numbers<[1], [0], [0], [1], [0, 0, 1, 1], [], []>} : vector<2x32xf32>, vector<32x16xf32>, vector<2x16xf32> -> vector<2x16xf32>
    %c0_33 = arith.constant 0 : index
    %c0_34 = arith.constant 0 : index
    %65 = vector.load %arg10[%c0_33, %c0_34] : memref<1x16xf32, #tpu.memory_space<vmem>>, vector<1x16xf32>
    %66 = vector.broadcast %65 : vector<1x16xf32> to vector<2x16xf32>
    %67 = arith.addf %64, %66 : vector<2x16xf32>
    %68 = vector.extract_strided_slice %67 {offsets = [0, 0], sizes = [2, 8], strides = [1, 1]} : vector<2x16xf32> to vector<2x8xf32>
    %c0_35 = arith.constant 0 : index
    %c0_36 = arith.constant 0 : index
    %69 = vector.load %arg11[%c0_35, %c0_36] : memref<2x8xf32, #tpu.memory_space<vmem>>, vector<2x8xf32>
    tpu.vector_store %arg11[%c0_35, %c0_36], %68 {strides = array<i32>} : memref<2x8xf32, #tpu.memory_space<vmem>>, vector<2x8xf32>,
    %70 = vector.extract_strided_slice %67 {offsets = [0, 8], sizes = [2, 8], strides = [1, 1]} : vector<2x16xf32> to vector<2x8xf32>
    %c0_37 = arith.constant 0 : index
    %c0_38 = arith.constant 0 : index
    %71 = vector.load %arg12[%c0_37, %c0_38] : memref<2x8xf32, #tpu.memory_space<vmem>>, vector<2x8xf32>
    tpu.vector_store %arg12[%c0_37, %c0_38], %70 {strides = array<i32>} : memref<2x8xf32, #tpu.memory_space<vmem>>, vector<2x8xf32>,
    return
  }
}

</mosaic_0001>

<llo_original>
// kernel: encoder_forward.3
$region0: #{encoder_forward.3}
  #allocation0 [shape = 'u32[]', space=smem, size = 0x4, offset = 0x4, fixed_abs, tag = 'smem constant byte address 0x4 - core index']
  #allocation1 [shape = 'u32[72,128]{1,0:T(1,128)}', space=vmem, size = 0x9000, scoped, tag = 'internal scratch']
  %s0 = inlined_call_operand.vmem [shape: f32[2,2048], index: 0, kind: input, shape index: {}]
  %s1 = inlined_call_operand.vmem [shape: f32[2048,32], index: 1, kind: input, shape index: {}]
  %s2 = inlined_call_operand.vmem [shape: f32[1,32], index: 2, kind: input, shape index: {}]
  %s3 = inlined_call_operand.vmem [shape: f32[1,32], index: 3, kind: input, shape index: {}]
  %s4 = inlined_call_operand.vmem [shape: f32[1,32], index: 4, kind: input, shape index: {}]
  %s5 = inlined_call_operand.vmem [shape: f32[32,32], index: 5, kind: input, shape index: {}]
  %s6 = inlined_call_operand.vmem [shape: f32[1,32], index: 6, kind: input, shape index: {}]
  %s7 = inlined_call_operand.vmem [shape: f32[1,32], index: 7, kind: input, shape index: {}]
  %s8 = inlined_call_operand.vmem [shape: f32[1,32], index: 8, kind: input, shape index: {}]
  %s9 = inlined_call_operand.vmem [shape: f32[32,16], index: 9, kind: input, shape index: {}]
  %s10 = inlined_call_operand.vmem [shape: f32[1,16], index: 10, kind: input, shape index: {}]
  %s11 = inlined_call_operand.hbm [shape: f32[2,8], index: 11, kind: output, shape index: {0}]
  %s12 = inlined_call_operand.hbm [shape: f32[2,8], index: 12, kind: output, shape index: {1}]
  %13 = xla_tuple %s11, %s12
  %s14 = sld [smem:[#allocation0]]
  $region62: #{encoder_forward.3} parent=0
    _
  %s16 = ssub.s32 1, %s14
  %s17 = scalar_select 0, %s16, %s14
  $region1: #{encoder_forward.3} parent=0
    #allocation2 [shape = 'u8[1024]{0}', space=vmem, size = 0x400, scoped, tag = 'output window, operand 0, single buffered']
    #allocation3 [shape = 's32[1]{0}', space=sflag, size = 0x4, scoped, tag = 'scoped memory for encoder_forward.3']
    #allocation4 [shape = 'u8[1024]{0}', space=vmem, size = 0x400, scoped, tag = 'output window, operand 1, single buffered']
    #allocation5 [shape = 's32[1]{0}', space=sflag, size = 0x4, scoped, tag = 'scoped memory for encoder_forward.3']
    %18 = vsyncpa [#allocation3], 0
    %19 = vsyncpa [#allocation5], 0
    // Predicated region
    $region2: #{encoder_forward.3} parent=1 // pred_check
      _
    $region3: #{encoder_forward.3} parent=1 // pred_check_branch
      %21 = sbr.rel (0) target = $region5
    $region4: #{encoder_forward.3} parent=1 // pred_region
      _
    $region5: #{encoder_forward.3} parent=1 // pred_fallthru
      _
    // Predicated region
    $region6: #{encoder_forward.3} parent=1 // pred_check
      _
    $region7: #{encoder_forward.3} parent=1 // pred_check_branch
      %23 = sbr.rel (0) target = $region9
    $region8: #{encoder_forward.3} parent=1 // pred_region
      _
    $region9: #{encoder_forward.3} parent=1 // pred_fallthru
      _
    // Predicated region
    $region10: #{encoder_forward.3} parent=1 // pred_check
      _
    $region11: #{encoder_forward.3} parent=1 // pred_check_branch
      %25 = sbr.rel (0) target = $region13
    $region12: #{encoder_forward.3} parent=1 // pred_region
      _
    $region13: #{encoder_forward.3} parent=1 // pred_fallthru
      _
    // Predicated region
    $region14: #{encoder_forward.3} parent=1 // pred_check
      _
    $region15: #{encoder_forward.3} parent=1 // pred_check_branch
      %27 = sbr.rel (0) target = $region17
    $region16: #{encoder_forward.3} parent=1 // pred_region
      _
    $region17: #{encoder_forward.3} parent=1 // pred_fallthru
      _
    // Predicated region
    $region18: #{encoder_forward.3} parent=1 // pred_check
      _
    $region19: #{encoder_forward.3} parent=1 // pred_check_branch
      %29 = sbr.rel (0) target = $region21
    $region20: #{encoder_forward.3} parent=1 // pred_region
      _
    $region21: #{encoder_forward.3} parent=1 // pred_fallthru
      _
    // Predicated region
    $region22: #{encoder_forward.3} parent=1 // pred_check
      _
    $region23: #{encoder_forward.3} parent=1 // pred_check_branch
      %31 = sbr.rel (0) target = $region25
    $region24: #{encoder_forward.3} parent=1 // pred_region
      _
    $region25: #{encoder_forward.3} parent=1 // pred_fallthru
      _
    // Predicated region
    $region26: #{encoder_forward.3} parent=1 // pred_check
      _
    $region27: #{encoder_forward.3} parent=1 // pred_check_branch
      %33 = sbr.rel (0) target = $region29
    $region28: #{encoder_forward.3} parent=1 // pred_region
      _
    $region29: #{encoder_forward.3} parent=1 // pred_fallthru
      _
    // Predicated region
    $region30: #{encoder_forward.3} parent=1 // pred_check
      _
    $region31: #{encoder_forward.3} parent=1 // pred_check_branch
      %35 = sbr.rel (0) target = $region33
    $region32: #{encoder_forward.3} parent=1 // pred_region
      _
    $region33: #{encoder_forward.3} parent=1 // pred_fallthru
      _
    // Predicated region
    $region34: #{encoder_forward.3} parent=1 // pred_check
      _
    $region35: #{encoder_forward.3} parent=1 // pred_check_branch
      %37 = sbr.rel (0) target = $region37
    $region36: #{encoder_forward.3} parent=1 // pred_region
      _
    $region37: #{encoder_forward.3} parent=1 // pred_fallthru
      _
    // Predicated region
    $region38: #{encoder_forward.3} parent=1 // pred_check
      _
    $region39: #{encoder_forward.3} parent=1 // pred_check_branch
      %39 = sbr.rel (0) target = $region41
    $region40: #{encoder_forward.3} parent=1 // pred_region
      _
    $region41: #{encoder_forward.3} parent=1 // pred_fallthru
      _
    // Predicated region
    $region42: #{encoder_forward.3} parent=1 // pred_check
      _
    $region43: #{encoder_forward.3} parent=1 // pred_check_branch
      %41 = sbr.rel (0) target = $region45
    $region44: #{encoder_forward.3} parent=1 // pred_region
      _
    $region45: #{encoder_forward.3} parent=1 // pred_fallthru
      _
    %v42 = vld [vmem:[%s0] sm:$0xff]
    %v43 = vld [vmem:[%s0 + $0x8] sm:$0xff]
    %v44 = vld [vmem:[%s0 + $0x10] sm:$0xff]
    %v45 = vld [vmem:[%s0 + $0x18] sm:$0xff]
    %v46 = vld [vmem:[%s1] sm:$0xff]
    %v47 = vld [vmem:[%s1 + $0x8] sm:$0xff]
    %v48 = vld [vmem:[%s1 + $0x10] sm:$0xff]
    %v49 = vld [vmem:[%s1 + $0x18] sm:$0xff]
    %v50 = vld [vmem:[%s1 + $0x20] sm:$0xff]
    %v51 = vld [vmem:[%s1 + $0x28] sm:$0xff]
    %v52 = vld [vmem:[%s1 + $0x30] sm:$0xff]
    %v53 = vld [vmem:[%s1 + $0x38] sm:$0xff]
    %v54 = vld [vmem:[%s1 + $0x40] sm:$0xff]
    %v55 = vld [vmem:[%s1 + $0x48] sm:$0xff]
    %v56 = vld [vmem:[%s1 + $0x50] sm:$0xff]
    %v57 = vld [vmem:[%s1 + $0x58] sm:$0xff]
    %v58 = vld [vmem:[%s1 + $0x60] sm:$0xff]
    %v59 = vld [vmem:[%s1 + $0x68] sm:$0xff]
    %v60 = vld [vmem:[%s1 + $0x70] sm:$0xff]
    %v61 = vld [vmem:[%s1 + $0x78] sm:$0xff]
    %v62 = vld [vmem:[%s1 + $0x80] sm:$0xff]
    %v63 = vld [vmem:[%s1 + $0x88] sm:$0xff]
    %v64 = vld [vmem:[%s1 + $0x90] sm:$0xff]
    %v65 = vld [vmem:[%s1 + $0x98] sm:$0xff]
    %v66 = vld [vmem:[%s1 + $0xa0] sm:$0xff]
    %v67 = vld [vmem:[%s1 + $0xa8] sm:$0xff]
    %v68 = vld [vmem:[%s1 + $0xb0] sm:$0xff]
    %v69 = vld [vmem:[%s1 + $0xb8] sm:$0xff]
    %v70 = vld [vmem:[%s1 + $0xc0] sm:$0xff]
    %v71 = vld [vmem:[%s1 + $0xc8] sm:$0xff]
    %v72 = vld [vmem:[%s1 + $0xd0] sm:$0xff]
    %v73 = vld [vmem:[%s1 + $0xd8] sm:$0xff]
    %v74 = vld [vmem:[%s1 + $0xe0] sm:$0xff]
    %v75 = vld [vmem:[%s1 + $0xe8] sm:$0xff]
    %v76 = vld [vmem:[%s1 + $0xf0] sm:$0xff]
    %v77 = vld [vmem:[%s1 + $0xf8] sm:$0xff]
    %v78 = vld [vmem:[%s1 + $0x100] sm:$0xff]
    %v79 = vld [vmem:[%s1 + $0x108] sm:$0xff]
    %v80 = vld [vmem:[%s1 + $0x110] sm:$0xff]
    %v81 = vld [vmem:[%s1 + $0x118] sm:$0xff]
    %v82 = vld [vmem:[%s1 + $0x120] sm:$0xff]
    %v83 = vld [vmem:[%s1 + $0x128] sm:$0xff]
    %v84 = vld [vmem:[%s1 + $0x130] sm:$0xff]
    %v85 = vld [vmem:[%s1 + $0x138] sm:$0xff]
    %v86 = vld [vmem:[%s1 + $0x140] sm:$0xff]
    %v87 = vld [vmem:[%s1 + $0x148] sm:$0xff]
    %v88 = vld [vmem:[%s1 + $0x150] sm:$0xff]
    %v89 = vld [vmem:[%s1 + $0x158] sm:$0xff]
    %v90 = vld [vmem:[%s1 + $0x160] sm:$0xff]
    %v91 = vld [vmem:[%s1 + $0x168] sm:$0xff]
    %v92 = vld [vmem:[%s1 + $0x170] sm:$0xff]
    %v93 = vld [vmem:[%s1 + $0x178] sm:$0xff]
    %v94 = vld [vmem:[%s1 + $0x180] sm:$0xff]
    %v95 = vld [vmem:[%s1 + $0x188] sm:$0xff]
    %v96 = vld [vmem:[%s1 + $0x190] sm:$0xff]
    %v97 = vld [vmem:[%s1 + $0x198] sm:$0xff]
    %v98 = vld [vmem:[%s1 + $0x1a0] sm:$0xff]
    %v99 = vld [vmem:[%s1 + $0x1a8] sm:$0xff]
    %v100 = vld [vmem:[%s1 + $0x1b0] sm:$0xff]
    %v101 = vld [vmem:[%s1 + $0x1b8] sm:$0xff]
    %v102 = vld [vmem:[%s1 + $0x1c0] sm:$0xff]
    %v103 = vld [vmem:[%s1 + $0x1c8] sm:$0xff]
    %v104 = vld [vmem:[%s1 + $0x1d0] sm:$0xff]
    %v105 = vld [vmem:[%s1 + $0x1d8] sm:$0xff]
    %v106 = vld [vmem:[%s1 + $0x1e0] sm:$0xff]
    %v107 = vld [vmem:[%s1 + $0x1e8] sm:$0xff]
    %v108 = vld [vmem:[%s1 + $0x1f0] sm:$0xff]
    %v109 = vld [vmem:[%s1 + $0x1f8] sm:$0xff]
    %v110 = vld [vmem:[%s1 + $0x200] sm:$0xff]
    %v111 = vld [vmem:[%s1 + $0x208] sm:$0xff]
    %v112 = vld [vmem:[%s1 + $0x210] sm:$0xff]
    %v113 = vld [vmem:[%s1 + $0x218] sm:$0xff]
    %v114 = vld [vmem:[%s1 + $0x220] sm:$0xff]
    %v115 = vld [vmem:[%s1 + $0x228] sm:$0xff]
    %v116 = vld [vmem:[%s1 + $0x230] sm:$0xff]
    %v117 = vld [vmem:[%s1 + $0x238] sm:$0xff]
    %v118 = vld [vmem:[%s1 + $0x240] sm:$0xff]
    %v119 = vld [vmem:[%s1 + $0x248] sm:$0xff]
    %v120 = vld [vmem:[%s1 + $0x250] sm:$0xff]
    %v121 = vld [vmem:[%s1 + $0x258] sm:$0xff]
    %v122 = vld [vmem:[%s1 + $0x260] sm:$0xff]
    %v123 = vld [vmem:[%s1 + $0x268] sm:$0xff]
    %v124 = vld [vmem:[%s1 + $0x270] sm:$0xff]
    %v125 = vld [vmem:[%s1 + $0x278] sm:$0xff]
    %v126 = vld [vmem:[%s1 + $0x280] sm:$0xff]
    %v127 = vld [vmem:[%s1 + $0x288] sm:$0xff]
    %v128 = vld [vmem:[%s1 + $0x290] sm:$0xff]
    %v129 = vld [vmem:[%s1 + $0x298] sm:$0xff]
    %v130 = vld [vmem:[%s1 + $0x2a0] sm:$0xff]
    %v131 = vld [vmem:[%s1 + $0x2a8] sm:$0xff]
    %v132 = vld [vmem:[%s1 + $0x2b0] sm:$0xff]
    %v133 = vld [vmem:[%s1 + $0x2b8] sm:$0xff]
    %v134 = vld [vmem:[%s1 + $0x2c0] sm:$0xff]
    %v135 = vld [vmem:[%s1 + $0x2c8] sm:$0xff]
    %v136 = vld [vmem:[%s1 + $0x2d0] sm:$0xff]
    %v137 = vld [vmem:[%s1 + $0x2d8] sm:$0xff]
    %v138 = vld [vmem:[%s1 + $0x2e0] sm:$0xff]
    %v139 = vld [vmem:[%s1 + $0x2e8] sm:$0xff]
    %v140 = vld [vmem:[%s1 + $0x2f0] sm:$0xff]
    %v141 = vld [vmem:[%s1 + $0x2f8] sm:$0xff]
    %v142 = vld [vmem:[%s1 + $0x300] sm:$0xff]
    %v143 = vld [vmem:[%s1 + $0x308] sm:$0xff]
    %v144 = vld [vmem:[%s1 + $0x310] sm:$0xff]
    %v145 = vld [vmem:[%s1 + $0x318] sm:$0xff]
    %v146 = vld [vmem:[%s1 + $0x320] sm:$0xff]
    %v147 = vld [vmem:[%s1 + $0x328] sm:$0xff]
    %v148 = vld [vmem:[%s1 + $0x330] sm:$0xff]
    %v149 = vld [vmem:[%s1 + $0x338] sm:$0xff]
    %v150 = vld [vmem:[%s1 + $0x340] sm:$0xff]
    %v151 = vld [vmem:[%s1 + $0x348] sm:$0xff]
    %v152 = vld [vmem:[%s1 + $0x350] sm:$0xff]
    %v153 = vld [vmem:[%s1 + $0x358] sm:$0xff]
    %v154 = vld [vmem:[%s1 + $0x360] sm:$0xff]
    %v155 = vld [vmem:[%s1 + $0x368] sm:$0xff]
    %v156 = vld [vmem:[%s1 + $0x370] sm:$0xff]
    %v157 = vld [vmem:[%s1 + $0x378] sm:$0xff]
    %v158 = vld [vmem:[%s1 + $0x380] sm:$0xff]
    %v159 = vld [vmem:[%s1 + $0x388] sm:$0xff]
    %v160 = vld [vmem:[%s1 + $0x390] sm:$0xff]
    %v161 = vld [vmem:[%s1 + $0x398] sm:$0xff]
    %v162 = vld [vmem:[%s1 + $0x3a0] sm:$0xff]
    %v163 = vld [vmem:[%s1 + $0x3a8] sm:$0xff]
    %v164 = vld [vmem:[%s1 + $0x3b0] sm:$0xff]
    %v165 = vld [vmem:[%s1 + $0x3b8] sm:$0xff]
    %v166 = vld [vmem:[%s1 + $0x3c0] sm:$0xff]
    %v167 = vld [vmem:[%s1 + $0x3c8] sm:$0xff]
    %v168 = vld [vmem:[%s1 + $0x3d0] sm:$0xff]
    %v169 = vld [vmem:[%s1 + $0x3d8] sm:$0xff]
    %v170 = vld [vmem:[%s1 + $0x3e0] sm:$0xff]
    %v171 = vld [vmem:[%s1 + $0x3e8] sm:$0xff]
    %v172 = vld [vmem:[%s1 + $0x3f0] sm:$0xff]
    %v173 = vld [vmem:[%s1 + $0x3f8] sm:$0xff]
    %v174 = vld [vmem:[%s1 + $0x400] sm:$0xff]
    %v175 = vld [vmem:[%s1 + $0x408] sm:$0xff]
    %v176 = vld [vmem:[%s1 + $0x410] sm:$0xff]
    %v177 = vld [vmem:[%s1 + $0x418] sm:$0xff]
    %v178 = vld [vmem:[%s1 + $0x420] sm:$0xff]
    %v179 = vld [vmem:[%s1 + $0x428] sm:$0xff]
    %v180 = vld [vmem:[%s1 + $0x430] sm:$0xff]
    %v181 = vld [vmem:[%s1 + $0x438] sm:$0xff]
    %v182 = vld [vmem:[%s1 + $0x440] sm:$0xff]
    %v183 = vld [vmem:[%s1 + $0x448] sm:$0xff]
    %v184 = vld [vmem:[%s1 + $0x450] sm:$0xff]
    %v185 = vld [vmem:[%s1 + $0x458] sm:$0xff]
    %v186 = vld [vmem:[%s1 + $0x460] sm:$0xff]
    %v187 = vld [vmem:[%s1 + $0x468] sm:$0xff]
    %v188 = vld [vmem:[%s1 + $0x470] sm:$0xff]
    %v189 = vld [vmem:[%s1 + $0x478] sm:$0xff]
    %v190 = vld [vmem:[%s1 + $0x480] sm:$0xff]
    %v191 = vld [vmem:[%s1 + $0x488] sm:$0xff]
    %v192 = vld [vmem:[%s1 + $0x490] sm:$0xff]
    %v193 = vld [vmem:[%s1 + $0x498] sm:$0xff]
    %v194 = vld [vmem:[%s1 + $0x4a0] sm:$0xff]
    %v195 = vld [vmem:[%s1 + $0x4a8] sm:$0xff]
    %v196 = vld [vmem:[%s1 + $0x4b0] sm:$0xff]
    %v197 = vld [vmem:[%s1 + $0x4b8] sm:$0xff]
    %v198 = vld [vmem:[%s1 + $0x4c0] sm:$0xff]
    %v199 = vld [vmem:[%s1 + $0x4c8] sm:$0xff]
    %v200 = vld [vmem:[%s1 + $0x4d0] sm:$0xff]
    %v201 = vld [vmem:[%s1 + $0x4d8] sm:$0xff]
    %v202 = vld [vmem:[%s1 + $0x4e0] sm:$0xff]
    %v203 = vld [vmem:[%s1 + $0x4e8] sm:$0xff]
    %v204 = vld [vmem:[%s1 + $0x4f0] sm:$0xff]
    %v205 = vld [vmem:[%s1 + $0x4f8] sm:$0xff]
    %v206 = vld [vmem:[%s1 + $0x500] sm:$0xff]
    %v207 = vld [vmem:[%s1 + $0x508] sm:$0xff]
    %v208 = vld [vmem:[%s1 + $0x510] sm:$0xff]
    %v209 = vld [vmem:[%s1 + $0x518] sm:$0xff]
    %v210 = vld [vmem:[%s1 + $0x520] sm:$0xff]
    %v211 = vld [vmem:[%s1 + $0x528] sm:$0xff]
    %v212 = vld [vmem:[%s1 + $0x530] sm:$0xff]
    %v213 = vld [vmem:[%s1 + $0x538] sm:$0xff]
    %v214 = vld [vmem:[%s1 + $0x540] sm:$0xff]
    %v215 = vld [vmem:[%s1 + $0x548] sm:$0xff]
    %v216 = vld [vmem:[%s1 + $0x550] sm:$0xff]
    %v217 = vld [vmem:[%s1 + $0x558] sm:$0xff]
    %v218 = vld [vmem:[%s1 + $0x560] sm:$0xff]
    %v219 = vld [vmem:[%s1 + $0x568] sm:$0xff]
    %v220 = vld [vmem:[%s1 + $0x570] sm:$0xff]
    %v221 = vld [vmem:[%s1 + $0x578] sm:$0xff]
    %v222 = vld [vmem:[%s1 + $0x580] sm:$0xff]
    %v223 = vld [vmem:[%s1 + $0x588] sm:$0xff]
    %v224 = vld [vmem:[%s1 + $0x590] sm:$0xff]
    %v225 = vld [vmem:[%s1 + $0x598] sm:$0xff]
    %v226 = vld [vmem:[%s1 + $0x5a0] sm:$0xff]
    %v227 = vld [vmem:[%s1 + $0x5a8] sm:$0xff]
    %v228 = vld [vmem:[%s1 + $0x5b0] sm:$0xff]
    %v229 = vld [vmem:[%s1 + $0x5b8] sm:$0xff]
    %v230 = vld [vmem:[%s1 + $0x5c0] sm:$0xff]
    %v231 = vld [vmem:[%s1 + $0x5c8] sm:$0xff]
    %v232 = vld [vmem:[%s1 + $0x5d0] sm:$0xff]
    %v233 = vld [vmem:[%s1 + $0x5d8] sm:$0xff]
    %v234 = vld [vmem:[%s1 + $0x5e0] sm:$0xff]
    %v235 = vld [vmem:[%s1 + $0x5e8] sm:$0xff]
    %v236 = vld [vmem:[%s1 + $0x5f0] sm:$0xff]
    %v237 = vld [vmem:[%s1 + $0x5f8] sm:$0xff]
    %v238 = vld [vmem:[%s1 + $0x600] sm:$0xff]
    %v239 = vld [vmem:[%s1 + $0x608] sm:$0xff]
    %v240 = vld [vmem:[%s1 + $0x610] sm:$0xff]
    %v241 = vld [vmem:[%s1 + $0x618] sm:$0xff]
    %v242 = vld [vmem:[%s1 + $0x620] sm:$0xff]
    %v243 = vld [vmem:[%s1 + $0x628] sm:$0xff]
    %v244 = vld [vmem:[%s1 + $0x630] sm:$0xff]
    %v245 = vld [vmem:[%s1 + $0x638] sm:$0xff]
    %v246 = vld [vmem:[%s1 + $0x640] sm:$0xff]
    %v247 = vld [vmem:[%s1 + $0x648] sm:$0xff]
    %v248 = vld [vmem:[%s1 + $0x650] sm:$0xff]
    %v249 = vld [vmem:[%s1 + $0x658] sm:$0xff]
    %v250 = vld [vmem:[%s1 + $0x660] sm:$0xff]
    %v251 = vld [vmem:[%s1 + $0x668] sm:$0xff]
    %v252 = vld [vmem:[%s1 + $0x670] sm:$0xff]
    %v253 = vld [vmem:[%s1 + $0x678] sm:$0xff]
    %v254 = vld [vmem:[%s1 + $0x680] sm:$0xff]
    %v255 = vld [vmem:[%s1 + $0x688] sm:$0xff]
    %v256 = vld [vmem:[%s1 + $0x690] sm:$0xff]
    %v257 = vld [vmem:[%s1 + $0x698] sm:$0xff]
    %v258 = vld [vmem:[%s1 + $0x6a0] sm:$0xff]
    %v259 = vld [vmem:[%s1 + $0x6a8] sm:$0xff]
    %v260 = vld [vmem:[%s1 + $0x6b0] sm:$0xff]
    %v261 = vld [vmem:[%s1 + $0x6b8] sm:$0xff]
    %v262 = vld [vmem:[%s1 + $0x6c0] sm:$0xff]
    %v263 = vld [vmem:[%s1 + $0x6c8] sm:$0xff]
    %v264 = vld [vmem:[%s1 + $0x6d0] sm:$0xff]
    %v265 = vld [vmem:[%s1 + $0x6d8] sm:$0xff]
    %v266 = vld [vmem:[%s1 + $0x6e0] sm:$0xff]
    %v267 = vld [vmem:[%s1 + $0x6e8] sm:$0xff]
    %v268 = vld [vmem:[%s1 + $0x6f0] sm:$0xff]
    %v269 = vld [vmem:[%s1 + $0x6f8] sm:$0xff]
    %v270 = vld [vmem:[%s1 + $0x700] sm:$0xff]
    %v271 = vld [vmem:[%s1 + $0x708] sm:$0xff]
    %v272 = vld [vmem:[%s1 + $0x710] sm:$0xff]
    %v273 = vld [vmem:[%s1 + $0x718] sm:$0xff]
    %v274 = vld [vmem:[%s1 + $0x720] sm:$0xff]
    %v275 = vld [vmem:[%s1 + $0x728] sm:$0xff]
    %v276 = vld [vmem:[%s1 + $0x730] sm:$0xff]
    %v277 = vld [vmem:[%s1 + $0x738] sm:$0xff]
    %v278 = vld [vmem:[%s1 + $0x740] sm:$0xff]
    %v279 = vld [vmem:[%s1 + $0x748] sm:$0xff]
    %v280 = vld [vmem:[%s1 + $0x750] sm:$0xff]
    %v281 = vld [vmem:[%s1 + $0x758] sm:$0xff]
    %v282 = vld [vmem:[%s1 + $0x760] sm:$0xff]
    %v283 = vld [vmem:[%s1 + $0x768] sm:$0xff]
    %v284 = vld [vmem:[%s1 + $0x770] sm:$0xff]
    %v285 = vld [vmem:[%s1 + $0x778] sm:$0xff]
    %v286 = vld [vmem:[%s1 + $0x780] sm:$0xff]
    %v287 = vld [vmem:[%s1 + $0x788] sm:$0xff]
    %v288 = vld [vmem:[%s1 + $0x790] sm:$0xff]
    %v289 = vld [vmem:[%s1 + $0x798] sm:$0xff]
    %v290 = vld [vmem:[%s1 + $0x7a0] sm:$0xff]
    %v291 = vld [vmem:[%s1 + $0x7a8] sm:$0xff]
    %v292 = vld [vmem:[%s1 + $0x7b0] sm:$0xff]
    %v293 = vld [vmem:[%s1 + $0x7b8] sm:$0xff]
    %v294 = vld [vmem:[%s1 + $0x7c0] sm:$0xff]
    %v295 = vld [vmem:[%s1 + $0x7c8] sm:$0xff]
    %v296 = vld [vmem:[%s1 + $0x7d0] sm:$0xff]
    %v297 = vld [vmem:[%s1 + $0x7d8] sm:$0xff]
    %v298 = vld [vmem:[%s1 + $0x7e0] sm:$0xff]
    %v299 = vld [vmem:[%s1 + $0x7e8] sm:$0xff]
    %v300 = vld [vmem:[%s1 + $0x7f0] sm:$0xff]
    %v301 = vld [vmem:[%s1 + $0x7f8] sm:$0xff]
    %v302 = vld [vmem:[%s2] sm:$0x1]
    %v304 = vperm.slane %v302, 0
    %310 = vst [vmem:[#allocation1] ss:$4 sm:$0xff] %v42
    %s311 = scalar_lea.vmem [#allocation1], 32
    %312 = vst [vmem:[%s311] ss:$4 sm:$0xff] %v43
    %v313 = vld.sshfl [vmem:[#allocation1] sm:$0xff pattern:$0x73625140]
    %v314 = vld.sshfl [vmem:[#allocation1 + $0x8] sm:$0xff pattern:$0x73625140]
    %v315 = vld.sshfl [vmem:[#allocation1 + $0x10] sm:$0xff pattern:$0x73625140]
    %v316 = vld.sshfl [vmem:[#allocation1 + $0x18] sm:$0xff pattern:$0x73625140]
    %v317 = vld.sshfl [vmem:[#allocation1 + $0x20] sm:$0xff pattern:$0x73625140]
    %v318 = vld.sshfl [vmem:[#allocation1 + $0x28] sm:$0xff pattern:$0x73625140]
    %v319 = vld.sshfl [vmem:[#allocation1 + $0x30] sm:$0xff pattern:$0x73625140]
    %v320 = vld.sshfl [vmem:[#allocation1 + $0x38] sm:$0xff pattern:$0x73625140]
    %321 = vst [vmem:[#allocation1] ss:$4 sm:$0xff] %v44
    %322 = vst [vmem:[%s311] ss:$4 sm:$0xff] %v45
    %v323 = vld.sshfl [vmem:[#allocation1] sm:$0xff pattern:$0x73625140]
    %v324 = vld.sshfl [vmem:[#allocation1 + $0x8] sm:$0xff pattern:$0x73625140]
    %v325 = vld.sshfl [vmem:[#allocation1 + $0x10] sm:$0xff pattern:$0x73625140]
    %v326 = vld.sshfl [vmem:[#allocation1 + $0x18] sm:$0xff pattern:$0x73625140]
    %v327 = vld.sshfl [vmem:[#allocation1 + $0x20] sm:$0xff pattern:$0x73625140]
    %v328 = vld.sshfl [vmem:[#allocation1 + $0x28] sm:$0xff pattern:$0x73625140]
    %v329 = vld.sshfl [vmem:[#allocation1 + $0x30] sm:$0xff pattern:$0x73625140]
    %v330 = vld.sshfl [vmem:[#allocation1 + $0x38] sm:$0xff pattern:$0x73625140]
    %347 = vmatpush.msra.mxu0 %v61
    %348 = vmatpush.msra.mxu0 %v60
    %349 = vmatpush.msra.mxu0 %v59
    %350 = vmatpush.msra.mxu0 %v58
    %351 = vmatpush.msra.mxu0 %v57
    %352 = vmatpush.msra.mxu0 %v56
    %353 = vmatpush.msra.mxu0 %v55
    %354 = vmatpush.msra.mxu0 %v54
    %355 = vmatpush.msra.mxu0 %v53
    %356 = vmatpush.msra.mxu0 %v52
    %357 = vmatpush.msra.mxu0 %v51
    %358 = vmatpush.msra.mxu0 %v50
    %359 = vmatpush.msra.mxu0 %v49
    %360 = vmatpush.msra.mxu0 %v48
    %361 = vmatpush.msra.mxu0 %v47
    %362 = vmatpush.msra.mxu0 %v46
    %363 = vmatmul.f32.gmra.mxu0 %v313
    %v364 = vpop.f32.mrf.mxu0
    %v365 = vadd.f32 %v304, %v364
    %366 = vdwg.mxu0
    %367 = vmatpush.msra.mxu0 %v77
    %368 = vmatpush.msra.mxu0 %v76
    %369 = vmatpush.msra.mxu0 %v75
    %370 = vmatpush.msra.mxu0 %v74
    %371 = vmatpush.msra.mxu0 %v73
    %372 = vmatpush.msra.mxu0 %v72
    %373 = vmatpush.msra.mxu0 %v71
    %374 = vmatpush.msra.mxu0 %v70
    %375 = vmatpush.msra.mxu0 %v69
    %376 = vmatpush.msra.mxu0 %v68
    %377 = vmatpush.msra.mxu0 %v67
    %378 = vmatpush.msra.mxu0 %v66
    %379 = vmatpush.msra.mxu0 %v65
    %380 = vmatpush.msra.mxu0 %v64
    %381 = vmatpush.msra.mxu0 %v63
    %382 = vmatpush.msra.mxu0 %v62
    %383 = vmatmul.f32.gmra.mxu0 %v314
    %v384 = vpop.f32.mrf.mxu0
    %v385 = vadd.f32 %v365, %v384
    %386 = vdwg.mxu0
    %387 = vmatpush.msra.mxu0 %v93
    %388 = vmatpush.msra.mxu0 %v92
    %389 = vmatpush.msra.mxu0 %v91
    %390 = vmatpush.msra.mxu0 %v90
    %391 = vmatpush.msra.mxu0 %v89
    %392 = vmatpush.msra.mxu0 %v88
    %393 = vmatpush.msra.mxu0 %v87
    %394 = vmatpush.msra.mxu0 %v86
    %395 = vmatpush.msra.mxu0 %v85
    %396 = vmatpush.msra.mxu0 %v84
    %397 = vmatpush.msra.mxu0 %v83
    %398 = vmatpush.msra.mxu0 %v82
    %399 = vmatpush.msra.mxu0 %v81
    %400 = vmatpush.msra.mxu0 %v80
    %401 = vmatpush.msra.mxu0 %v79
    %402 = vmatpush.msra.mxu0 %v78
    %403 = vmatmul.f32.gmra.mxu0 %v315
    %v404 = vpop.f32.mrf.mxu0
    %v405 = vadd.f32 %v385, %v404
    %406 = vdwg.mxu0
    %407 = vmatpush.msra.mxu0 %v109
    %408 = vmatpush.msra.mxu0 %v108
    %409 = vmatpush.msra.mxu0 %v107
    %410 = vmatpush.msra.mxu0 %v106
    %411 = vmatpush.msra.mxu0 %v105
    %412 = vmatpush.msra.mxu0 %v104
    %413 = vmatpush.msra.mxu0 %v103
    %414 = vmatpush.msra.mxu0 %v102
    %415 = vmatpush.msra.mxu0 %v101
    %416 = vmatpush.msra.mxu0 %v100
    %417 = vmatpush.msra.mxu0 %v99
    %418 = vmatpush.msra.mxu0 %v98
    %419 = vmatpush.msra.mxu0 %v97
    %420 = vmatpush.msra.mxu0 %v96
    %421 = vmatpush.msra.mxu0 %v95
    %422 = vmatpush.msra.mxu0 %v94
    %423 = vmatmul.f32.gmra.mxu0 %v316
    %v424 = vpop.f32.mrf.mxu0
    %v425 = vadd.f32 %v405, %v424
    %426 = vdwg.mxu0
    %427 = vmatpush.msra.mxu0 %v125
    %428 = vmatpush.msra.mxu0 %v124
    %429 = vmatpush.msra.mxu0 %v123
    %430 = vmatpush.msra.mxu0 %v122
    %431 = vmatpush.msra.mxu0 %v121
    %432 = vmatpush.msra.mxu0 %v120
    %433 = vmatpush.msra.mxu0 %v119
    %434 = vmatpush.msra.mxu0 %v118
    %435 = vmatpush.msra.mxu0 %v117
    %436 = vmatpush.msra.mxu0 %v116
    %437 = vmatpush.msra.mxu0 %v115
    %438 = vmatpush.msra.mxu0 %v114
    %439 = vmatpush.msra.mxu0 %v113
    %440 = vmatpush.msra.mxu0 %v112
    %441 = vmatpush.msra.mxu0 %v111
    %442 = vmatpush.msra.mxu0 %v110
    %443 = vmatmul.f32.gmra.mxu0 %v317
    %v444 = vpop.f32.mrf.mxu0
    %v445 = vadd.f32 %v425, %v444
    %446 = vdwg.mxu0
    %447 = vmatpush.msra.mxu0 %v141
    %448 = vmatpush.msra.mxu0 %v140
    %449 = vmatpush.msra.mxu0 %v139
    %450 = vmatpush.msra.mxu0 %v138
    %451 = vmatpush.msra.mxu0 %v137
    %452 = vmatpush.msra.mxu0 %v136
    %453 = vmatpush.msra.mxu0 %v135
    %454 = vmatpush.msra.mxu0 %v134
    %455 = vmatpush.msra.mxu0 %v133
    %456 = vmatpush.msra.mxu0 %v132
    %457 = vmatpush.msra.mxu0 %v131
    %458 = vmatpush.msra.mxu0 %v130
    %459 = vmatpush.msra.mxu0 %v129
    %460 = vmatpush.msra.mxu0 %v128
    %461 = vmatpush.msra.mxu0 %v127
    %462 = vmatpush.msra.mxu0 %v126
    %463 = vmatmul.f32.gmra.mxu0 %v318
    %v464 = vpop.f32.mrf.mxu0
    %v465 = vadd.f32 %v445, %v464
    %466 = vdwg.mxu0
    %467 = vmatpush.msra.mxu0 %v157
    %468 = vmatpush.msra.mxu0 %v156
    %469 = vmatpush.msra.mxu0 %v155
    %470 = vmatpush.msra.mxu0 %v154
    %471 = vmatpush.msra.mxu0 %v153
    %472 = vmatpush.msra.mxu0 %v152
    %473 = vmatpush.msra.mxu0 %v151
    %474 = vmatpush.msra.mxu0 %v150
    %475 = vmatpush.msra.mxu0 %v149
    %476 = vmatpush.msra.mxu0 %v148
    %477 = vmatpush.msra.mxu0 %v147
    %478 = vmatpush.msra.mxu0 %v146
    %479 = vmatpush.msra.mxu0 %v145
    %480 = vmatpush.msra.mxu0 %v144
    %481 = vmatpush.msra.mxu0 %v143
    %482 = vmatpush.msra.mxu0 %v142
    %483 = vmatmul.f32.gmra.mxu0 %v319
    %v484 = vpop.f32.mrf.mxu0
    %v485 = vadd.f32 %v465, %v484
    %486 = vdwg.mxu0
    %487 = vmatpush.msra.mxu0 %v173
    %488 = vmatpush.msra.mxu0 %v172
    %489 = vmatpush.msra.mxu0 %v171
    %490 = vmatpush.msra.mxu0 %v170
    %491 = vmatpush.msra.mxu0 %v169
    %492 = vmatpush.msra.mxu0 %v168
    %493 = vmatpush.msra.mxu0 %v167
    %494 = vmatpush.msra.mxu0 %v166
    %495 = vmatpush.msra.mxu0 %v165
    %496 = vmatpush.msra.mxu0 %v164
    %497 = vmatpush.msra.mxu0 %v163
    %498 = vmatpush.msra.mxu0 %v162
    %499 = vmatpush.msra.mxu0 %v161
    %500 = vmatpush.msra.mxu0 %v160
    %501 = vmatpush.msra.mxu0 %v159
    %502 = vmatpush.msra.mxu0 %v158
    %503 = vmatmul.f32.gmra.mxu0 %v320
    %v504 = vpop.f32.mrf.mxu0
    %v505 = vadd.f32 %v485, %v504
    %506 = vdwg.mxu0
    %507 = vmatpush.msra.mxu0 %v189
    %508 = vmatpush.msra.mxu0 %v188
    %509 = vmatpush.msra.mxu0 %v187
    %510 = vmatpush.msra.mxu0 %v186
    %511 = vmatpush.msra.mxu0 %v185
    %512 = vmatpush.msra.mxu0 %v184
    %513 = vmatpush.msra.mxu0 %v183
    %514 = vmatpush.msra.mxu0 %v182
    %515 = vmatpush.msra.mxu0 %v181
    %516 = vmatpush.msra.mxu0 %v180
    %517 = vmatpush.msra.mxu0 %v179
    %518 = vmatpush.msra.mxu0 %v178
    %519 = vmatpush.msra.mxu0 %v177
    %520 = vmatpush.msra.mxu0 %v176
    %521 = vmatpush.msra.mxu0 %v175
    %522 = vmatpush.msra.mxu0 %v174
    %523 = vmatmul.f32.gmra.mxu0 %v323
    %v524 = vpop.f32.mrf.mxu0
    %v525 = vadd.f32 %v505, %v524
    %526 = vdwg.mxu0
    %527 = vmatpush.msra.mxu0 %v205
    %528 = vmatpush.msra.mxu0 %v204
    %529 = vmatpush.msra.mxu0 %v203
    %530 = vmatpush.msra.mxu0 %v202
    %531 = vmatpush.msra.mxu0 %v201
    %532 = vmatpush.msra.mxu0 %v200
    %533 = vmatpush.msra.mxu0 %v199
    %534 = vmatpush.msra.mxu0 %v198
    %535 = vmatpush.msra.mxu0 %v197
    %536 = vmatpush.msra.mxu0 %v196
    %537 = vmatpush.msra.mxu0 %v195
    %538 = vmatpush.msra.mxu0 %v194
    %539 = vmatpush.msra.mxu0 %v193
    %540 = vmatpush.msra.mxu0 %v192
    %541 = vmatpush.msra.mxu0 %v191
    %542 = vmatpush.msra.mxu0 %v190
    %543 = vmatmul.f32.gmra.mxu0 %v324
    %v544 = vpop.f32.mrf.mxu0
    %v545 = vadd.f32 %v525, %v544
    %546 = vdwg.mxu0
    %547 = vmatpush.msra.mxu0 %v221
    %548 = vmatpush.msra.mxu0 %v220
    %549 = vmatpush.msra.mxu0 %v219
    %550 = vmatpush.msra.mxu0 %v218
    %551 = vmatpush.msra.mxu0 %v217
    %552 = vmatpush.msra.mxu0 %v216
    %553 = vmatpush.msra.mxu0 %v215
    %554 = vmatpush.msra.mxu0 %v214
    %555 = vmatpush.msra.mxu0 %v213
    %556 = vmatpush.msra.mxu0 %v212
    %557 = vmatpush.msra.mxu0 %v211
    %558 = vmatpush.msra.mxu0 %v210
    %559 = vmatpush.msra.mxu0 %v209
    %560 = vmatpush.msra.mxu0 %v208
    %561 = vmatpush.msra.mxu0 %v207
    %562 = vmatpush.msra.mxu0 %v206
    %563 = vmatmul.f32.gmra.mxu0 %v325
    %v564 = vpop.f32.mrf.mxu0
    %v565 = vadd.f32 %v545, %v564
    %566 = vdwg.mxu0
    %567 = vmatpush.msra.mxu0 %v237
    %568 = vmatpush.msra.mxu0 %v236
    %569 = vmatpush.msra.mxu0 %v235
    %570 = vmatpush.msra.mxu0 %v234
    %571 = vmatpush.msra.mxu0 %v233
    %572 = vmatpush.msra.mxu0 %v232
    %573 = vmatpush.msra.mxu0 %v231
    %574 = vmatpush.msra.mxu0 %v230
    %575 = vmatpush.msra.mxu0 %v229
    %576 = vmatpush.msra.mxu0 %v228
    %577 = vmatpush.msra.mxu0 %v227
    %578 = vmatpush.msra.mxu0 %v226
    %579 = vmatpush.msra.mxu0 %v225
    %580 = vmatpush.msra.mxu0 %v224
    %581 = vmatpush.msra.mxu0 %v223
    %582 = vmatpush.msra.mxu0 %v222
    %583 = vmatmul.f32.gmra.mxu0 %v326
    %v584 = vpop.f32.mrf.mxu0
    %v585 = vadd.f32 %v565, %v584
    %586 = vdwg.mxu0
    %587 = vmatpush.msra.mxu0 %v253
    %588 = vmatpush.msra.mxu0 %v252
    %589 = vmatpush.msra.mxu0 %v251
    %590 = vmatpush.msra.mxu0 %v250
    %591 = vmatpush.msra.mxu0 %v249
    %592 = vmatpush.msra.mxu0 %v248
    %593 = vmatpush.msra.mxu0 %v247
    %594 = vmatpush.msra.mxu0 %v246
    %595 = vmatpush.msra.mxu0 %v245
    %596 = vmatpush.msra.mxu0 %v244
    %597 = vmatpush.msra.mxu0 %v243
    %598 = vmatpush.msra.mxu0 %v242
    %599 = vmatpush.msra.mxu0 %v241
    %600 = vmatpush.msra.mxu0 %v240
    %601 = vmatpush.msra.mxu0 %v239
    %602 = vmatpush.msra.mxu0 %v238
    %603 = vmatmul.f32.gmra.mxu0 %v327
    %v604 = vpop.f32.mrf.mxu0
    %v605 = vadd.f32 %v585, %v604
    %606 = vdwg.mxu0
    %607 = vmatpush.msra.mxu0 %v269
    %608 = vmatpush.msra.mxu0 %v268
    %609 = vmatpush.msra.mxu0 %v267
    %610 = vmatpush.msra.mxu0 %v266
    %611 = vmatpush.msra.mxu0 %v265
    %612 = vmatpush.msra.mxu0 %v264
    %613 = vmatpush.msra.mxu0 %v263
    %614 = vmatpush.msra.mxu0 %v262
    %615 = vmatpush.msra.mxu0 %v261
    %616 = vmatpush.msra.mxu0 %v260
    %617 = vmatpush.msra.mxu0 %v259
    %618 = vmatpush.msra.mxu0 %v258
    %619 = vmatpush.msra.mxu0 %v257
    %620 = vmatpush.msra.mxu0 %v256
    %621 = vmatpush.msra.mxu0 %v255
    %622 = vmatpush.msra.mxu0 %v254
    %623 = vmatmul.f32.gmra.mxu0 %v328
    %v624 = vpop.f32.mrf.mxu0
    %v625 = vadd.f32 %v605, %v624
    %626 = vdwg.mxu0
    %627 = vmatpush.msra.mxu0 %v285
    %628 = vmatpush.msra.mxu0 %v284
    %629 = vmatpush.msra.mxu0 %v283
    %630 = vmatpush.msra.mxu0 %v282
    %631 = vmatpush.msra.mxu0 %v281
    %632 = vmatpush.msra.mxu0 %v280
    %633 = vmatpush.msra.mxu0 %v279
    %634 = vmatpush.msra.mxu0 %v278
    %635 = vmatpush.msra.mxu0 %v277
    %636 = vmatpush.msra.mxu0 %v276
    %637 = vmatpush.msra.mxu0 %v275
    %638 = vmatpush.msra.mxu0 %v274
    %639 = vmatpush.msra.mxu0 %v273
    %640 = vmatpush.msra.mxu0 %v272
    %641 = vmatpush.msra.mxu0 %v271
    %642 = vmatpush.msra.mxu0 %v270
    %643 = vmatmul.f32.gmra.mxu0 %v329
    %v644 = vpop.f32.mrf.mxu0
    %v645 = vadd.f32 %v625, %v644
    %646 = vdwg.mxu0
    %647 = vmatpush.msra.mxu0 %v301
    %648 = vmatpush.msra.mxu0 %v300
    %649 = vmatpush.msra.mxu0 %v299
    %650 = vmatpush.msra.mxu0 %v298
    %651 = vmatpush.msra.mxu0 %v297
    %652 = vmatpush.msra.mxu0 %v296
    %653 = vmatpush.msra.mxu0 %v295
    %654 = vmatpush.msra.mxu0 %v294
    %655 = vmatpush.msra.mxu0 %v293
    %656 = vmatpush.msra.mxu0 %v292
    %657 = vmatpush.msra.mxu0 %v291
    %658 = vmatpush.msra.mxu0 %v290
    %659 = vmatpush.msra.mxu0 %v289
    %660 = vmatpush.msra.mxu0 %v288
    %661 = vmatpush.msra.mxu0 %v287
    %662 = vmatpush.msra.mxu0 %v286
    %663 = vmatmul.f32.gmra.mxu0 %v330
    %v664 = vpop.f32.mrf.mxu0
    %v665 = vadd.f32 %v645, %v664
    %666 = vdwg.mxu0
    %vm667 = vcmask 254976
    %v668 = vsel %vm667, %v665, 0.0
    %v669 = vrot.slane %v668, 4
    %v670 = vadd.f32 %v668, %v669
    %v671 = vrot.slane %v670, 2
    %v672 = vadd.f32 %v670, %v671
    %v673 = vrot.slane %v672, 1
    %v674 = vadd.f32 %v672, %v673
    %v675 = vrcp.pop 2.0
    %v676 = vmul.f32 2.0, %v675
    %v677 = vsub.f32 1.0, %v676
    %v678 = vmul.f32 %v675, %v677
    %v679 = vadd.f32 %v675, %v678
    %vm680 = vweird.f32 %v675
    %v681 = vsel %vm680, %v675, %v679
    %v682 = vmul.f32 %v674, %v681
    %v683 = vsub.f32 %v665, %v682
    %v684 = vmul.f32 %v683, %v683
    %v685 = vsel %vm667, %v684, 0.0
    %v686 = vrot.slane %v685, 4
    %v687 = vadd.f32 %v685, %v686
    %v688 = vrot.slane %v687, 2
    %v689 = vadd.f32 %v687, %v688
    %v690 = vrot.slane %v689, 1
    %v691 = vadd.f32 %v689, %v690
    %v692 = vmul.f32 %v691, %v681
    %v693 = vadd.f32 %v692, 1e-05
    %v694 = vrsqrt.pop %v693
    %v695 = vmul.f32 %v694, %v693
    %v696 = vmul.f32 %v695, %v694
    %v697 = vmul.f32 0.5, %v696
    %v698 = vsub.f32 1.5, %v697
    %v699 = vmul.f32 %v694, %v698
    %vm700 = vweird.f32 %v693
    %vm701 = vweird.f32 %v694
    %vm702 = vmor %vm700, %vm701
    %v703 = vsel %vm702, %v694, %v699
    %v704 = vmul.f32 %v683, %v703
    %v705 = vld [vmem:[%s3] sm:$0x1]
    %v707 = vperm.slane %v705, 0
    %v709 = vmul.f32 %v704, %v707
    %v710 = vld [vmem:[%s4] sm:$0x1]
    %v712 = vperm.slane %v710, 0
    %v714 = vadd.f32 %v709, %v712
    %v715 = vmax.f32 %v714, 0.0
    %v716 = vld [vmem:[%s5] sm:$0xff]
    %v717 = vld [vmem:[%s5 + $0x8] sm:$0xff]
    %v718 = vld [vmem:[%s5 + $0x10] sm:$0xff]
    %v719 = vld [vmem:[%s5 + $0x18] sm:$0xff]
    %v720 = vld [vmem:[%s6] sm:$0x1]
    %v722 = vperm.slane %v720, 0
    %vm724 = vcmask 261120
    %v726 = vsel %vm724, %v715, 0
    %728 = vmatpush.msra.mxu0 0.0
    %729 = vmatpush.msra.mxu0 0.0
    %730 = vmatpush.msra.mxu0 0.0
    %731 = vmatpush.msra.mxu0 0.0
    %732 = vmatpush.msra.mxu0 0.0
    %733 = vmatpush.msra.mxu0 0.0
    %734 = vmatpush.msra.mxu0 0.0
    %735 = vmatpush.msra.mxu0 0.0
    %736 = vmatpush.msra.mxu0 0.0
    %737 = vmatpush.msra.mxu0 0.0
    %738 = vmatpush.msra.mxu0 0.0
    %739 = vmatpush.msra.mxu0 0.0
    %740 = vmatpush.msra.mxu0 %v719
    %741 = vmatpush.msra.mxu0 %v718
    %742 = vmatpush.msra.mxu0 %v717
    %743 = vmatpush.msra.mxu0 %v716
    %744 = vmatmul.f32.gmra.mxu0 %v726
    %v745 = vpop.f32.mrf.mxu0
    %v746 = vadd.f32 %v722, %v745
    %747 = vdwg.mxu0
    %v748 = vsel %vm667, %v746, 0.0
    %v749 = vrot.slane %v748, 4
    %v750 = vadd.f32 %v748, %v749
    %v751 = vrot.slane %v750, 2
    %v752 = vadd.f32 %v750, %v751
    %v753 = vrot.slane %v752, 1
    %v754 = vadd.f32 %v752, %v753
    %v755 = vmul.f32 %v754, %v681
    %v756 = vsub.f32 %v746, %v755
    %v757 = vmul.f32 %v756, %v756
    %v758 = vsel %vm667, %v757, 0.0
    %v759 = vrot.slane %v758, 4
    %v760 = vadd.f32 %v758, %v759
    %v761 = vrot.slane %v760, 2
    %v762 = vadd.f32 %v760, %v761
    %v763 = vrot.slane %v762, 1
    %v764 = vadd.f32 %v762, %v763
    %v765 = vmul.f32 %v764, %v681
    %v766 = vadd.f32 %v765, 1e-05
    %v767 = vrsqrt.pop %v766
    %v768 = vmul.f32 %v767, %v766
    %v769 = vmul.f32 %v768, %v767
    %v770 = vmul.f32 0.5, %v769
    %v771 = vsub.f32 1.5, %v770
    %v772 = vmul.f32 %v767, %v771
    %vm773 = vweird.f32 %v766
    %vm774 = vweird.f32 %v767
    %vm775 = vmor %vm773, %vm774
    %v776 = vsel %vm775, %v767, %v772
    %v777 = vmul.f32 %v756, %v776
    %v778 = vld [vmem:[%s7] sm:$0x1]
    %v780 = vperm.slane %v778, 0
    %v782 = vmul.f32 %v777, %v780
    %v783 = vld [vmem:[%s8] sm:$0x1]
    %v785 = vperm.slane %v783, 0
    %v787 = vadd.f32 %v782, %v785
    %v788 = vmax.f32 %v787, 0.0
    %v789 = vld [vmem:[%s9] sm:$0xff]
    %v790 = vld [vmem:[%s9 + $0x8] sm:$0xff]
    %v791 = vld [vmem:[%s9 + $0x10] sm:$0xff]
    %v792 = vld [vmem:[%s9 + $0x18] sm:$0xff]
    %v793 = vld [vmem:[%s10] sm:$0x1]
    %v795 = vperm.slane %v793, 0
    %v798 = vsel %vm724, %v788, 0
    %800 = vmatpush.msra.mxu0 0.0
    %801 = vmatpush.msra.mxu0 0.0
    %802 = vmatpush.msra.mxu0 0.0
    %803 = vmatpush.msra.mxu0 0.0
    %804 = vmatpush.msra.mxu0 0.0
    %805 = vmatpush.msra.mxu0 0.0
    %806 = vmatpush.msra.mxu0 0.0
    %807 = vmatpush.msra.mxu0 0.0
    %808 = vmatpush.msra.mxu0 0.0
    %809 = vmatpush.msra.mxu0 0.0
    %810 = vmatpush.msra.mxu0 0.0
    %811 = vmatpush.msra.mxu0 0.0
    %812 = vmatpush.msra.mxu0 %v792
    %813 = vmatpush.msra.mxu0 %v791
    %814 = vmatpush.msra.mxu0 %v790
    %815 = vmatpush.msra.mxu0 %v789
    %816 = vmatmul.f32.gmra.mxu0 %v798
    %v817 = vpop.f32.mrf.mxu0
    %v818 = vadd.f32 %v795, %v817
    %819 = vdwg.mxu0
    %vm820 = vcmask 58368
    %821 = vst.msk [vmem:[#allocation2] sm:$0x3] %vm820, %v818
    %823 = vrot.lane.b32.xlu0 %v818, 120
    %v824 = vpop.permute.xlu0 %823
    %826 = vst.msk [vmem:[#allocation4] sm:$0x3] %vm820, %v824
    // Predicated region
    $region46: #{encoder_forward.3} parent=1 // pred_check
      _
    $region47: #{encoder_forward.3} parent=1 // pred_check_branch
      %828 = sbr.rel (0) target = $region49
    $region48: #{encoder_forward.3} parent=1 // pred_region
      %830 = vsyncadd [#allocation3], 0
      %s832 = sshll.u32 [#allocation2], 4
      %s833 = int_to_ptr.vmem [resolvable:$true] %s832
      %s834 = sshll.u32 %s11, 4
      %s835 = int_to_ptr.hbm [resolvable:$true] %s834
      %837 = dma.vmem_to_hbm [thread:$0]  %s833, 32, %s835, [#allocation3]
    $region49: #{encoder_forward.3} parent=1 // pred_fallthru
      _
    // Predicated region
    $region50: #{encoder_forward.3} parent=1 // pred_check
      _
    $region51: #{encoder_forward.3} parent=1 // pred_check_branch
      %839 = sbr.rel (0) target = $region53
    $region52: #{encoder_forward.3} parent=1 // pred_region
      %841 = vsyncadd [#allocation5], 0
      %s843 = sshll.u32 [#allocation4], 4
      %s844 = int_to_ptr.vmem [resolvable:$true] %s843
      %s845 = sshll.u32 %s12, 4
      %s846 = int_to_ptr.hbm [resolvable:$true] %s845
      %848 = dma.vmem_to_hbm [thread:$0]  %s844, 32, %s846, [#allocation5]
    $region53: #{encoder_forward.3} parent=1 // pred_fallthru
      _
    // Predicated region
    $region54: #{encoder_forward.3} parent=1 // pred_check
      _
    $region55: #{encoder_forward.3} parent=1 // pred_check_branch
      %850 = sbr.rel (0) target = $region57
    $region56: #{encoder_forward.3} parent=1 // pred_region
      %852 = dma.done [#allocation3], 32
    $region57: #{encoder_forward.3} parent=1 // pred_fallthru
      _
    // Predicated region
    $region58: #{encoder_forward.3} parent=1 // pred_check
      _
    $region59: #{encoder_forward.3} parent=1 // pred_check_branch
      %854 = sbr.rel (0) target = $region61
    $region60: #{encoder_forward.3} parent=1 // pred_region
      %856 = dma.done [#allocation5], 32
    $region61: #{encoder_forward.3} parent=1 // pred_fallthru
      _
    %857 = vsyncpa [#allocation3], 1
    %858 = vsyncpa [#allocation5], 1

// kernel: encoder_forward.2
$region0: #{encoder_forward.2}
  #allocation0 [shape = 'u32[]', space=smem, size = 0x4, offset = 0x4, fixed_abs, tag = 'smem constant byte address 0x4 - core index']
  #allocation1 [shape = 'u32[72,128]{1,0:T(1,128)}', space=vmem, size = 0x9000, scoped, tag = 'internal scratch']
  #allocation2 [shape = 'f32[18,18,32]{2,1,0:T(8,128)}', space=vmem, size = 0x36000, scoped, tag = 'scratch operand']
  #allocation3 [shape = 'f32[256,288]{1,0:T(8,128)}', space=vmem, size = 0x60000, scoped, tag = 'scratch operand']
  %s0 = inlined_call_operand.vmem [shape: f32[2,18,18,8], index: 0, kind: input, shape index: {}]
  %s1 = inlined_call_operand.vmem [shape: f32[64,256], index: 1, kind: input, shape index: {}]
  %s2 = inlined_call_operand.vmem [shape: f32[72,32], index: 2, kind: input, shape index: {}]
  %s3 = inlined_call_operand.vmem [shape: f32[1,32], index: 3, kind: input, shape index: {}]
  %s4 = inlined_call_operand.vmem [shape: f32[288,32], index: 4, kind: input, shape index: {}]
  %s5 = inlined_call_operand.vmem [shape: f32[1,32], index: 5, kind: input, shape index: {}]
  %s6 = inlined_call_operand.vmem [shape: f32[288,32], index: 6, kind: input, shape index: {}]
  %s7 = inlined_call_operand.vmem [shape: f32[1,32], index: 7, kind: input, shape index: {}]
  %s8 = inlined_call_operand.vmem [shape: f32[2,64,32], index: 8, kind: output, shape index: {}]
  %s9 = sld [smem:[#allocation0]]
  $region65: #{encoder_forward.2} parent=0
    _
  %s11 = ssub.s32 1, %s9
  %s12 = scalar_select 0, %s11, %s9
  loop: start=0, step=1, limit=4
  $region2: #{encoder_forward.2} parent=0 // loop_pre_header
    _
  $region3: #{encoder_forward.2} parent=0 // loop_header
    %s14 = sphi 0, %s18
    %p15 = scmp.ge.s32.totalorder %s14, 4
    %s24 = sphi 0, %s26
    %s27 = sphi 0, %s24
    %s28 = sphi 0, %s27
    %s44 = sphi 0, %s28
    %s48 = sphi 0, %s48
    %s50 = sphi 0, %s48
    %s51 = sphi 0, %s50
    %s65 = sphi 0, %s51
    %s69 = sphi 0, %s69
    %s71 = sphi 0, %s69
    %s72 = sphi 0, %s71
    %s86 = sphi 0, %s72
    %s90 = sphi 0, %s90
    %s92 = sphi 0, %s90
    %s93 = sphi 0, %s92
    %s107 = sphi 0, %s93
    %s111 = sphi 0, %s111
    %s113 = sphi 0, %s111
    %s114 = sphi 0, %s113
    %s128 = sphi 0, %s114
    %s132 = sphi 0, %s132
    %s134 = sphi 0, %s132
    %s135 = sphi 0, %s134
    %s149 = sphi 0, %s135
    %s153 = sphi 0, %s153
    %s155 = sphi 0, %s153
    %s156 = sphi 0, %s155
    %s170 = sphi 0, %s156
    %s174 = sphi 0, %s174
    %s176 = sphi 0, %s174
    %s177 = sphi 0, %s176
    %s191 = sphi 0, %s177
    %s197 = sphi 0, %s199
    %s200 = sphi 0, %s197
    %s201 = sphi 0, %s200
    %s217 = sphi 0, %s201
  $region4: #{encoder_forward.2} parent=0 // loop_header_branch
    %17 = sbr.rel (%p15) target = $region8
  $region5: #{encoder_forward.2} parent=0 // loop_body
    %s19 = ssub.s32 %s14, 1
    %s20 = ssub.s32 %s14, 2
    %s21 = sadd.s32 %s14, 1
    %s22 = ssub.s32 %s14, %s21
    %p23 = scmp.eq.s32.totalorder %s22, 0
    %s25 = sadd.s32 %s24, 1
    %s26 = scalar_select %p23, %s24, %s25
    %p29 = pneg %p23
    %p30 = scmp.eq.s32.totalorder %s14, 1
    %p31 = por %p29, %p30
    %p32 = scmp.ne.s32.totalorder %s24, %s27
    %p33 = scmp.eq.s32.totalorder %s14, 0
    %p34 = por %p32, %p33
    %p35 = scmp.ne.s32.totalorder %s24, %s27
    %p36 = scmp.eq.s32.totalorder %s19, 1
    %p37 = por %p35, %p36
    %p38 = scmp.ne.s32.totalorder %s27, %s28
    %p39 = scmp.eq.s32.totalorder %s19, 0
    %p40 = por %p38, %p39
    %p41 = scmp.ne.s32.totalorder %s27, %s28
    %p42 = scmp.eq.s32.totalorder %s20, 1
    %p43 = por %p41, %p42
    %p45 = scmp.ne.s32.totalorder %s28, %s44
    %p46 = scmp.eq.s32.totalorder %s20, 0
    %p47 = por %p45, %p46
    %s49 = sadd.s32 %s48, 1
    %p52 = scmp.eq.s32.totalorder %s14, 1
    %p53 = scmp.ne.s32.totalorder %s48, %s50
    %p54 = scmp.eq.s32.totalorder %s14, 0
    %p55 = por %p53, %p54
    %p56 = scmp.ne.s32.totalorder %s48, %s50
    %p57 = scmp.eq.s32.totalorder %s19, 1
    %p58 = por %p56, %p57
    %p59 = scmp.ne.s32.totalorder %s50, %s51
    %p60 = scmp.eq.s32.totalorder %s19, 0
    %p61 = por %p59, %p60
    %p62 = scmp.ne.s32.totalorder %s50, %s51
    %p63 = scmp.eq.s32.totalorder %s20, 1
    %p64 = por %p62, %p63
    %p66 = scmp.ne.s32.totalorder %s51, %s65
    %p67 = scmp.eq.s32.totalorder %s20, 0
    %p68 = por %p66, %p67
    %s70 = sadd.s32 %s69, 1
    %p73 = scmp.eq.s32.totalorder %s14, 1
    %p74 = scmp.ne.s32.totalorder %s69, %s71
    %p75 = scmp.eq.s32.totalorder %s14, 0
    %p76 = por %p74, %p75
    %p77 = scmp.ne.s32.totalorder %s69, %s71
    %p78 = scmp.eq.s32.totalorder %s19, 1
    %p79 = por %p77, %p78
    %p80 = scmp.ne.s32.totalorder %s71, %s72
    %p81 = scmp.eq.s32.totalorder %s19, 0
    %p82 = por %p80, %p81
    %p83 = scmp.ne.s32.totalorder %s71, %s72
    %p84 = scmp.eq.s32.totalorder %s20, 1
    %p85 = por %p83, %p84
    %p87 = scmp.ne.s32.totalorder %s72, %s86
    %p88 = scmp.eq.s32.totalorder %s20, 0
    %p89 = por %p87, %p88
    %s91 = sadd.s32 %s90, 1
    %p94 = scmp.eq.s32.totalorder %s14, 1
    %p95 = scmp.ne.s32.totalorder %s90, %s92
    %p96 = scmp.eq.s32.totalorder %s14, 0
    %p97 = por %p95, %p96
    %p98 = scmp.ne.s32.totalorder %s90, %s92
    %p99 = scmp.eq.s32.totalorder %s19, 1
    %p100 = por %p98, %p99
    %p101 = scmp.ne.s32.totalorder %s92, %s93
    %p102 = scmp.eq.s32.totalorder %s19, 0
    %p103 = por %p101, %p102
    %p104 = scmp.ne.s32.totalorder %s92, %s93
    %p105 = scmp.eq.s32.totalorder %s20, 1
    %p106 = por %p104, %p105
    %p108 = scmp.ne.s32.totalorder %s93, %s107
    %p109 = scmp.eq.s32.totalorder %s20, 0
    %p110 = por %p108, %p109
    %s112 = sadd.s32 %s111, 1
    %p115 = scmp.eq.s32.totalorder %s14, 1
    %p116 = scmp.ne.s32.totalorder %s111, %s113
    %p117 = scmp.eq.s32.totalorder %s14, 0
    %p118 = por %p116, %p117
    %p119 = scmp.ne.s32.totalorder %s111, %s113
    %p120 = scmp.eq.s32.totalorder %s19, 1
    %p121 = por %p119, %p120
    %p122 = scmp.ne.s32.totalorder %s113, %s114
    %p123 = scmp.eq.s32.totalorder %s19, 0
    %p124 = por %p122, %p123
    %p125 = scmp.ne.s32.totalorder %s113, %s114
    %p126 = scmp.eq.s32.totalorder %s20, 1
    %p127 = por %p125, %p126
    %p129 = scmp.ne.s32.totalorder %s114, %s128
    %p130 = scmp.eq.s32.totalorder %s20, 0
    %p131 = por %p129, %p130
    %s133 = sadd.s32 %s132, 1
    %p136 = scmp.eq.s32.totalorder %s14, 1
    %p137 = scmp.ne.s32.totalorder %s132, %s134
    %p138 = scmp.eq.s32.totalorder %s14, 0
    %p139 = por %p137, %p138
    %p140 = scmp.ne.s32.totalorder %s132, %s134
    %p141 = scmp.eq.s32.totalorder %s19, 1
    %p142 = por %p140, %p141
    %p143 = scmp.ne.s32.totalorder %s134, %s135
    %p144 = scmp.eq.s32.totalorder %s19, 0
    %p145 = por %p143, %p144
    %p146 = scmp.ne.s32.totalorder %s134, %s135
    %p147 = scmp.eq.s32.totalorder %s20, 1
    %p148 = por %p146, %p147
    %p150 = scmp.ne.s32.totalorder %s135, %s149
    %p151 = scmp.eq.s32.totalorder %s20, 0
    %p152 = por %p150, %p151
    %s154 = sadd.s32 %s153, 1
    %p157 = scmp.eq.s32.totalorder %s14, 1
    %p158 = scmp.ne.s32.totalorder %s153, %s155
    %p159 = scmp.eq.s32.totalorder %s14, 0
    %p160 = por %p158, %p159
    %p161 = scmp.ne.s32.totalorder %s153, %s155
    %p162 = scmp.eq.s32.totalorder %s19, 1
    %p163 = por %p161, %p162
    %p164 = scmp.ne.s32.totalorder %s155, %s156
    %p165 = scmp.eq.s32.totalorder %s19, 0
    %p166 = por %p164, %p165
    %p167 = scmp.ne.s32.totalorder %s155, %s156
    %p168 = scmp.eq.s32.totalorder %s20, 1
    %p169 = por %p167, %p168
    %p171 = scmp.ne.s32.totalorder %s156, %s170
    %p172 = scmp.eq.s32.totalorder %s20, 0
    %p173 = por %p171, %p172
    %s175 = sadd.s32 %s174, 1
    %p178 = scmp.eq.s32.totalorder %s14, 1
    %p179 = scmp.ne.s32.totalorder %s174, %s176
    %p180 = scmp.eq.s32.totalorder %s14, 0
    %p181 = por %p179, %p180
    %p182 = scmp.ne.s32.totalorder %s174, %s176
    %p183 = scmp.eq.s32.totalorder %s19, 1
    %p184 = por %p182, %p183
    %p185 = scmp.ne.s32.totalorder %s176, %s177
    %p186 = scmp.eq.s32.totalorder %s19, 0
    %p187 = por %p185, %p186
    %p188 = scmp.ne.s32.totalorder %s176, %s177
    %p189 = scmp.eq.s32.totalorder %s20, 1
    %p190 = por %p188, %p189
    %p192 = scmp.ne.s32.totalorder %s177, %s191
    %p193 = scmp.eq.s32.totalorder %s20, 0
    %p194 = por %p192, %p193
    %s195 = ssub.s32 %s14, %s21
    %p196 = scmp.eq.s32.totalorder %s195, 0
    %s198 = sadd.s32 %s197, 1
    %s199 = scalar_select %p196, %s197, %s198
    %p202 = pneg %p196
    %p203 = scmp.eq.s32.totalorder %s14, 1
    %p204 = por %p202, %p203
    %p205 = scmp.ne.s32.totalorder %s197, %s200
    %p206 = scmp.eq.s32.totalorder %s14, 0
    %p207 = por %p205, %p206
    %p208 = scmp.ne.s32.totalorder %s197, %s200
    %p209 = scmp.eq.s32.totalorder %s19, 1
    %p210 = por %p208, %p209
    %p211 = scmp.ne.s32.totalorder %s200, %s201
    %p212 = scmp.eq.s32.totalorder %s19, 0
    %p213 = por %p211, %p212
    %p214 = scmp.ne.s32.totalorder %s200, %s201
    %p215 = scmp.eq.s32.totalorder %s20, 1
    %p216 = por %p214, %p215
    %p218 = scmp.ne.s32.totalorder %s201, %s217
    %p219 = scmp.eq.s32.totalorder %s20, 0
    %p220 = por %p218, %p219
    %p221 = scmp.le.s32.totalorder 1, %s14
    %p222 = scmp.lt.s32.totalorder %s14, 3
    %p223 = pnand %p221, %p222
    %p224 = pneg %p223
    // Predicated region
    $region9: #{encoder_forward.2} parent=5 // pred_check
      _
    $region10: #{encoder_forward.2} parent=5 // pred_check_branch
      %226 = sbr.rel (%p223) target = $region12
    $region11: #{encoder_forward.2} parent=5 // pred_region
      %s227 = ssub.s32 %s14, 1
      // Predicated region
      $region13: #{encoder_forward.2} parent=11 // pred_check
        %p228 = pneg %p61
      $region14: #{encoder_forward.2} parent=11 // pred_check_branch
        %230 = sbr.rel (%p228) target = $region16
      $region15: #{encoder_forward.2} parent=11 // pred_region
        _
      $region16: #{encoder_forward.2} parent=11 // pred_fallthru
        _
      // Predicated region
      $region17: #{encoder_forward.2} parent=11 // pred_check
        %p231 = pneg %p82
      $region18: #{encoder_forward.2} parent=11 // pred_check_branch
        %233 = sbr.rel (%p231) target = $region20
      $region19: #{encoder_forward.2} parent=11 // pred_region
        _
      $region20: #{encoder_forward.2} parent=11 // pred_fallthru
        _
      // Predicated region
      $region21: #{encoder_forward.2} parent=11 // pred_check
        %p234 = pneg %p103
      $region22: #{encoder_forward.2} parent=11 // pred_check_branch
        %236 = sbr.rel (%p234) target = $region24
      $region23: #{encoder_forward.2} parent=11 // pred_region
        _
      $region24: #{encoder_forward.2} parent=11 // pred_fallthru
        _
      // Predicated region
      $region25: #{encoder_forward.2} parent=11 // pred_check
        %p237 = pneg %p124
      $region26: #{encoder_forward.2} parent=11 // pred_check_branch
        %239 = sbr.rel (%p237) target = $region28
      $region27: #{encoder_forward.2} parent=11 // pred_region
        _
      $region28: #{encoder_forward.2} parent=11 // pred_fallthru
        _
      // Predicated region
      $region29: #{encoder_forward.2} parent=11 // pred_check
        %p240 = pneg %p145
      $region30: #{encoder_forward.2} parent=11 // pred_check_branch
        %242 = sbr.rel (%p240) target = $region32
      $region31: #{encoder_forward.2} parent=11 // pred_region
        _
      $region32: #{encoder_forward.2} parent=11 // pred_fallthru
        _
      // Predicated region
      $region33: #{encoder_forward.2} parent=11 // pred_check
        %p243 = pneg %p166
      $region34: #{encoder_forward.2} parent=11 // pred_check_branch
        %245 = sbr.rel (%p243) target = $region36
      $region35: #{encoder_forward.2} parent=11 // pred_region
        _
      $region36: #{encoder_forward.2} parent=11 // pred_fallthru
        _
      // Predicated region
      $region37: #{encoder_forward.2} parent=11 // pred_check
        %p246 = pneg %p187
      $region38: #{encoder_forward.2} parent=11 // pred_check_branch
        %248 = sbr.rel (%p246) target = $region40
      $region39: #{encoder_forward.2} parent=11 // pred_region
        _
      $region40: #{encoder_forward.2} parent=11 // pred_fallthru
        _
    $region12: #{encoder_forward.2} parent=5 // pred_fallthru
      _
    %p249 = scmp.lt.s32.totalorder %s14, 2
    // Predicated region
    $region41: #{encoder_forward.2} parent=5 // pred_check
      %p250 = pneg %p249
    $region42: #{encoder_forward.2} parent=5 // pred_check_branch
      %252 = sbr.rel (%p250) target = $region44
    $region43: #{encoder_forward.2} parent=5 // pred_region
      // Predicated region
      $region45: #{encoder_forward.2} parent=43 // pred_check
        %p253 = pneg %p34
      $region46: #{encoder_forward.2} parent=43 // pred_check_branch
        %255 = sbr.rel (%p253) target = $region48
      $region47: #{encoder_forward.2} parent=43 // pred_region
        %p256 = scmp.lt.s32.totalorder %s14, 1
        %s257 = scalar_select %p256, %s14, 1
        %s258 = smul.addr %s257, 54
        %s259 = smul.addr %s258, 8
        %s260 = scalar_lea.vmem %s0, %s259
      $region48: #{encoder_forward.2} parent=43 // pred_fallthru
        _
    $region44: #{encoder_forward.2} parent=5 // pred_fallthru
      _
    %p261 = scmp.le.s32.totalorder 1, %s14
    %p262 = scmp.lt.s32.totalorder %s14, 3
    %p263 = pnand %p261, %p262
    %p264 = pneg %p263
    // Predicated region
    $region49: #{encoder_forward.2} parent=5 // pred_check
      _
    $region50: #{encoder_forward.2} parent=5 // pred_check_branch
      %266 = sbr.rel (%p263) target = $region52
    $region51: #{encoder_forward.2} parent=5 // pred_region
      %s267 = ssub.s32 %s14, 1
      %p268 = scmp.lt.s32.totalorder %s19, 1
      %s269 = scalar_select %p268, %s19, 1
      %s270 = smul.addr %s269, 54
      %s271 = smul.addr %s270, 8
      %s272 = scalar_lea.vmem %s0, %s271
      %p273 = pneg %p40
      %p274 = pneg %p37
      %p275 = pneg %p61
      %p276 = pneg %p58
      %p277 = pneg %p82
      %p278 = pneg %p79
      %p279 = pneg %p103
      %p280 = pneg %p100
      %p281 = pneg %p124
      %p282 = pneg %p121
      %p283 = pneg %p145
      %p284 = pneg %p142
      %p285 = pneg %p166
      %p286 = pneg %p163
      %p287 = pneg %p187
      %p288 = pneg %p184
      %p289 = pneg %p213
      %p290 = pneg %p210
      %p291 = scmp.lt.s32.totalorder %s19, 1
      %s292 = scalar_select %p291, %s19, 1
      %s293 = smul.addr %s292, 8
      %s294 = smul.addr %s293, 8
      %s295 = scalar_lea.vmem %s8, %s294
      %p296 = scmp.lt.s32.totalorder %s19, 1
      %s297 = scalar_select %p296, %s19, 1
      %s298 = smul.addr %s297, 54
      %s299 = smul.addr %s298, 8
      %s300 = scalar_lea.vmem %s0, %s299
      %p301 = scmp.lt.s32.totalorder %s19, 1
      %s302 = scalar_select %p301, %s19, 1
      %s303 = smul.addr %s302, 8
      %s304 = smul.addr %s303, 8
      %s305 = scalar_lea.vmem %s8, %s304
      %v306 = vld [vmem:[%s300] sm:$0xff]
      %v307 = vld [vmem:[%s300 + $0x8] sm:$0xff]
      %v308 = vld [vmem:[%s300 + $0x18] sm:$0xff]
      %v309 = vld [vmem:[%s300 + $0x20] sm:$0xff]
      %v310 = vld [vmem:[%s300 + $0x30] sm:$0xff]
      %v311 = vld [vmem:[%s300 + $0x38] sm:$0xff]
      %v312 = vld [vmem:[%s300 + $0x48] sm:$0xff]
      %v313 = vld [vmem:[%s300 + $0x50] sm:$0xff]
      %v314 = vld [vmem:[%s300 + $0x60] sm:$0xff]
      %v315 = vld [vmem:[%s300 + $0x68] sm:$0xff]
      %v316 = vld [vmem:[%s300 + $0x78] sm:$0xff]
      %v317 = vld [vmem:[%s300 + $0x80] sm:$0xff]
      %v318 = vld [vmem:[%s300 + $0x90] sm:$0xff]
      %v319 = vld [vmem:[%s300 + $0x98] sm:$0xff]
      %v320 = vld [vmem:[%s300 + $0xa8] sm:$0xff]
      %v321 = vld [vmem:[%s300 + $0xb0] sm:$0xff]
      %v322 = vld [vmem:[%s300 + $0xc0] sm:$0xff]
      %v323 = vld [vmem:[%s300 + $0xc8] sm:$0xff]
      %v324 = vld [vmem:[%s300 + $0xd8] sm:$0xff]
      %v325 = vld [vmem:[%s300 + $0xe0] sm:$0xff]
      %v326 = vld [vmem:[%s300 + $0xf0] sm:$0xff]
      %v327 = vld [vmem:[%s300 + $0xf8] sm:$0xff]
      %v328 = vld [vmem:[%s300 + $0x108] sm:$0xff]
      %v329 = vld [vmem:[%s300 + $0x110] sm:$0xff]
      %v330 = vld [vmem:[%s300 + $0x120] sm:$0xff]
      %v331 = vld [vmem:[%s300 + $0x128] sm:$0xff]
      %v332 = vld [vmem:[%s300 + $0x138] sm:$0xff]
      %v333 = vld [vmem:[%s300 + $0x140] sm:$0xff]
      %v334 = vld [vmem:[%s300 + $0x150] sm:$0xff]
      %v335 = vld [vmem:[%s300 + $0x158] sm:$0xff]
      %v336 = vld [vmem:[%s300 + $0x168] sm:$0xff]
      %v337 = vld [vmem:[%s300 + $0x170] sm:$0xff]
      %vm338 = vcmask 64512
      %339 = vst.msk [vmem:[#allocation3] sm:$0xff] %vm338, %v306
      %340 = vst.msk [vmem:[#allocation3 + $0x18] sm:$0xff] %vm338, %v307
      %341 = vst.msk [vmem:[#allocation3 + $0x30] sm:$0xff] %vm338, %v308
      %342 = vst.msk [vmem:[#allocation3 + $0x48] sm:$0xff] %vm338, %v309
      %343 = vst.msk [vmem:[#allocation3 + $0x60] sm:$0xff] %vm338, %v310
      %344 = vst.msk [vmem:[#allocation3 + $0x78] sm:$0xff] %vm338, %v311
      %345 = vst.msk [vmem:[#allocation3 + $0x90] sm:$0xff] %vm338, %v312
      %346 = vst.msk [vmem:[#allocation3 + $0xa8] sm:$0xff] %vm338, %v313
      %347 = vst.msk [vmem:[#allocation3 + $0xc0] sm:$0xff] %vm338, %v314
      %348 = vst.msk [vmem:[#allocation3 + $0xd8] sm:$0xff] %vm338, %v315
      %349 = vst.msk [vmem:[#allocation3 + $0xf0] sm:$0xff] %vm338, %v316
      %350 = vst.msk [vmem:[#allocation3 + $0x108] sm:$0xff] %vm338, %v317
      %351 = vst.msk [vmem:[#allocation3 + $0x120] sm:$0xff] %vm338, %v318
      %352 = vst.msk [vmem:[#allocation3 + $0x138] sm:$0xff] %vm338, %v319
      %353 = vst.msk [vmem:[#allocation3 + $0x150] sm:$0xff] %vm338, %v320
      %354 = vst.msk [vmem:[#allocation3 + $0x168] sm:$0xff] %vm338, %v321
      %355 = vst.msk [vmem:[#allocation3 + $0x180] sm:$0xff] %vm338, %v322
      %356 = vst.msk [vmem:[#allocation3 + $0x198] sm:$0xff] %vm338, %v323
      %357 = vst.msk [vmem:[#allocation3 + $0x1b0] sm:$0xff] %vm338, %v324
      %358 = vst.msk [vmem:[#allocation3 + $0x1c8] sm:$0xff] %vm338, %v325
      %359 = vst.msk [vmem:[#allocation3 + $0x1e0] sm:$0xff] %vm338, %v326
      %360 = vst.msk [vmem:[#allocation3 + $0x1f8] sm:$0xff] %vm338, %v327
      %361 = vst.msk [vmem:[#allocation3 + $0x210] sm:$0xff] %vm338, %v328
      %362 = vst.msk [vmem:[#allocation3 + $0x228] sm:$0xff] %vm338, %v329
      %363 = vst.msk [vmem:[#allocation3 + $0x240] sm:$0xff] %vm338, %v330
      %364 = vst.msk [vmem:[#allocation3 + $0x258] sm:$0xff] %vm338, %v331
      %365 = vst.msk [vmem:[#allocation3 + $0x270] sm:$0xff] %vm338, %v332
      %366 = vst.msk [vmem:[#allocation3 + $0x288] sm:$0xff] %vm338, %v333
      %367 = vst.msk [vmem:[#allocation3 + $0x2a0] sm:$0xff] %vm338, %v334
      %368 = vst.msk [vmem:[#allocation3 + $0x2b8] sm:$0xff] %vm338, %v335
      %369 = vst.msk [vmem:[#allocation3 + $0x2d0] sm:$0xff] %vm338, %v336
      %370 = vst.msk [vmem:[#allocation3 + $0x2e8] sm:$0xff] %vm338, %v337
      %v371 = vld [vmem:[%s300 + $0x1] sm:$0xff]
      %v372 = vld [vmem:[%s300 + $0x9] sm:$0xff]
      %v373 = vld [vmem:[%s300 + $0x19] sm:$0xff]
      %v374 = vld [vmem:[%s300 + $0x21] sm:$0xff]
      %v375 = vld [vmem:[%s300 + $0x31] sm:$0xff]
      %v376 = vld [vmem:[%s300 + $0x39] sm:$0xff]
      %v377 = vld [vmem:[%s300 + $0x49] sm:$0xff]
      %v378 = vld [vmem:[%s300 + $0x51] sm:$0xff]
      %v379 = vld [vmem:[%s300 + $0x61] sm:$0xff]
      %v380 = vld [vmem:[%s300 + $0x69] sm:$0xff]
      %v381 = vld [vmem:[%s300 + $0x79] sm:$0xff]
      %v382 = vld [vmem:[%s300 + $0x81] sm:$0xff]
      %v383 = vld [vmem:[%s300 + $0x91] sm:$0xff]
      %v384 = vld [vmem:[%s300 + $0x99] sm:$0xff]
      %v385 = vld [vmem:[%s300 + $0xa9] sm:$0xff]
      %v386 = vld [vmem:[%s300 + $0xb1] sm:$0xff]
      %v387 = vld [vmem:[%s300 + $0xc1] sm:$0xff]
      %v388 = vld [vmem:[%s300 + $0xc9] sm:$0xff]
      %v389 = vld [vmem:[%s300 + $0xd9] sm:$0xff]
      %v390 = vld [vmem:[%s300 + $0xe1] sm:$0xff]
      %v391 = vld [vmem:[%s300 + $0xf1] sm:$0xff]
      %v392 = vld [vmem:[%s300 + $0xf9] sm:$0xff]
      %v393 = vld [vmem:[%s300 + $0x109] sm:$0xff]
      %v394 = vld [vmem:[%s300 + $0x111] sm:$0xff]
      %v395 = vld [vmem:[%s300 + $0x121] sm:$0xff]
      %v396 = vld [vmem:[%s300 + $0x129] sm:$0xff]
      %v397 = vld [vmem:[%s300 + $0x139] sm:$0xff]
      %v398 = vld [vmem:[%s300 + $0x141] sm:$0xff]
      %v399 = vld [vmem:[%s300 + $0x151] sm:$0xff]
      %v400 = vld [vmem:[%s300 + $0x159] sm:$0xff]
      %v401 = vld [vmem:[%s300 + $0x169] sm:$0xff]
      %v402 = vld [vmem:[%s300 + $0x171] sm:$0xff]
      %435 = vrot.lane.b32.xlu0 %v371, 8
      %v436 = vpop.permute.xlu0 %435
      %437 = vrot.lane.b32.xlu0 %v372, 8
      %v438 = vpop.permute.xlu0 %437
      %439 = vrot.lane.b32.xlu0 %v373, 8
      %v440 = vpop.permute.xlu0 %439
      %441 = vrot.lane.b32.xlu0 %v374, 8
      %v442 = vpop.permute.xlu0 %441
      %443 = vrot.lane.b32.xlu0 %v375, 8
      %v444 = vpop.permute.xlu0 %443
      %445 = vrot.lane.b32.xlu0 %v376, 8
      %v446 = vpop.permute.xlu0 %445
      %447 = vrot.lane.b32.xlu0 %v377, 8
      %v448 = vpop.permute.xlu0 %447
      %449 = vrot.lane.b32.xlu0 %v378, 8
      %v450 = vpop.permute.xlu0 %449
      %451 = vrot.lane.b32.xlu0 %v379, 8
      %v452 = vpop.permute.xlu0 %451
      %453 = vrot.lane.b32.xlu0 %v380, 8
      %v454 = vpop.permute.xlu0 %453
      %455 = vrot.lane.b32.xlu0 %v381, 8
      %v456 = vpop.permute.xlu0 %455
      %457 = vrot.lane.b32.xlu0 %v382, 8
      %v458 = vpop.permute.xlu0 %457
      %459 = vrot.lane.b32.xlu0 %v383, 8
      %v460 = vpop.permute.xlu0 %459
      %461 = vrot.lane.b32.xlu0 %v384, 8
      %v462 = vpop.permute.xlu0 %461
      %463 = vrot.lane.b32.xlu0 %v385, 8
      %v464 = vpop.permute.xlu0 %463
      %465 = vrot.lane.b32.xlu0 %v386, 8
      %v466 = vpop.permute.xlu0 %465
      %467 = vrot.lane.b32.xlu0 %v387, 8
      %v468 = vpop.permute.xlu0 %467
      %469 = vrot.lane.b32.xlu0 %v388, 8
      %v470 = vpop.permute.xlu0 %469
      %471 = vrot.lane.b32.xlu0 %v389, 8
      %v472 = vpop.permute.xlu0 %471
      %473 = vrot.lane.b32.xlu0 %v390, 8
      %v474 = vpop.permute.xlu0 %473
      %475 = vrot.lane.b32.xlu0 %v391, 8
      %v476 = vpop.permute.xlu0 %475
      %477 = vrot.lane.b32.xlu0 %v392, 8
      %v478 = vpop.permute.xlu0 %477
      %479 = vrot.lane.b32.xlu0 %v393, 8
      %v480 = vpop.permute.xlu0 %479
      %481 = vrot.lane.b32.xlu0 %v394, 8
      %v482 = vpop.permute.xlu0 %481
      %483 = vrot.lane.b32.xlu0 %v395, 8
      %v484 = vpop.permute.xlu0 %483
      %485 = vrot.lane.b32.xlu0 %v396, 8
      %v486 = vpop.permute.xlu0 %485
      %487 = vrot.lane.b32.xlu0 %v397, 8
      %v488 = vpop.permute.xlu0 %487
      %489 = vrot.lane.b32.xlu0 %v398, 8
      %v490 = vpop.permute.xlu0 %489
      %491 = vrot.lane.b32.xlu0 %v399, 8
      %v492 = vpop.permute.xlu0 %491
      %493 = vrot.lane.b32.xlu0 %v400, 8
      %v494 = vpop.permute.xlu0 %493
      %495 = vrot.lane.b32.xlu0 %v401, 8
      %v496 = vpop.permute.xlu0 %495
      %497 = vrot.lane.b32.xlu0 %v402, 8
      %v498 = vpop.permute.xlu0 %497
      %vm531 = vcmask 130112
      %532 = vst.msk [vmem:[#allocation3] sm:$0xff] %vm531, %v436
      %533 = vst.msk [vmem:[#allocation3 + $0x18] sm:$0xff] %vm531, %v438
      %534 = vst.msk [vmem:[#allocation3 + $0x30] sm:$0xff] %vm531, %v440
      %535 = vst.msk [vmem:[#allocation3 + $0x48] sm:$0xff] %vm531, %v442
      %536 = vst.msk [vmem:[#allocation3 + $0x60] sm:$0xff] %vm531, %v444
      %537 = vst.msk [vmem:[#allocation3 + $0x78] sm:$0xff] %vm531, %v446
      %538 = vst.msk [vmem:[#allocation3 + $0x90] sm:$0xff] %vm531, %v448
      %539 = vst.msk [vmem:[#allocation3 + $0xa8] sm:$0xff] %vm531, %v450
      %540 = vst.msk [vmem:[#allocation3 + $0xc0] sm:$0xff] %vm531, %v452
      %541 = vst.msk [vmem:[#allocation3 + $0xd8] sm:$0xff] %vm531, %v454
      %542 = vst.msk [vmem:[#allocation3 + $0xf0] sm:$0xff] %vm531, %v456
      %543 = vst.msk [vmem:[#allocation3 + $0x108] sm:$0xff] %vm531, %v458
      %544 = vst.msk [vmem:[#allocation3 + $0x120] sm:$0xff] %vm531, %v460
      %545 = vst.msk [vmem:[#allocation3 + $0x138] sm:$0xff] %vm531, %v462
      %546 = vst.msk [vmem:[#allocation3 + $0x150] sm:$0xff] %vm531, %v464
      %547 = vst.msk [vmem:[#allocation3 + $0x168] sm:$0xff] %vm531, %v466
      %548 = vst.msk [vmem:[#allocation3 + $0x180] sm:$0xff] %vm531, %v468
      %549 = vst.msk [vmem:[#allocation3 + $0x198] sm:$0xff] %vm531, %v470
      %550 = vst.msk [vmem:[#allocation3 + $0x1b0] sm:$0xff] %vm531, %v472
      %551 = vst.msk [vmem:[#allocation3 + $0x1c8] sm:$0xff] %vm531, %v474
      %552 = vst.msk [vmem:[#allocation3 + $0x1e0] sm:$0xff] %vm531, %v476
      %553 = vst.msk [vmem:[#allocation3 + $0x1f8] sm:$0xff] %vm531, %v478
      %554 = vst.msk [vmem:[#allocation3 + $0x210] sm:$0xff] %vm531, %v480
      %555 = vst.msk [vmem:[#allocation3 + $0x228] sm:$0xff] %vm531, %v482
      %556 = vst.msk [vmem:[#allocation3 + $0x240] sm:$0xff] %vm531, %v484
      %557 = vst.msk [vmem:[#allocation3 + $0x258] sm:$0xff] %vm531, %v486
      %558 = vst.msk [vmem:[#allocation3 + $0x270] sm:$0xff] %vm531, %v488
      %559 = vst.msk [vmem:[#allocation3 + $0x288] sm:$0xff] %vm531, %v490
      %560 = vst.msk [vmem:[#allocation3 + $0x2a0] sm:$0xff] %vm531, %v492
      %561 = vst.msk [vmem:[#allocation3 + $0x2b8] sm:$0xff] %vm531, %v494
      %562 = vst.msk [vmem:[#allocation3 + $0x2d0] sm:$0xff] %vm531, %v496
      %563 = vst.msk [vmem:[#allocation3 + $0x2e8] sm:$0xff] %vm531, %v498
      %v564 = vld [vmem:[%s300 + $0x2] sm:$0xff]
      %v565 = vld [vmem:[%s300 + $0xa] sm:$0xff]
      %v566 = vld [vmem:[%s300 + $0x1a] sm:$0xff]
      %v567 = vld [vmem:[%s300 + $0x22] sm:$0xff]
      %v568 = vld [vmem:[%s300 + $0x32] sm:$0xff]
      %v569 = vld [vmem:[%s300 + $0x3a] sm:$0xff]
      %v570 = vld [vmem:[%s300 + $0x4a] sm:$0xff]
      %v571 = vld [vmem:[%s300 + $0x52] sm:$0xff]
      %v572 = vld [vmem:[%s300 + $0x62] sm:$0xff]
      %v573 = vld [vmem:[%s300 + $0x6a] sm:$0xff]
      %v574 = vld [vmem:[%s300 + $0x7a] sm:$0xff]
      %v575 = vld [vmem:[%s300 + $0x82] sm:$0xff]
      %v576 = vld [vmem:[%s300 + $0x92] sm:$0xff]
      %v577 = vld [vmem:[%s300 + $0x9a] sm:$0xff]
      %v578 = vld [vmem:[%s300 + $0xaa] sm:$0xff]
      %v579 = vld [vmem:[%s300 + $0xb2] sm:$0xff]
      %v580 = vld [vmem:[%s300 + $0xc2] sm:$0xff]
      %v581 = vld [vmem:[%s300 + $0xca] sm:$0xff]
      %v582 = vld [vmem:[%s300 + $0xda] sm:$0xff]
      %v583 = vld [vmem:[%s300 + $0xe2] sm:$0xff]
      %v584 = vld [vmem:[%s300 + $0xf2] sm:$0xff]
      %v585 = vld [vmem:[%s300 + $0xfa] sm:$0xff]
      %v586 = vld [vmem:[%s300 + $0x10a] sm:$0xff]
      %v587 = vld [vmem:[%s300 + $0x112] sm:$0xff]
      %v588 = vld [vmem:[%s300 + $0x122] sm:$0xff]
      %v589 = vld [vmem:[%s300 + $0x12a] sm:$0xff]
      %v590 = vld [vmem:[%s300 + $0x13a] sm:$0xff]
      %v591 = vld [vmem:[%s300 + $0x142] sm:$0xff]
      %v592 = vld [vmem:[%s300 + $0x152] sm:$0xff]
      %v593 = vld [vmem:[%s300 + $0x15a] sm:$0xff]
      %v594 = vld [vmem:[%s300 + $0x16a] sm:$0xff]
      %v595 = vld [vmem:[%s300 + $0x172] sm:$0xff]
      %628 = vrot.lane.b32.xlu0 %v564, 16
      %v629 = vpop.permute.xlu0 %628
      %630 = vrot.lane.b32.xlu0 %v565, 16
      %v631 = vpop.permute.xlu0 %630
      %632 = vrot.lane.b32.xlu0 %v566, 16
      %v633 = vpop.permute.xlu0 %632
      %634 = vrot.lane.b32.xlu0 %v567, 16
      %v635 = vpop.permute.xlu0 %634
      %636 = vrot.lane.b32.xlu0 %v568, 16
      %v637 = vpop.permute.xlu0 %636
      %638 = vrot.lane.b32.xlu0 %v569, 16
      %v639 = vpop.permute.xlu0 %638
      %640 = vrot.lane.b32.xlu0 %v570, 16
      %v641 = vpop.permute.xlu0 %640
      %642 = vrot.lane.b32.xlu0 %v571, 16
      %v643 = vpop.permute.xlu0 %642
      %644 = vrot.lane.b32.xlu0 %v572, 16
      %v645 = vpop.permute.xlu0 %644
      %646 = vrot.lane.b32.xlu0 %v573, 16
      %v647 = vpop.permute.xlu0 %646
      %648 = vrot.lane.b32.xlu0 %v574, 16
      %v649 = vpop.permute.xlu0 %648
      %650 = vrot.lane.b32.xlu0 %v575, 16
      %v651 = vpop.permute.xlu0 %650
      %652 = vrot.lane.b32.xlu0 %v576, 16
      %v653 = vpop.permute.xlu0 %652
      %654 = vrot.lane.b32.xlu0 %v577, 16
      %v655 = vpop.permute.xlu0 %654
      %656 = vrot.lane.b32.xlu0 %v578, 16
      %v657 = vpop.permute.xlu0 %656
      %658 = vrot.lane.b32.xlu0 %v579, 16
      %v659 = vpop.permute.xlu0 %658
      %660 = vrot.lane.b32.xlu0 %v580, 16
      %v661 = vpop.permute.xlu0 %660
      %662 = vrot.lane.b32.xlu0 %v581, 16
      %v663 = vpop.permute.xlu0 %662
      %664 = vrot.lane.b32.xlu0 %v582, 16
      %v665 = vpop.permute.xlu0 %664
      %666 = vrot.lane.b32.xlu0 %v583, 16
      %v667 = vpop.permute.xlu0 %666
      %668 = vrot.lane.b32.xlu0 %v584, 16
      %v669 = vpop.permute.xlu0 %668
      %670 = vrot.lane.b32.xlu0 %v585, 16
      %v671 = vpop.permute.xlu0 %670
      %672 = vrot.lane.b32.xlu0 %v586, 16
      %v673 = vpop.permute.xlu0 %672
      %674 = vrot.lane.b32.xlu0 %v587, 16
      %v675 = vpop.permute.xlu0 %674
      %676 = vrot.lane.b32.xlu0 %v588, 16
      %v677 = vpop.permute.xlu0 %676
      %678 = vrot.lane.b32.xlu0 %v589, 16
      %v679 = vpop.permute.xlu0 %678
      %680 = vrot.lane.b32.xlu0 %v590, 16
      %v681 = vpop.permute.xlu0 %680
      %682 = vrot.lane.b32.xlu0 %v591, 16
      %v683 = vpop.permute.xlu0 %682
      %684 = vrot.lane.b32.xlu0 %v592, 16
      %v685 = vpop.permute.xlu0 %684
      %686 = vrot.lane.b32.xlu0 %v593, 16
      %v687 = vpop.permute.xlu0 %686
      %688 = vrot.lane.b32.xlu0 %v594, 16
      %v689 = vpop.permute.xlu0 %688
      %690 = vrot.lane.b32.xlu0 %v595, 16
      %v691 = vpop.permute.xlu0 %690
      %vm724 = vcmask 195712
      %725 = vst.msk [vmem:[#allocation3] sm:$0xff] %vm724, %v629
      %726 = vst.msk [vmem:[#allocation3 + $0x18] sm:$0xff] %vm724, %v631
      %727 = vst.msk [vmem:[#allocation3 + $0x30] sm:$0xff] %vm724, %v633
      %728 = vst.msk [vmem:[#allocation3 + $0x48] sm:$0xff] %vm724, %v635
      %729 = vst.msk [vmem:[#allocation3 + $0x60] sm:$0xff] %vm724, %v637
      %730 = vst.msk [vmem:[#allocation3 + $0x78] sm:$0xff] %vm724, %v639
      %731 = vst.msk [vmem:[#allocation3 + $0x90] sm:$0xff] %vm724, %v641
      %732 = vst.msk [vmem:[#allocation3 + $0xa8] sm:$0xff] %vm724, %v643
      %733 = vst.msk [vmem:[#allocation3 + $0xc0] sm:$0xff] %vm724, %v645
      %734 = vst.msk [vmem:[#allocation3 + $0xd8] sm:$0xff] %vm724, %v647
      %735 = vst.msk [vmem:[#allocation3 + $0xf0] sm:$0xff] %vm724, %v649
      %736 = vst.msk [vmem:[#allocation3 + $0x108] sm:$0xff] %vm724, %v651
      %737 = vst.msk [vmem:[#allocation3 + $0x120] sm:$0xff] %vm724, %v653
      %738 = vst.msk [vmem:[#allocation3 + $0x138] sm:$0xff] %vm724, %v655
      %739 = vst.msk [vmem:[#allocation3 + $0x150] sm:$0xff] %vm724, %v657
      %740 = vst.msk [vmem:[#allocation3 + $0x168] sm:$0xff] %vm724, %v659
      %741 = vst.msk [vmem:[#allocation3 + $0x180] sm:$0xff] %vm724, %v661
      %742 = vst.msk [vmem:[#allocation3 + $0x198] sm:$0xff] %vm724, %v663
      %743 = vst.msk [vmem:[#allocation3 + $0x1b0] sm:$0xff] %vm724, %v665
      %744 = vst.msk [vmem:[#allocation3 + $0x1c8] sm:$0xff] %vm724, %v667
      %745 = vst.msk [vmem:[#allocation3 + $0x1e0] sm:$0xff] %vm724, %v669
      %746 = vst.msk [vmem:[#allocation3 + $0x1f8] sm:$0xff] %vm724, %v671
      %747 = vst.msk [vmem:[#allocation3 + $0x210] sm:$0xff] %vm724, %v673
      %748 = vst.msk [vmem:[#allocation3 + $0x228] sm:$0xff] %vm724, %v675
      %749 = vst.msk [vmem:[#allocation3 + $0x240] sm:$0xff] %vm724, %v677
      %750 = vst.msk [vmem:[#allocation3 + $0x258] sm:$0xff] %vm724, %v679
      %751 = vst.msk [vmem:[#allocation3 + $0x270] sm:$0xff] %vm724, %v681
      %752 = vst.msk [vmem:[#allocation3 + $0x288] sm:$0xff] %vm724, %v683
      %753 = vst.msk [vmem:[#allocation3 + $0x2a0] sm:$0xff] %vm724, %v685
      %754 = vst.msk [vmem:[#allocation3 + $0x2b8] sm:$0xff] %vm724, %v687
      %755 = vst.msk [vmem:[#allocation3 + $0x2d0] sm:$0xff] %vm724, %v689
      %756 = vst.msk [vmem:[#allocation3 + $0x2e8] sm:$0xff] %vm724, %v691
      %s757 = scalar_lea.vmem %s300, 24
      %v758 = vld [vmem:[%s757] sm:$0xff]
      %v759 = vld [vmem:[%s757 + $0x8] sm:$0xff]
      %v760 = vld [vmem:[%s757 + $0x18] sm:$0xff]
      %v761 = vld [vmem:[%s757 + $0x20] sm:$0xff]
      %v762 = vld [vmem:[%s757 + $0x30] sm:$0xff]
      %v763 = vld [vmem:[%s757 + $0x38] sm:$0xff]
      %v764 = vld [vmem:[%s757 + $0x48] sm:$0xff]
      %v765 = vld [vmem:[%s757 + $0x50] sm:$0xff]
      %v766 = vld [vmem:[%s757 + $0x60] sm:$0xff]
      %v767 = vld [vmem:[%s757 + $0x68] sm:$0xff]
      %v768 = vld [vmem:[%s757 + $0x78] sm:$0xff]
      %v769 = vld [vmem:[%s757 + $0x80] sm:$0xff]
      %v770 = vld [vmem:[%s757 + $0x90] sm:$0xff]
      %v771 = vld [vmem:[%s757 + $0x98] sm:$0xff]
      %v772 = vld [vmem:[%s757 + $0xa8] sm:$0xff]
      %v773 = vld [vmem:[%s757 + $0xb0] sm:$0xff]
      %v774 = vld [vmem:[%s757 + $0xc0] sm:$0xff]
      %v775 = vld [vmem:[%s757 + $0xc8] sm:$0xff]
      %v776 = vld [vmem:[%s757 + $0xd8] sm:$0xff]
      %v777 = vld [vmem:[%s757 + $0xe0] sm:$0xff]
      %v778 = vld [vmem:[%s757 + $0xf0] sm:$0xff]
      %v779 = vld [vmem:[%s757 + $0xf8] sm:$0xff]
      %v780 = vld [vmem:[%s757 + $0x108] sm:$0xff]
      %v781 = vld [vmem:[%s757 + $0x110] sm:$0xff]
      %v782 = vld [vmem:[%s757 + $0x120] sm:$0xff]
      %v783 = vld [vmem:[%s757 + $0x128] sm:$0xff]
      %v784 = vld [vmem:[%s757 + $0x138] sm:$0xff]
      %v785 = vld [vmem:[%s757 + $0x140] sm:$0xff]
      %v786 = vld [vmem:[%s757 + $0x150] sm:$0xff]
      %v787 = vld [vmem:[%s757 + $0x158] sm:$0xff]
      %v788 = vld [vmem:[%s757 + $0x168] sm:$0xff]
      %v789 = vld [vmem:[%s757 + $0x170] sm:$0xff]
      %822 = vrot.lane.b32.xlu0 %v758, 24
      %v823 = vpop.permute.xlu0 %822
      %824 = vrot.lane.b32.xlu0 %v759, 24
      %v825 = vpop.permute.xlu0 %824
      %826 = vrot.lane.b32.xlu0 %v760, 24
      %v827 = vpop.permute.xlu0 %826
      %828 = vrot.lane.b32.xlu0 %v761, 24
      %v829 = vpop.permute.xlu0 %828
      %830 = vrot.lane.b32.xlu0 %v762, 24
      %v831 = vpop.permute.xlu0 %830
      %832 = vrot.lane.b32.xlu0 %v763, 24
      %v833 = vpop.permute.xlu0 %832
      %834 = vrot.lane.b32.xlu0 %v764, 24
      %v835 = vpop.permute.xlu0 %834
      %836 = vrot.lane.b32.xlu0 %v765, 24
      %v837 = vpop.permute.xlu0 %836
      %838 = vrot.lane.b32.xlu0 %v766, 24
      %v839 = vpop.permute.xlu0 %838
      %840 = vrot.lane.b32.xlu0 %v767, 24
      %v841 = vpop.permute.xlu0 %840
      %842 = vrot.lane.b32.xlu0 %v768, 24
      %v843 = vpop.permute.xlu0 %842
      %844 = vrot.lane.b32.xlu0 %v769, 24
      %v845 = vpop.permute.xlu0 %844
      %846 = vrot.lane.b32.xlu0 %v770, 24
      %v847 = vpop.permute.xlu0 %846
      %848 = vrot.lane.b32.xlu0 %v771, 24
      %v849 = vpop.permute.xlu0 %848
      %850 = vrot.lane.b32.xlu0 %v772, 24
      %v851 = vpop.permute.xlu0 %850
      %852 = vrot.lane.b32.xlu0 %v773, 24
      %v853 = vpop.permute.xlu0 %852
      %854 = vrot.lane.b32.xlu0 %v774, 24
      %v855 = vpop.permute.xlu0 %854
      %856 = vrot.lane.b32.xlu0 %v775, 24
      %v857 = vpop.permute.xlu0 %856
      %858 = vrot.lane.b32.xlu0 %v776, 24
      %v859 = vpop.permute.xlu0 %858
      %860 = vrot.lane.b32.xlu0 %v777, 24
      %v861 = vpop.permute.xlu0 %860
      %862 = vrot.lane.b32.xlu0 %v778, 24
      %v863 = vpop.permute.xlu0 %862
      %864 = vrot.lane.b32.xlu0 %v779, 24
      %v865 = vpop.permute.xlu0 %864
      %866 = vrot.lane.b32.xlu0 %v780, 24
      %v867 = vpop.permute.xlu0 %866
      %868 = vrot.lane.b32.xlu0 %v781, 24
      %v869 = vpop.permute.xlu0 %868
      %870 = vrot.lane.b32.xlu0 %v782, 24
      %v871 = vpop.permute.xlu0 %870
      %872 = vrot.lane.b32.xlu0 %v783, 24
      %v873 = vpop.permute.xlu0 %872
      %874 = vrot.lane.b32.xlu0 %v784, 24
      %v875 = vpop.permute.xlu0 %874
      %876 = vrot.lane.b32.xlu0 %v785, 24
      %v877 = vpop.permute.xlu0 %876
      %878 = vrot.lane.b32.xlu0 %v786, 24
      %v879 = vpop.permute.xlu0 %878
      %880 = vrot.lane.b32.xlu0 %v787, 24
      %v881 = vpop.permute.xlu0 %880
      %882 = vrot.lane.b32.xlu0 %v788, 24
      %v883 = vpop.permute.xlu0 %882
      %884 = vrot.lane.b32.xlu0 %v789, 24
      %v885 = vpop.permute.xlu0 %884
      %vm918 = vcmask 261312
      %919 = vst.msk [vmem:[#allocation3] sm:$0xff] %vm918, %v823
      %920 = vst.msk [vmem:[#allocation3 + $0x18] sm:$0xff] %vm918, %v825
      %921 = vst.msk [vmem:[#allocation3 + $0x30] sm:$0xff] %vm918, %v827
      %922 = vst.msk [vmem:[#allocation3 + $0x48] sm:$0xff] %vm918, %v829
      %923 = vst.msk [vmem:[#allocation3 + $0x60] sm:$0xff] %vm918, %v831
      %924 = vst.msk [vmem:[#allocation3 + $0x78] sm:$0xff] %vm918, %v833
      %925 = vst.msk [vmem:[#allocation3 + $0x90] sm:$0xff] %vm918, %v835
      %926 = vst.msk [vmem:[#allocation3 + $0xa8] sm:$0xff] %vm918, %v837
      %927 = vst.msk [vmem:[#allocation3 + $0xc0] sm:$0xff] %vm918, %v839
      %928 = vst.msk [vmem:[#allocation3 + $0xd8] sm:$0xff] %vm918, %v841
      %929 = vst.msk [vmem:[#allocation3 + $0xf0] sm:$0xff] %vm918, %v843
      %930 = vst.msk [vmem:[#allocation3 + $0x108] sm:$0xff] %vm918, %v845
      %931 = vst.msk [vmem:[#allocation3 + $0x120] sm:$0xff] %vm918, %v847
      %932 = vst.msk [vmem:[#allocation3 + $0x138] sm:$0xff] %vm918, %v849
      %933 = vst.msk [vmem:[#allocation3 + $0x150] sm:$0xff] %vm918, %v851
      %934 = vst.msk [vmem:[#allocation3 + $0x168] sm:$0xff] %vm918, %v853
      %935 = vst.msk [vmem:[#allocation3 + $0x180] sm:$0xff] %vm918, %v855
      %936 = vst.msk [vmem:[#allocation3 + $0x198] sm:$0xff] %vm918, %v857
      %937 = vst.msk [vmem:[#allocation3 + $0x1b0] sm:$0xff] %vm918, %v859
      %938 = vst.msk [vmem:[#allocation3 + $0x1c8] sm:$0xff] %vm918, %v861
      %939 = vst.msk [vmem:[#allocation3 + $0x1e0] sm:$0xff] %vm918, %v863
      %940 = vst.msk [vmem:[#allocation3 + $0x1f8] sm:$0xff] %vm918, %v865
      %941 = vst.msk [vmem:[#allocation3 + $0x210] sm:$0xff] %vm918, %v867
      %942 = vst.msk [vmem:[#allocation3 + $0x228] sm:$0xff] %vm918, %v869
      %943 = vst.msk [vmem:[#allocation3 + $0x240] sm:$0xff] %vm918, %v871
      %944 = vst.msk [vmem:[#allocation3 + $0x258] sm:$0xff] %vm918, %v873
      %945 = vst.msk [vmem:[#allocation3 + $0x270] sm:$0xff] %vm918, %v875
      %946 = vst.msk [vmem:[#allocation3 + $0x288] sm:$0xff] %vm918, %v877
      %947 = vst.msk [vmem:[#allocation3 + $0x2a0] sm:$0xff] %vm918, %v879
      %948 = vst.msk [vmem:[#allocation3 + $0x2b8] sm:$0xff] %vm918, %v881
      %949 = vst.msk [vmem:[#allocation3 + $0x2d0] sm:$0xff] %vm918, %v883
      %950 = vst.msk [vmem:[#allocation3 + $0x2e8] sm:$0xff] %vm918, %v885
      %v951 = vld [vmem:[%s757 + $0x1] sm:$0xff]
      %v952 = vld [vmem:[%s757 + $0x9] sm:$0xff]
      %v953 = vld [vmem:[%s757 + $0x19] sm:$0xff]
      %v954 = vld [vmem:[%s757 + $0x21] sm:$0xff]
      %v955 = vld [vmem:[%s757 + $0x31] sm:$0xff]
      %v956 = vld [vmem:[%s757 + $0x39] sm:$0xff]
      %v957 = vld [vmem:[%s757 + $0x49] sm:$0xff]
      %v958 = vld [vmem:[%s757 + $0x51] sm:$0xff]
      %v959 = vld [vmem:[%s757 + $0x61] sm:$0xff]
      %v960 = vld [vmem:[%s757 + $0x69] sm:$0xff]
      %v961 = vld [vmem:[%s757 + $0x79] sm:$0xff]
      %v962 = vld [vmem:[%s757 + $0x81] sm:$0xff]
      %v963 = vld [vmem:[%s757 + $0x91] sm:$0xff]
      %v964 = vld [vmem:[%s757 + $0x99] sm:$0xff]
      %v965 = vld [vmem:[%s757 + $0xa9] sm:$0xff]
      %v966 = vld [vmem:[%s757 + $0xb1] sm:$0xff]
      %v967 = vld [vmem:[%s757 + $0xc1] sm:$0xff]
      %v968 = vld [vmem:[%s757 + $0xc9] sm:$0xff]
      %v969 = vld [vmem:[%s757 + $0xd9] sm:$0xff]
      %v970 = vld [vmem:[%s757 + $0xe1] sm:$0xff]
      %v971 = vld [vmem:[%s757 + $0xf1] sm:$0xff]
      %v972 = vld [vmem:[%s757 + $0xf9] sm:$0xff]
      %v973 = vld [vmem:[%s757 + $0x109] sm:$0xff]
      %v974 = vld [vmem:[%s757 + $0x111] sm:$0xff]
      %v975 = vld [vmem:[%s757 + $0x121] sm:$0xff]
      %v976 = vld [vmem:[%s757 + $0x129] sm:$0xff]
      %v977 = vld [vmem:[%s757 + $0x139] sm:$0xff]
      %v978 = vld [vmem:[%s757 + $0x141] sm:$0xff]
      %v979 = vld [vmem:[%s757 + $0x151] sm:$0xff]
      %v980 = vld [vmem:[%s757 + $0x159] sm:$0xff]
      %v981 = vld [vmem:[%s757 + $0x169] sm:$0xff]
      %v982 = vld [vmem:[%s757 + $0x171] sm:$0xff]
      %1015 = vrot.lane.b32.xlu0 %v951, 32
      %v1016 = vpop.permute.xlu0 %1015
      %1017 = vrot.lane.b32.xlu0 %v952, 32
      %v1018 = vpop.permute.xlu0 %1017
      %1019 = vrot.lane.b32.xlu0 %v953, 32
      %v1020 = vpop.permute.xlu0 %1019
      %1021 = vrot.lane.b32.xlu0 %v954, 32
      %v1022 = vpop.permute.xlu0 %1021
      %1023 = vrot.lane.b32.xlu0 %v955, 32
      %v1024 = vpop.permute.xlu0 %1023
      %1025 = vrot.lane.b32.xlu0 %v956, 32
      %v1026 = vpop.permute.xlu0 %1025
      %1027 = vrot.lane.b32.xlu0 %v957, 32
      %v1028 = vpop.permute.xlu0 %1027
      %1029 = vrot.lane.b32.xlu0 %v958, 32
      %v1030 = vpop.permute.xlu0 %1029
      %1031 = vrot.lane.b32.xlu0 %v959, 32
      %v1032 = vpop.permute.xlu0 %1031
      %1033 = vrot.lane.b32.xlu0 %v960, 32
      %v1034 = vpop.permute.xlu0 %1033
      %1035 = vrot.lane.b32.xlu0 %v961, 32
      %v1036 = vpop.permute.xlu0 %1035
      %1037 = vrot.lane.b32.xlu0 %v962, 32
      %v1038 = vpop.permute.xlu0 %1037
      %1039 = vrot.lane.b32.xlu0 %v963, 32
      %v1040 = vpop.permute.xlu0 %1039
      %1041 = vrot.lane.b32.xlu0 %v964, 32
      %v1042 = vpop.permute.xlu0 %1041
      %1043 = vrot.lane.b32.xlu0 %v965, 32
      %v1044 = vpop.permute.xlu0 %1043
      %1045 = vrot.lane.b32.xlu0 %v966, 32
      %v1046 = vpop.permute.xlu0 %1045
      %1047 = vrot.lane.b32.xlu0 %v967, 32
      %v1048 = vpop.permute.xlu0 %1047
      %1049 = vrot.lane.b32.xlu0 %v968, 32
      %v1050 = vpop.permute.xlu0 %1049
      %1051 = vrot.lane.b32.xlu0 %v969, 32
      %v1052 = vpop.permute.xlu0 %1051
      %1053 = vrot.lane.b32.xlu0 %v970, 32
      %v1054 = vpop.permute.xlu0 %1053
      %1055 = vrot.lane.b32.xlu0 %v971, 32
      %v1056 = vpop.permute.xlu0 %1055
      %1057 = vrot.lane.b32.xlu0 %v972, 32
      %v1058 = vpop.permute.xlu0 %1057
      %1059 = vrot.lane.b32.xlu0 %v973, 32
      %v1060 = vpop.permute.xlu0 %1059
      %1061 = vrot.lane.b32.xlu0 %v974, 32
      %v1062 = vpop.permute.xlu0 %1061
      %1063 = vrot.lane.b32.xlu0 %v975, 32
      %v1064 = vpop.permute.xlu0 %1063
      %1065 = vrot.lane.b32.xlu0 %v976, 32
      %v1066 = vpop.permute.xlu0 %1065
      %1067 = vrot.lane.b32.xlu0 %v977, 32
      %v1068 = vpop.permute.xlu0 %1067
      %1069 = vrot.lane.b32.xlu0 %v978, 32
      %v1070 = vpop.permute.xlu0 %1069
      %1071 = vrot.lane.b32.xlu0 %v979, 32
      %v1072 = vpop.permute.xlu0 %1071
      %1073 = vrot.lane.b32.xlu0 %v980, 32
      %v1074 = vpop.permute.xlu0 %1073
      %1075 = vrot.lane.b32.xlu0 %v981, 32
      %v1076 = vpop.permute.xlu0 %1075
      %1077 = vrot.lane.b32.xlu0 %v982, 32
      %v1078 = vpop.permute.xlu0 %1077
      %vm1111 = vcmask 326912
      %1112 = vst.msk [vmem:[#allocation3] sm:$0xff] %vm1111, %v1016
      %1113 = vst.msk [vmem:[#allocation3 + $0x18] sm:$0xff] %vm1111, %v1018
      %1114 = vst.msk [vmem:[#allocation3 + $0x30] sm:$0xff] %vm1111, %v1020
      %1115 = vst.msk [vmem:[#allocation3 + $0x48] sm:$0xff] %vm1111, %v1022
      %1116 = vst.msk [vmem:[#allocation3 + $0x60] sm:$0xff] %vm1111, %v1024
      %1117 = vst.msk [vmem:[#allocation3 + $0x78] sm:$0xff] %vm1111, %v1026
      %1118 = vst.msk [vmem:[#allocation3 + $0x90] sm:$0xff] %vm1111, %v1028
      %1119 = vst.msk [vmem:[#allocation3 + $0xa8] sm:$0xff] %vm1111, %v1030
      %1120 = vst.msk [vmem:[#allocation3 + $0xc0] sm:$0xff] %vm1111, %v1032
      %1121 = vst.msk [vmem:[#allocation3 + $0xd8] sm:$0xff] %vm1111, %v1034
      %1122 = vst.msk [vmem:[#allocation3 + $0xf0] sm:$0xff] %vm1111, %v1036
      %1123 = vst.msk [vmem:[#allocation3 + $0x108] sm:$0xff] %vm1111, %v1038
      %1124 = vst.msk [vmem:[#allocation3 + $0x120] sm:$0xff] %vm1111, %v1040
      %1125 = vst.msk [vmem:[#allocation3 + $0x138] sm:$0xff] %vm1111, %v1042
      %1126 = vst.msk [vmem:[#allocation3 + $0x150] sm:$0xff] %vm1111, %v1044
      %1127 = vst.msk [vmem:[#allocation3 + $0x168] sm:$0xff] %vm1111, %v1046
      %1128 = vst.msk [vmem:[#allocation3 + $0x180] sm:$0xff] %vm1111, %v1048
      %1129 = vst.msk [vmem:[#allocation3 + $0x198] sm:$0xff] %vm1111, %v1050
      %1130 = vst.msk [vmem:[#allocation3 + $0x1b0] sm:$0xff] %vm1111, %v1052
      %1131 = vst.msk [vmem:[#allocation3 + $0x1c8] sm:$0xff] %vm1111, %v1054
      %1132 = vst.msk [vmem:[#allocation3 + $0x1e0] sm:$0xff] %vm1111, %v1056
      %1133 = vst.msk [vmem:[#allocation3 + $0x1f8] sm:$0xff] %vm1111, %v1058
      %1134 = vst.msk [vmem:[#allocation3 + $0x210] sm:$0xff] %vm1111, %v1060
      %1135 = vst.msk [vmem:[#allocation3 + $0x228] sm:$0xff] %vm1111, %v1062
      %1136 = vst.msk [vmem:[#allocation3 + $0x240] sm:$0xff] %vm1111, %v1064
      %1137 = vst.msk [vmem:[#allocation3 + $0x258] sm:$0xff] %vm1111, %v1066
      %1138 = vst.msk [vmem:[#allocation3 + $0x270] sm:$0xff] %vm1111, %v1068
      %1139 = vst.msk [vmem:[#allocation3 + $0x288] sm:$0xff] %vm1111, %v1070
      %1140 = vst.msk [vmem:[#allocation3 + $0x2a0] sm:$0xff] %vm1111, %v1072
      %1141 = vst.msk [vmem:[#allocation3 + $0x2b8] sm:$0xff] %vm1111, %v1074
      %1142 = vst.msk [vmem:[#allocation3 + $0x2d0] sm:$0xff] %vm1111, %v1076
      %1143 = vst.msk [vmem:[#allocation3 + $0x2e8] sm:$0xff] %vm1111, %v1078
      %v1144 = vld [vmem:[%s757 + $0x2] sm:$0xff]
      %v1145 = vld [vmem:[%s757 + $0xa] sm:$0xff]
      %v1146 = vld [vmem:[%s757 + $0x1a] sm:$0xff]
      %v1147 = vld [vmem:[%s757 + $0x22] sm:$0xff]
      %v1148 = vld [vmem:[%s757 + $0x32] sm:$0xff]
      %v1149 = vld [vmem:[%s757 + $0x3a] sm:$0xff]
      %v1150 = vld [vmem:[%s757 + $0x4a] sm:$0xff]
      %v1151 = vld [vmem:[%s757 + $0x52] sm:$0xff]
      %v1152 = vld [vmem:[%s757 + $0x62] sm:$0xff]
      %v1153 = vld [vmem:[%s757 + $0x6a] sm:$0xff]
      %v1154 = vld [vmem:[%s757 + $0x7a] sm:$0xff]
      %v1155 = vld [vmem:[%s757 + $0x82] sm:$0xff]
      %v1156 = vld [vmem:[%s757 + $0x92] sm:$0xff]
      %v1157 = vld [vmem:[%s757 + $0x9a] sm:$0xff]
      %v1158 = vld [vmem:[%s757 + $0xaa] sm:$0xff]
      %v1159 = vld [vmem:[%s757 + $0xb2] sm:$0xff]
      %v1160 = vld [vmem:[%s757 + $0xc2] sm:$0xff]
      %v1161 = vld [vmem:[%s757 + $0xca] sm:$0xff]
      %v1162 = vld [vmem:[%s757 + $0xda] sm:$0xff]
      %v1163 = vld [vmem:[%s757 + $0xe2] sm:$0xff]
      %v1164 = vld [vmem:[%s757 + $0xf2] sm:$0xff]
      %v1165 = vld [vmem:[%s757 + $0xfa] sm:$0xff]
      %v1166 = vld [vmem:[%s757 + $0x10a] sm:$0xff]
      %v1167 = vld [vmem:[%s757 + $0x112] sm:$0xff]
      %v1168 = vld [vmem:[%s757 + $0x122] sm:$0xff]
      %v1169 = vld [vmem:[%s757 + $0x12a] sm:$0xff]
      %v1170 = vld [vmem:[%s757 + $0x13a] sm:$0xff]
      %v1171 = vld [vmem:[%s757 + $0x142] sm:$0xff]
      %v1172 = vld [vmem:[%s757 + $0x152] sm:$0xff]
      %v1173 = vld [vmem:[%s757 + $0x15a] sm:$0xff]
      %v1174 = vld [vmem:[%s757 + $0x16a] sm:$0xff]
      %v1175 = vld [vmem:[%s757 + $0x172] sm:$0xff]
      %1208 = vrot.lane.b32.xlu0 %v1144, 40
      %v1209 = vpop.permute.xlu0 %1208
      %1210 = vrot.lane.b32.xlu0 %v1145, 40
      %v1211 = vpop.permute.xlu0 %1210
      %1212 = vrot.lane.b32.xlu0 %v1146, 40
      %v1213 = vpop.permute.xlu0 %1212
      %1214 = vrot.lane.b32.xlu0 %v1147, 40
      %v1215 = vpop.permute.xlu0 %1214
      %1216 = vrot.lane.b32.xlu0 %v1148, 40
      %v1217 = vpop.permute.xlu0 %1216
      %1218 = vrot.lane.b32.xlu0 %v1149, 40
      %v1219 = vpop.permute.xlu0 %1218
      %1220 = vrot.lane.b32.xlu0 %v1150, 40
      %v1221 = vpop.permute.xlu0 %1220
      %1222 = vrot.lane.b32.xlu0 %v1151, 40
      %v1223 = vpop.permute.xlu0 %1222
      %1224 = vrot.lane.b32.xlu0 %v1152, 40
      %v1225 = vpop.permute.xlu0 %1224
      %1226 = vrot.lane.b32.xlu0 %v1153, 40
      %v1227 = vpop.permute.xlu0 %1226
      %1228 = vrot.lane.b32.xlu0 %v1154, 40
      %v1229 = vpop.permute.xlu0 %1228
      %1230 = vrot.lane.b32.xlu0 %v1155, 40
      %v1231 = vpop.permute.xlu0 %1230
      %1232 = vrot.lane.b32.xlu0 %v1156, 40
      %v1233 = vpop.permute.xlu0 %1232
      %1234 = vrot.lane.b32.xlu0 %v1157, 40
      %v1235 = vpop.permute.xlu0 %1234
      %1236 = vrot.lane.b32.xlu0 %v1158, 40
      %v1237 = vpop.permute.xlu0 %1236
      %1238 = vrot.lane.b32.xlu0 %v1159, 40
      %v1239 = vpop.permute.xlu0 %1238
      %1240 = vrot.lane.b32.xlu0 %v1160, 40
      %v1241 = vpop.permute.xlu0 %1240
      %1242 = vrot.lane.b32.xlu0 %v1161, 40
      %v1243 = vpop.permute.xlu0 %1242
      %1244 = vrot.lane.b32.xlu0 %v1162, 40
      %v1245 = vpop.permute.xlu0 %1244
      %1246 = vrot.lane.b32.xlu0 %v1163, 40
      %v1247 = vpop.permute.xlu0 %1246
      %1248 = vrot.lane.b32.xlu0 %v1164, 40
      %v1249 = vpop.permute.xlu0 %1248
      %1250 = vrot.lane.b32.xlu0 %v1165, 40
      %v1251 = vpop.permute.xlu0 %1250
      %1252 = vrot.lane.b32.xlu0 %v1166, 40
      %v1253 = vpop.permute.xlu0 %1252
      %1254 = vrot.lane.b32.xlu0 %v1167, 40
      %v1255 = vpop.permute.xlu0 %1254
      %1256 = vrot.lane.b32.xlu0 %v1168, 40
      %v1257 = vpop.permute.xlu0 %1256
      %1258 = vrot.lane.b32.xlu0 %v1169, 40
      %v1259 = vpop.permute.xlu0 %1258
      %1260 = vrot.lane.b32.xlu0 %v1170, 40
      %v1261 = vpop.permute.xlu0 %1260
      %1262 = vrot.lane.b32.xlu0 %v1171, 40
      %v1263 = vpop.permute.xlu0 %1262
      %1264 = vrot.lane.b32.xlu0 %v1172, 40
      %v1265 = vpop.permute.xlu0 %1264
      %1266 = vrot.lane.b32.xlu0 %v1173, 40
      %v1267 = vpop.permute.xlu0 %1266
      %1268 = vrot.lane.b32.xlu0 %v1174, 40
      %v1269 = vpop.permute.xlu0 %1268
      %1270 = vrot.lane.b32.xlu0 %v1175, 40
      %v1271 = vpop.permute.xlu0 %1270
      %vm1304 = vcmask 392512
      %1305 = vst.msk [vmem:[#allocation3] sm:$0xff] %vm1304, %v1209
      %1306 = vst.msk [vmem:[#allocation3 + $0x18] sm:$0xff] %vm1304, %v1211
      %1307 = vst.msk [vmem:[#allocation3 + $0x30] sm:$0xff] %vm1304, %v1213
      %1308 = vst.msk [vmem:[#allocation3 + $0x48] sm:$0xff] %vm1304, %v1215
      %1309 = vst.msk [vmem:[#allocation3 + $0x60] sm:$0xff] %vm1304, %v1217
      %1310 = vst.msk [vmem:[#allocation3 + $0x78] sm:$0xff] %vm1304, %v1219
      %1311 = vst.msk [vmem:[#allocation3 + $0x90] sm:$0xff] %vm1304, %v1221
      %1312 = vst.msk [vmem:[#allocation3 + $0xa8] sm:$0xff] %vm1304, %v1223
      %1313 = vst.msk [vmem:[#allocation3 + $0xc0] sm:$0xff] %vm1304, %v1225
      %1314 = vst.msk [vmem:[#allocation3 + $0xd8] sm:$0xff] %vm1304, %v1227
      %1315 = vst.msk [vmem:[#allocation3 + $0xf0] sm:$0xff] %vm1304, %v1229
      %1316 = vst.msk [vmem:[#allocation3 + $0x108] sm:$0xff] %vm1304, %v1231
      %1317 = vst.msk [vmem:[#allocation3 + $0x120] sm:$0xff] %vm1304, %v1233
      %1318 = vst.msk [vmem:[#allocation3 + $0x138] sm:$0xff] %vm1304, %v1235
      %1319 = vst.msk [vmem:[#allocation3 + $0x150] sm:$0xff] %vm1304, %v1237
      %1320 = vst.msk [vmem:[#allocation3 + $0x168] sm:$0xff] %vm1304, %v1239
      %1321 = vst.msk [vmem:[#allocation3 + $0x180] sm:$0xff] %vm1304, %v1241
      %1322 = vst.msk [vmem:[#allocation3 + $0x198] sm:$0xff] %vm1304, %v1243
      %1323 = vst.msk [vmem:[#allocation3 + $0x1b0] sm:$0xff] %vm1304, %v1245
      %1324 = vst.msk [vmem:[#allocation3 + $0x1c8] sm:$0xff] %vm1304, %v1247
      %1325 = vst.msk [vmem:[#allocation3 + $0x1e0] sm:$0xff] %vm1304, %v1249
      %1326 = vst.msk [vmem:[#allocation3 + $0x1f8] sm:$0xff] %vm1304, %v1251
      %1327 = vst.msk [vmem:[#allocation3 + $0x210] sm:$0xff] %vm1304, %v1253
      %1328 = vst.msk [vmem:[#allocation3 + $0x228] sm:$0xff] %vm1304, %v1255
      %1329 = vst.msk [vmem:[#allocation3 + $0x240] sm:$0xff] %vm1304, %v1257
      %1330 = vst.msk [vmem:[#allocation3 + $0x258] sm:$0xff] %vm1304, %v1259
      %1331 = vst.msk [vmem:[#allocation3 + $0x270] sm:$0xff] %vm1304, %v1261
      %1332 = vst.msk [vmem:[#allocation3 + $0x288] sm:$0xff] %vm1304, %v1263
      %1333 = vst.msk [vmem:[#allocation3 + $0x2a0] sm:$0xff] %vm1304, %v1265
      %1334 = vst.msk [vmem:[#allocation3 + $0x2b8] sm:$0xff] %vm1304, %v1267
      %1335 = vst.msk [vmem:[#allocation3 + $0x2d0] sm:$0xff] %vm1304, %v1269
      %1336 = vst.msk [vmem:[#allocation3 + $0x2e8] sm:$0xff] %vm1304, %v1271
      %s1337 = scalar_lea.vmem %s300, 48
      %v1338 = vld [vmem:[%s1337] sm:$0xff]
      %v1339 = vld [vmem:[%s1337 + $0x8] sm:$0xff]
      %v1340 = vld [vmem:[%s1337 + $0x18] sm:$0xff]
      %v1341 = vld [vmem:[%s1337 + $0x20] sm:$0xff]
      %v1342 = vld [vmem:[%s1337 + $0x30] sm:$0xff]
      %v1343 = vld [vmem:[%s1337 + $0x38] sm:$0xff]
      %v1344 = vld [vmem:[%s1337 + $0x48] sm:$0xff]
      %v1345 = vld [vmem:[%s1337 + $0x50] sm:$0xff]
      %v1346 = vld [vmem:[%s1337 + $0x60] sm:$0xff]
      %v1347 = vld [vmem:[%s1337 + $0x68] sm:$0xff]
      %v1348 = vld [vmem:[%s1337 + $0x78] sm:$0xff]
      %v1349 = vld [vmem:[%s1337 + $0x80] sm:$0xff]
      %v1350 = vld [vmem:[%s1337 + $0x90] sm:$0xff]
      %v1351 = vld [vmem:[%s1337 + $0x98] sm:$0xff]
      %v1352 = vld [vmem:[%s1337 + $0xa8] sm:$0xff]
      %v1353 = vld [vmem:[%s1337 + $0xb0] sm:$0xff]
      %v1354 = vld [vmem:[%s1337 + $0xc0] sm:$0xff]
      %v1355 = vld [vmem:[%s1337 + $0xc8] sm:$0xff]
      %v1356 = vld [vmem:[%s1337 + $0xd8] sm:$0xff]
      %v1357 = vld [vmem:[%s1337 + $0xe0] sm:$0xff]
      %v1358 = vld [vmem:[%s1337 + $0xf0] sm:$0xff]
      %v1359 = vld [vmem:[%s1337 + $0xf8] sm:$0xff]
      %v1360 = vld [vmem:[%s1337 + $0x108] sm:$0xff]
      %v1361 = vld [vmem:[%s1337 + $0x110] sm:$0xff]
      %v1362 = vld [vmem:[%s1337 + $0x120] sm:$0xff]
      %v1363 = vld [vmem:[%s1337 + $0x128] sm:$0xff]
      %v1364 = vld [vmem:[%s1337 + $0x138] sm:$0xff]
      %v1365 = vld [vmem:[%s1337 + $0x140] sm:$0xff]
      %v1366 = vld [vmem:[%s1337 + $0x150] sm:$0xff]
      %v1367 = vld [vmem:[%s1337 + $0x158] sm:$0xff]
      %v1368 = vld [vmem:[%s1337 + $0x168] sm:$0xff]
      %v1369 = vld [vmem:[%s1337 + $0x170] sm:$0xff]
      %1402 = vrot.lane.b32.xlu0 %v1338, 48
      %v1403 = vpop.permute.xlu0 %1402
      %1404 = vrot.lane.b32.xlu0 %v1339, 48
      %v1405 = vpop.permute.xlu0 %1404
      %1406 = vrot.lane.b32.xlu0 %v1340, 48
      %v1407 = vpop.permute.xlu0 %1406
      %1408 = vrot.lane.b32.xlu0 %v1341, 48
      %v1409 = vpop.permute.xlu0 %1408
      %1410 = vrot.lane.b32.xlu0 %v1342, 48
      %v1411 = vpop.permute.xlu0 %1410
      %1412 = vrot.lane.b32.xlu0 %v1343, 48
      %v1413 = vpop.permute.xlu0 %1412
      %1414 = vrot.lane.b32.xlu0 %v1344, 48
      %v1415 = vpop.permute.xlu0 %1414
      %1416 = vrot.lane.b32.xlu0 %v1345, 48
      %v1417 = vpop.permute.xlu0 %1416
      %1418 = vrot.lane.b32.xlu0 %v1346, 48
      %v1419 = vpop.permute.xlu0 %1418
      %1420 = vrot.lane.b32.xlu0 %v1347, 48
      %v1421 = vpop.permute.xlu0 %1420
      %1422 = vrot.lane.b32.xlu0 %v1348, 48
      %v1423 = vpop.permute.xlu0 %1422
      %1424 = vrot.lane.b32.xlu0 %v1349, 48
      %v1425 = vpop.permute.xlu0 %1424
      %1426 = vrot.lane.b32.xlu0 %v1350, 48
      %v1427 = vpop.permute.xlu0 %1426
      %1428 = vrot.lane.b32.xlu0 %v1351, 48
      %v1429 = vpop.permute.xlu0 %1428
      %1430 = vrot.lane.b32.xlu0 %v1352, 48
      %v1431 = vpop.permute.xlu0 %1430
      %1432 = vrot.lane.b32.xlu0 %v1353, 48
      %v1433 = vpop.permute.xlu0 %1432
      %1434 = vrot.lane.b32.xlu0 %v1354, 48
      %v1435 = vpop.permute.xlu0 %1434
      %1436 = vrot.lane.b32.xlu0 %v1355, 48
      %v1437 = vpop.permute.xlu0 %1436
      %1438 = vrot.lane.b32.xlu0 %v1356, 48
      %v1439 = vpop.permute.xlu0 %1438
      %1440 = vrot.lane.b32.xlu0 %v1357, 48
      %v1441 = vpop.permute.xlu0 %1440
      %1442 = vrot.lane.b32.xlu0 %v1358, 48
      %v1443 = vpop.permute.xlu0 %1442
      %1444 = vrot.lane.b32.xlu0 %v1359, 48
      %v1445 = vpop.permute.xlu0 %1444
      %1446 = vrot.lane.b32.xlu0 %v1360, 48
      %v1447 = vpop.permute.xlu0 %1446
      %1448 = vrot.lane.b32.xlu0 %v1361, 48
      %v1449 = vpop.permute.xlu0 %1448
      %1450 = vrot.lane.b32.xlu0 %v1362, 48
      %v1451 = vpop.permute.xlu0 %1450
      %1452 = vrot.lane.b32.xlu0 %v1363, 48
      %v1453 = vpop.permute.xlu0 %1452
      %1454 = vrot.lane.b32.xlu0 %v1364, 48
      %v1455 = vpop.permute.xlu0 %1454
      %1456 = vrot.lane.b32.xlu0 %v1365, 48
      %v1457 = vpop.permute.xlu0 %1456
      %1458 = vrot.lane.b32.xlu0 %v1366, 48
      %v1459 = vpop.permute.xlu0 %1458
      %1460 = vrot.lane.b32.xlu0 %v1367, 48
      %v1461 = vpop.permute.xlu0 %1460
      %1462 = vrot.lane.b32.xlu0 %v1368, 48
      %v1463 = vpop.permute.xlu0 %1462
      %1464 = vrot.lane.b32.xlu0 %v1369, 48
      %v1465 = vpop.permute.xlu0 %1464
      %vm1498 = vcmask 458112
      %1499 = vst.msk [vmem:[#allocation3] sm:$0xff] %vm1498, %v1403
      %1500 = vst.msk [vmem:[#allocation3 + $0x18] sm:$0xff] %vm1498, %v1405
      %1501 = vst.msk [vmem:[#allocation3 + $0x30] sm:$0xff] %vm1498, %v1407
      %1502 = vst.msk [vmem:[#allocation3 + $0x48] sm:$0xff] %vm1498, %v1409
      %1503 = vst.msk [vmem:[#allocation3 + $0x60] sm:$0xff] %vm1498, %v1411
      %1504 = vst.msk [vmem:[#allocation3 + $0x78] sm:$0xff] %vm1498, %v1413
      %1505 = vst.msk [vmem:[#allocation3 + $0x90] sm:$0xff] %vm1498, %v1415
      %1506 = vst.msk [vmem:[#allocation3 + $0xa8] sm:$0xff] %vm1498, %v1417
      %1507 = vst.msk [vmem:[#allocation3 + $0xc0] sm:$0xff] %vm1498, %v1419
      %1508 = vst.msk [vmem:[#allocation3 + $0xd8] sm:$0xff] %vm1498, %v1421
      %1509 = vst.msk [vmem:[#allocation3 + $0xf0] sm:$0xff] %vm1498, %v1423
      %1510 = vst.msk [vmem:[#allocation3 + $0x108] sm:$0xff] %vm1498, %v1425
      %1511 = vst.msk [vmem:[#allocation3 + $0x120] sm:$0xff] %vm1498, %v1427
      %1512 = vst.msk [vmem:[#allocation3 + $0x138] sm:$0xff] %vm1498, %v1429
      %1513 = vst.msk [vmem:[#allocation3 + $0x150] sm:$0xff] %vm1498, %v1431
      %1514 = vst.msk [vmem:[#allocation3 + $0x168] sm:$0xff] %vm1498, %v1433
      %1515 = vst.msk [vmem:[#allocation3 + $0x180] sm:$0xff] %vm1498, %v1435
      %1516 = vst.msk [vmem:[#allocation3 + $0x198] sm:$0xff] %vm1498, %v1437
      %1517 = vst.msk [vmem:[#allocation3 + $0x1b0] sm:$0xff] %vm1498, %v1439
      %1518 = vst.msk [vmem:[#allocation3 + $0x1c8] sm:$0xff] %vm1498, %v1441
      %1519 = vst.msk [vmem:[#allocation3 + $0x1e0] sm:$0xff] %vm1498, %v1443
      %1520 = vst.msk [vmem:[#allocation3 + $0x1f8] sm:$0xff] %vm1498, %v1445
      %1521 = vst.msk [vmem:[#allocation3 + $0x210] sm:$0xff] %vm1498, %v1447
      %1522 = vst.msk [vmem:[#allocation3 + $0x228] sm:$0xff] %vm1498, %v1449
      %1523 = vst.msk [vmem:[#allocation3 + $0x240] sm:$0xff] %vm1498, %v1451
      %1524 = vst.msk [vmem:[#allocation3 + $0x258] sm:$0xff] %vm1498, %v1453
      %1525 = vst.msk [vmem:[#allocation3 + $0x270] sm:$0xff] %vm1498, %v1455
      %1526 = vst.msk [vmem:[#allocation3 + $0x288] sm:$0xff] %vm1498, %v1457
      %1527 = vst.msk [vmem:[#allocation3 + $0x2a0] sm:$0xff] %vm1498, %v1459
      %1528 = vst.msk [vmem:[#allocation3 + $0x2b8] sm:$0xff] %vm1498, %v1461
      %1529 = vst.msk [vmem:[#allocation3 + $0x2d0] sm:$0xff] %vm1498, %v1463
      %1530 = vst.msk [vmem:[#allocation3 + $0x2e8] sm:$0xff] %vm1498, %v1465
      %v1531 = vld [vmem:[%s1337 + $0x1] sm:$0xff]
      %v1532 = vld [vmem:[%s1337 + $0x9] sm:$0xff]
      %v1533 = vld [vmem:[%s1337 + $0x19] sm:$0xff]
      %v1534 = vld [vmem:[%s1337 + $0x21] sm:$0xff]
      %v1535 = vld [vmem:[%s1337 + $0x31] sm:$0xff]
      %v1536 = vld [vmem:[%s1337 + $0x39] sm:$0xff]
      %v1537 = vld [vmem:[%s1337 + $0x49] sm:$0xff]
      %v1538 = vld [vmem:[%s1337 + $0x51] sm:$0xff]
      %v1539 = vld [vmem:[%s1337 + $0x61] sm:$0xff]
      %v1540 = vld [vmem:[%s1337 + $0x69] sm:$0xff]
      %v1541 = vld [vmem:[%s1337 + $0x79] sm:$0xff]
      %v1542 = vld [vmem:[%s1337 + $0x81] sm:$0xff]
      %v1543 = vld [vmem:[%s1337 + $0x91] sm:$0xff]
      %v1544 = vld [vmem:[%s1337 + $0x99] sm:$0xff]
      %v1545 = vld [vmem:[%s1337 + $0xa9] sm:$0xff]
      %v1546 = vld [vmem:[%s1337 + $0xb1] sm:$0xff]
      %v1547 = vld [vmem:[%s1337 + $0xc1] sm:$0xff]
      %v1548 = vld [vmem:[%s1337 + $0xc9] sm:$0xff]
      %v1549 = vld [vmem:[%s1337 + $0xd9] sm:$0xff]
      %v1550 = vld [vmem:[%s1337 + $0xe1] sm:$0xff]
      %v1551 = vld [vmem:[%s1337 + $0xf1] sm:$0xff]
      %v1552 = vld [vmem:[%s1337 + $0xf9] sm:$0xff]
      %v1553 = vld [vmem:[%s1337 + $0x109] sm:$0xff]
      %v1554 = vld [vmem:[%s1337 + $0x111] sm:$0xff]
      %v1555 = vld [vmem:[%s1337 + $0x121] sm:$0xff]
      %v1556 = vld [vmem:[%s1337 + $0x129] sm:$0xff]
      %v1557 = vld [vmem:[%s1337 + $0x139] sm:$0xff]
      %v1558 = vld [vmem:[%s1337 + $0x141] sm:$0xff]
      %v1559 = vld [vmem:[%s1337 + $0x151] sm:$0xff]
      %v1560 = vld [vmem:[%s1337 + $0x159] sm:$0xff]
      %v1561 = vld [vmem:[%s1337 + $0x169] sm:$0xff]
      %v1562 = vld [vmem:[%s1337 + $0x171] sm:$0xff]
      %1595 = vrot.lane.b32.xlu0 %v1531, 56
      %v1596 = vpop.permute.xlu0 %1595
      %1597 = vrot.lane.b32.xlu0 %v1532, 56
      %v1598 = vpop.permute.xlu0 %1597
      %1599 = vrot.lane.b32.xlu0 %v1533, 56
      %v1600 = vpop.permute.xlu0 %1599
      %1601 = vrot.lane.b32.xlu0 %v1534, 56
      %v1602 = vpop.permute.xlu0 %1601
      %1603 = vrot.lane.b32.xlu0 %v1535, 56
      %v1604 = vpop.permute.xlu0 %1603
      %1605 = vrot.lane.b32.xlu0 %v1536, 56
      %v1606 = vpop.permute.xlu0 %1605
      %1607 = vrot.lane.b32.xlu0 %v1537, 56
      %v1608 = vpop.permute.xlu0 %1607
      %1609 = vrot.lane.b32.xlu0 %v1538, 56
      %v1610 = vpop.permute.xlu0 %1609
      %1611 = vrot.lane.b32.xlu0 %v1539, 56
      %v1612 = vpop.permute.xlu0 %1611
      %1613 = vrot.lane.b32.xlu0 %v1540, 56
      %v1614 = vpop.permute.xlu0 %1613
      %1615 = vrot.lane.b32.xlu0 %v1541, 56
      %v1616 = vpop.permute.xlu0 %1615
      %1617 = vrot.lane.b32.xlu0 %v1542, 56
      %v1618 = vpop.permute.xlu0 %1617
      %1619 = vrot.lane.b32.xlu0 %v1543, 56
      %v1620 = vpop.permute.xlu0 %1619
      %1621 = vrot.lane.b32.xlu0 %v1544, 56
      %v1622 = vpop.permute.xlu0 %1621
      %1623 = vrot.lane.b32.xlu0 %v1545, 56
      %v1624 = vpop.permute.xlu0 %1623
      %1625 = vrot.lane.b32.xlu0 %v1546, 56
      %v1626 = vpop.permute.xlu0 %1625
      %1627 = vrot.lane.b32.xlu0 %v1547, 56
      %v1628 = vpop.permute.xlu0 %1627
      %1629 = vrot.lane.b32.xlu0 %v1548, 56
      %v1630 = vpop.permute.xlu0 %1629
      %1631 = vrot.lane.b32.xlu0 %v1549, 56
      %v1632 = vpop.permute.xlu0 %1631
      %1633 = vrot.lane.b32.xlu0 %v1550, 56
      %v1634 = vpop.permute.xlu0 %1633
      %1635 = vrot.lane.b32.xlu0 %v1551, 56
      %v1636 = vpop.permute.xlu0 %1635
      %1637 = vrot.lane.b32.xlu0 %v1552, 56
      %v1638 = vpop.permute.xlu0 %1637
      %1639 = vrot.lane.b32.xlu0 %v1553, 56
      %v1640 = vpop.permute.xlu0 %1639
      %1641 = vrot.lane.b32.xlu0 %v1554, 56
      %v1642 = vpop.permute.xlu0 %1641
      %1643 = vrot.lane.b32.xlu0 %v1555, 56
      %v1644 = vpop.permute.xlu0 %1643
      %1645 = vrot.lane.b32.xlu0 %v1556, 56
      %v1646 = vpop.permute.xlu0 %1645
      %1647 = vrot.lane.b32.xlu0 %v1557, 56
      %v1648 = vpop.permute.xlu0 %1647
      %1649 = vrot.lane.b32.xlu0 %v1558, 56
      %v1650 = vpop.permute.xlu0 %1649
      %1651 = vrot.lane.b32.xlu0 %v1559, 56
      %v1652 = vpop.permute.xlu0 %1651
      %1653 = vrot.lane.b32.xlu0 %v1560, 56
      %v1654 = vpop.permute.xlu0 %1653
      %1655 = vrot.lane.b32.xlu0 %v1561, 56
      %v1656 = vpop.permute.xlu0 %1655
      %1657 = vrot.lane.b32.xlu0 %v1562, 56
      %v1658 = vpop.permute.xlu0 %1657
      %vm1691 = vcmask 523712
      %1692 = vst.msk [vmem:[#allocation3] sm:$0xff] %vm1691, %v1596
      %1693 = vst.msk [vmem:[#allocation3 + $0x18] sm:$0xff] %vm1691, %v1598
      %1694 = vst.msk [vmem:[#allocation3 + $0x30] sm:$0xff] %vm1691, %v1600
      %1695 = vst.msk [vmem:[#allocation3 + $0x48] sm:$0xff] %vm1691, %v1602
      %1696 = vst.msk [vmem:[#allocation3 + $0x60] sm:$0xff] %vm1691, %v1604
      %1697 = vst.msk [vmem:[#allocation3 + $0x78] sm:$0xff] %vm1691, %v1606
      %1698 = vst.msk [vmem:[#allocation3 + $0x90] sm:$0xff] %vm1691, %v1608
      %1699 = vst.msk [vmem:[#allocation3 + $0xa8] sm:$0xff] %vm1691, %v1610
      %1700 = vst.msk [vmem:[#allocation3 + $0xc0] sm:$0xff] %vm1691, %v1612
      %1701 = vst.msk [vmem:[#allocation3 + $0xd8] sm:$0xff] %vm1691, %v1614
      %1702 = vst.msk [vmem:[#allocation3 + $0xf0] sm:$0xff] %vm1691, %v1616
      %1703 = vst.msk [vmem:[#allocation3 + $0x108] sm:$0xff] %vm1691, %v1618
      %1704 = vst.msk [vmem:[#allocation3 + $0x120] sm:$0xff] %vm1691, %v1620
      %1705 = vst.msk [vmem:[#allocation3 + $0x138] sm:$0xff] %vm1691, %v1622
      %1706 = vst.msk [vmem:[#allocation3 + $0x150] sm:$0xff] %vm1691, %v1624
      %1707 = vst.msk [vmem:[#allocation3 + $0x168] sm:$0xff] %vm1691, %v1626
      %1708 = vst.msk [vmem:[#allocation3 + $0x180] sm:$0xff] %vm1691, %v1628
      %1709 = vst.msk [vmem:[#allocation3 + $0x198] sm:$0xff] %vm1691, %v1630
      %1710 = vst.msk [vmem:[#allocation3 + $0x1b0] sm:$0xff] %vm1691, %v1632
      %1711 = vst.msk [vmem:[#allocation3 + $0x1c8] sm:$0xff] %vm1691, %v1634
      %1712 = vst.msk [vmem:[#allocation3 + $0x1e0] sm:$0xff] %vm1691, %v1636
      %1713 = vst.msk [vmem:[#allocation3 + $0x1f8] sm:$0xff] %vm1691, %v1638
      %1714 = vst.msk [vmem:[#allocation3 + $0x210] sm:$0xff] %vm1691, %v1640
      %1715 = vst.msk [vmem:[#allocation3 + $0x228] sm:$0xff] %vm1691, %v1642
      %1716 = vst.msk [vmem:[#allocation3 + $0x240] sm:$0xff] %vm1691, %v1644
      %1717 = vst.msk [vmem:[#allocation3 + $0x258] sm:$0xff] %vm1691, %v1646
      %1718 = vst.msk [vmem:[#allocation3 + $0x270] sm:$0xff] %vm1691, %v1648
      %1719 = vst.msk [vmem:[#allocation3 + $0x288] sm:$0xff] %vm1691, %v1650
      %1720 = vst.msk [vmem:[#allocation3 + $0x2a0] sm:$0xff] %vm1691, %v1652
      %1721 = vst.msk [vmem:[#allocation3 + $0x2b8] sm:$0xff] %vm1691, %v1654
      %1722 = vst.msk [vmem:[#allocation3 + $0x2d0] sm:$0xff] %vm1691, %v1656
      %1723 = vst.msk [vmem:[#allocation3 + $0x2e8] sm:$0xff] %vm1691, %v1658
      %v1724 = vld [vmem:[%s1337 + $0x2] sm:$0xff]
      %v1725 = vld [vmem:[%s1337 + $0xa] sm:$0xff]
      %v1726 = vld [vmem:[%s1337 + $0x1a] sm:$0xff]
      %v1727 = vld [vmem:[%s1337 + $0x22] sm:$0xff]
      %v1728 = vld [vmem:[%s1337 + $0x32] sm:$0xff]
      %v1729 = vld [vmem:[%s1337 + $0x3a] sm:$0xff]
      %v1730 = vld [vmem:[%s1337 + $0x4a] sm:$0xff]
      %v1731 = vld [vmem:[%s1337 + $0x52] sm:$0xff]
      %v1732 = vld [vmem:[%s1337 + $0x62] sm:$0xff]
      %v1733 = vld [vmem:[%s1337 + $0x6a] sm:$0xff]
      %v1734 = vld [vmem:[%s1337 + $0x7a] sm:$0xff]
      %v1735 = vld [vmem:[%s1337 + $0x82] sm:$0xff]
      %v1736 = vld [vmem:[%s1337 + $0x92] sm:$0xff]
      %v1737 = vld [vmem:[%s1337 + $0x9a] sm:$0xff]
      %v1738 = vld [vmem:[%s1337 + $0xaa] sm:$0xff]
      %v1739 = vld [vmem:[%s1337 + $0xb2] sm:$0xff]
      %v1740 = vld [vmem:[%s1337 + $0xc2] sm:$0xff]
      %v1741 = vld [vmem:[%s1337 + $0xca] sm:$0xff]
      %v1742 = vld [vmem:[%s1337 + $0xda] sm:$0xff]
      %v1743 = vld [vmem:[%s1337 + $0xe2] sm:$0xff]
      %v1744 = vld [vmem:[%s1337 + $0xf2] sm:$0xff]
      %v1745 = vld [vmem:[%s1337 + $0xfa] sm:$0xff]
      %v1746 = vld [vmem:[%s1337 + $0x10a] sm:$0xff]
      %v1747 = vld [vmem:[%s1337 + $0x112] sm:$0xff]
      %v1748 = vld [vmem:[%s1337 + $0x122] sm:$0xff]
      %v1749 = vld [vmem:[%s1337 + $0x12a] sm:$0xff]
      %v1750 = vld [vmem:[%s1337 + $0x13a] sm:$0xff]
      %v1751 = vld [vmem:[%s1337 + $0x142] sm:$0xff]
      %v1752 = vld [vmem:[%s1337 + $0x152] sm:$0xff]
      %v1753 = vld [vmem:[%s1337 + $0x15a] sm:$0xff]
      %v1754 = vld [vmem:[%s1337 + $0x16a] sm:$0xff]
      %v1755 = vld [vmem:[%s1337 + $0x172] sm:$0xff]
      %1788 = vrot.lane.b32.xlu0 %v1724, 64
      %v1789 = vpop.permute.xlu0 %1788
      %1790 = vrot.lane.b32.xlu0 %v1725, 64
      %v1791 = vpop.permute.xlu0 %1790
      %1792 = vrot.lane.b32.xlu0 %v1726, 64
      %v1793 = vpop.permute.xlu0 %1792
      %1794 = vrot.lane.b32.xlu0 %v1727, 64
      %v1795 = vpop.permute.xlu0 %1794
      %1796 = vrot.lane.b32.xlu0 %v1728, 64
      %v1797 = vpop.permute.xlu0 %1796
      %1798 = vrot.lane.b32.xlu0 %v1729, 64
      %v1799 = vpop.permute.xlu0 %1798
      %1800 = vrot.lane.b32.xlu0 %v1730, 64
      %v1801 = vpop.permute.xlu0 %1800
      %1802 = vrot.lane.b32.xlu0 %v1731, 64
      %v1803 = vpop.permute.xlu0 %1802
      %1804 = vrot.lane.b32.xlu0 %v1732, 64
      %v1805 = vpop.permute.xlu0 %1804
      %1806 = vrot.lane.b32.xlu0 %v1733, 64
      %v1807 = vpop.permute.xlu0 %1806
      %1808 = vrot.lane.b32.xlu0 %v1734, 64
      %v1809 = vpop.permute.xlu0 %1808
      %1810 = vrot.lane.b32.xlu0 %v1735, 64
      %v1811 = vpop.permute.xlu0 %1810
      %1812 = vrot.lane.b32.xlu0 %v1736, 64
      %v1813 = vpop.permute.xlu0 %1812
      %1814 = vrot.lane.b32.xlu0 %v1737, 64
      %v1815 = vpop.permute.xlu0 %1814
      %1816 = vrot.lane.b32.xlu0 %v1738, 64
      %v1817 = vpop.permute.xlu0 %1816
      %1818 = vrot.lane.b32.xlu0 %v1739, 64
      %v1819 = vpop.permute.xlu0 %1818
      %1820 = vrot.lane.b32.xlu0 %v1740, 64
      %v1821 = vpop.permute.xlu0 %1820
      %1822 = vrot.lane.b32.xlu0 %v1741, 64
      %v1823 = vpop.permute.xlu0 %1822
      %1824 = vrot.lane.b32.xlu0 %v1742, 64
      %v1825 = vpop.permute.xlu0 %1824
      %1826 = vrot.lane.b32.xlu0 %v1743, 64
      %v1827 = vpop.permute.xlu0 %1826
      %1828 = vrot.lane.b32.xlu0 %v1744, 64
      %v1829 = vpop.permute.xlu0 %1828
      %1830 = vrot.lane.b32.xlu0 %v1745, 64
      %v1831 = vpop.permute.xlu0 %1830
      %1832 = vrot.lane.b32.xlu0 %v1746, 64
      %v1833 = vpop.permute.xlu0 %1832
      %1834 = vrot.lane.b32.xlu0 %v1747, 64
      %v1835 = vpop.permute.xlu0 %1834
      %1836 = vrot.lane.b32.xlu0 %v1748, 64
      %v1837 = vpop.permute.xlu0 %1836
      %1838 = vrot.lane.b32.xlu0 %v1749, 64
      %v1839 = vpop.permute.xlu0 %1838
      %1840 = vrot.lane.b32.xlu0 %v1750, 64
      %v1841 = vpop.permute.xlu0 %1840
      %1842 = vrot.lane.b32.xlu0 %v1751, 64
      %v1843 = vpop.permute.xlu0 %1842
      %1844 = vrot.lane.b32.xlu0 %v1752, 64
      %v1845 = vpop.permute.xlu0 %1844
      %1846 = vrot.lane.b32.xlu0 %v1753, 64
      %v1847 = vpop.permute.xlu0 %1846
      %1848 = vrot.lane.b32.xlu0 %v1754, 64
      %v1849 = vpop.permute.xlu0 %1848
      %1850 = vrot.lane.b32.xlu0 %v1755, 64
      %v1851 = vpop.permute.xlu0 %1850
      %vm1884 = vcmask 589312
      %1885 = vst.msk [vmem:[#allocation3] sm:$0xff] %vm1884, %v1789
      %1886 = vst.msk [vmem:[#allocation3 + $0x18] sm:$0xff] %vm1884, %v1791
      %1887 = vst.msk [vmem:[#allocation3 + $0x30] sm:$0xff] %vm1884, %v1793
      %1888 = vst.msk [vmem:[#allocation3 + $0x48] sm:$0xff] %vm1884, %v1795
      %1889 = vst.msk [vmem:[#allocation3 + $0x60] sm:$0xff] %vm1884, %v1797
      %1890 = vst.msk [vmem:[#allocation3 + $0x78] sm:$0xff] %vm1884, %v1799
      %1891 = vst.msk [vmem:[#allocation3 + $0x90] sm:$0xff] %vm1884, %v1801
      %1892 = vst.msk [vmem:[#allocation3 + $0xa8] sm:$0xff] %vm1884, %v1803
      %1893 = vst.msk [vmem:[#allocation3 + $0xc0] sm:$0xff] %vm1884, %v1805
      %1894 = vst.msk [vmem:[#allocation3 + $0xd8] sm:$0xff] %vm1884, %v1807
      %1895 = vst.msk [vmem:[#allocation3 + $0xf0] sm:$0xff] %vm1884, %v1809
      %1896 = vst.msk [vmem:[#allocation3 + $0x108] sm:$0xff] %vm1884, %v1811
      %1897 = vst.msk [vmem:[#allocation3 + $0x120] sm:$0xff] %vm1884, %v1813
      %1898 = vst.msk [vmem:[#allocation3 + $0x138] sm:$0xff] %vm1884, %v1815
      %1899 = vst.msk [vmem:[#allocation3 + $0x150] sm:$0xff] %vm1884, %v1817
      %1900 = vst.msk [vmem:[#allocation3 + $0x168] sm:$0xff] %vm1884, %v1819
      %1901 = vst.msk [vmem:[#allocation3 + $0x180] sm:$0xff] %vm1884, %v1821
      %1902 = vst.msk [vmem:[#allocation3 + $0x198] sm:$0xff] %vm1884, %v1823
      %1903 = vst.msk [vmem:[#allocation3 + $0x1b0] sm:$0xff] %vm1884, %v1825
      %1904 = vst.msk [vmem:[#allocation3 + $0x1c8] sm:$0xff] %vm1884, %v1827
      %1905 = vst.msk [vmem:[#allocation3 + $0x1e0] sm:$0xff] %vm1884, %v1829
      %1906 = vst.msk [vmem:[#allocation3 + $0x1f8] sm:$0xff] %vm1884, %v1831
      %1907 = vst.msk [vmem:[#allocation3 + $0x210] sm:$0xff] %vm1884, %v1833
      %1908 = vst.msk [vmem:[#allocation3 + $0x228] sm:$0xff] %vm1884, %v1835
      %1909 = vst.msk [vmem:[#allocation3 + $0x240] sm:$0xff] %vm1884, %v1837
      %1910 = vst.msk [vmem:[#allocation3 + $0x258] sm:$0xff] %vm1884, %v1839
      %1911 = vst.msk [vmem:[#allocation3 + $0x270] sm:$0xff] %vm1884, %v1841
      %1912 = vst.msk [vmem:[#allocation3 + $0x288] sm:$0xff] %vm1884, %v1843
      %1913 = vst.msk [vmem:[#allocation3 + $0x2a0] sm:$0xff] %vm1884, %v1845
      %1914 = vst.msk [vmem:[#allocation3 + $0x2b8] sm:$0xff] %vm1884, %v1847
      %1915 = vst.msk [vmem:[#allocation3 + $0x2d0] sm:$0xff] %vm1884, %v1849
      %1916 = vst.msk [vmem:[#allocation3 + $0x2e8] sm:$0xff] %vm1884, %v1851
      %v1917 = vld [vmem:[#allocation3] sm:$0xff]
      %v1918 = vld [vmem:[#allocation3 + $0x18] sm:$0xff]
      %v1919 = vld [vmem:[#allocation3 + $0x30] sm:$0xff]
      %v1920 = vld [vmem:[#allocation3 + $0x48] sm:$0xff]
      %v1921 = vld [vmem:[#allocation3 + $0x60] sm:$0xff]
      %v1922 = vld [vmem:[#allocation3 + $0x78] sm:$0xff]
      %v1923 = vld [vmem:[#allocation3 + $0x90] sm:$0xff]
      %v1924 = vld [vmem:[#allocation3 + $0xa8] sm:$0xff]
      %v1925 = vld [vmem:[#allocation3 + $0xc0] sm:$0xff]
      %v1926 = vld [vmem:[#allocation3 + $0xd8] sm:$0xff]
      %v1927 = vld [vmem:[#allocation3 + $0xf0] sm:$0xff]
      %v1928 = vld [vmem:[#allocation3 + $0x108] sm:$0xff]
      %v1929 = vld [vmem:[#allocation3 + $0x120] sm:$0xff]
      %v1930 = vld [vmem:[#allocation3 + $0x138] sm:$0xff]
      %v1931 = vld [vmem:[#allocation3 + $0x150] sm:$0xff]
      %v1932 = vld [vmem:[#allocation3 + $0x168] sm:$0xff]
      %v1933 = vld [vmem:[#allocation3 + $0x180] sm:$0xff]
      %v1934 = vld [vmem:[#allocation3 + $0x198] sm:$0xff]
      %v1935 = vld [vmem:[#allocation3 + $0x1b0] sm:$0xff]
      %v1936 = vld [vmem:[#allocation3 + $0x1c8] sm:$0xff]
      %v1937 = vld [vmem:[#allocation3 + $0x1e0] sm:$0xff]
      %v1938 = vld [vmem:[#allocation3 + $0x1f8] sm:$0xff]
      %v1939 = vld [vmem:[#allocation3 + $0x210] sm:$0xff]
      %v1940 = vld [vmem:[#allocation3 + $0x228] sm:$0xff]
      %v1941 = vld [vmem:[#allocation3 + $0x240] sm:$0xff]
      %v1942 = vld [vmem:[#allocation3 + $0x258] sm:$0xff]
      %v1943 = vld [vmem:[#allocation3 + $0x270] sm:$0xff]
      %v1944 = vld [vmem:[#allocation3 + $0x288] sm:$0xff]
      %v1945 = vld [vmem:[#allocation3 + $0x2a0] sm:$0xff]
      %v1946 = vld [vmem:[#allocation3 + $0x2b8] sm:$0xff]
      %v1947 = vld [vmem:[#allocation3 + $0x2d0] sm:$0xff]
      %v1948 = vld [vmem:[#allocation3 + $0x2e8] sm:$0xff]
      %v1949 = vld [vmem:[%s2] sm:$0xff]
      %v1950 = vld [vmem:[%s2 + $0x8] sm:$0xff]
      %v1951 = vld [vmem:[%s2 + $0x10] sm:$0xff]
      %v1952 = vld [vmem:[%s2 + $0x18] sm:$0xff]
      %v1953 = vld [vmem:[%s2 + $0x20] sm:$0xff]
      %v1954 = vld [vmem:[%s2 + $0x28] sm:$0xff]
      %v1955 = vld [vmem:[%s2 + $0x30] sm:$0xff]
      %v1956 = vld [vmem:[%s2 + $0x38] sm:$0xff]
      %v1957 = vld [vmem:[%s2 + $0x40] sm:$0xff]
      %v1958 = vld [vmem:[%s3] sm:$0x1]
      %v1960 = vperm.slane %v1958, 0
      %vm1962 = vcmask 588800
      %v1964 = vsel %vm1962, %v1917, 0
      %v1967 = vsel %vm1962, %v1918, 0
      %v1970 = vsel %vm1962, %v1919, 0
      %v1973 = vsel %vm1962, %v1920, 0
      %v1976 = vsel %vm1962, %v1921, 0
      %v1979 = vsel %vm1962, %v1922, 0
      %v1982 = vsel %vm1962, %v1923, 0
      %v1985 = vsel %vm1962, %v1924, 0
      %v1988 = vsel %vm1962, %v1925, 0
      %v1991 = vsel %vm1962, %v1926, 0
      %v1994 = vsel %vm1962, %v1927, 0
      %v1997 = vsel %vm1962, %v1928, 0
      %v2000 = vsel %vm1962, %v1929, 0
      %v2003 = vsel %vm1962, %v1930, 0
      %v2006 = vsel %vm1962, %v1931, 0
      %v2009 = vsel %vm1962, %v1932, 0
      %v2012 = vsel %vm1962, %v1933, 0
      %v2015 = vsel %vm1962, %v1934, 0
      %v2018 = vsel %vm1962, %v1935, 0
      %v2021 = vsel %vm1962, %v1936, 0
      %v2024 = vsel %vm1962, %v1937, 0
      %v2027 = vsel %vm1962, %v1938, 0
      %v2030 = vsel %vm1962, %v1939, 0
      %v2033 = vsel %vm1962, %v1940, 0
      %v2036 = vsel %vm1962, %v1941, 0
      %v2039 = vsel %vm1962, %v1942, 0
      %v2042 = vsel %vm1962, %v1943, 0
      %v2045 = vsel %vm1962, %v1944, 0
      %v2048 = vsel %vm1962, %v1945, 0
      %v2051 = vsel %vm1962, %v1946, 0
      %v2054 = vsel %vm1962, %v1947, 0
      %v2057 = vsel %vm1962, %v1948, 0
      %2059 = vmatpush.msra.mxu0 0.0
      %2060 = vmatpush.msra.mxu0 0.0
      %2061 = vmatpush.msra.mxu0 0.0
      %2062 = vmatpush.msra.mxu0 0.0
      %2063 = vmatpush.msra.mxu0 0.0
      %2064 = vmatpush.msra.mxu0 0.0
      %2065 = vmatpush.msra.mxu0 0.0
      %2066 = vmatpush.msra.mxu0 %v1957
      %2067 = vmatpush.msra.mxu0 %v1956
      %2068 = vmatpush.msra.mxu0 %v1955
      %2069 = vmatpush.msra.mxu0 %v1954
      %2070 = vmatpush.msra.mxu0 %v1953
      %2071 = vmatpush.msra.mxu0 %v1952
      %2072 = vmatpush.msra.mxu0 %v1951
      %2073 = vmatpush.msra.mxu0 %v1950
      %2074 = vmatpush.msra.mxu0 %v1949
      %2075 = vmatmul.f32.gmra.mxu0 %v1964
      %v2076 = vpop.f32.mrf.mxu0
      %v2077 = vadd.f32 %v1960, %v2076
      %2078 = vmatmul.f32.gmra.mxu0 %v1967
      %v2079 = vpop.f32.mrf.mxu0
      %v2080 = vadd.f32 %v1960, %v2079
      %2081 = vmatmul.f32.gmra.mxu0 %v1970
      %v2082 = vpop.f32.mrf.mxu0
      %v2083 = vadd.f32 %v1960, %v2082
      %2084 = vmatmul.f32.gmra.mxu0 %v1973
      %v2085 = vpop.f32.mrf.mxu0
      %v2086 = vadd.f32 %v1960, %v2085
      %2087 = vmatmul.f32.gmra.mxu0 %v1976
      %v2088 = vpop.f32.mrf.mxu0
      %v2089 = vadd.f32 %v1960, %v2088
      %2090 = vmatmul.f32.gmra.mxu0 %v1979
      %v2091 = vpop.f32.mrf.mxu0
      %v2092 = vadd.f32 %v1960, %v2091
      %2093 = vmatmul.f32.gmra.mxu0 %v1982
      %v2094 = vpop.f32.mrf.mxu0
      %v2095 = vadd.f32 %v1960, %v2094
      %2096 = vmatmul.f32.gmra.mxu0 %v1985
      %v2097 = vpop.f32.mrf.mxu0
      %v2098 = vadd.f32 %v1960, %v2097
      %2099 = vmatmul.f32.gmra.mxu0 %v1988
      %v2100 = vpop.f32.mrf.mxu0
      %v2101 = vadd.f32 %v1960, %v2100
      %2102 = vmatmul.f32.gmra.mxu0 %v1991
      %v2103 = vpop.f32.mrf.mxu0
      %v2104 = vadd.f32 %v1960, %v2103
      %2105 = vmatmul.f32.gmra.mxu0 %v1994
      %v2106 = vpop.f32.mrf.mxu0
      %v2107 = vadd.f32 %v1960, %v2106
      %2108 = vmatmul.f32.gmra.mxu0 %v1997
      %v2109 = vpop.f32.mrf.mxu0
      %v2110 = vadd.f32 %v1960, %v2109
      %2111 = vmatmul.f32.gmra.mxu0 %v2000
      %v2112 = vpop.f32.mrf.mxu0
      %v2113 = vadd.f32 %v1960, %v2112
      %2114 = vmatmul.f32.gmra.mxu0 %v2003
      %v2115 = vpop.f32.mrf.mxu0
      %v2116 = vadd.f32 %v1960, %v2115
      %2117 = vmatmul.f32.gmra.mxu0 %v2006
      %v2118 = vpop.f32.mrf.mxu0
      %v2119 = vadd.f32 %v1960, %v2118
      %2120 = vmatmul.f32.gmra.mxu0 %v2009
      %v2121 = vpop.f32.mrf.mxu0
      %v2122 = vadd.f32 %v1960, %v2121
      %2123 = vmatmul.f32.gmra.mxu0 %v2012
      %v2124 = vpop.f32.mrf.mxu0
      %v2125 = vadd.f32 %v1960, %v2124
      %2126 = vmatmul.f32.gmra.mxu0 %v2015
      %v2127 = vpop.f32.mrf.mxu0
      %v2128 = vadd.f32 %v1960, %v2127
      %2129 = vmatmul.f32.gmra.mxu0 %v2018
      %v2130 = vpop.f32.mrf.mxu0
      %v2131 = vadd.f32 %v1960, %v2130
      %2132 = vmatmul.f32.gmra.mxu0 %v2021
      %v2133 = vpop.f32.mrf.mxu0
      %v2134 = vadd.f32 %v1960, %v2133
      %2135 = vmatmul.f32.gmra.mxu0 %v2024
      %v2136 = vpop.f32.mrf.mxu0
      %v2137 = vadd.f32 %v1960, %v2136
      %2138 = vmatmul.f32.gmra.mxu0 %v2027
      %v2139 = vpop.f32.mrf.mxu0
      %v2140 = vadd.f32 %v1960, %v2139
      %2141 = vmatmul.f32.gmra.mxu0 %v2030
      %v2142 = vpop.f32.mrf.mxu0
      %v2143 = vadd.f32 %v1960, %v2142
      %2144 = vmatmul.f32.gmra.mxu0 %v2033
      %v2145 = vpop.f32.mrf.mxu0
      %v2146 = vadd.f32 %v1960, %v2145
      %2147 = vmatmul.f32.gmra.mxu0 %v2036
      %v2148 = vpop.f32.mrf.mxu0
      %v2149 = vadd.f32 %v1960, %v2148
      %2150 = vmatmul.f32.gmra.mxu0 %v2039
      %v2151 = vpop.f32.mrf.mxu0
      %v2152 = vadd.f32 %v1960, %v2151
      %2153 = vmatmul.f32.gmra.mxu0 %v2042
      %v2154 = vpop.f32.mrf.mxu0
      %v2155 = vadd.f32 %v1960, %v2154
      %2156 = vmatmul.f32.gmra.mxu0 %v2045
      %v2157 = vpop.f32.mrf.mxu0
      %v2158 = vadd.f32 %v1960, %v2157
      %2159 = vmatmul.f32.gmra.mxu0 %v2048
      %v2160 = vpop.f32.mrf.mxu0
      %v2161 = vadd.f32 %v1960, %v2160
      %2162 = vmatmul.f32.gmra.mxu0 %v2051
      %v2163 = vpop.f32.mrf.mxu0
      %v2164 = vadd.f32 %v1960, %v2163
      %2165 = vmatmul.f32.gmra.mxu0 %v2054
      %v2166 = vpop.f32.mrf.mxu0
      %v2167 = vadd.f32 %v1960, %v2166
      %2168 = vmatmul.f32.gmra.mxu0 %v2057
      %v2169 = vpop.f32.mrf.mxu0
      %v2170 = vadd.f32 %v1960, %v2169
      %2171 = vdwg.mxu0
      %v2172 = vmax.f32 %v2077, 0.0
      %v2173 = vmax.f32 %v2080, 0.0
      %v2174 = vmax.f32 %v2083, 0.0
      %v2175 = vmax.f32 %v2086, 0.0
      %v2176 = vmax.f32 %v2089, 0.0
      %v2177 = vmax.f32 %v2092, 0.0
      %v2178 = vmax.f32 %v2095, 0.0
      %v2179 = vmax.f32 %v2098, 0.0
      %v2180 = vmax.f32 %v2101, 0.0
      %v2181 = vmax.f32 %v2104, 0.0
      %v2182 = vmax.f32 %v2107, 0.0
      %v2183 = vmax.f32 %v2110, 0.0
      %v2184 = vmax.f32 %v2113, 0.0
      %v2185 = vmax.f32 %v2116, 0.0
      %v2186 = vmax.f32 %v2119, 0.0
      %v2187 = vmax.f32 %v2122, 0.0
      %v2188 = vmax.f32 %v2125, 0.0
      %v2189 = vmax.f32 %v2128, 0.0
      %v2190 = vmax.f32 %v2131, 0.0
      %v2191 = vmax.f32 %v2134, 0.0
      %v2192 = vmax.f32 %v2137, 0.0
      %v2193 = vmax.f32 %v2140, 0.0
      %v2194 = vmax.f32 %v2143, 0.0
      %v2195 = vmax.f32 %v2146, 0.0
      %v2196 = vmax.f32 %v2149, 0.0
      %v2197 = vmax.f32 %v2152, 0.0
      %v2198 = vmax.f32 %v2155, 0.0
      %v2199 = vmax.f32 %v2158, 0.0
      %v2200 = vmax.f32 %v2161, 0.0
      %v2201 = vmax.f32 %v2164, 0.0
      %v2202 = vmax.f32 %v2167, 0.0
      %v2203 = vmax.f32 %v2170, 0.0
      %vm2204 = vcmask 261120
      %2205 = vst.msk [vmem:[#allocation2] sm:$0xff] %vm2204, 0.0
      %2206 = vst.msk [vmem:[#allocation2 + $0x8] sm:$0xff] %vm2204, 0.0
      %vm2207 = vcmask 254976
      %2208 = vst.msk [vmem:[#allocation2 + $0x10] sm:$0x3] %vm2207, 0.0
      %2209 = vst.msk [vmem:[#allocation2 + $0x18] sm:$0xff] %vm2204, 0.0
      %2210 = vst.msk [vmem:[#allocation2 + $0x20] sm:$0xff] %vm2204, 0.0
      %2211 = vst.msk [vmem:[#allocation2 + $0x28] sm:$0x3] %vm2207, 0.0
      %2212 = vst.msk [vmem:[#allocation2 + $0x30] sm:$0xff] %vm2204, 0.0
      %2213 = vst.msk [vmem:[#allocation2 + $0x38] sm:$0xff] %vm2204, 0.0
      %2214 = vst.msk [vmem:[#allocation2 + $0x40] sm:$0x3] %vm2207, 0.0
      %2215 = vst.msk [vmem:[#allocation2 + $0x48] sm:$0xff] %vm2204, 0.0
      %2216 = vst.msk [vmem:[#allocation2 + $0x50] sm:$0xff] %vm2204, 0.0
      %2217 = vst.msk [vmem:[#allocation2 + $0x58] sm:$0x3] %vm2207, 0.0
      %2218 = vst.msk [vmem:[#allocation2 + $0x60] sm:$0xff] %vm2204, 0.0
      %2219 = vst.msk [vmem:[#allocation2 + $0x68] sm:$0xff] %vm2204, 0.0
      %2220 = vst.msk [vmem:[#allocation2 + $0x70] sm:$0x3] %vm2207, 0.0
      %2221 = vst.msk [vmem:[#allocation2 + $0x78] sm:$0xff] %vm2204, 0.0
      %2222 = vst.msk [vmem:[#allocation2 + $0x80] sm:$0xff] %vm2204, 0.0
      %2223 = vst.msk [vmem:[#allocation2 + $0x88] sm:$0x3] %vm2207, 0.0
      %2224 = vst.msk [vmem:[#allocation2 + $0x90] sm:$0xff] %vm2204, 0.0
      %2225 = vst.msk [vmem:[#allocation2 + $0x98] sm:$0xff] %vm2204, 0.0
      %2226 = vst.msk [vmem:[#allocation2 + $0xa0] sm:$0x3] %vm2207, 0.0
      %2227 = vst.msk [vmem:[#allocation2 + $0xa8] sm:$0xff] %vm2204, 0.0
      %2228 = vst.msk [vmem:[#allocation2 + $0xb0] sm:$0xff] %vm2204, 0.0
      %2229 = vst.msk [vmem:[#allocation2 + $0xb8] sm:$0x3] %vm2207, 0.0
      %2230 = vst.msk [vmem:[#allocation2 + $0xc0] sm:$0xff] %vm2204, 0.0
      %2231 = vst.msk [vmem:[#allocation2 + $0xc8] sm:$0xff] %vm2204, 0.0
      %2232 = vst.msk [vmem:[#allocation2 + $0xd0] sm:$0x3] %vm2207, 0.0
      %2233 = vst.msk [vmem:[#allocation2 + $0xd8] sm:$0xff] %vm2204, 0.0
      %2234 = vst.msk [vmem:[#allocation2 + $0xe0] sm:$0xff] %vm2204, 0.0
      %2235 = vst.msk [vmem:[#allocation2 + $0xe8] sm:$0x3] %vm2207, 0.0
      %2236 = vst.msk [vmem:[#allocation2 + $0xf0] sm:$0xff] %vm2204, 0.0
      %2237 = vst.msk [vmem:[#allocation2 + $0xf8] sm:$0xff] %vm2204, 0.0
      %2238 = vst.msk [vmem:[#allocation2 + $0x100] sm:$0x3] %vm2207, 0.0
      %2239 = vst.msk [vmem:[#allocation2 + $0x108] sm:$0xff] %vm2204, 0.0
      %2240 = vst.msk [vmem:[#allocation2 + $0x110] sm:$0xff] %vm2204, 0.0
      %2241 = vst.msk [vmem:[#allocation2 + $0x118] sm:$0x3] %vm2207, 0.0
      %2242 = vst.msk [vmem:[#allocation2 + $0x120] sm:$0xff] %vm2204, 0.0
      %2243 = vst.msk [vmem:[#allocation2 + $0x128] sm:$0xff] %vm2204, 0.0
      %2244 = vst.msk [vmem:[#allocation2 + $0x130] sm:$0x3] %vm2207, 0.0
      %2245 = vst.msk [vmem:[#allocation2 + $0x138] sm:$0xff] %vm2204, 0.0
      %2246 = vst.msk [vmem:[#allocation2 + $0x140] sm:$0xff] %vm2204, 0.0
      %2247 = vst.msk [vmem:[#allocation2 + $0x148] sm:$0x3] %vm2207, 0.0
      %2248 = vst.msk [vmem:[#allocation2 + $0x150] sm:$0xff] %vm2204, 0.0
      %2249 = vst.msk [vmem:[#allocation2 + $0x158] sm:$0xff] %vm2204, 0.0
      %2250 = vst.msk [vmem:[#allocation2 + $0x160] sm:$0x3] %vm2207, 0.0
      %2251 = vst.msk [vmem:[#allocation2 + $0x168] sm:$0xff] %vm2204, 0.0
      %2252 = vst.msk [vmem:[#allocation2 + $0x170] sm:$0xff] %vm2204, 0.0
      %2253 = vst.msk [vmem:[#allocation2 + $0x178] sm:$0x3] %vm2207, 0.0
      %2254 = vst.msk [vmem:[#allocation2 + $0x180] sm:$0xff] %vm2204, 0.0
      %2255 = vst.msk [vmem:[#allocation2 + $0x188] sm:$0xff] %vm2204, 0.0
      %2256 = vst.msk [vmem:[#allocation2 + $0x190] sm:$0x3] %vm2207, 0.0
      %2257 = vst.msk [vmem:[#allocation2 + $0x198] sm:$0xff] %vm2204, 0.0
      %2258 = vst.msk [vmem:[#allocation2 + $0x1a0] sm:$0xff] %vm2204, 0.0
      %2259 = vst.msk [vmem:[#allocation2 + $0x1a8] sm:$0x3] %vm2207, 0.0
      %s2260 = scalar_lea.vmem [#allocation2], 24
      %2261 = vst.msk [vmem:[%s2260 + $0x1] sm:$0xff] %vm2204, %v2172
      %2262 = vst.msk [vmem:[%s2260 + $0x9] sm:$0xff] %vm2204, %v2173
      %2263 = vst.msk [vmem:[%s2260 + $0x19] sm:$0xff] %vm2204, %v2174
      %2264 = vst.msk [vmem:[%s2260 + $0x21] sm:$0xff] %vm2204, %v2175
      %2265 = vst.msk [vmem:[%s2260 + $0x31] sm:$0xff] %vm2204, %v2176
      %2266 = vst.msk [vmem:[%s2260 + $0x39] sm:$0xff] %vm2204, %v2177
      %2267 = vst.msk [vmem:[%s2260 + $0x49] sm:$0xff] %vm2204, %v2178
      %2268 = vst.msk [vmem:[%s2260 + $0x51] sm:$0xff] %vm2204, %v2179
      %2269 = vst.msk [vmem:[%s2260 + $0x61] sm:$0xff] %vm2204, %v2180
      %2270 = vst.msk [vmem:[%s2260 + $0x69] sm:$0xff] %vm2204, %v2181
      %2271 = vst.msk [vmem:[%s2260 + $0x79] sm:$0xff] %vm2204, %v2182
      %2272 = vst.msk [vmem:[%s2260 + $0x81] sm:$0xff] %vm2204, %v2183
      %2273 = vst.msk [vmem:[%s2260 + $0x91] sm:$0xff] %vm2204, %v2184
      %2274 = vst.msk [vmem:[%s2260 + $0x99] sm:$0xff] %vm2204, %v2185
      %2275 = vst.msk [vmem:[%s2260 + $0xa9] sm:$0xff] %vm2204, %v2186
      %2276 = vst.msk [vmem:[%s2260 + $0xb1] sm:$0xff] %vm2204, %v2187
      %2277 = vst.msk [vmem:[%s2260 + $0xc1] sm:$0xff] %vm2204, %v2188
      %2278 = vst.msk [vmem:[%s2260 + $0xc9] sm:$0xff] %vm2204, %v2189
      %2279 = vst.msk [vmem:[%s2260 + $0xd9] sm:$0xff] %vm2204, %v2190
      %2280 = vst.msk [vmem:[%s2260 + $0xe1] sm:$0xff] %vm2204, %v2191
      %2281 = vst.msk [vmem:[%s2260 + $0xf1] sm:$0xff] %vm2204, %v2192
      %2282 = vst.msk [vmem:[%s2260 + $0xf9] sm:$0xff] %vm2204, %v2193
      %2283 = vst.msk [vmem:[%s2260 + $0x109] sm:$0xff] %vm2204, %v2194
      %2284 = vst.msk [vmem:[%s2260 + $0x111] sm:$0xff] %vm2204, %v2195
      %2285 = vst.msk [vmem:[%s2260 + $0x121] sm:$0xff] %vm2204, %v2196
      %2286 = vst.msk [vmem:[%s2260 + $0x129] sm:$0xff] %vm2204, %v2197
      %2287 = vst.msk [vmem:[%s2260 + $0x139] sm:$0xff] %vm2204, %v2198
      %2288 = vst.msk [vmem:[%s2260 + $0x141] sm:$0xff] %vm2204, %v2199
      %2289 = vst.msk [vmem:[%s2260 + $0x151] sm:$0xff] %vm2204, %v2200
      %2290 = vst.msk [vmem:[%s2260 + $0x159] sm:$0xff] %vm2204, %v2201
      %2291 = vst.msk [vmem:[%s2260 + $0x169] sm:$0xff] %vm2204, %v2202
      %2292 = vst.msk [vmem:[%s2260 + $0x171] sm:$0xff] %vm2204, %v2203
      %v2293 = vld [vmem:[#allocation2] sm:$0xff]
      %v2294 = vld [vmem:[#allocation2 + $0x8] sm:$0xff]
      %v2295 = vld [vmem:[#allocation2 + $0x18] sm:$0xff]
      %v2296 = vld [vmem:[#allocation2 + $0x20] sm:$0xff]
      %v2297 = vld [vmem:[#allocation2 + $0x30] sm:$0xff]
      %v2298 = vld [vmem:[#allocation2 + $0x38] sm:$0xff]
      %v2299 = vld [vmem:[#allocation2 + $0x48] sm:$0xff]
      %v2300 = vld [vmem:[#allocation2 + $0x50] sm:$0xff]
      %v2301 = vld [vmem:[#allocation2 + $0x60] sm:$0xff]
      %v2302 = vld [vmem:[#allocation2 + $0x68] sm:$0xff]
      %v2303 = vld [vmem:[#allocation2 + $0x78] sm:$0xff]
      %v2304 = vld [vmem:[#allocation2 + $0x80] sm:$0xff]
      %v2305 = vld [vmem:[#allocation2 + $0x90] sm:$0xff]
      %v2306 = vld [vmem:[#allocation2 + $0x98] sm:$0xff]
      %v2307 = vld [vmem:[#allocation2 + $0xa8] sm:$0xff]
      %v2308 = vld [vmem:[#allocation2 + $0xb0] sm:$0xff]
      %v2309 = vld [vmem:[#allocation2 + $0xc0] sm:$0xff]
      %v2310 = vld [vmem:[#allocation2 + $0xc8] sm:$0xff]
      %v2311 = vld [vmem:[#allocation2 + $0xd8] sm:$0xff]
      %v2312 = vld [vmem:[#allocation2 + $0xe0] sm:$0xff]
      %v2313 = vld [vmem:[#allocation2 + $0xf0] sm:$0xff]
      %v2314 = vld [vmem:[#allocation2 + $0xf8] sm:$0xff]
      %v2315 = vld [vmem:[#allocation2 + $0x108] sm:$0xff]
      %v2316 = vld [vmem:[#allocation2 + $0x110] sm:$0xff]
      %v2317 = vld [vmem:[#allocation2 + $0x120] sm:$0xff]
      %v2318 = vld [vmem:[#allocation2 + $0x128] sm:$0xff]
      %v2319 = vld [vmem:[#allocation2 + $0x138] sm:$0xff]
      %v2320 = vld [vmem:[#allocation2 + $0x140] sm:$0xff]
      %v2321 = vld [vmem:[#allocation2 + $0x150] sm:$0xff]
      %v2322 = vld [vmem:[#allocation2 + $0x158] sm:$0xff]
      %v2323 = vld [vmem:[#allocation2 + $0x168] sm:$0xff]
      %v2324 = vld [vmem:[#allocation2 + $0x170] sm:$0xff]
      %2325 = vst.msk [vmem:[#allocation3] sm:$0xff] %vm2204, %v2293
      %2326 = vst.msk [vmem:[#allocation3 + $0x18] sm:$0xff] %vm2204, %v2294
      %2327 = vst.msk [vmem:[#allocation3 + $0x30] sm:$0xff] %vm2204, %v2295
      %2328 = vst.msk [vmem:[#allocation3 + $0x48] sm:$0xff] %vm2204, %v2296
      %2329 = vst.msk [vmem:[#allocation3 + $0x60] sm:$0xff] %vm2204, %v2297
      %2330 = vst.msk [vmem:[#allocation3 + $0x78] sm:$0xff] %vm2204, %v2298
      %2331 = vst.msk [vmem:[#allocation3 + $0x90] sm:$0xff] %vm2204, %v2299
      %2332 = vst.msk [vmem:[#allocation3 + $0xa8] sm:$0xff] %vm2204, %v2300
      %2333 = vst.msk [vmem:[#allocation3 + $0xc0] sm:$0xff] %vm2204, %v2301
      %2334 = vst.msk [vmem:[#allocation3 + $0xd8] sm:$0xff] %vm2204, %v2302
      %2335 = vst.msk [vmem:[#allocation3 + $0xf0] sm:$0xff] %vm2204, %v2303
      %2336 = vst.msk [vmem:[#allocation3 + $0x108] sm:$0xff] %vm2204, %v2304
      %2337 = vst.msk [vmem:[#allocation3 + $0x120] sm:$0xff] %vm2204, %v2305
      %2338 = vst.msk [vmem:[#allocation3 + $0x138] sm:$0xff] %vm2204, %v2306
      %2339 = vst.msk [vmem:[#allocation3 + $0x150] sm:$0xff] %vm2204, %v2307
      %2340 = vst.msk [vmem:[#allocation3 + $0x168] sm:$0xff] %vm2204, %v2308
      %2341 = vst.msk [vmem:[#allocation3 + $0x180] sm:$0xff] %vm2204, %v2309
      %2342 = vst.msk [vmem:[#allocation3 + $0x198] sm:$0xff] %vm2204, %v2310
      %2343 = vst.msk [vmem:[#allocation3 + $0x1b0] sm:$0xff] %vm2204, %v2311
      %2344 = vst.msk [vmem:[#allocation3 + $0x1c8] sm:$0xff] %vm2204, %v2312
      %2345 = vst.msk [vmem:[#allocation3 + $0x1e0] sm:$0xff] %vm2204, %v2313
      %2346 = vst.msk [vmem:[#allocation3 + $0x1f8] sm:$0xff] %vm2204, %v2314
      %2347 = vst.msk [vmem:[#allocation3 + $0x210] sm:$0xff] %vm2204, %v2315
      %2348 = vst.msk [vmem:[#allocation3 + $0x228] sm:$0xff] %vm2204, %v2316
      %2349 = vst.msk [vmem:[#allocation3 + $0x240] sm:$0xff] %vm2204, %v2317
      %2350 = vst.msk [vmem:[#allocation3 + $0x258] sm:$0xff] %vm2204, %v2318
      %2351 = vst.msk [vmem:[#allocation3 + $0x270] sm:$0xff] %vm2204, %v2319
      %2352 = vst.msk [vmem:[#allocation3 + $0x288] sm:$0xff] %vm2204, %v2320
      %2353 = vst.msk [vmem:[#allocation3 + $0x2a0] sm:$0xff] %vm2204, %v2321
      %2354 = vst.msk [vmem:[#allocation3 + $0x2b8] sm:$0xff] %vm2204, %v2322
      %2355 = vst.msk [vmem:[#allocation3 + $0x2d0] sm:$0xff] %vm2204, %v2323
      %2356 = vst.msk [vmem:[#allocation3 + $0x2e8] sm:$0xff] %vm2204, %v2324
      %v2357 = vld [vmem:[#allocation2 + $0x1] sm:$0xff]
      %v2358 = vld [vmem:[#allocation2 + $0x9] sm:$0xff]
      %v2359 = vld [vmem:[#allocation2 + $0x19] sm:$0xff]
      %v2360 = vld [vmem:[#allocation2 + $0x21] sm:$0xff]
      %v2361 = vld [vmem:[#allocation2 + $0x31] sm:$0xff]
      %v2362 = vld [vmem:[#allocation2 + $0x39] sm:$0xff]
      %v2363 = vld [vmem:[#allocation2 + $0x49] sm:$0xff]
      %v2364 = vld [vmem:[#allocation2 + $0x51] sm:$0xff]
      %v2365 = vld [vmem:[#allocation2 + $0x61] sm:$0xff]
      %v2366 = vld [vmem:[#allocation2 + $0x69] sm:$0xff]
      %v2367 = vld [vmem:[#allocation2 + $0x79] sm:$0xff]
      %v2368 = vld [vmem:[#allocation2 + $0x81] sm:$0xff]
      %v2369 = vld [vmem:[#allocation2 + $0x91] sm:$0xff]
      %v2370 = vld [vmem:[#allocation2 + $0x99] sm:$0xff]
      %v2371 = vld [vmem:[#allocation2 + $0xa9] sm:$0xff]
      %v2372 = vld [vmem:[#allocation2 + $0xb1] sm:$0xff]
      %v2373 = vld [vmem:[#allocation2 + $0xc1] sm:$0xff]
      %v2374 = vld [vmem:[#allocation2 + $0xc9] sm:$0xff]
      %v2375 = vld [vmem:[#allocation2 + $0xd9] sm:$0xff]
      %v2376 = vld [vmem:[#allocation2 + $0xe1] sm:$0xff]
      %v2377 = vld [vmem:[#allocation2 + $0xf1] sm:$0xff]
      %v2378 = vld [vmem:[#allocation2 + $0xf9] sm:$0xff]
      %v2379 = vld [vmem:[#allocation2 + $0x109] sm:$0xff]
      %v2380 = vld [vmem:[#allocation2 + $0x111] sm:$0xff]
      %v2381 = vld [vmem:[#allocation2 + $0x121] sm:$0xff]
      %v2382 = vld [vmem:[#allocation2 + $0x129] sm:$0xff]
      %v2383 = vld [vmem:[#allocation2 + $0x139] sm:$0xff]
      %v2384 = vld [vmem:[#allocation2 + $0x141] sm:$0xff]
      %v2385 = vld [vmem:[#allocation2 + $0x151] sm:$0xff]
      %v2386 = vld [vmem:[#allocation2 + $0x159] sm:$0xff]
      %v2387 = vld [vmem:[#allocation2 + $0x169] sm:$0xff]
      %v2388 = vld [vmem:[#allocation2 + $0x171] sm:$0xff]
      %2421 = vrot.lane.b32.xlu0 %v2357, 32
      %v2422 = vpop.permute.xlu0 %2421
      %2423 = vrot.lane.b32.xlu0 %v2358, 32
      %v2424 = vpop.permute.xlu0 %2423
      %2425 = vrot.lane.b32.xlu0 %v2359, 32
      %v2426 = vpop.permute.xlu0 %2425
      %2427 = vrot.lane.b32.xlu0 %v2360, 32
      %v2428 = vpop.permute.xlu0 %2427
      %2429 = vrot.lane.b32.xlu0 %v2361, 32
      %v2430 = vpop.permute.xlu0 %2429
      %2431 = vrot.lane.b32.xlu0 %v2362, 32
      %v2432 = vpop.permute.xlu0 %2431
      %2433 = vrot.lane.b32.xlu0 %v2363, 32
      %v2434 = vpop.permute.xlu0 %2433
      %2435 = vrot.lane.b32.xlu0 %v2364, 32
      %v2436 = vpop.permute.xlu0 %2435
      %2437 = vrot.lane.b32.xlu0 %v2365, 32
      %v2438 = vpop.permute.xlu0 %2437
      %2439 = vrot.lane.b32.xlu0 %v2366, 32
      %v2440 = vpop.permute.xlu0 %2439
      %2441 = vrot.lane.b32.xlu0 %v2367, 32
      %v2442 = vpop.permute.xlu0 %2441
      %2443 = vrot.lane.b32.xlu0 %v2368, 32
      %v2444 = vpop.permute.xlu0 %2443
      %2445 = vrot.lane.b32.xlu0 %v2369, 32
      %v2446 = vpop.permute.xlu0 %2445
      %2447 = vrot.lane.b32.xlu0 %v2370, 32
      %v2448 = vpop.permute.xlu0 %2447
      %2449 = vrot.lane.b32.xlu0 %v2371, 32
      %v2450 = vpop.permute.xlu0 %2449
      %2451 = vrot.lane.b32.xlu0 %v2372, 32
      %v2452 = vpop.permute.xlu0 %2451
      %2453 = vrot.lane.b32.xlu0 %v2373, 32
      %v2454 = vpop.permute.xlu0 %2453
      %2455 = vrot.lane.b32.xlu0 %v2374, 32
      %v2456 = vpop.permute.xlu0 %2455
      %2457 = vrot.lane.b32.xlu0 %v2375, 32
      %v2458 = vpop.permute.xlu0 %2457
      %2459 = vrot.lane.b32.xlu0 %v2376, 32
      %v2460 = vpop.permute.xlu0 %2459
      %2461 = vrot.lane.b32.xlu0 %v2377, 32
      %v2462 = vpop.permute.xlu0 %2461
      %2463 = vrot.lane.b32.xlu0 %v2378, 32
      %v2464 = vpop.permute.xlu0 %2463
      %2465 = vrot.lane.b32.xlu0 %v2379, 32
      %v2466 = vpop.permute.xlu0 %2465
      %2467 = vrot.lane.b32.xlu0 %v2380, 32
      %v2468 = vpop.permute.xlu0 %2467
      %2469 = vrot.lane.b32.xlu0 %v2381, 32
      %v2470 = vpop.permute.xlu0 %2469
      %2471 = vrot.lane.b32.xlu0 %v2382, 32
      %v2472 = vpop.permute.xlu0 %2471
      %2473 = vrot.lane.b32.xlu0 %v2383, 32
      %v2474 = vpop.permute.xlu0 %2473
      %2475 = vrot.lane.b32.xlu0 %v2384, 32
      %v2476 = vpop.permute.xlu0 %2475
      %2477 = vrot.lane.b32.xlu0 %v2385, 32
      %v2478 = vpop.permute.xlu0 %2477
      %2479 = vrot.lane.b32.xlu0 %v2386, 32
      %v2480 = vpop.permute.xlu0 %2479
      %2481 = vrot.lane.b32.xlu0 %v2387, 32
      %v2482 = vpop.permute.xlu0 %2481
      %2483 = vrot.lane.b32.xlu0 %v2388, 32
      %v2484 = vpop.permute.xlu0 %2483
      %vm2517 = vcmask 523520
      %2518 = vst.msk [vmem:[#allocation3] sm:$0xff] %vm2517, %v2422
      %2519 = vst.msk [vmem:[#allocation3 + $0x18] sm:$0xff] %vm2517, %v2424
      %2520 = vst.msk [vmem:[#allocation3 + $0x30] sm:$0xff] %vm2517, %v2426
      %2521 = vst.msk [vmem:[#allocation3 + $0x48] sm:$0xff] %vm2517, %v2428
      %2522 = vst.msk [vmem:[#allocation3 + $0x60] sm:$0xff] %vm2517, %v2430
      %2523 = vst.msk [vmem:[#allocation3 + $0x78] sm:$0xff] %vm2517, %v2432
      %2524 = vst.msk [vmem:[#allocation3 + $0x90] sm:$0xff] %vm2517, %v2434
      %2525 = vst.msk [vmem:[#allocation3 + $0xa8] sm:$0xff] %vm2517, %v2436
      %2526 = vst.msk [vmem:[#allocation3 + $0xc0] sm:$0xff] %vm2517, %v2438
      %2527 = vst.msk [vmem:[#allocation3 + $0xd8] sm:$0xff] %vm2517, %v2440
      %2528 = vst.msk [vmem:[#allocation3 + $0xf0] sm:$0xff] %vm2517, %v2442
      %2529 = vst.msk [vmem:[#allocation3 + $0x108] sm:$0xff] %vm2517, %v2444
      %2530 = vst.msk [vmem:[#allocation3 + $0x120] sm:$0xff] %vm2517, %v2446
      %2531 = vst.msk [vmem:[#allocation3 + $0x138] sm:$0xff] %vm2517, %v2448
      %2532 = vst.msk [vmem:[#allocation3 + $0x150] sm:$0xff] %vm2517, %v2450
      %2533 = vst.msk [vmem:[#allocation3 + $0x168] sm:$0xff] %vm2517, %v2452
      %2534 = vst.msk [vmem:[#allocation3 + $0x180] sm:$0xff] %vm2517, %v2454
      %2535 = vst.msk [vmem:[#allocation3 + $0x198] sm:$0xff] %vm2517, %v2456
      %2536 = vst.msk [vmem:[#allocation3 + $0x1b0] sm:$0xff] %vm2517, %v2458
      %2537 = vst.msk [vmem:[#allocation3 + $0x1c8] sm:$0xff] %vm2517, %v2460
      %2538 = vst.msk [vmem:[#allocation3 + $0x1e0] sm:$0xff] %vm2517, %v2462
      %2539 = vst.msk [vmem:[#allocation3 + $0x1f8] sm:$0xff] %vm2517, %v2464
      %2540 = vst.msk [vmem:[#allocation3 + $0x210] sm:$0xff] %vm2517, %v2466
      %2541 = vst.msk [vmem:[#allocation3 + $0x228] sm:$0xff] %vm2517, %v2468
      %2542 = vst.msk [vmem:[#allocation3 + $0x240] sm:$0xff] %vm2517, %v2470
      %2543 = vst.msk [vmem:[#allocation3 + $0x258] sm:$0xff] %vm2517, %v2472
      %2544 = vst.msk [vmem:[#allocation3 + $0x270] sm:$0xff] %vm2517, %v2474
      %2545 = vst.msk [vmem:[#allocation3 + $0x288] sm:$0xff] %vm2517, %v2476
      %2546 = vst.msk [vmem:[#allocation3 + $0x2a0] sm:$0xff] %vm2517, %v2478
      %2547 = vst.msk [vmem:[#allocation3 + $0x2b8] sm:$0xff] %vm2517, %v2480
      %2548 = vst.msk [vmem:[#allocation3 + $0x2d0] sm:$0xff] %vm2517, %v2482
      %2549 = vst.msk [vmem:[#allocation3 + $0x2e8] sm:$0xff] %vm2517, %v2484
      %v2550 = vld [vmem:[#allocation2 + $0x2] sm:$0xff]
      %v2551 = vld [vmem:[#allocation2 + $0xa] sm:$0xff]
      %v2552 = vld [vmem:[#allocation2 + $0x1a] sm:$0xff]
      %v2553 = vld [vmem:[#allocation2 + $0x22] sm:$0xff]
      %v2554 = vld [vmem:[#allocation2 + $0x32] sm:$0xff]
      %v2555 = vld [vmem:[#allocation2 + $0x3a] sm:$0xff]
      %v2556 = vld [vmem:[#allocation2 + $0x4a] sm:$0xff]
      %v2557 = vld [vmem:[#allocation2 + $0x52] sm:$0xff]
      %v2558 = vld [vmem:[#allocation2 + $0x62] sm:$0xff]
      %v2559 = vld [vmem:[#allocation2 + $0x6a] sm:$0xff]
      %v2560 = vld [vmem:[#allocation2 + $0x7a] sm:$0xff]
      %v2561 = vld [vmem:[#allocation2 + $0x82] sm:$0xff]
      %v2562 = vld [vmem:[#allocation2 + $0x92] sm:$0xff]
      %v2563 = vld [vmem:[#allocation2 + $0x9a] sm:$0xff]
      %v2564 = vld [vmem:[#allocation2 + $0xaa] sm:$0xff]
      %v2565 = vld [vmem:[#allocation2 + $0xb2] sm:$0xff]
      %v2566 = vld [vmem:[#allocation2 + $0xc2] sm:$0xff]
      %v2567 = vld [vmem:[#allocation2 + $0xca] sm:$0xff]
      %v2568 = vld [vmem:[#allocation2 + $0xda] sm:$0xff]
      %v2569 = vld [vmem:[#allocation2 + $0xe2] sm:$0xff]
      %v2570 = vld [vmem:[#allocation2 + $0xf2] sm:$0xff]
      %v2571 = vld [vmem:[#allocation2 + $0xfa] sm:$0xff]
      %v2572 = vld [vmem:[#allocation2 + $0x10a] sm:$0xff]
      %v2573 = vld [vmem:[#allocation2 + $0x112] sm:$0xff]
      %v2574 = vld [vmem:[#allocation2 + $0x122] sm:$0xff]
      %v2575 = vld [vmem:[#allocation2 + $0x12a] sm:$0xff]
      %v2576 = vld [vmem:[#allocation2 + $0x13a] sm:$0xff]
      %v2577 = vld [vmem:[#allocation2 + $0x142] sm:$0xff]
      %v2578 = vld [vmem:[#allocation2 + $0x152] sm:$0xff]
      %v2579 = vld [vmem:[#allocation2 + $0x15a] sm:$0xff]
      %v2580 = vld [vmem:[#allocation2 + $0x16a] sm:$0xff]
      %v2581 = vld [vmem:[#allocation2 + $0x172] sm:$0xff]
      %2614 = vrot.lane.b32.xlu0 %v2550, 64
      %v2615 = vpop.permute.xlu0 %2614
      %2616 = vrot.lane.b32.xlu0 %v2551, 64
      %v2617 = vpop.permute.xlu0 %2616
      %2618 = vrot.lane.b32.xlu0 %v2552, 64
      %v2619 = vpop.permute.xlu0 %2618
      %2620 = vrot.lane.b32.xlu0 %v2553, 64
      %v2621 = vpop.permute.xlu0 %2620
      %2622 = vrot.lane.b32.xlu0 %v2554, 64
      %v2623 = vpop.permute.xlu0 %2622
      %2624 = vrot.lane.b32.xlu0 %v2555, 64
      %v2625 = vpop.permute.xlu0 %2624
      %2626 = vrot.lane.b32.xlu0 %v2556, 64
      %v2627 = vpop.permute.xlu0 %2626
      %2628 = vrot.lane.b32.xlu0 %v2557, 64
      %v2629 = vpop.permute.xlu0 %2628
      %2630 = vrot.lane.b32.xlu0 %v2558, 64
      %v2631 = vpop.permute.xlu0 %2630
      %2632 = vrot.lane.b32.xlu0 %v2559, 64
      %v2633 = vpop.permute.xlu0 %2632
      %2634 = vrot.lane.b32.xlu0 %v2560, 64
      %v2635 = vpop.permute.xlu0 %2634
      %2636 = vrot.lane.b32.xlu0 %v2561, 64
      %v2637 = vpop.permute.xlu0 %2636
      %2638 = vrot.lane.b32.xlu0 %v2562, 64
      %v2639 = vpop.permute.xlu0 %2638
      %2640 = vrot.lane.b32.xlu0 %v2563, 64
      %v2641 = vpop.permute.xlu0 %2640
      %2642 = vrot.lane.b32.xlu0 %v2564, 64
      %v2643 = vpop.permute.xlu0 %2642
      %2644 = vrot.lane.b32.xlu0 %v2565, 64
      %v2645 = vpop.permute.xlu0 %2644
      %2646 = vrot.lane.b32.xlu0 %v2566, 64
      %v2647 = vpop.permute.xlu0 %2646
      %2648 = vrot.lane.b32.xlu0 %v2567, 64
      %v2649 = vpop.permute.xlu0 %2648
      %2650 = vrot.lane.b32.xlu0 %v2568, 64
      %v2651 = vpop.permute.xlu0 %2650
      %2652 = vrot.lane.b32.xlu0 %v2569, 64
      %v2653 = vpop.permute.xlu0 %2652
      %2654 = vrot.lane.b32.xlu0 %v2570, 64
      %v2655 = vpop.permute.xlu0 %2654
      %2656 = vrot.lane.b32.xlu0 %v2571, 64
      %v2657 = vpop.permute.xlu0 %2656
      %2658 = vrot.lane.b32.xlu0 %v2572, 64
      %v2659 = vpop.permute.xlu0 %2658
      %2660 = vrot.lane.b32.xlu0 %v2573, 64
      %v2661 = vpop.permute.xlu0 %2660
      %2662 = vrot.lane.b32.xlu0 %v2574, 64
      %v2663 = vpop.permute.xlu0 %2662
      %2664 = vrot.lane.b32.xlu0 %v2575, 64
      %v2665 = vpop.permute.xlu0 %2664
      %2666 = vrot.lane.b32.xlu0 %v2576, 64
      %v2667 = vpop.permute.xlu0 %2666
      %2668 = vrot.lane.b32.xlu0 %v2577, 64
      %v2669 = vpop.permute.xlu0 %2668
      %2670 = vrot.lane.b32.xlu0 %v2578, 64
      %v2671 = vpop.permute.xlu0 %2670
      %2672 = vrot.lane.b32.xlu0 %v2579, 64
      %v2673 = vpop.permute.xlu0 %2672
      %2674 = vrot.lane.b32.xlu0 %v2580, 64
      %v2675 = vpop.permute.xlu0 %2674
      %2676 = vrot.lane.b32.xlu0 %v2581, 64
      %v2677 = vpop.permute.xlu0 %2676
      %vm2710 = vcmask 785920
      %2711 = vst.msk [vmem:[#allocation3] sm:$0xff] %vm2710, %v2615
      %2712 = vst.msk [vmem:[#allocation3 + $0x18] sm:$0xff] %vm2710, %v2617
      %2713 = vst.msk [vmem:[#allocation3 + $0x30] sm:$0xff] %vm2710, %v2619
      %2714 = vst.msk [vmem:[#allocation3 + $0x48] sm:$0xff] %vm2710, %v2621
      %2715 = vst.msk [vmem:[#allocation3 + $0x60] sm:$0xff] %vm2710, %v2623
      %2716 = vst.msk [vmem:[#allocation3 + $0x78] sm:$0xff] %vm2710, %v2625
      %2717 = vst.msk [vmem:[#allocation3 + $0x90] sm:$0xff] %vm2710, %v2627
      %2718 = vst.msk [vmem:[#allocation3 + $0xa8] sm:$0xff] %vm2710, %v2629
      %2719 = vst.msk [vmem:[#allocation3 + $0xc0] sm:$0xff] %vm2710, %v2631
      %2720 = vst.msk [vmem:[#allocation3 + $0xd8] sm:$0xff] %vm2710, %v2633
      %2721 = vst.msk [vmem:[#allocation3 + $0xf0] sm:$0xff] %vm2710, %v2635
      %2722 = vst.msk [vmem:[#allocation3 + $0x108] sm:$0xff] %vm2710, %v2637
      %2723 = vst.msk [vmem:[#allocation3 + $0x120] sm:$0xff] %vm2710, %v2639
      %2724 = vst.msk [vmem:[#allocation3 + $0x138] sm:$0xff] %vm2710, %v2641
      %2725 = vst.msk [vmem:[#allocation3 + $0x150] sm:$0xff] %vm2710, %v2643
      %2726 = vst.msk [vmem:[#allocation3 + $0x168] sm:$0xff] %vm2710, %v2645
      %2727 = vst.msk [vmem:[#allocation3 + $0x180] sm:$0xff] %vm2710, %v2647
      %2728 = vst.msk [vmem:[#allocation3 + $0x198] sm:$0xff] %vm2710, %v2649
      %2729 = vst.msk [vmem:[#allocation3 + $0x1b0] sm:$0xff] %vm2710, %v2651
      %2730 = vst.msk [vmem:[#allocation3 + $0x1c8] sm:$0xff] %vm2710, %v2653
      %2731 = vst.msk [vmem:[#allocation3 + $0x1e0] sm:$0xff] %vm2710, %v2655
      %2732 = vst.msk [vmem:[#allocation3 + $0x1f8] sm:$0xff] %vm2710, %v2657
      %2733 = vst.msk [vmem:[#allocation3 + $0x210] sm:$0xff] %vm2710, %v2659
      %2734 = vst.msk [vmem:[#allocation3 + $0x228] sm:$0xff] %vm2710, %v2661
      %2735 = vst.msk [vmem:[#allocation3 + $0x240] sm:$0xff] %vm2710, %v2663
      %2736 = vst.msk [vmem:[#allocation3 + $0x258] sm:$0xff] %vm2710, %v2665
      %2737 = vst.msk [vmem:[#allocation3 + $0x270] sm:$0xff] %vm2710, %v2667
      %2738 = vst.msk [vmem:[#allocation3 + $0x288] sm:$0xff] %vm2710, %v2669
      %2739 = vst.msk [vmem:[#allocation3 + $0x2a0] sm:$0xff] %vm2710, %v2671
      %2740 = vst.msk [vmem:[#allocation3 + $0x2b8] sm:$0xff] %vm2710, %v2673
      %2741 = vst.msk [vmem:[#allocation3 + $0x2d0] sm:$0xff] %vm2710, %v2675
      %2742 = vst.msk [vmem:[#allocation3 + $0x2e8] sm:$0xff] %vm2710, %v2677
      %v2743 = vld [vmem:[%s2260] sm:$0xff]
      %v2744 = vld [vmem:[%s2260 + $0x8] sm:$0xff]
      %v2745 = vld [vmem:[%s2260 + $0x18] sm:$0xff]
      %v2746 = vld [vmem:[%s2260 + $0x20] sm:$0xff]
      %v2747 = vld [vmem:[%s2260 + $0x30] sm:$0xff]
      %v2748 = vld [vmem:[%s2260 + $0x38] sm:$0xff]
      %v2749 = vld [vmem:[%s2260 + $0x48] sm:$0xff]
      %v2750 = vld [vmem:[%s2260 + $0x50] sm:$0xff]
      %v2751 = vld [vmem:[%s2260 + $0x60] sm:$0xff]
      %v2752 = vld [vmem:[%s2260 + $0x68] sm:$0xff]
      %v2753 = vld [vmem:[%s2260 + $0x78] sm:$0xff]
      %v2754 = vld [vmem:[%s2260 + $0x80] sm:$0xff]
      %v2755 = vld [vmem:[%s2260 + $0x90] sm:$0xff]
      %v2756 = vld [vmem:[%s2260 + $0x98] sm:$0xff]
      %v2757 = vld [vmem:[%s2260 + $0xa8] sm:$0xff]
      %v2758 = vld [vmem:[%s2260 + $0xb0] sm:$0xff]
      %v2759 = vld [vmem:[%s2260 + $0xc0] sm:$0xff]
      %v2760 = vld [vmem:[%s2260 + $0xc8] sm:$0xff]
      %v2761 = vld [vmem:[%s2260 + $0xd8] sm:$0xff]
      %v2762 = vld [vmem:[%s2260 + $0xe0] sm:$0xff]
      %v2763 = vld [vmem:[%s2260 + $0xf0] sm:$0xff]
      %v2764 = vld [vmem:[%s2260 + $0xf8] sm:$0xff]
      %v2765 = vld [vmem:[%s2260 + $0x108] sm:$0xff]
      %v2766 = vld [vmem:[%s2260 + $0x110] sm:$0xff]
      %v2767 = vld [vmem:[%s2260 + $0x120] sm:$0xff]
      %v2768 = vld [vmem:[%s2260 + $0x128] sm:$0xff]
      %v2769 = vld [vmem:[%s2260 + $0x138] sm:$0xff]
      %v2770 = vld [vmem:[%s2260 + $0x140] sm:$0xff]
      %v2771 = vld [vmem:[%s2260 + $0x150] sm:$0xff]
      %v2772 = vld [vmem:[%s2260 + $0x158] sm:$0xff]
      %v2773 = vld [vmem:[%s2260 + $0x168] sm:$0xff]
      %v2774 = vld [vmem:[%s2260 + $0x170] sm:$0xff]
      %2807 = vrot.lane.b32.xlu0 %v2743, 96
      %v2808 = vpop.permute.xlu0 %2807
      %2809 = vrot.lane.b32.xlu0 %v2744, 96
      %v2810 = vpop.permute.xlu0 %2809
      %2811 = vrot.lane.b32.xlu0 %v2745, 96
      %v2812 = vpop.permute.xlu0 %2811
      %2813 = vrot.lane.b32.xlu0 %v2746, 96
      %v2814 = vpop.permute.xlu0 %2813
      %2815 = vrot.lane.b32.xlu0 %v2747, 96
      %v2816 = vpop.permute.xlu0 %2815
      %2817 = vrot.lane.b32.xlu0 %v2748, 96
      %v2818 = vpop.permute.xlu0 %2817
      %2819 = vrot.lane.b32.xlu0 %v2749, 96
      %v2820 = vpop.permute.xlu0 %2819
      %2821 = vrot.lane.b32.xlu0 %v2750, 96
      %v2822 = vpop.permute.xlu0 %2821
      %2823 = vrot.lane.b32.xlu0 %v2751, 96
      %v2824 = vpop.permute.xlu0 %2823
      %2825 = vrot.lane.b32.xlu0 %v2752, 96
      %v2826 = vpop.permute.xlu0 %2825
      %2827 = vrot.lane.b32.xlu0 %v2753, 96
      %v2828 = vpop.permute.xlu0 %2827
      %2829 = vrot.lane.b32.xlu0 %v2754, 96
      %v2830 = vpop.permute.xlu0 %2829
      %2831 = vrot.lane.b32.xlu0 %v2755, 96
      %v2832 = vpop.permute.xlu0 %2831
      %2833 = vrot.lane.b32.xlu0 %v2756, 96
      %v2834 = vpop.permute.xlu0 %2833
      %2835 = vrot.lane.b32.xlu0 %v2757, 96
      %v2836 = vpop.permute.xlu0 %2835
      %2837 = vrot.lane.b32.xlu0 %v2758, 96
      %v2838 = vpop.permute.xlu0 %2837
      %2839 = vrot.lane.b32.xlu0 %v2759, 96
      %v2840 = vpop.permute.xlu0 %2839
      %2841 = vrot.lane.b32.xlu0 %v2760, 96
      %v2842 = vpop.permute.xlu0 %2841
      %2843 = vrot.lane.b32.xlu0 %v2761, 96
      %v2844 = vpop.permute.xlu0 %2843
      %2845 = vrot.lane.b32.xlu0 %v2762, 96
      %v2846 = vpop.permute.xlu0 %2845
      %2847 = vrot.lane.b32.xlu0 %v2763, 96
      %v2848 = vpop.permute.xlu0 %2847
      %2849 = vrot.lane.b32.xlu0 %v2764, 96
      %v2850 = vpop.permute.xlu0 %2849
      %2851 = vrot.lane.b32.xlu0 %v2765, 96
      %v2852 = vpop.permute.xlu0 %2851
      %2853 = vrot.lane.b32.xlu0 %v2766, 96
      %v2854 = vpop.permute.xlu0 %2853
      %2855 = vrot.lane.b32.xlu0 %v2767, 96
      %v2856 = vpop.permute.xlu0 %2855
      %2857 = vrot.lane.b32.xlu0 %v2768, 96
      %v2858 = vpop.permute.xlu0 %2857
      %2859 = vrot.lane.b32.xlu0 %v2769, 96
      %v2860 = vpop.permute.xlu0 %2859
      %2861 = vrot.lane.b32.xlu0 %v2770, 96
      %v2862 = vpop.permute.xlu0 %2861
      %2863 = vrot.lane.b32.xlu0 %v2771, 96
      %v2864 = vpop.permute.xlu0 %2863
      %2865 = vrot.lane.b32.xlu0 %v2772, 96
      %v2866 = vpop.permute.xlu0 %2865
      %2867 = vrot.lane.b32.xlu0 %v2773, 96
      %v2868 = vpop.permute.xlu0 %2867
      %2869 = vrot.lane.b32.xlu0 %v2774, 96
      %v2870 = vpop.permute.xlu0 %2869
      %vm2903 = vcmask 1048320
      %2904 = vst.msk [vmem:[#allocation3] sm:$0xff] %vm2903, %v2808
      %2905 = vst.msk [vmem:[#allocation3 + $0x18] sm:$0xff] %vm2903, %v2810
      %2906 = vst.msk [vmem:[#allocation3 + $0x30] sm:$0xff] %vm2903, %v2812
      %2907 = vst.msk [vmem:[#allocation3 + $0x48] sm:$0xff] %vm2903, %v2814
      %2908 = vst.msk [vmem:[#allocation3 + $0x60] sm:$0xff] %vm2903, %v2816
      %2909 = vst.msk [vmem:[#allocation3 + $0x78] sm:$0xff] %vm2903, %v2818
      %2910 = vst.msk [vmem:[#allocation3 + $0x90] sm:$0xff] %vm2903, %v2820
      %2911 = vst.msk [vmem:[#allocation3 + $0xa8] sm:$0xff] %vm2903, %v2822
      %2912 = vst.msk [vmem:[#allocation3 + $0xc0] sm:$0xff] %vm2903, %v2824
      %2913 = vst.msk [vmem:[#allocation3 + $0xd8] sm:$0xff] %vm2903, %v2826
      %2914 = vst.msk [vmem:[#allocation3 + $0xf0] sm:$0xff] %vm2903, %v2828
      %2915 = vst.msk [vmem:[#allocation3 + $0x108] sm:$0xff] %vm2903, %v2830
      %2916 = vst.msk [vmem:[#allocation3 + $0x120] sm:$0xff] %vm2903, %v2832
      %2917 = vst.msk [vmem:[#allocation3 + $0x138] sm:$0xff] %vm2903, %v2834
      %2918 = vst.msk [vmem:[#allocation3 + $0x150] sm:$0xff] %vm2903, %v2836
      %2919 = vst.msk [vmem:[#allocation3 + $0x168] sm:$0xff] %vm2903, %v2838
      %2920 = vst.msk [vmem:[#allocation3 + $0x180] sm:$0xff] %vm2903, %v2840
      %2921 = vst.msk [vmem:[#allocation3 + $0x198] sm:$0xff] %vm2903, %v2842
      %2922 = vst.msk [vmem:[#allocation3 + $0x1b0] sm:$0xff] %vm2903, %v2844
      %2923 = vst.msk [vmem:[#allocation3 + $0x1c8] sm:$0xff] %vm2903, %v2846
      %2924 = vst.msk [vmem:[#allocation3 + $0x1e0] sm:$0xff] %vm2903, %v2848
      %2925 = vst.msk [vmem:[#allocation3 + $0x1f8] sm:$0xff] %vm2903, %v2850
      %2926 = vst.msk [vmem:[#allocation3 + $0x210] sm:$0xff] %vm2903, %v2852
      %2927 = vst.msk [vmem:[#allocation3 + $0x228] sm:$0xff] %vm2903, %v2854
      %2928 = vst.msk [vmem:[#allocation3 + $0x240] sm:$0xff] %vm2903, %v2856
      %2929 = vst.msk [vmem:[#allocation3 + $0x258] sm:$0xff] %vm2903, %v2858
      %2930 = vst.msk [vmem:[#allocation3 + $0x270] sm:$0xff] %vm2903, %v2860
      %2931 = vst.msk [vmem:[#allocation3 + $0x288] sm:$0xff] %vm2903, %v2862
      %2932 = vst.msk [vmem:[#allocation3 + $0x2a0] sm:$0xff] %vm2903, %v2864
      %2933 = vst.msk [vmem:[#allocation3 + $0x2b8] sm:$0xff] %vm2903, %v2866
      %2934 = vst.msk [vmem:[#allocation3 + $0x2d0] sm:$0xff] %vm2903, %v2868
      %2935 = vst.msk [vmem:[#allocation3 + $0x2e8] sm:$0xff] %vm2903, %v2870
      %v2936 = vld [vmem:[%s2260 + $0x1] sm:$0xff]
      %v2937 = vld [vmem:[%s2260 + $0x9] sm:$0xff]
      %v2938 = vld [vmem:[%s2260 + $0x19] sm:$0xff]
      %v2939 = vld [vmem:[%s2260 + $0x21] sm:$0xff]
      %v2940 = vld [vmem:[%s2260 + $0x31] sm:$0xff]
      %v2941 = vld [vmem:[%s2260 + $0x39] sm:$0xff]
      %v2942 = vld [vmem:[%s2260 + $0x49] sm:$0xff]
      %v2943 = vld [vmem:[%s2260 + $0x51] sm:$0xff]
      %v2944 = vld [vmem:[%s2260 + $0x61] sm:$0xff]
      %v2945 = vld [vmem:[%s2260 + $0x69] sm:$0xff]
      %v2946 = vld [vmem:[%s2260 + $0x79] sm:$0xff]
      %v2947 = vld [vmem:[%s2260 + $0x81] sm:$0xff]
      %v2948 = vld [vmem:[%s2260 + $0x91] sm:$0xff]
      %v2949 = vld [vmem:[%s2260 + $0x99] sm:$0xff]
      %v2950 = vld [vmem:[%s2260 + $0xa9] sm:$0xff]
      %v2951 = vld [vmem:[%s2260 + $0xb1] sm:$0xff]
      %v2952 = vld [vmem:[%s2260 + $0xc1] sm:$0xff]
      %v2953 = vld [vmem:[%s2260 + $0xc9] sm:$0xff]
      %v2954 = vld [vmem:[%s2260 + $0xd9] sm:$0xff]
      %v2955 = vld [vmem:[%s2260 + $0xe1] sm:$0xff]
      %v2956 = vld [vmem:[%s2260 + $0xf1] sm:$0xff]
      %v2957 = vld [vmem:[%s2260 + $0xf9] sm:$0xff]
      %v2958 = vld [vmem:[%s2260 + $0x109] sm:$0xff]
      %v2959 = vld [vmem:[%s2260 + $0x111] sm:$0xff]
      %v2960 = vld [vmem:[%s2260 + $0x121] sm:$0xff]
      %v2961 = vld [vmem:[%s2260 + $0x129] sm:$0xff]
      %v2962 = vld [vmem:[%s2260 + $0x139] sm:$0xff]
      %v2963 = vld [vmem:[%s2260 + $0x141] sm:$0xff]
      %v2964 = vld [vmem:[%s2260 + $0x151] sm:$0xff]
      %v2965 = vld [vmem:[%s2260 + $0x159] sm:$0xff]
      %v2966 = vld [vmem:[%s2260 + $0x169] sm:$0xff]
      %v2967 = vld [vmem:[%s2260 + $0x171] sm:$0xff]
      %2968 = vst.msk [vmem:[#allocation3 + $0x8] sm:$0xff] %vm2204, %v2936
      %2969 = vst.msk [vmem:[#allocation3 + $0x20] sm:$0xff] %vm2204, %v2937
      %2970 = vst.msk [vmem:[#allocation3 + $0x38] sm:$0xff] %vm2204, %v2938
      %2971 = vst.msk [vmem:[#allocation3 + $0x50] sm:$0xff] %vm2204, %v2939
      %2972 = vst.msk [vmem:[#allocation3 + $0x68] sm:$0xff] %vm2204, %v2940
      %2973 = vst.msk [vmem:[#allocation3 + $0x80] sm:$0xff] %vm2204, %v2941
      %2974 = vst.msk [vmem:[#allocation3 + $0x98] sm:$0xff] %vm2204, %v2942
      %2975 = vst.msk [vmem:[#allocation3 + $0xb0] sm:$0xff] %vm2204, %v2943
      %2976 = vst.msk [vmem:[#allocation3 + $0xc8] sm:$0xff] %vm2204, %v2944
      %2977 = vst.msk [vmem:[#allocation3 + $0xe0] sm:$0xff] %vm2204, %v2945
      %2978 = vst.msk [vmem:[#allocation3 + $0xf8] sm:$0xff] %vm2204, %v2946
      %2979 = vst.msk [vmem:[#allocation3 + $0x110] sm:$0xff] %vm2204, %v2947
      %2980 = vst.msk [vmem:[#allocation3 + $0x128] sm:$0xff] %vm2204, %v2948
      %2981 = vst.msk [vmem:[#allocation3 + $0x140] sm:$0xff] %vm2204, %v2949
      %2982 = vst.msk [vmem:[#allocation3 + $0x158] sm:$0xff] %vm2204, %v2950
      %2983 = vst.msk [vmem:[#allocation3 + $0x170] sm:$0xff] %vm2204, %v2951
      %2984 = vst.msk [vmem:[#allocation3 + $0x188] sm:$0xff] %vm2204, %v2952
      %2985 = vst.msk [vmem:[#allocation3 + $0x1a0] sm:$0xff] %vm2204, %v2953
      %2986 = vst.msk [vmem:[#allocation3 + $0x1b8] sm:$0xff] %vm2204, %v2954
      %2987 = vst.msk [vmem:[#allocation3 + $0x1d0] sm:$0xff] %vm2204, %v2955
      %2988 = vst.msk [vmem:[#allocation3 + $0x1e8] sm:$0xff] %vm2204, %v2956
      %2989 = vst.msk [vmem:[#allocation3 + $0x200] sm:$0xff] %vm2204, %v2957
      %2990 = vst.msk [vmem:[#allocation3 + $0x218] sm:$0xff] %vm2204, %v2958
      %2991 = vst.msk [vmem:[#allocation3 + $0x230] sm:$0xff] %vm2204, %v2959
      %2992 = vst.msk [vmem:[#allocation3 + $0x248] sm:$0xff] %vm2204, %v2960
      %2993 = vst.msk [vmem:[#allocation3 + $0x260] sm:$0xff] %vm2204, %v2961
      %2994 = vst.msk [vmem:[#allocation3 + $0x278] sm:$0xff] %vm2204, %v2962
      %2995 = vst.msk [vmem:[#allocation3 + $0x290] sm:$0xff] %vm2204, %v2963
      %2996 = vst.msk [vmem:[#allocation3 + $0x2a8] sm:$0xff] %vm2204, %v2964
      %2997 = vst.msk [vmem:[#allocation3 + $0x2c0] sm:$0xff] %vm2204, %v2965
      %2998 = vst.msk [vmem:[#allocation3 + $0x2d8] sm:$0xff] %vm2204, %v2966
      %2999 = vst.msk [vmem:[#allocation3 + $0x2f0] sm:$0xff] %vm2204, %v2967
      %v3000 = vld [vmem:[%s2260 + $0x2] sm:$0xff]
      %v3001 = vld [vmem:[%s2260 + $0xa] sm:$0xff]
      %v3002 = vld [vmem:[%s2260 + $0x1a] sm:$0xff]
      %v3003 = vld [vmem:[%s2260 + $0x22] sm:$0xff]
      %v3004 = vld [vmem:[%s2260 + $0x32] sm:$0xff]
      %v3005 = vld [vmem:[%s2260 + $0x3a] sm:$0xff]
      %v3006 = vld [vmem:[%s2260 + $0x4a] sm:$0xff]
      %v3007 = vld [vmem:[%s2260 + $0x52] sm:$0xff]
      %v3008 = vld [vmem:[%s2260 + $0x62] sm:$0xff]
      %v3009 = vld [vmem:[%s2260 + $0x6a] sm:$0xff]
      %v3010 = vld [vmem:[%s2260 + $0x7a] sm:$0xff]
      %v3011 = vld [vmem:[%s2260 + $0x82] sm:$0xff]
      %v3012 = vld [vmem:[%s2260 + $0x92] sm:$0xff]
      %v3013 = vld [vmem:[%s2260 + $0x9a] sm:$0xff]
      %v3014 = vld [vmem:[%s2260 + $0xaa] sm:$0xff]
      %v3015 = vld [vmem:[%s2260 + $0xb2] sm:$0xff]
      %v3016 = vld [vmem:[%s2260 + $0xc2] sm:$0xff]
      %v3017 = vld [vmem:[%s2260 + $0xca] sm:$0xff]
      %v3018 = vld [vmem:[%s2260 + $0xda] sm:$0xff]
      %v3019 = vld [vmem:[%s2260 + $0xe2] sm:$0xff]
      %v3020 = vld [vmem:[%s2260 + $0xf2] sm:$0xff]
      %v3021 = vld [vmem:[%s2260 + $0xfa] sm:$0xff]
      %v3022 = vld [vmem:[%s2260 + $0x10a] sm:$0xff]
      %v3023 = vld [vmem:[%s2260 + $0x112] sm:$0xff]
      %v3024 = vld [vmem:[%s2260 + $0x122] sm:$0xff]
      %v3025 = vld [vmem:[%s2260 + $0x12a] sm:$0xff]
      %v3026 = vld [vmem:[%s2260 + $0x13a] sm:$0xff]
      %v3027 = vld [vmem:[%s2260 + $0x142] sm:$0xff]
      %v3028 = vld [vmem:[%s2260 + $0x152] sm:$0xff]
      %v3029 = vld [vmem:[%s2260 + $0x15a] sm:$0xff]
      %v3030 = vld [vmem:[%s2260 + $0x16a] sm:$0xff]
      %v3031 = vld [vmem:[%s2260 + $0x172] sm:$0xff]
      %3064 = vrot.lane.b32.xlu0 %v3000, 32
      %v3065 = vpop.permute.xlu0 %3064
      %3066 = vrot.lane.b32.xlu0 %v3001, 32
      %v3067 = vpop.permute.xlu0 %3066
      %3068 = vrot.lane.b32.xlu0 %v3002, 32
      %v3069 = vpop.permute.xlu0 %3068
      %3070 = vrot.lane.b32.xlu0 %v3003, 32
      %v3071 = vpop.permute.xlu0 %3070
      %3072 = vrot.lane.b32.xlu0 %v3004, 32
      %v3073 = vpop.permute.xlu0 %3072
      %3074 = vrot.lane.b32.xlu0 %v3005, 32
      %v3075 = vpop.permute.xlu0 %3074
      %3076 = vrot.lane.b32.xlu0 %v3006, 32
      %v3077 = vpop.permute.xlu0 %3076
      %3078 = vrot.lane.b32.xlu0 %v3007, 32
      %v3079 = vpop.permute.xlu0 %3078
      %3080 = vrot.lane.b32.xlu0 %v3008, 32
      %v3081 = vpop.permute.xlu0 %3080
      %3082 = vrot.lane.b32.xlu0 %v3009, 32
      %v3083 = vpop.permute.xlu0 %3082
      %3084 = vrot.lane.b32.xlu0 %v3010, 32
      %v3085 = vpop.permute.xlu0 %3084
      %3086 = vrot.lane.b32.xlu0 %v3011, 32
      %v3087 = vpop.permute.xlu0 %3086
      %3088 = vrot.lane.b32.xlu0 %v3012, 32
      %v3089 = vpop.permute.xlu0 %3088
      %3090 = vrot.lane.b32.xlu0 %v3013, 32
      %v3091 = vpop.permute.xlu0 %3090
      %3092 = vrot.lane.b32.xlu0 %v3014, 32
      %v3093 = vpop.permute.xlu0 %3092
      %3094 = vrot.lane.b32.xlu0 %v3015, 32
      %v3095 = vpop.permute.xlu0 %3094
      %3096 = vrot.lane.b32.xlu0 %v3016, 32
      %v3097 = vpop.permute.xlu0 %3096
      %3098 = vrot.lane.b32.xlu0 %v3017, 32
      %v3099 = vpop.permute.xlu0 %3098
      %3100 = vrot.lane.b32.xlu0 %v3018, 32
      %v3101 = vpop.permute.xlu0 %3100
      %3102 = vrot.lane.b32.xlu0 %v3019, 32
      %v3103 = vpop.permute.xlu0 %3102
      %3104 = vrot.lane.b32.xlu0 %v3020, 32
      %v3105 = vpop.permute.xlu0 %3104
      %3106 = vrot.lane.b32.xlu0 %v3021, 32
      %v3107 = vpop.permute.xlu0 %3106
      %3108 = vrot.lane.b32.xlu0 %v3022, 32
      %v3109 = vpop.permute.xlu0 %3108
      %3110 = vrot.lane.b32.xlu0 %v3023, 32
      %v3111 = vpop.permute.xlu0 %3110
      %3112 = vrot.lane.b32.xlu0 %v3024, 32
      %v3113 = vpop.permute.xlu0 %3112
      %3114 = vrot.lane.b32.xlu0 %v3025, 32
      %v3115 = vpop.permute.xlu0 %3114
      %3116 = vrot.lane.b32.xlu0 %v3026, 32
      %v3117 = vpop.permute.xlu0 %3116
      %3118 = vrot.lane.b32.xlu0 %v3027, 32
      %v3119 = vpop.permute.xlu0 %3118
      %3120 = vrot.lane.b32.xlu0 %v3028, 32
      %v3121 = vpop.permute.xlu0 %3120
      %3122 = vrot.lane.b32.xlu0 %v3029, 32
      %v3123 = vpop.permute.xlu0 %3122
      %3124 = vrot.lane.b32.xlu0 %v3030, 32
      %v3125 = vpop.permute.xlu0 %3124
      %3126 = vrot.lane.b32.xlu0 %v3031, 32
      %v3127 = vpop.permute.xlu0 %3126
      %3160 = vst.msk [vmem:[#allocation3 + $0x8] sm:$0xff] %vm2517, %v3065
      %3161 = vst.msk [vmem:[#allocation3 + $0x20] sm:$0xff] %vm2517, %v3067
      %3162 = vst.msk [vmem:[#allocation3 + $0x38] sm:$0xff] %vm2517, %v3069
      %3163 = vst.msk [vmem:[#allocation3 + $0x50] sm:$0xff] %vm2517, %v3071
      %3164 = vst.msk [vmem:[#allocation3 + $0x68] sm:$0xff] %vm2517, %v3073
      %3165 = vst.msk [vmem:[#allocation3 + $0x80] sm:$0xff] %vm2517, %v3075
      %3166 = vst.msk [vmem:[#allocation3 + $0x98] sm:$0xff] %vm2517, %v3077
      %3167 = vst.msk [vmem:[#allocation3 + $0xb0] sm:$0xff] %vm2517, %v3079
      %3168 = vst.msk [vmem:[#allocation3 + $0xc8] sm:$0xff] %vm2517, %v3081
      %3169 = vst.msk [vmem:[#allocation3 + $0xe0] sm:$0xff] %vm2517, %v3083
      %3170 = vst.msk [vmem:[#allocation3 + $0xf8] sm:$0xff] %vm2517, %v3085
      %3171 = vst.msk [vmem:[#allocation3 + $0x110] sm:$0xff] %vm2517, %v3087
      %3172 = vst.msk [vmem:[#allocation3 + $0x128] sm:$0xff] %vm2517, %v3089
      %3173 = vst.msk [vmem:[#allocation3 + $0x140] sm:$0xff] %vm2517, %v3091
      %3174 = vst.msk [vmem:[#allocation3 + $0x158] sm:$0xff] %vm2517, %v3093
      %3175 = vst.msk [vmem:[#allocation3 + $0x170] sm:$0xff] %vm2517, %v3095
      %3176 = vst.msk [vmem:[#allocation3 + $0x188] sm:$0xff] %vm2517, %v3097
      %3177 = vst.msk [vmem:[#allocation3 + $0x1a0] sm:$0xff] %vm2517, %v3099
      %3178 = vst.msk [vmem:[#allocation3 + $0x1b8] sm:$0xff] %vm2517, %v3101
      %3179 = vst.msk [vmem:[#allocation3 + $0x1d0] sm:$0xff] %vm2517, %v3103
      %3180 = vst.msk [vmem:[#allocation3 + $0x1e8] sm:$0xff] %vm2517, %v3105
      %3181 = vst.msk [vmem:[#allocation3 + $0x200] sm:$0xff] %vm2517, %v3107
      %3182 = vst.msk [vmem:[#allocation3 + $0x218] sm:$0xff] %vm2517, %v3109
      %3183 = vst.msk [vmem:[#allocation3 + $0x230] sm:$0xff] %vm2517, %v3111
      %3184 = vst.msk [vmem:[#allocation3 + $0x248] sm:$0xff] %vm2517, %v3113
      %3185 = vst.msk [vmem:[#allocation3 + $0x260] sm:$0xff] %vm2517, %v3115
      %3186 = vst.msk [vmem:[#allocation3 + $0x278] sm:$0xff] %vm2517, %v3117
      %3187 = vst.msk [vmem:[#allocation3 + $0x290] sm:$0xff] %vm2517, %v3119
      %3188 = vst.msk [vmem:[#allocation3 + $0x2a8] sm:$0xff] %vm2517, %v3121
      %3189 = vst.msk [vmem:[#allocation3 + $0x2c0] sm:$0xff] %vm2517, %v3123
      %3190 = vst.msk [vmem:[#allocation3 + $0x2d8] sm:$0xff] %vm2517, %v3125
      %3191 = vst.msk [vmem:[#allocation3 + $0x2f0] sm:$0xff] %vm2517, %v3127
      %s3192 = scalar_lea.vmem [#allocation2], 48
      %v3193 = vld [vmem:[%s3192] sm:$0xff]
      %v3194 = vld [vmem:[%s3192 + $0x8] sm:$0xff]
      %v3195 = vld [vmem:[%s3192 + $0x18] sm:$0xff]
      %v3196 = vld [vmem:[%s3192 + $0x20] sm:$0xff]
      %v3197 = vld [vmem:[%s3192 + $0x30] sm:$0xff]
      %v3198 = vld [vmem:[%s3192 + $0x38] sm:$0xff]
      %v3199 = vld [vmem:[%s3192 + $0x48] sm:$0xff]
      %v3200 = vld [vmem:[%s3192 + $0x50] sm:$0xff]
      %v3201 = vld [vmem:[%s3192 + $0x60] sm:$0xff]
      %v3202 = vld [vmem:[%s3192 + $0x68] sm:$0xff]
      %v3203 = vld [vmem:[%s3192 + $0x78] sm:$0xff]
      %v3204 = vld [vmem:[%s3192 + $0x80] sm:$0xff]
      %v3205 = vld [vmem:[%s3192 + $0x90] sm:$0xff]
      %v3206 = vld [vmem:[%s3192 + $0x98] sm:$0xff]
      %v3207 = vld [vmem:[%s3192 + $0xa8] sm:$0xff]
      %v3208 = vld [vmem:[%s3192 + $0xb0] sm:$0xff]
      %v3209 = vld [vmem:[%s3192 + $0xc0] sm:$0xff]
      %v3210 = vld [vmem:[%s3192 + $0xc8] sm:$0xff]
      %v3211 = vld [vmem:[%s3192 + $0xd8] sm:$0xff]
      %v3212 = vld [vmem:[%s3192 + $0xe0] sm:$0xff]
      %v3213 = vld [vmem:[%s3192 + $0xf0] sm:$0xff]
      %v3214 = vld [vmem:[%s3192 + $0xf8] sm:$0xff]
      %v3215 = vld [vmem:[%s3192 + $0x108] sm:$0xff]
      %v3216 = vld [vmem:[%s3192 + $0x110] sm:$0xff]
      %v3217 = vld [vmem:[%s3192 + $0x120] sm:$0xff]
      %v3218 = vld [vmem:[%s3192 + $0x128] sm:$0xff]
      %v3219 = vld [vmem:[%s3192 + $0x138] sm:$0xff]
      %v3220 = vld [vmem:[%s3192 + $0x140] sm:$0xff]
      %v3221 = vld [vmem:[%s3192 + $0x150] sm:$0xff]
      %v3222 = vld [vmem:[%s3192 + $0x158] sm:$0xff]
      %v3223 = vld [vmem:[%s3192 + $0x168] sm:$0xff]
      %v3224 = vld [vmem:[%s3192 + $0x170] sm:$0xff]
      %3257 = vrot.lane.b32.xlu0 %v3193, 64
      %v3258 = vpop.permute.xlu0 %3257
      %3259 = vrot.lane.b32.xlu0 %v3194, 64
      %v3260 = vpop.permute.xlu0 %3259
      %3261 = vrot.lane.b32.xlu0 %v3195, 64
      %v3262 = vpop.permute.xlu0 %3261
      %3263 = vrot.lane.b32.xlu0 %v3196, 64
      %v3264 = vpop.permute.xlu0 %3263
      %3265 = vrot.lane.b32.xlu0 %v3197, 64
      %v3266 = vpop.permute.xlu0 %3265
      %3267 = vrot.lane.b32.xlu0 %v3198, 64
      %v3268 = vpop.permute.xlu0 %3267
      %3269 = vrot.lane.b32.xlu0 %v3199, 64
      %v3270 = vpop.permute.xlu0 %3269
      %3271 = vrot.lane.b32.xlu0 %v3200, 64
      %v3272 = vpop.permute.xlu0 %3271
      %3273 = vrot.lane.b32.xlu0 %v3201, 64
      %v3274 = vpop.permute.xlu0 %3273
      %3275 = vrot.lane.b32.xlu0 %v3202, 64
      %v3276 = vpop.permute.xlu0 %3275
      %3277 = vrot.lane.b32.xlu0 %v3203, 64
      %v3278 = vpop.permute.xlu0 %3277
      %3279 = vrot.lane.b32.xlu0 %v3204, 64
      %v3280 = vpop.permute.xlu0 %3279
      %3281 = vrot.lane.b32.xlu0 %v3205, 64
      %v3282 = vpop.permute.xlu0 %3281
      %3283 = vrot.lane.b32.xlu0 %v3206, 64
      %v3284 = vpop.permute.xlu0 %3283
      %3285 = vrot.lane.b32.xlu0 %v3207, 64
      %v3286 = vpop.permute.xlu0 %3285
      %3287 = vrot.lane.b32.xlu0 %v3208, 64
      %v3288 = vpop.permute.xlu0 %3287
      %3289 = vrot.lane.b32.xlu0 %v3209, 64
      %v3290 = vpop.permute.xlu0 %3289
      %3291 = vrot.lane.b32.xlu0 %v3210, 64
      %v3292 = vpop.permute.xlu0 %3291
      %3293 = vrot.lane.b32.xlu0 %v3211, 64
      %v3294 = vpop.permute.xlu0 %3293
      %3295 = vrot.lane.b32.xlu0 %v3212, 64
      %v3296 = vpop.permute.xlu0 %3295
      %3297 = vrot.lane.b32.xlu0 %v3213, 64
      %v3298 = vpop.permute.xlu0 %3297
      %3299 = vrot.lane.b32.xlu0 %v3214, 64
      %v3300 = vpop.permute.xlu0 %3299
      %3301 = vrot.lane.b32.xlu0 %v3215, 64
      %v3302 = vpop.permute.xlu0 %3301
      %3303 = vrot.lane.b32.xlu0 %v3216, 64
      %v3304 = vpop.permute.xlu0 %3303
      %3305 = vrot.lane.b32.xlu0 %v3217, 64
      %v3306 = vpop.permute.xlu0 %3305
      %3307 = vrot.lane.b32.xlu0 %v3218, 64
      %v3308 = vpop.permute.xlu0 %3307
      %3309 = vrot.lane.b32.xlu0 %v3219, 64
      %v3310 = vpop.permute.xlu0 %3309
      %3311 = vrot.lane.b32.xlu0 %v3220, 64
      %v3312 = vpop.permute.xlu0 %3311
      %3313 = vrot.lane.b32.xlu0 %v3221, 64
      %v3314 = vpop.permute.xlu0 %3313
      %3315 = vrot.lane.b32.xlu0 %v3222, 64
      %v3316 = vpop.permute.xlu0 %3315
      %3317 = vrot.lane.b32.xlu0 %v3223, 64
      %v3318 = vpop.permute.xlu0 %3317
      %3319 = vrot.lane.b32.xlu0 %v3224, 64
      %v3320 = vpop.permute.xlu0 %3319
      %3353 = vst.msk [vmem:[#allocation3 + $0x8] sm:$0xff] %vm2710, %v3258
      %3354 = vst.msk [vmem:[#allocation3 + $0x20] sm:$0xff] %vm2710, %v3260
      %3355 = vst.msk [vmem:[#allocation3 + $0x38] sm:$0xff] %vm2710, %v3262
      %3356 = vst.msk [vmem:[#allocation3 + $0x50] sm:$0xff] %vm2710, %v3264
      %3357 = vst.msk [vmem:[#allocation3 + $0x68] sm:$0xff] %vm2710, %v3266
      %3358 = vst.msk [vmem:[#allocation3 + $0x80] sm:$0xff] %vm2710, %v3268
      %3359 = vst.msk [vmem:[#allocation3 + $0x98] sm:$0xff] %vm2710, %v3270
      %3360 = vst.msk [vmem:[#allocation3 + $0xb0] sm:$0xff] %vm2710, %v3272
      %3361 = vst.msk [vmem:[#allocation3 + $0xc8] sm:$0xff] %vm2710, %v3274
      %3362 = vst.msk [vmem:[#allocation3 + $0xe0] sm:$0xff] %vm2710, %v3276
      %3363 = vst.msk [vmem:[#allocation3 + $0xf8] sm:$0xff] %vm2710, %v3278
      %3364 = vst.msk [vmem:[#allocation3 + $0x110] sm:$0xff] %vm2710, %v3280
      %3365 = vst.msk [vmem:[#allocation3 + $0x128] sm:$0xff] %vm2710, %v3282
      %3366 = vst.msk [vmem:[#allocation3 + $0x140] sm:$0xff] %vm2710, %v3284
      %3367 = vst.msk [vmem:[#allocation3 + $0x158] sm:$0xff] %vm2710, %v3286
      %3368 = vst.msk [vmem:[#allocation3 + $0x170] sm:$0xff] %vm2710, %v3288
      %3369 = vst.msk [vmem:[#allocation3 + $0x188] sm:$0xff] %vm2710, %v3290
      %3370 = vst.msk [vmem:[#allocation3 + $0x1a0] sm:$0xff] %vm2710, %v3292
      %3371 = vst.msk [vmem:[#allocation3 + $0x1b8] sm:$0xff] %vm2710, %v3294
      %3372 = vst.msk [vmem:[#allocation3 + $0x1d0] sm:$0xff] %vm2710, %v3296
      %3373 = vst.msk [vmem:[#allocation3 + $0x1e8] sm:$0xff] %vm2710, %v3298
      %3374 = vst.msk [vmem:[#allocation3 + $0x200] sm:$0xff] %vm2710, %v3300
      %3375 = vst.msk [vmem:[#allocation3 + $0x218] sm:$0xff] %vm2710, %v3302
      %3376 = vst.msk [vmem:[#allocation3 + $0x230] sm:$0xff] %vm2710, %v3304
      %3377 = vst.msk [vmem:[#allocation3 + $0x248] sm:$0xff] %vm2710, %v3306
      %3378 = vst.msk [vmem:[#allocation3 + $0x260] sm:$0xff] %vm2710, %v3308
      %3379 = vst.msk [vmem:[#allocation3 + $0x278] sm:$0xff] %vm2710, %v3310
      %3380 = vst.msk [vmem:[#allocation3 + $0x290] sm:$0xff] %vm2710, %v3312
      %3381 = vst.msk [vmem:[#allocation3 + $0x2a8] sm:$0xff] %vm2710, %v3314
      %3382 = vst.msk [vmem:[#allocation3 + $0x2c0] sm:$0xff] %vm2710, %v3316
      %3383 = vst.msk [vmem:[#allocation3 + $0x2d8] sm:$0xff] %vm2710, %v3318
      %3384 = vst.msk [vmem:[#allocation3 + $0x2f0] sm:$0xff] %vm2710, %v3320
      %v3385 = vld [vmem:[%s3192 + $0x1] sm:$0xff]
      %v3386 = vld [vmem:[%s3192 + $0x9] sm:$0xff]
      %v3387 = vld [vmem:[%s3192 + $0x19] sm:$0xff]
      %v3388 = vld [vmem:[%s3192 + $0x21] sm:$0xff]
      %v3389 = vld [vmem:[%s3192 + $0x31] sm:$0xff]
      %v3390 = vld [vmem:[%s3192 + $0x39] sm:$0xff]
      %v3391 = vld [vmem:[%s3192 + $0x49] sm:$0xff]
      %v3392 = vld [vmem:[%s3192 + $0x51] sm:$0xff]
      %v3393 = vld [vmem:[%s3192 + $0x61] sm:$0xff]
      %v3394 = vld [vmem:[%s3192 + $0x69] sm:$0xff]
      %v3395 = vld [vmem:[%s3192 + $0x79] sm:$0xff]
      %v3396 = vld [vmem:[%s3192 + $0x81] sm:$0xff]
      %v3397 = vld [vmem:[%s3192 + $0x91] sm:$0xff]
      %v3398 = vld [vmem:[%s3192 + $0x99] sm:$0xff]
      %v3399 = vld [vmem:[%s3192 + $0xa9] sm:$0xff]
      %v3400 = vld [vmem:[%s3192 + $0xb1] sm:$0xff]
      %v3401 = vld [vmem:[%s3192 + $0xc1] sm:$0xff]
      %v3402 = vld [vmem:[%s3192 + $0xc9] sm:$0xff]
      %v3403 = vld [vmem:[%s3192 + $0xd9] sm:$0xff]
      %v3404 = vld [vmem:[%s3192 + $0xe1] sm:$0xff]
      %v3405 = vld [vmem:[%s3192 + $0xf1] sm:$0xff]
      %v3406 = vld [vmem:[%s3192 + $0xf9] sm:$0xff]
      %v3407 = vld [vmem:[%s3192 + $0x109] sm:$0xff]
      %v3408 = vld [vmem:[%s3192 + $0x111] sm:$0xff]
      %v3409 = vld [vmem:[%s3192 + $0x121] sm:$0xff]
      %v3410 = vld [vmem:[%s3192 + $0x129] sm:$0xff]
      %v3411 = vld [vmem:[%s3192 + $0x139] sm:$0xff]
      %v3412 = vld [vmem:[%s3192 + $0x141] sm:$0xff]
      %v3413 = vld [vmem:[%s3192 + $0x151] sm:$0xff]
      %v3414 = vld [vmem:[%s3192 + $0x159] sm:$0xff]
      %v3415 = vld [vmem:[%s3192 + $0x169] sm:$0xff]
      %v3416 = vld [vmem:[%s3192 + $0x171] sm:$0xff]
      %3449 = vrot.lane.b32.xlu0 %v3385, 96
      %v3450 = vpop.permute.xlu0 %3449
      %3451 = vrot.lane.b32.xlu0 %v3386, 96
      %v3452 = vpop.permute.xlu0 %3451
      %3453 = vrot.lane.b32.xlu0 %v3387, 96
      %v3454 = vpop.permute.xlu0 %3453
      %3455 = vrot.lane.b32.xlu0 %v3388, 96
      %v3456 = vpop.permute.xlu0 %3455
      %3457 = vrot.lane.b32.xlu0 %v3389, 96
      %v3458 = vpop.permute.xlu0 %3457
      %3459 = vrot.lane.b32.xlu0 %v3390, 96
      %v3460 = vpop.permute.xlu0 %3459
      %3461 = vrot.lane.b32.xlu0 %v3391, 96
      %v3462 = vpop.permute.xlu0 %3461
      %3463 = vrot.lane.b32.xlu0 %v3392, 96
      %v3464 = vpop.permute.xlu0 %3463
      %3465 = vrot.lane.b32.xlu0 %v3393, 96
      %v3466 = vpop.permute.xlu0 %3465
      %3467 = vrot.lane.b32.xlu0 %v3394, 96
      %v3468 = vpop.permute.xlu0 %3467
      %3469 = vrot.lane.b32.xlu0 %v3395, 96
      %v3470 = vpop.permute.xlu0 %3469
      %3471 = vrot.lane.b32.xlu0 %v3396, 96
      %v3472 = vpop.permute.xlu0 %3471
      %3473 = vrot.lane.b32.xlu0 %v3397, 96
      %v3474 = vpop.permute.xlu0 %3473
      %3475 = vrot.lane.b32.xlu0 %v3398, 96
      %v3476 = vpop.permute.xlu0 %3475
      %3477 = vrot.lane.b32.xlu0 %v3399, 96
      %v3478 = vpop.permute.xlu0 %3477
      %3479 = vrot.lane.b32.xlu0 %v3400, 96
      %v3480 = vpop.permute.xlu0 %3479
      %3481 = vrot.lane.b32.xlu0 %v3401, 96
      %v3482 = vpop.permute.xlu0 %3481
      %3483 = vrot.lane.b32.xlu0 %v3402, 96
      %v3484 = vpop.permute.xlu0 %3483
      %3485 = vrot.lane.b32.xlu0 %v3403, 96
      %v3486 = vpop.permute.xlu0 %3485
      %3487 = vrot.lane.b32.xlu0 %v3404, 96
      %v3488 = vpop.permute.xlu0 %3487
      %3489 = vrot.lane.b32.xlu0 %v3405, 96
      %v3490 = vpop.permute.xlu0 %3489
      %3491 = vrot.lane.b32.xlu0 %v3406, 96
      %v3492 = vpop.permute.xlu0 %3491
      %3493 = vrot.lane.b32.xlu0 %v3407, 96
      %v3494 = vpop.permute.xlu0 %3493
      %3495 = vrot.lane.b32.xlu0 %v3408, 96
      %v3496 = vpop.permute.xlu0 %3495
      %3497 = vrot.lane.b32.xlu0 %v3409, 96
      %v3498 = vpop.permute.xlu0 %3497
      %3499 = vrot.lane.b32.xlu0 %v3410, 96
      %v3500 = vpop.permute.xlu0 %3499
      %3501 = vrot.lane.b32.xlu0 %v3411, 96
      %v3502 = vpop.permute.xlu0 %3501
      %3503 = vrot.lane.b32.xlu0 %v3412, 96
      %v3504 = vpop.permute.xlu0 %3503
      %3505 = vrot.lane.b32.xlu0 %v3413, 96
      %v3506 = vpop.permute.xlu0 %3505
      %3507 = vrot.lane.b32.xlu0 %v3414, 96
      %v3508 = vpop.permute.xlu0 %3507
      %3509 = vrot.lane.b32.xlu0 %v3415, 96
      %v3510 = vpop.permute.xlu0 %3509
      %3511 = vrot.lane.b32.xlu0 %v3416, 96
      %v3512 = vpop.permute.xlu0 %3511
      %3545 = vst.msk [vmem:[#allocation3 + $0x8] sm:$0xff] %vm2903, %v3450
      %3546 = vst.msk [vmem:[#allocation3 + $0x20] sm:$0xff] %vm2903, %v3452
      %3547 = vst.msk [vmem:[#allocation3 + $0x38] sm:$0xff] %vm2903, %v3454
      %3548 = vst.msk [vmem:[#allocation3 + $0x50] sm:$0xff] %vm2903, %v3456
      %3549 = vst.msk [vmem:[#allocation3 + $0x68] sm:$0xff] %vm2903, %v3458
      %3550 = vst.msk [vmem:[#allocation3 + $0x80] sm:$0xff] %vm2903, %v3460
      %3551 = vst.msk [vmem:[#allocation3 + $0x98] sm:$0xff] %vm2903, %v3462
      %3552 = vst.msk [vmem:[#allocation3 + $0xb0] sm:$0xff] %vm2903, %v3464
      %3553 = vst.msk [vmem:[#allocation3 + $0xc8] sm:$0xff] %vm2903, %v3466
      %3554 = vst.msk [vmem:[#allocation3 + $0xe0] sm:$0xff] %vm2903, %v3468
      %3555 = vst.msk [vmem:[#allocation3 + $0xf8] sm:$0xff] %vm2903, %v3470
      %3556 = vst.msk [vmem:[#allocation3 + $0x110] sm:$0xff] %vm2903, %v3472
      %3557 = vst.msk [vmem:[#allocation3 + $0x128] sm:$0xff] %vm2903, %v3474
      %3558 = vst.msk [vmem:[#allocation3 + $0x140] sm:$0xff] %vm2903, %v3476
      %3559 = vst.msk [vmem:[#allocation3 + $0x158] sm:$0xff] %vm2903, %v3478
      %3560 = vst.msk [vmem:[#allocation3 + $0x170] sm:$0xff] %vm2903, %v3480
      %3561 = vst.msk [vmem:[#allocation3 + $0x188] sm:$0xff] %vm2903, %v3482
      %3562 = vst.msk [vmem:[#allocation3 + $0x1a0] sm:$0xff] %vm2903, %v3484
      %3563 = vst.msk [vmem:[#allocation3 + $0x1b8] sm:$0xff] %vm2903, %v3486
      %3564 = vst.msk [vmem:[#allocation3 + $0x1d0] sm:$0xff] %vm2903, %v3488
      %3565 = vst.msk [vmem:[#allocation3 + $0x1e8] sm:$0xff] %vm2903, %v3490
      %3566 = vst.msk [vmem:[#allocation3 + $0x200] sm:$0xff] %vm2903, %v3492
      %3567 = vst.msk [vmem:[#allocation3 + $0x218] sm:$0xff] %vm2903, %v3494
      %3568 = vst.msk [vmem:[#allocation3 + $0x230] sm:$0xff] %vm2903, %v3496
      %3569 = vst.msk [vmem:[#allocation3 + $0x248] sm:$0xff] %vm2903, %v3498
      %3570 = vst.msk [vmem:[#allocation3 + $0x260] sm:$0xff] %vm2903, %v3500
      %3571 = vst.msk [vmem:[#allocation3 + $0x278] sm:$0xff] %vm2903, %v3502
      %3572 = vst.msk [vmem:[#allocation3 + $0x290] sm:$0xff] %vm2903, %v3504
      %3573 = vst.msk [vmem:[#allocation3 + $0x2a8] sm:$0xff] %vm2903, %v3506
      %3574 = vst.msk [vmem:[#allocation3 + $0x2c0] sm:$0xff] %vm2903, %v3508
      %3575 = vst.msk [vmem:[#allocation3 + $0x2d8] sm:$0xff] %vm2903, %v3510
      %3576 = vst.msk [vmem:[#allocation3 + $0x2f0] sm:$0xff] %vm2903, %v3512
      %v3577 = vld [vmem:[%s3192 + $0x2] sm:$0xff]
      %v3578 = vld [vmem:[%s3192 + $0xa] sm:$0xff]
      %v3579 = vld [vmem:[%s3192 + $0x1a] sm:$0xff]
      %v3580 = vld [vmem:[%s3192 + $0x22] sm:$0xff]
      %v3581 = vld [vmem:[%s3192 + $0x32] sm:$0xff]
      %v3582 = vld [vmem:[%s3192 + $0x3a] sm:$0xff]
      %v3583 = vld [vmem:[%s3192 + $0x4a] sm:$0xff]
      %v3584 = vld [vmem:[%s3192 + $0x52] sm:$0xff]
      %v3585 = vld [vmem:[%s3192 + $0x62] sm:$0xff]
      %v3586 = vld [vmem:[%s3192 + $0x6a] sm:$0xff]
      %v3587 = vld [vmem:[%s3192 + $0x7a] sm:$0xff]
      %v3588 = vld [vmem:[%s3192 + $0x82] sm:$0xff]
      %v3589 = vld [vmem:[%s3192 + $0x92] sm:$0xff]
      %v3590 = vld [vmem:[%s3192 + $0x9a] sm:$0xff]
      %v3591 = vld [vmem:[%s3192 + $0xaa] sm:$0xff]
      %v3592 = vld [vmem:[%s3192 + $0xb2] sm:$0xff]
      %v3593 = vld [vmem:[%s3192 + $0xc2] sm:$0xff]
      %v3594 = vld [vmem:[%s3192 + $0xca] sm:$0xff]
      %v3595 = vld [vmem:[%s3192 + $0xda] sm:$0xff]
      %v3596 = vld [vmem:[%s3192 + $0xe2] sm:$0xff]
      %v3597 = vld [vmem:[%s3192 + $0xf2] sm:$0xff]
      %v3598 = vld [vmem:[%s3192 + $0xfa] sm:$0xff]
      %v3599 = vld [vmem:[%s3192 + $0x10a] sm:$0xff]
      %v3600 = vld [vmem:[%s3192 + $0x112] sm:$0xff]
      %v3601 = vld [vmem:[%s3192 + $0x122] sm:$0xff]
      %v3602 = vld [vmem:[%s3192 + $0x12a] sm:$0xff]
      %v3603 = vld [vmem:[%s3192 + $0x13a] sm:$0xff]
      %v3604 = vld [vmem:[%s3192 + $0x142] sm:$0xff]
      %v3605 = vld [vmem:[%s3192 + $0x152] sm:$0xff]
      %v3606 = vld [vmem:[%s3192 + $0x15a] sm:$0xff]
      %v3607 = vld [vmem:[%s3192 + $0x16a] sm:$0xff]
      %v3608 = vld [vmem:[%s3192 + $0x172] sm:$0xff]
      %3609 = vst.msk [vmem:[#allocation3 + $0x10] sm:$0xff] %vm2204, %v3577
      %3610 = vst.msk [vmem:[#allocation3 + $0x28] sm:$0xff] %vm2204, %v3578
      %3611 = vst.msk [vmem:[#allocation3 + $0x40] sm:$0xff] %vm2204, %v3579
      %3612 = vst.msk [vmem:[#allocation3 + $0x58] sm:$0xff] %vm2204, %v3580
      %3613 = vst.msk [vmem:[#allocation3 + $0x70] sm:$0xff] %vm2204, %v3581
      %3614 = vst.msk [vmem:[#allocation3 + $0x88] sm:$0xff] %vm2204, %v3582
      %3615 = vst.msk [vmem:[#allocation3 + $0xa0] sm:$0xff] %vm2204, %v3583
      %3616 = vst.msk [vmem:[#allocation3 + $0xb8] sm:$0xff] %vm2204, %v3584
      %3617 = vst.msk [vmem:[#allocation3 + $0xd0] sm:$0xff] %vm2204, %v3585
      %3618 = vst.msk [vmem:[#allocation3 + $0xe8] sm:$0xff] %vm2204, %v3586
      %3619 = vst.msk [vmem:[#allocation3 + $0x100] sm:$0xff] %vm2204, %v3587
      %3620 = vst.msk [vmem:[#allocation3 + $0x118] sm:$0xff] %vm2204, %v3588
      %3621 = vst.msk [vmem:[#allocation3 + $0x130] sm:$0xff] %vm2204, %v3589
      %3622 = vst.msk [vmem:[#allocation3 + $0x148] sm:$0xff] %vm2204, %v3590
      %3623 = vst.msk [vmem:[#allocation3 + $0x160] sm:$0xff] %vm2204, %v3591
      %3624 = vst.msk [vmem:[#allocation3 + $0x178] sm:$0xff] %vm2204, %v3592
      %3625 = vst.msk [vmem:[#allocation3 + $0x190] sm:$0xff] %vm2204, %v3593
      %3626 = vst.msk [vmem:[#allocation3 + $0x1a8] sm:$0xff] %vm2204, %v3594
      %3627 = vst.msk [vmem:[#allocation3 + $0x1c0] sm:$0xff] %vm2204, %v3595
      %3628 = vst.msk [vmem:[#allocation3 + $0x1d8] sm:$0xff] %vm2204, %v3596
      %3629 = vst.msk [vmem:[#allocation3 + $0x1f0] sm:$0xff] %vm2204, %v3597
      %3630 = vst.msk [vmem:[#allocation3 + $0x208] sm:$0xff] %vm2204, %v3598
      %3631 = vst.msk [vmem:[#allocation3 + $0x220] sm:$0xff] %vm2204, %v3599
      %3632 = vst.msk [vmem:[#allocation3 + $0x238] sm:$0xff] %vm2204, %v3600
      %3633 = vst.msk [vmem:[#allocation3 + $0x250] sm:$0xff] %vm2204, %v3601
      %3634 = vst.msk [vmem:[#allocation3 + $0x268] sm:$0xff] %vm2204, %v3602
      %3635 = vst.msk [vmem:[#allocation3 + $0x280] sm:$0xff] %vm2204, %v3603
      %3636 = vst.msk [vmem:[#allocation3 + $0x298] sm:$0xff] %vm2204, %v3604
      %3637 = vst.msk [vmem:[#allocation3 + $0x2b0] sm:$0xff] %vm2204, %v3605
      %3638 = vst.msk [vmem:[#allocation3 + $0x2c8] sm:$0xff] %vm2204, %v3606
      %3639 = vst.msk [vmem:[#allocation3 + $0x2e0] sm:$0xff] %vm2204, %v3607
      %3640 = vst.msk [vmem:[#allocation3 + $0x2f8] sm:$0xff] %vm2204, %v3608
      %v3641 = vld [vmem:[#allocation3] sm:$0xff]
      %v3642 = vld [vmem:[#allocation3 + $0x8] sm:$0xff]
      %v3643 = vld [vmem:[#allocation3 + $0x10] sm:$0xff]
      %v3644 = vld [vmem:[#allocation3 + $0x18] sm:$0xff]
      %v3645 = vld [vmem:[#allocation3 + $0x20] sm:$0xff]
      %v3646 = vld [vmem:[#allocation3 + $0x28] sm:$0xff]
      %v3647 = vld [vmem:[#allocation3 + $0x30] sm:$0xff]
      %v3648 = vld [vmem:[#allocation3 + $0x38] sm:$0xff]
      %v3649 = vld [vmem:[#allocation3 + $0x40] sm:$0xff]
      %v3650 = vld [vmem:[#allocation3 + $0x48] sm:$0xff]
      %v3651 = vld [vmem:[#allocation3 + $0x50] sm:$0xff]
      %v3652 = vld [vmem:[#allocation3 + $0x58] sm:$0xff]
      %v3653 = vld [vmem:[#allocation3 + $0x60] sm:$0xff]
      %v3654 = vld [vmem:[#allocation3 + $0x68] sm:$0xff]
      %v3655 = vld [vmem:[#allocation3 + $0x70] sm:$0xff]
      %v3656 = vld [vmem:[#allocation3 + $0x78] sm:$0xff]
      %v3657 = vld [vmem:[#allocation3 + $0x80] sm:$0xff]
      %v3658 = vld [vmem:[#allocation3 + $0x88] sm:$0xff]
      %v3659 = vld [vmem:[#allocation3 + $0x90] sm:$0xff]
      %v3660 = vld [vmem:[#allocation3 + $0x98] sm:$0xff]
      %v3661 = vld [vmem:[#allocation3 + $0xa0] sm:$0xff]
      %v3662 = vld [vmem:[#allocation3 + $0xa8] sm:$0xff]
      %v3663 = vld [vmem:[#allocation3 + $0xb0] sm:$0xff]
      %v3664 = vld [vmem:[#allocation3 + $0xb8] sm:$0xff]
      %v3665 = vld [vmem:[#allocation3 + $0xc0] sm:$0xff]
      %v3666 = vld [vmem:[#allocation3 + $0xc8] sm:$0xff]
      %v3667 = vld [vmem:[#allocation3 + $0xd0] sm:$0xff]
      %v3668 = vld [vmem:[#allocation3 + $0xd8] sm:$0xff]
      %v3669 = vld [vmem:[#allocation3 + $0xe0] sm:$0xff]
      %v3670 = vld [vmem:[#allocation3 + $0xe8] sm:$0xff]
      %v3671 = vld [vmem:[#allocation3 + $0xf0] sm:$0xff]
      %v3672 = vld [vmem:[#allocation3 + $0xf8] sm:$0xff]
      %v3673 = vld [vmem:[#allocation3 + $0x100] sm:$0xff]
      %v3674 = vld [vmem:[#allocation3 + $0x108] sm:$0xff]
      %v3675 = vld [vmem:[#allocation3 + $0x110] sm:$0xff]
      %v3676 = vld [vmem:[#allocation3 + $0x118] sm:$0xff]
      %v3677 = vld [vmem:[#allocation3 + $0x120] sm:$0xff]
      %v3678 = vld [vmem:[#allocation3 + $0x128] sm:$0xff]
      %v3679 = vld [vmem:[#allocation3 + $0x130] sm:$0xff]
      %v3680 = vld [vmem:[#allocation3 + $0x138] sm:$0xff]
      %v3681 = vld [vmem:[#allocation3 + $0x140] sm:$0xff]
      %v3682 = vld [vmem:[#allocation3 + $0x148] sm:$0xff]
      %v3683 = vld [vmem:[#allocation3 + $0x150] sm:$0xff]
      %v3684 = vld [vmem:[#allocation3 + $0x158] sm:$0xff]
      %v3685 = vld [vmem:[#allocation3 + $0x160] sm:$0xff]
      %v3686 = vld [vmem:[#allocation3 + $0x168] sm:$0xff]
      %v3687 = vld [vmem:[#allocation3 + $0x170] sm:$0xff]
      %v3688 = vld [vmem:[#allocation3 + $0x178] sm:$0xff]
      %v3689 = vld [vmem:[#allocation3 + $0x180] sm:$0xff]
      %v3690 = vld [vmem:[#allocation3 + $0x188] sm:$0xff]
      %v3691 = vld [vmem:[#allocation3 + $0x190] sm:$0xff]
      %v3692 = vld [vmem:[#allocation3 + $0x198] sm:$0xff]
      %v3693 = vld [vmem:[#allocation3 + $0x1a0] sm:$0xff]
      %v3694 = vld [vmem:[#allocation3 + $0x1a8] sm:$0xff]
      %v3695 = vld [vmem:[#allocation3 + $0x1b0] sm:$0xff]
      %v3696 = vld [vmem:[#allocation3 + $0x1b8] sm:$0xff]
      %v3697 = vld [vmem:[#allocation3 + $0x1c0] sm:$0xff]
      %v3698 = vld [vmem:[#allocation3 + $0x1c8] sm:$0xff]
      %v3699 = vld [vmem:[#allocation3 + $0x1d0] sm:$0xff]
      %v3700 = vld [vmem:[#allocation3 + $0x1d8] sm:$0xff]
      %v3701 = vld [vmem:[#allocation3 + $0x1e0] sm:$0xff]
      %v3702 = vld [vmem:[#allocation3 + $0x1e8] sm:$0xff]
      %v3703 = vld [vmem:[#allocation3 + $0x1f0] sm:$0xff]
      %v3704 = vld [vmem:[#allocation3 + $0x1f8] sm:$0xff]
      %v3705 = vld [vmem:[#allocation3 + $0x200] sm:$0xff]
      %v3706 = vld [vmem:[#allocation3 + $0x208] sm:$0xff]
      %v3707 = vld [vmem:[#allocation3 + $0x210] sm:$0xff]
      %v3708 = vld [vmem:[#allocation3 + $0x218] sm:$0xff]
      %v3709 = vld [vmem:[#allocation3 + $0x220] sm:$0xff]
      %v3710 = vld [vmem:[#allocation3 + $0x228] sm:$0xff]
      %v3711 = vld [vmem:[#allocation3 + $0x230] sm:$0xff]
      %v3712 = vld [vmem:[#allocation3 + $0x238] sm:$0xff]
      %v3713 = vld [vmem:[#allocation3 + $0x240] sm:$0xff]
      %v3714 = vld [vmem:[#allocation3 + $0x248] sm:$0xff]
      %v3715 = vld [vmem:[#allocation3 + $0x250] sm:$0xff]
      %v3716 = vld [vmem:[#allocation3 + $0x258] sm:$0xff]
      %v3717 = vld [vmem:[#allocation3 + $0x260] sm:$0xff]
      %v3718 = vld [vmem:[#allocation3 + $0x268] sm:$0xff]
      %v3719 = vld [vmem:[#allocation3 + $0x270] sm:$0xff]
      %v3720 = vld [vmem:[#allocation3 + $0x278] sm:$0xff]
      %v3721 = vld [vmem:[#allocation3 + $0x280] sm:$0xff]
      %v3722 = vld [vmem:[#allocation3 + $0x288] sm:$0xff]
      %v3723 = vld [vmem:[#allocation3 + $0x290] sm:$0xff]
      %v3724 = vld [vmem:[#allocation3 + $0x298] sm:$0xff]
      %v3725 = vld [vmem:[#allocation3 + $0x2a0] sm:$0xff]
      %v3726 = vld [vmem:[#allocation3 + $0x2a8] sm:$0xff]
      %v3727 = vld [vmem:[#allocation3 + $0x2b0] sm:$0xff]
      %v3728 = vld [vmem:[#allocation3 + $0x2b8] sm:$0xff]
      %v3729 = vld [vmem:[#allocation3 + $0x2c0] sm:$0xff]
      %v3730 = vld [vmem:[#allocation3 + $0x2c8] sm:$0xff]
      %v3731 = vld [vmem:[#allocation3 + $0x2d0] sm:$0xff]
      %v3732 = vld [vmem:[#allocation3 + $0x2d8] sm:$0xff]
      %v3733 = vld [vmem:[#allocation3 + $0x2e0] sm:$0xff]
      %v3734 = vld [vmem:[#allocation3 + $0x2e8] sm:$0xff]
      %v3735 = vld [vmem:[#allocation3 + $0x2f0] sm:$0xff]
      %v3736 = vld [vmem:[#allocation3 + $0x2f8] sm:$0xff]
      %v3737 = vld [vmem:[%s4] sm:$0xff]
      %v3738 = vld [vmem:[%s4 + $0x8] sm:$0xff]
      %v3739 = vld [vmem:[%s4 + $0x10] sm:$0xff]
      %v3740 = vld [vmem:[%s4 + $0x18] sm:$0xff]
      %v3741 = vld [vmem:[%s4 + $0x20] sm:$0xff]
      %v3742 = vld [vmem:[%s4 + $0x28] sm:$0xff]
      %v3743 = vld [vmem:[%s4 + $0x30] sm:$0xff]
      %v3744 = vld [vmem:[%s4 + $0x38] sm:$0xff]
      %v3745 = vld [vmem:[%s4 + $0x40] sm:$0xff]
      %v3746 = vld [vmem:[%s4 + $0x48] sm:$0xff]
      %v3747 = vld [vmem:[%s4 + $0x50] sm:$0xff]
      %v3748 = vld [vmem:[%s4 + $0x58] sm:$0xff]
      %v3749 = vld [vmem:[%s4 + $0x60] sm:$0xff]
      %v3750 = vld [vmem:[%s4 + $0x68] sm:$0xff]
      %v3751 = vld [vmem:[%s4 + $0x70] sm:$0xff]
      %v3752 = vld [vmem:[%s4 + $0x78] sm:$0xff]
      %v3753 = vld [vmem:[%s4 + $0x80] sm:$0xff]
      %v3754 = vld [vmem:[%s4 + $0x88] sm:$0xff]
      %v3755 = vld [vmem:[%s4 + $0x90] sm:$0xff]
      %v3756 = vld [vmem:[%s4 + $0x98] sm:$0xff]
      %v3757 = vld [vmem:[%s4 + $0xa0] sm:$0xff]
      %v3758 = vld [vmem:[%s4 + $0xa8] sm:$0xff]
      %v3759 = vld [vmem:[%s4 + $0xb0] sm:$0xff]
      %v3760 = vld [vmem:[%s4 + $0xb8] sm:$0xff]
      %v3761 = vld [vmem:[%s4 + $0xc0] sm:$0xff]
      %v3762 = vld [vmem:[%s4 + $0xc8] sm:$0xff]
      %v3763 = vld [vmem:[%s4 + $0xd0] sm:$0xff]
      %v3764 = vld [vmem:[%s4 + $0xd8] sm:$0xff]
      %v3765 = vld [vmem:[%s4 + $0xe0] sm:$0xff]
      %v3766 = vld [vmem:[%s4 + $0xe8] sm:$0xff]
      %v3767 = vld [vmem:[%s4 + $0xf0] sm:$0xff]
      %v3768 = vld [vmem:[%s4 + $0xf8] sm:$0xff]
      %v3769 = vld [vmem:[%s4 + $0x100] sm:$0xff]
      %v3770 = vld [vmem:[%s4 + $0x108] sm:$0xff]
      %v3771 = vld [vmem:[%s4 + $0x110] sm:$0xff]
      %v3772 = vld [vmem:[%s4 + $0x118] sm:$0xff]
      %v3773 = vld [vmem:[%s5] sm:$0x1]
      %v3775 = vperm.slane %v3773, 0
      %v3778 = vsel %vm2204, %v3643, 0
      %v3781 = vsel %vm2204, %v3646, 0
      %v3784 = vsel %vm2204, %v3649, 0
      %v3787 = vsel %vm2204, %v3652, 0
      %v3790 = vsel %vm2204, %v3655, 0
      %v3793 = vsel %vm2204, %v3658, 0
      %v3796 = vsel %vm2204, %v3661, 0
      %v3799 = vsel %vm2204, %v3664, 0
      %v3802 = vsel %vm2204, %v3667, 0
      %v3805 = vsel %vm2204, %v3670, 0
      %v3808 = vsel %vm2204, %v3673, 0
      %v3811 = vsel %vm2204, %v3676, 0
      %v3814 = vsel %vm2204, %v3679, 0
      %v3817 = vsel %vm2204, %v3682, 0
      %v3820 = vsel %vm2204, %v3685, 0
      %v3823 = vsel %vm2204, %v3688, 0
      %v3826 = vsel %vm2204, %v3691, 0
      %v3829 = vsel %vm2204, %v3694, 0
      %v3832 = vsel %vm2204, %v3697, 0
      %v3835 = vsel %vm2204, %v3700, 0
      %v3838 = vsel %vm2204, %v3703, 0
      %v3841 = vsel %vm2204, %v3706, 0
      %v3844 = vsel %vm2204, %v3709, 0
      %v3847 = vsel %vm2204, %v3712, 0
      %v3850 = vsel %vm2204, %v3715, 0
      %v3853 = vsel %vm2204, %v3718, 0
      %v3856 = vsel %vm2204, %v3721, 0
      %v3859 = vsel %vm2204, %v3724, 0
      %v3862 = vsel %vm2204, %v3727, 0
      %v3865 = vsel %vm2204, %v3730, 0
      %v3868 = vsel %vm2204, %v3733, 0
      %v3871 = vsel %vm2204, %v3736, 0
      %3873 = vmatpush.msra.mxu0 %v3752
      %3874 = vmatpush.msra.mxu0 %v3751
      %3875 = vmatpush.msra.mxu0 %v3750
      %3876 = vmatpush.msra.mxu0 %v3749
      %3877 = vmatpush.msra.mxu0 %v3748
      %3878 = vmatpush.msra.mxu0 %v3747
      %3879 = vmatpush.msra.mxu0 %v3746
      %3880 = vmatpush.msra.mxu0 %v3745
      %3881 = vmatpush.msra.mxu0 %v3744
      %3882 = vmatpush.msra.mxu0 %v3743
      %3883 = vmatpush.msra.mxu0 %v3742
      %3884 = vmatpush.msra.mxu0 %v3741
      %3885 = vmatpush.msra.mxu0 %v3740
      %3886 = vmatpush.msra.mxu0 %v3739
      %3887 = vmatpush.msra.mxu0 %v3738
      %3888 = vmatpush.msra.mxu0 %v3737
      %3889 = vmatmul.f32.gmra.mxu0 %v3641
      %v3890 = vpop.f32.mrf.mxu0
      %v3891 = vadd.f32 %v3775, %v3890
      %3892 = vmatmul.f32.gmra.mxu0 %v3644
      %v3893 = vpop.f32.mrf.mxu0
      %v3894 = vadd.f32 %v3775, %v3893
      %3895 = vmatmul.f32.gmra.mxu0 %v3647
      %v3896 = vpop.f32.mrf.mxu0
      %v3897 = vadd.f32 %v3775, %v3896
      %3898 = vmatmul.f32.gmra.mxu0 %v3650
      %v3899 = vpop.f32.mrf.mxu0
      %v3900 = vadd.f32 %v3775, %v3899
      %3901 = vmatmul.f32.gmra.mxu0 %v3653
      %v3902 = vpop.f32.mrf.mxu0
      %v3903 = vadd.f32 %v3775, %v3902
      %3904 = vmatmul.f32.gmra.mxu0 %v3656
      %v3905 = vpop.f32.mrf.mxu0
      %v3906 = vadd.f32 %v3775, %v3905
      %3907 = vmatmul.f32.gmra.mxu0 %v3659
      %v3908 = vpop.f32.mrf.mxu0
      %v3909 = vadd.f32 %v3775, %v3908
      %3910 = vmatmul.f32.gmra.mxu0 %v3662
      %v3911 = vpop.f32.mrf.mxu0
      %v3912 = vadd.f32 %v3775, %v3911
      %3913 = vmatmul.f32.gmra.mxu0 %v3665
      %v3914 = vpop.f32.mrf.mxu0
      %v3915 = vadd.f32 %v3775, %v3914
      %3916 = vmatmul.f32.gmra.mxu0 %v3668
      %v3917 = vpop.f32.mrf.mxu0
      %v3918 = vadd.f32 %v3775, %v3917
      %3919 = vmatmul.f32.gmra.mxu0 %v3671
      %v3920 = vpop.f32.mrf.mxu0
      %v3921 = vadd.f32 %v3775, %v3920
      %3922 = vmatmul.f32.gmra.mxu0 %v3674
      %v3923 = vpop.f32.mrf.mxu0
      %v3924 = vadd.f32 %v3775, %v3923
      %3925 = vmatmul.f32.gmra.mxu0 %v3677
      %v3926 = vpop.f32.mrf.mxu0
      %v3927 = vadd.f32 %v3775, %v3926
      %3928 = vmatmul.f32.gmra.mxu0 %v3680
      %v3929 = vpop.f32.mrf.mxu0
      %v3930 = vadd.f32 %v3775, %v3929
      %3931 = vmatmul.f32.gmra.mxu0 %v3683
      %v3932 = vpop.f32.mrf.mxu0
      %v3933 = vadd.f32 %v3775, %v3932
      %3934 = vmatmul.f32.gmra.mxu0 %v3686
      %v3935 = vpop.f32.mrf.mxu0
      %v3936 = vadd.f32 %v3775, %v3935
      %3937 = vmatmul.f32.gmra.mxu0 %v3689
      %v3938 = vpop.f32.mrf.mxu0
      %v3939 = vadd.f32 %v3775, %v3938
      %3940 = vmatmul.f32.gmra.mxu0 %v3692
      %v3941 = vpop.f32.mrf.mxu0
      %v3942 = vadd.f32 %v3775, %v3941
      %3943 = vmatmul.f32.gmra.mxu0 %v3695
      %v3944 = vpop.f32.mrf.mxu0
      %v3945 = vadd.f32 %v3775, %v3944
      %3946 = vmatmul.f32.gmra.mxu0 %v3698
      %v3947 = vpop.f32.mrf.mxu0
      %v3948 = vadd.f32 %v3775, %v3947
      %3949 = vmatmul.f32.gmra.mxu0 %v3701
      %v3950 = vpop.f32.mrf.mxu0
      %v3951 = vadd.f32 %v3775, %v3950
      %3952 = vmatmul.f32.gmra.mxu0 %v3704
      %v3953 = vpop.f32.mrf.mxu0
      %v3954 = vadd.f32 %v3775, %v3953
      %3955 = vmatmul.f32.gmra.mxu0 %v3707
      %v3956 = vpop.f32.mrf.mxu0
      %v3957 = vadd.f32 %v3775, %v3956
      %3958 = vmatmul.f32.gmra.mxu0 %v3710
      %v3959 = vpop.f32.mrf.mxu0
      %v3960 = vadd.f32 %v3775, %v3959
      %3961 = vmatmul.f32.gmra.mxu0 %v3713
      %v3962 = vpop.f32.mrf.mxu0
      %v3963 = vadd.f32 %v3775, %v3962
      %3964 = vmatmul.f32.gmra.mxu0 %v3716
      %v3965 = vpop.f32.mrf.mxu0
      %v3966 = vadd.f32 %v3775, %v3965
      %3967 = vmatmul.f32.gmra.mxu0 %v3719
      %v3968 = vpop.f32.mrf.mxu0
      %v3969 = vadd.f32 %v3775, %v3968
      %3970 = vmatmul.f32.gmra.mxu0 %v3722
      %v3971 = vpop.f32.mrf.mxu0
      %v3972 = vadd.f32 %v3775, %v3971
      %3973 = vmatmul.f32.gmra.mxu0 %v3725
      %v3974 = vpop.f32.mrf.mxu0
      %v3975 = vadd.f32 %v3775, %v3974
      %3976 = vmatmul.f32.gmra.mxu0 %v3728
      %v3977 = vpop.f32.mrf.mxu0
      %v3978 = vadd.f32 %v3775, %v3977
      %3979 = vmatmul.f32.gmra.mxu0 %v3731
      %v3980 = vpop.f32.mrf.mxu0
      %v3981 = vadd.f32 %v3775, %v3980
      %3982 = vmatmul.f32.gmra.mxu0 %v3734
      %v3983 = vpop.f32.mrf.mxu0
      %v3984 = vadd.f32 %v3775, %v3983
      %3985 = vdwg.mxu0
      %3986 = vmatpush.msra.mxu0 %v3768
      %3987 = vmatpush.msra.mxu0 %v3767
      %3988 = vmatpush.msra.mxu0 %v3766
      %3989 = vmatpush.msra.mxu0 %v3765
      %3990 = vmatpush.msra.mxu0 %v3764
      %3991 = vmatpush.msra.mxu0 %v3763
      %3992 = vmatpush.msra.mxu0 %v3762
      %3993 = vmatpush.msra.mxu0 %v3761
      %3994 = vmatpush.msra.mxu0 %v3760
      %3995 = vmatpush.msra.mxu0 %v3759
      %3996 = vmatpush.msra.mxu0 %v3758
      %3997 = vmatpush.msra.mxu0 %v3757
      %3998 = vmatpush.msra.mxu0 %v3756
      %3999 = vmatpush.msra.mxu0 %v3755
      %4000 = vmatpush.msra.mxu0 %v3754
      %4001 = vmatpush.msra.mxu0 %v3753
      %4002 = vmatmul.f32.gmra.mxu0 %v3642
      %v4003 = vpop.f32.mrf.mxu0
      %v4004 = vadd.f32 %v3891, %v4003
      %4005 = vmatmul.f32.gmra.mxu0 %v3645
      %v4006 = vpop.f32.mrf.mxu0
      %v4007 = vadd.f32 %v3894, %v4006
      %4008 = vmatmul.f32.gmra.mxu0 %v3648
      %v4009 = vpop.f32.mrf.mxu0
      %v4010 = vadd.f32 %v3897, %v4009
      %4011 = vmatmul.f32.gmra.mxu0 %v3651
      %v4012 = vpop.f32.mrf.mxu0
      %v4013 = vadd.f32 %v3900, %v4012
      %4014 = vmatmul.f32.gmra.mxu0 %v3654
      %v4015 = vpop.f32.mrf.mxu0
      %v4016 = vadd.f32 %v3903, %v4015
      %4017 = vmatmul.f32.gmra.mxu0 %v3657
      %v4018 = vpop.f32.mrf.mxu0
      %v4019 = vadd.f32 %v3906, %v4018
      %4020 = vmatmul.f32.gmra.mxu0 %v3660
      %v4021 = vpop.f32.mrf.mxu0
      %v4022 = vadd.f32 %v3909, %v4021
      %4023 = vmatmul.f32.gmra.mxu0 %v3663
      %v4024 = vpop.f32.mrf.mxu0
      %v4025 = vadd.f32 %v3912, %v4024
      %4026 = vmatmul.f32.gmra.mxu0 %v3666
      %v4027 = vpop.f32.mrf.mxu0
      %v4028 = vadd.f32 %v3915, %v4027
      %4029 = vmatmul.f32.gmra.mxu0 %v3669
      %v4030 = vpop.f32.mrf.mxu0
      %v4031 = vadd.f32 %v3918, %v4030
      %4032 = vmatmul.f32.gmra.mxu0 %v3672
      %v4033 = vpop.f32.mrf.mxu0
      %v4034 = vadd.f32 %v3921, %v4033
      %4035 = vmatmul.f32.gmra.mxu0 %v3675
      %v4036 = vpop.f32.mrf.mxu0
      %v4037 = vadd.f32 %v3924, %v4036
      %4038 = vmatmul.f32.gmra.mxu0 %v3678
      %v4039 = vpop.f32.mrf.mxu0
      %v4040 = vadd.f32 %v3927, %v4039
      %4041 = vmatmul.f32.gmra.mxu0 %v3681
      %v4042 = vpop.f32.mrf.mxu0
      %v4043 = vadd.f32 %v3930, %v4042
      %4044 = vmatmul.f32.gmra.mxu0 %v3684
      %v4045 = vpop.f32.mrf.mxu0
      %v4046 = vadd.f32 %v3933, %v4045
      %4047 = vmatmul.f32.gmra.mxu0 %v3687
      %v4048 = vpop.f32.mrf.mxu0
      %v4049 = vadd.f32 %v3936, %v4048
      %4050 = vmatmul.f32.gmra.mxu0 %v3690
      %v4051 = vpop.f32.mrf.mxu0
      %v4052 = vadd.f32 %v3939, %v4051
      %4053 = vmatmul.f32.gmra.mxu0 %v3693
      %v4054 = vpop.f32.mrf.mxu0
      %v4055 = vadd.f32 %v3942, %v4054
      %4056 = vmatmul.f32.gmra.mxu0 %v3696
      %v4057 = vpop.f32.mrf.mxu0
      %v4058 = vadd.f32 %v3945, %v4057
      %4059 = vmatmul.f32.gmra.mxu0 %v3699
      %v4060 = vpop.f32.mrf.mxu0
      %v4061 = vadd.f32 %v3948, %v4060
      %4062 = vmatmul.f32.gmra.mxu0 %v3702
      %v4063 = vpop.f32.mrf.mxu0
      %v4064 = vadd.f32 %v3951, %v4063
      %4065 = vmatmul.f32.gmra.mxu0 %v3705
      %v4066 = vpop.f32.mrf.mxu0
      %v4067 = vadd.f32 %v3954, %v4066
      %4068 = vmatmul.f32.gmra.mxu0 %v3708
      %v4069 = vpop.f32.mrf.mxu0
      %v4070 = vadd.f32 %v3957, %v4069
      %4071 = vmatmul.f32.gmra.mxu0 %v3711
      %v4072 = vpop.f32.mrf.mxu0
      %v4073 = vadd.f32 %v3960, %v4072
      %4074 = vmatmul.f32.gmra.mxu0 %v3714
      %v4075 = vpop.f32.mrf.mxu0
      %v4076 = vadd.f32 %v3963, %v4075
      %4077 = vmatmul.f32.gmra.mxu0 %v3717
      %v4078 = vpop.f32.mrf.mxu0
      %v4079 = vadd.f32 %v3966, %v4078
      %4080 = vmatmul.f32.gmra.mxu0 %v3720
      %v4081 = vpop.f32.mrf.mxu0
      %v4082 = vadd.f32 %v3969, %v4081
      %4083 = vmatmul.f32.gmra.mxu0 %v3723
      %v4084 = vpop.f32.mrf.mxu0
      %v4085 = vadd.f32 %v3972, %v4084
      %4086 = vmatmul.f32.gmra.mxu0 %v3726
      %v4087 = vpop.f32.mrf.mxu0
      %v4088 = vadd.f32 %v3975, %v4087
      %4089 = vmatmul.f32.gmra.mxu0 %v3729
      %v4090 = vpop.f32.mrf.mxu0
      %v4091 = vadd.f32 %v3978, %v4090
      %4092 = vmatmul.f32.gmra.mxu0 %v3732
      %v4093 = vpop.f32.mrf.mxu0
      %v4094 = vadd.f32 %v3981, %v4093
      %4095 = vmatmul.f32.gmra.mxu0 %v3735
      %v4096 = vpop.f32.mrf.mxu0
      %v4097 = vadd.f32 %v3984, %v4096
      %4098 = vdwg.mxu0
      %4099 = vmatpush.msra.mxu0 0.0
      %4100 = vmatpush.msra.mxu0 0.0
      %4101 = vmatpush.msra.mxu0 0.0
      %4102 = vmatpush.msra.mxu0 0.0
      %4103 = vmatpush.msra.mxu0 0.0
      %4104 = vmatpush.msra.mxu0 0.0
      %4105 = vmatpush.msra.mxu0 0.0
      %4106 = vmatpush.msra.mxu0 0.0
      %4107 = vmatpush.msra.mxu0 0.0
      %4108 = vmatpush.msra.mxu0 0.0
      %4109 = vmatpush.msra.mxu0 0.0
      %4110 = vmatpush.msra.mxu0 0.0
      %4111 = vmatpush.msra.mxu0 %v3772
      %4112 = vmatpush.msra.mxu0 %v3771
      %4113 = vmatpush.msra.mxu0 %v3770
      %4114 = vmatpush.msra.mxu0 %v3769
      %4115 = vmatmul.f32.gmra.mxu0 %v3778
      %v4116 = vpop.f32.mrf.mxu0
      %v4117 = vadd.f32 %v4004, %v4116
      %4118 = vmatmul.f32.gmra.mxu0 %v3781
      %v4119 = vpop.f32.mrf.mxu0
      %v4120 = vadd.f32 %v4007, %v4119
      %4121 = vmatmul.f32.gmra.mxu0 %v3784
      %v4122 = vpop.f32.mrf.mxu0
      %v4123 = vadd.f32 %v4010, %v4122
      %4124 = vmatmul.f32.gmra.mxu0 %v3787
      %v4125 = vpop.f32.mrf.mxu0
      %v4126 = vadd.f32 %v4013, %v4125
      %4127 = vmatmul.f32.gmra.mxu0 %v3790
      %v4128 = vpop.f32.mrf.mxu0
      %v4129 = vadd.f32 %v4016, %v4128
      %4130 = vmatmul.f32.gmra.mxu0 %v3793
      %v4131 = vpop.f32.mrf.mxu0
      %v4132 = vadd.f32 %v4019, %v4131
      %4133 = vmatmul.f32.gmra.mxu0 %v3796
      %v4134 = vpop.f32.mrf.mxu0
      %v4135 = vadd.f32 %v4022, %v4134
      %4136 = vmatmul.f32.gmra.mxu0 %v3799
      %v4137 = vpop.f32.mrf.mxu0
      %v4138 = vadd.f32 %v4025, %v4137
      %4139 = vmatmul.f32.gmra.mxu0 %v3802
      %v4140 = vpop.f32.mrf.mxu0
      %v4141 = vadd.f32 %v4028, %v4140
      %4142 = vmatmul.f32.gmra.mxu0 %v3805
      %v4143 = vpop.f32.mrf.mxu0
      %v4144 = vadd.f32 %v4031, %v4143
      %4145 = vmatmul.f32.gmra.mxu0 %v3808
      %v4146 = vpop.f32.mrf.mxu0
      %v4147 = vadd.f32 %v4034, %v4146
      %4148 = vmatmul.f32.gmra.mxu0 %v3811
      %v4149 = vpop.f32.mrf.mxu0
      %v4150 = vadd.f32 %v4037, %v4149
      %4151 = vmatmul.f32.gmra.mxu0 %v3814
      %v4152 = vpop.f32.mrf.mxu0
      %v4153 = vadd.f32 %v4040, %v4152
      %4154 = vmatmul.f32.gmra.mxu0 %v3817
      %v4155 = vpop.f32.mrf.mxu0
      %v4156 = vadd.f32 %v4043, %v4155
      %4157 = vmatmul.f32.gmra.mxu0 %v3820
      %v4158 = vpop.f32.mrf.mxu0
      %v4159 = vadd.f32 %v4046, %v4158
      %4160 = vmatmul.f32.gmra.mxu0 %v3823
      %v4161 = vpop.f32.mrf.mxu0
      %v4162 = vadd.f32 %v4049, %v4161
      %4163 = vmatmul.f32.gmra.mxu0 %v3826
      %v4164 = vpop.f32.mrf.mxu0
      %v4165 = vadd.f32 %v4052, %v4164
      %4166 = vmatmul.f32.gmra.mxu0 %v3829
      %v4167 = vpop.f32.mrf.mxu0
      %v4168 = vadd.f32 %v4055, %v4167
      %4169 = vmatmul.f32.gmra.mxu0 %v3832
      %v4170 = vpop.f32.mrf.mxu0
      %v4171 = vadd.f32 %v4058, %v4170
      %4172 = vmatmul.f32.gmra.mxu0 %v3835
      %v4173 = vpop.f32.mrf.mxu0
      %v4174 = vadd.f32 %v4061, %v4173
      %4175 = vmatmul.f32.gmra.mxu0 %v3838
      %v4176 = vpop.f32.mrf.mxu0
      %v4177 = vadd.f32 %v4064, %v4176
      %4178 = vmatmul.f32.gmra.mxu0 %v3841
      %v4179 = vpop.f32.mrf.mxu0
      %v4180 = vadd.f32 %v4067, %v4179
      %4181 = vmatmul.f32.gmra.mxu0 %v3844
      %v4182 = vpop.f32.mrf.mxu0
      %v4183 = vadd.f32 %v4070, %v4182
      %4184 = vmatmul.f32.gmra.mxu0 %v3847
      %v4185 = vpop.f32.mrf.mxu0
      %v4186 = vadd.f32 %v4073, %v4185
      %4187 = vmatmul.f32.gmra.mxu0 %v3850
      %v4188 = vpop.f32.mrf.mxu0
      %v4189 = vadd.f32 %v4076, %v4188
      %4190 = vmatmul.f32.gmra.mxu0 %v3853
      %v4191 = vpop.f32.mrf.mxu0
      %v4192 = vadd.f32 %v4079, %v4191
      %4193 = vmatmul.f32.gmra.mxu0 %v3856
      %v4194 = vpop.f32.mrf.mxu0
      %v4195 = vadd.f32 %v4082, %v4194
      %4196 = vmatmul.f32.gmra.mxu0 %v3859
      %v4197 = vpop.f32.mrf.mxu0
      %v4198 = vadd.f32 %v4085, %v4197
      %4199 = vmatmul.f32.gmra.mxu0 %v3862
      %v4200 = vpop.f32.mrf.mxu0
      %v4201 = vadd.f32 %v4088, %v4200
      %4202 = vmatmul.f32.gmra.mxu0 %v3865
      %v4203 = vpop.f32.mrf.mxu0
      %v4204 = vadd.f32 %v4091, %v4203
      %4205 = vmatmul.f32.gmra.mxu0 %v3868
      %v4206 = vpop.f32.mrf.mxu0
      %v4207 = vadd.f32 %v4094, %v4206
      %4208 = vmatmul.f32.gmra.mxu0 %v3871
      %v4209 = vpop.f32.mrf.mxu0
      %v4210 = vadd.f32 %v4097, %v4209
      %4211 = vdwg.mxu0
      %v4212 = vmax.f32 %v4117, 0.0
      %v4213 = vmax.f32 %v4120, 0.0
      %v4214 = vmax.f32 %v4123, 0.0
      %v4215 = vmax.f32 %v4126, 0.0
      %v4216 = vmax.f32 %v4129, 0.0
      %v4217 = vmax.f32 %v4132, 0.0
      %v4218 = vmax.f32 %v4135, 0.0
      %v4219 = vmax.f32 %v4138, 0.0
      %v4220 = vmax.f32 %v4141, 0.0
      %v4221 = vmax.f32 %v4144, 0.0
      %v4222 = vmax.f32 %v4147, 0.0
      %v4223 = vmax.f32 %v4150, 0.0
      %v4224 = vmax.f32 %v4153, 0.0
      %v4225 = vmax.f32 %v4156, 0.0
      %v4226 = vmax.f32 %v4159, 0.0
      %v4227 = vmax.f32 %v4162, 0.0
      %v4228 = vmax.f32 %v4165, 0.0
      %v4229 = vmax.f32 %v4168, 0.0
      %v4230 = vmax.f32 %v4171, 0.0
      %v4231 = vmax.f32 %v4174, 0.0
      %v4232 = vmax.f32 %v4177, 0.0
      %v4233 = vmax.f32 %v4180, 0.0
      %v4234 = vmax.f32 %v4183, 0.0
      %v4235 = vmax.f32 %v4186, 0.0
      %v4236 = vmax.f32 %v4189, 0.0
      %v4237 = vmax.f32 %v4192, 0.0
      %v4238 = vmax.f32 %v4195, 0.0
      %v4239 = vmax.f32 %v4198, 0.0
      %v4240 = vmax.f32 %v4201, 0.0
      %v4241 = vmax.f32 %v4204, 0.0
      %v4242 = vmax.f32 %v4207, 0.0
      %v4243 = vmax.f32 %v4210, 0.0
      %4244 = vst.msk [vmem:[%s2260 + $0x1] sm:$0xff] %vm2204, %v4212
      %4245 = vst.msk [vmem:[%s2260 + $0x9] sm:$0xff] %vm2204, %v4213
      %4246 = vst.msk [vmem:[%s2260 + $0x19] sm:$0xff] %vm2204, %v4214
      %4247 = vst.msk [vmem:[%s2260 + $0x21] sm:$0xff] %vm2204, %v4215
      %4248 = vst.msk [vmem:[%s2260 + $0x31] sm:$0xff] %vm2204, %v4216
      %4249 = vst.msk [vmem:[%s2260 + $0x39] sm:$0xff] %vm2204, %v4217
      %4250 = vst.msk [vmem:[%s2260 + $0x49] sm:$0xff] %vm2204, %v4218
      %4251 = vst.msk [vmem:[%s2260 + $0x51] sm:$0xff] %vm2204, %v4219
      %4252 = vst.msk [vmem:[%s2260 + $0x61] sm:$0xff] %vm2204, %v4220
      %4253 = vst.msk [vmem:[%s2260 + $0x69] sm:$0xff] %vm2204, %v4221
      %4254 = vst.msk [vmem:[%s2260 + $0x79] sm:$0xff] %vm2204, %v4222
      %4255 = vst.msk [vmem:[%s2260 + $0x81] sm:$0xff] %vm2204, %v4223
      %4256 = vst.msk [vmem:[%s2260 + $0x91] sm:$0xff] %vm2204, %v4224
      %4257 = vst.msk [vmem:[%s2260 + $0x99] sm:$0xff] %vm2204, %v4225
      %4258 = vst.msk [vmem:[%s2260 + $0xa9] sm:$0xff] %vm2204, %v4226
      %4259 = vst.msk [vmem:[%s2260 + $0xb1] sm:$0xff] %vm2204, %v4227
      %4260 = vst.msk [vmem:[%s2260 + $0xc1] sm:$0xff] %vm2204, %v4228
      %4261 = vst.msk [vmem:[%s2260 + $0xc9] sm:$0xff] %vm2204, %v4229
      %4262 = vst.msk [vmem:[%s2260 + $0xd9] sm:$0xff] %vm2204, %v4230
      %4263 = vst.msk [vmem:[%s2260 + $0xe1] sm:$0xff] %vm2204, %v4231
      %4264 = vst.msk [vmem:[%s2260 + $0xf1] sm:$0xff] %vm2204, %v4232
      %4265 = vst.msk [vmem:[%s2260 + $0xf9] sm:$0xff] %vm2204, %v4233
      %4266 = vst.msk [vmem:[%s2260 + $0x109] sm:$0xff] %vm2204, %v4234
      %4267 = vst.msk [vmem:[%s2260 + $0x111] sm:$0xff] %vm2204, %v4235
      %4268 = vst.msk [vmem:[%s2260 + $0x121] sm:$0xff] %vm2204, %v4236
      %4269 = vst.msk [vmem:[%s2260 + $0x129] sm:$0xff] %vm2204, %v4237
      %4270 = vst.msk [vmem:[%s2260 + $0x139] sm:$0xff] %vm2204, %v4238
      %4271 = vst.msk [vmem:[%s2260 + $0x141] sm:$0xff] %vm2204, %v4239
      %4272 = vst.msk [vmem:[%s2260 + $0x151] sm:$0xff] %vm2204, %v4240
      %4273 = vst.msk [vmem:[%s2260 + $0x159] sm:$0xff] %vm2204, %v4241
      %4274 = vst.msk [vmem:[%s2260 + $0x169] sm:$0xff] %vm2204, %v4242
      %4275 = vst.msk [vmem:[%s2260 + $0x171] sm:$0xff] %vm2204, %v4243
      %v4276 = vld [vmem:[#allocation2] sm:$0xff]
      %v4277 = vld [vmem:[#allocation2 + $0x8] sm:$0xff]
      %v4278 = vld [vmem:[#allocation2 + $0x18] sm:$0xff]
      %v4279 = vld [vmem:[#allocation2 + $0x20] sm:$0xff]
      %v4280 = vld [vmem:[#allocation2 + $0x30] sm:$0xff]
      %v4281 = vld [vmem:[#allocation2 + $0x38] sm:$0xff]
      %v4282 = vld [vmem:[#allocation2 + $0x48] sm:$0xff]
      %v4283 = vld [vmem:[#allocation2 + $0x50] sm:$0xff]
      %v4284 = vld [vmem:[#allocation2 + $0x60] sm:$0xff]
      %v4285 = vld [vmem:[#allocation2 + $0x68] sm:$0xff]
      %v4286 = vld [vmem:[#allocation2 + $0x78] sm:$0xff]
      %v4287 = vld [vmem:[#allocation2 + $0x80] sm:$0xff]
      %v4288 = vld [vmem:[#allocation2 + $0x90] sm:$0xff]
      %v4289 = vld [vmem:[#allocation2 + $0x98] sm:$0xff]
      %v4290 = vld [vmem:[#allocation2 + $0xa8] sm:$0xff]
      %v4291 = vld [vmem:[#allocation2 + $0xb0] sm:$0xff]
      %v4292 = vld [vmem:[#allocation2 + $0xc0] sm:$0xff]
      %v4293 = vld [vmem:[#allocation2 + $0xc8] sm:$0xff]
      %v4294 = vld [vmem:[#allocation2 + $0xd8] sm:$0xff]
      %v4295 = vld [vmem:[#allocation2 + $0xe0] sm:$0xff]
      %v4296 = vld [vmem:[#allocation2 + $0xf0] sm:$0xff]
      %v4297 = vld [vmem:[#allocation2 + $0xf8] sm:$0xff]
      %v4298 = vld [vmem:[#allocation2 + $0x108] sm:$0xff]
      %v4299 = vld [vmem:[#allocation2 + $0x110] sm:$0xff]
      %v4300 = vld [vmem:[#allocation2 + $0x120] sm:$0xff]
      %v4301 = vld [vmem:[#allocation2 + $0x128] sm:$0xff]
      %v4302 = vld [vmem:[#allocation2 + $0x138] sm:$0xff]
      %v4303 = vld [vmem:[#allocation2 + $0x140] sm:$0xff]
      %v4304 = vld [vmem:[#allocation2 + $0x150] sm:$0xff]
      %v4305 = vld [vmem:[#allocation2 + $0x158] sm:$0xff]
      %v4306 = vld [vmem:[#allocation2 + $0x168] sm:$0xff]
      %v4307 = vld [vmem:[#allocation2 + $0x170] sm:$0xff]
      %4308 = vst.msk [vmem:[#allocation3] sm:$0xff] %vm2204, %v4276
      %4309 = vst.msk [vmem:[#allocation3 + $0x18] sm:$0xff] %vm2204, %v4277
      %4310 = vst.msk [vmem:[#allocation3 + $0x30] sm:$0xff] %vm2204, %v4278
      %4311 = vst.msk [vmem:[#allocation3 + $0x48] sm:$0xff] %vm2204, %v4279
      %4312 = vst.msk [vmem:[#allocation3 + $0x60] sm:$0xff] %vm2204, %v4280
      %4313 = vst.msk [vmem:[#allocation3 + $0x78] sm:$0xff] %vm2204, %v4281
      %4314 = vst.msk [vmem:[#allocation3 + $0x90] sm:$0xff] %vm2204, %v4282
      %4315 = vst.msk [vmem:[#allocation3 + $0xa8] sm:$0xff] %vm2204, %v4283
      %4316 = vst.msk [vmem:[#allocation3 + $0xc0] sm:$0xff] %vm2204, %v4284
      %4317 = vst.msk [vmem:[#allocation3 + $0xd8] sm:$0xff] %vm2204, %v4285
      %4318 = vst.msk [vmem:[#allocation3 + $0xf0] sm:$0xff] %vm2204, %v4286
      %4319 = vst.msk [vmem:[#allocation3 + $0x108] sm:$0xff] %vm2204, %v4287
      %4320 = vst.msk [vmem:[#allocation3 + $0x120] sm:$0xff] %vm2204, %v4288
      %4321 = vst.msk [vmem:[#allocation3 + $0x138] sm:$0xff] %vm2204, %v4289
      %4322 = vst.msk [vmem:[#allocation3 + $0x150] sm:$0xff] %vm2204, %v4290
      %4323 = vst.msk [vmem:[#allocation3 + $0x168] sm:$0xff] %vm2204, %v4291
      %4324 = vst.msk [vmem:[#allocation3 + $0x180] sm:$0xff] %vm2204, %v4292
      %4325 = vst.msk [vmem:[#allocation3 + $0x198] sm:$0xff] %vm2204, %v4293
      %4326 = vst.msk [vmem:[#allocation3 + $0x1b0] sm:$0xff] %vm2204, %v4294
      %4327 = vst.msk [vmem:[#allocation3 + $0x1c8] sm:$0xff] %vm2204, %v4295
      %4328 = vst.msk [vmem:[#allocation3 + $0x1e0] sm:$0xff] %vm2204, %v4296
      %4329 = vst.msk [vmem:[#allocation3 + $0x1f8] sm:$0xff] %vm2204, %v4297
      %4330 = vst.msk [vmem:[#allocation3 + $0x210] sm:$0xff] %vm2204, %v4298
      %4331 = vst.msk [vmem:[#allocation3 + $0x228] sm:$0xff] %vm2204, %v4299
      %4332 = vst.msk [vmem:[#allocation3 + $0x240] sm:$0xff] %vm2204, %v4300
      %4333 = vst.msk [vmem:[#allocation3 + $0x258] sm:$0xff] %vm2204, %v4301
      %4334 = vst.msk [vmem:[#allocation3 + $0x270] sm:$0xff] %vm2204, %v4302
      %4335 = vst.msk [vmem:[#allocation3 + $0x288] sm:$0xff] %vm2204, %v4303
      %4336 = vst.msk [vmem:[#allocation3 + $0x2a0] sm:$0xff] %vm2204, %v4304
      %4337 = vst.msk [vmem:[#allocation3 + $0x2b8] sm:$0xff] %vm2204, %v4305
      %4338 = vst.msk [vmem:[#allocation3 + $0x2d0] sm:$0xff] %vm2204, %v4306
      %4339 = vst.msk [vmem:[#allocation3 + $0x2e8] sm:$0xff] %vm2204, %v4307
      %v4340 = vld [vmem:[#allocation2 + $0x1] sm:$0xff]
      %v4341 = vld [vmem:[#allocation2 + $0x9] sm:$0xff]
      %v4342 = vld [vmem:[#allocation2 + $0x19] sm:$0xff]
      %v4343 = vld [vmem:[#allocation2 + $0x21] sm:$0xff]
      %v4344 = vld [vmem:[#allocation2 + $0x31] sm:$0xff]
      %v4345 = vld [vmem:[#allocation2 + $0x39] sm:$0xff]
      %v4346 = vld [vmem:[#allocation2 + $0x49] sm:$0xff]
      %v4347 = vld [vmem:[#allocation2 + $0x51] sm:$0xff]
      %v4348 = vld [vmem:[#allocation2 + $0x61] sm:$0xff]
      %v4349 = vld [vmem:[#allocation2 + $0x69] sm:$0xff]
      %v4350 = vld [vmem:[#allocation2 + $0x79] sm:$0xff]
      %v4351 = vld [vmem:[#allocation2 + $0x81] sm:$0xff]
      %v4352 = vld [vmem:[#allocation2 + $0x91] sm:$0xff]
      %v4353 = vld [vmem:[#allocation2 + $0x99] sm:$0xff]
      %v4354 = vld [vmem:[#allocation2 + $0xa9] sm:$0xff]
      %v4355 = vld [vmem:[#allocation2 + $0xb1] sm:$0xff]
      %v4356 = vld [vmem:[#allocation2 + $0xc1] sm:$0xff]
      %v4357 = vld [vmem:[#allocation2 + $0xc9] sm:$0xff]
      %v4358 = vld [vmem:[#allocation2 + $0xd9] sm:$0xff]
      %v4359 = vld [vmem:[#allocation2 + $0xe1] sm:$0xff]
      %v4360 = vld [vmem:[#allocation2 + $0xf1] sm:$0xff]
      %v4361 = vld [vmem:[#allocation2 + $0xf9] sm:$0xff]
      %v4362 = vld [vmem:[#allocation2 + $0x109] sm:$0xff]
      %v4363 = vld [vmem:[#allocation2 + $0x111] sm:$0xff]
      %v4364 = vld [vmem:[#allocation2 + $0x121] sm:$0xff]
      %v4365 = vld [vmem:[#allocation2 + $0x129] sm:$0xff]
      %v4366 = vld [vmem:[#allocation2 + $0x139] sm:$0xff]
      %v4367 = vld [vmem:[#allocation2 + $0x141] sm:$0xff]
      %v4368 = vld [vmem:[#allocation2 + $0x151] sm:$0xff]
      %v4369 = vld [vmem:[#allocation2 + $0x159] sm:$0xff]
      %v4370 = vld [vmem:[#allocation2 + $0x169] sm:$0xff]
      %v4371 = vld [vmem:[#allocation2 + $0x171] sm:$0xff]
      %4404 = vrot.lane.b32.xlu0 %v4340, 32
      %v4405 = vpop.permute.xlu0 %4404
      %4406 = vrot.lane.b32.xlu0 %v4341, 32
      %v4407 = vpop.permute.xlu0 %4406
      %4408 = vrot.lane.b32.xlu0 %v4342, 32
      %v4409 = vpop.permute.xlu0 %4408
      %4410 = vrot.lane.b32.xlu0 %v4343, 32
      %v4411 = vpop.permute.xlu0 %4410
      %4412 = vrot.lane.b32.xlu0 %v4344, 32
      %v4413 = vpop.permute.xlu0 %4412
      %4414 = vrot.lane.b32.xlu0 %v4345, 32
      %v4415 = vpop.permute.xlu0 %4414
      %4416 = vrot.lane.b32.xlu0 %v4346, 32
      %v4417 = vpop.permute.xlu0 %4416
      %4418 = vrot.lane.b32.xlu0 %v4347, 32
      %v4419 = vpop.permute.xlu0 %4418
      %4420 = vrot.lane.b32.xlu0 %v4348, 32
      %v4421 = vpop.permute.xlu0 %4420
      %4422 = vrot.lane.b32.xlu0 %v4349, 32
      %v4423 = vpop.permute.xlu0 %4422
      %4424 = vrot.lane.b32.xlu0 %v4350, 32
      %v4425 = vpop.permute.xlu0 %4424
      %4426 = vrot.lane.b32.xlu0 %v4351, 32
      %v4427 = vpop.permute.xlu0 %4426
      %4428 = vrot.lane.b32.xlu0 %v4352, 32
      %v4429 = vpop.permute.xlu0 %4428
      %4430 = vrot.lane.b32.xlu0 %v4353, 32
      %v4431 = vpop.permute.xlu0 %4430
      %4432 = vrot.lane.b32.xlu0 %v4354, 32
      %v4433 = vpop.permute.xlu0 %4432
      %4434 = vrot.lane.b32.xlu0 %v4355, 32
      %v4435 = vpop.permute.xlu0 %4434
      %4436 = vrot.lane.b32.xlu0 %v4356, 32
      %v4437 = vpop.permute.xlu0 %4436
      %4438 = vrot.lane.b32.xlu0 %v4357, 32
      %v4439 = vpop.permute.xlu0 %4438
      %4440 = vrot.lane.b32.xlu0 %v4358, 32
      %v4441 = vpop.permute.xlu0 %4440
      %4442 = vrot.lane.b32.xlu0 %v4359, 32
      %v4443 = vpop.permute.xlu0 %4442
      %4444 = vrot.lane.b32.xlu0 %v4360, 32
      %v4445 = vpop.permute.xlu0 %4444
      %4446 = vrot.lane.b32.xlu0 %v4361, 32
      %v4447 = vpop.permute.xlu0 %4446
      %4448 = vrot.lane.b32.xlu0 %v4362, 32
      %v4449 = vpop.permute.xlu0 %4448
      %4450 = vrot.lane.b32.xlu0 %v4363, 32
      %v4451 = vpop.permute.xlu0 %4450
      %4452 = vrot.lane.b32.xlu0 %v4364, 32
      %v4453 = vpop.permute.xlu0 %4452
      %4454 = vrot.lane.b32.xlu0 %v4365, 32
      %v4455 = vpop.permute.xlu0 %4454
      %4456 = vrot.lane.b32.xlu0 %v4366, 32
      %v4457 = vpop.permute.xlu0 %4456
      %4458 = vrot.lane.b32.xlu0 %v4367, 32
      %v4459 = vpop.permute.xlu0 %4458
      %4460 = vrot.lane.b32.xlu0 %v4368, 32
      %v4461 = vpop.permute.xlu0 %4460
      %4462 = vrot.lane.b32.xlu0 %v4369, 32
      %v4463 = vpop.permute.xlu0 %4462
      %4464 = vrot.lane.b32.xlu0 %v4370, 32
      %v4465 = vpop.permute.xlu0 %4464
      %4466 = vrot.lane.b32.xlu0 %v4371, 32
      %v4467 = vpop.permute.xlu0 %4466
      %4500 = vst.msk [vmem:[#allocation3] sm:$0xff] %vm2517, %v4405
      %4501 = vst.msk [vmem:[#allocation3 + $0x18] sm:$0xff] %vm2517, %v4407
      %4502 = vst.msk [vmem:[#allocation3 + $0x30] sm:$0xff] %vm2517, %v4409
      %4503 = vst.msk [vmem:[#allocation3 + $0x48] sm:$0xff] %vm2517, %v4411
      %4504 = vst.msk [vmem:[#allocation3 + $0x60] sm:$0xff] %vm2517, %v4413
      %4505 = vst.msk [vmem:[#allocation3 + $0x78] sm:$0xff] %vm2517, %v4415
      %4506 = vst.msk [vmem:[#allocation3 + $0x90] sm:$0xff] %vm2517, %v4417
      %4507 = vst.msk [vmem:[#allocation3 + $0xa8] sm:$0xff] %vm2517, %v4419
      %4508 = vst.msk [vmem:[#allocation3 + $0xc0] sm:$0xff] %vm2517, %v4421
      %4509 = vst.msk [vmem:[#allocation3 + $0xd8] sm:$0xff] %vm2517, %v4423
      %4510 = vst.msk [vmem:[#allocation3 + $0xf0] sm:$0xff] %vm2517, %v4425
      %4511 = vst.msk [vmem:[#allocation3 + $0x108] sm:$0xff] %vm2517, %v4427
      %4512 = vst.msk [vmem:[#allocation3 + $0x120] sm:$0xff] %vm2517, %v4429
      %4513 = vst.msk [vmem:[#allocation3 + $0x138] sm:$0xff] %vm2517, %v4431
      %4514 = vst.msk [vmem:[#allocation3 + $0x150] sm:$0xff] %vm2517, %v4433
      %4515 = vst.msk [vmem:[#allocation3 + $0x168] sm:$0xff] %vm2517, %v4435
      %4516 = vst.msk [vmem:[#allocation3 + $0x180] sm:$0xff] %vm2517, %v4437
      %4517 = vst.msk [vmem:[#allocation3 + $0x198] sm:$0xff] %vm2517, %v4439
      %4518 = vst.msk [vmem:[#allocation3 + $0x1b0] sm:$0xff] %vm2517, %v4441
      %4519 = vst.msk [vmem:[#allocation3 + $0x1c8] sm:$0xff] %vm2517, %v4443
      %4520 = vst.msk [vmem:[#allocation3 + $0x1e0] sm:$0xff] %vm2517, %v4445
      %4521 = vst.msk [vmem:[#allocation3 + $0x1f8] sm:$0xff] %vm2517, %v4447
      %4522 = vst.msk [vmem:[#allocation3 + $0x210] sm:$0xff] %vm2517, %v4449
      %4523 = vst.msk [vmem:[#allocation3 + $0x228] sm:$0xff] %vm2517, %v4451
      %4524 = vst.msk [vmem:[#allocation3 + $0x240] sm:$0xff] %vm2517, %v4453
      %4525 = vst.msk [vmem:[#allocation3 + $0x258] sm:$0xff] %vm2517, %v4455
      %4526 = vst.msk [vmem:[#allocation3 + $0x270] sm:$0xff] %vm2517, %v4457
      %4527 = vst.msk [vmem:[#allocation3 + $0x288] sm:$0xff] %vm2517, %v4459
      %4528 = vst.msk [vmem:[#allocation3 + $0x2a0] sm:$0xff] %vm2517, %v4461
      %4529 = vst.msk [vmem:[#allocation3 + $0x2b8] sm:$0xff] %vm2517, %v4463
      %4530 = vst.msk [vmem:[#allocation3 + $0x2d0] sm:$0xff] %vm2517, %v4465
      %4531 = vst.msk [vmem:[#allocation3 + $0x2e8] sm:$0xff] %vm2517, %v4467
      %v4532 = vld [vmem:[#allocation2 + $0x2] sm:$0xff]
      %v4533 = vld [vmem:[#allocation2 + $0xa] sm:$0xff]
      %v4534 = vld [vmem:[#allocation2 + $0x1a] sm:$0xff]
      %v4535 = vld [vmem:[#allocation2 + $0x22] sm:$0xff]
      %v4536 = vld [vmem:[#allocation2 + $0x32] sm:$0xff]
      %v4537 = vld [vmem:[#allocation2 + $0x3a] sm:$0xff]
      %v4538 = vld [vmem:[#allocation2 + $0x4a] sm:$0xff]
      %v4539 = vld [vmem:[#allocation2 + $0x52] sm:$0xff]
      %v4540 = vld [vmem:[#allocation2 + $0x62] sm:$0xff]
      %v4541 = vld [vmem:[#allocation2 + $0x6a] sm:$0xff]
      %v4542 = vld [vmem:[#allocation2 + $0x7a] sm:$0xff]
      %v4543 = vld [vmem:[#allocation2 + $0x82] sm:$0xff]
      %v4544 = vld [vmem:[#allocation2 + $0x92] sm:$0xff]
      %v4545 = vld [vmem:[#allocation2 + $0x9a] sm:$0xff]
      %v4546 = vld [vmem:[#allocation2 + $0xaa] sm:$0xff]
      %v4547 = vld [vmem:[#allocation2 + $0xb2] sm:$0xff]
      %v4548 = vld [vmem:[#allocation2 + $0xc2] sm:$0xff]
      %v4549 = vld [vmem:[#allocation2 + $0xca] sm:$0xff]
      %v4550 = vld [vmem:[#allocation2 + $0xda] sm:$0xff]
      %v4551 = vld [vmem:[#allocation2 + $0xe2] sm:$0xff]
      %v4552 = vld [vmem:[#allocation2 + $0xf2] sm:$0xff]
      %v4553 = vld [vmem:[#allocation2 + $0xfa] sm:$0xff]
      %v4554 = vld [vmem:[#allocation2 + $0x10a] sm:$0xff]
      %v4555 = vld [vmem:[#allocation2 + $0x112] sm:$0xff]
      %v4556 = vld [vmem:[#allocation2 + $0x122] sm:$0xff]
      %v4557 = vld [vmem:[#allocation2 + $0x12a] sm:$0xff]
      %v4558 = vld [vmem:[#allocation2 + $0x13a] sm:$0xff]
      %v4559 = vld [vmem:[#allocation2 + $0x142] sm:$0xff]
      %v4560 = vld [vmem:[#allocation2 + $0x152] sm:$0xff]
      %v4561 = vld [vmem:[#allocation2 + $0x15a] sm:$0xff]
      %v4562 = vld [vmem:[#allocation2 + $0x16a] sm:$0xff]
      %v4563 = vld [vmem:[#allocation2 + $0x172] sm:$0xff]
      %4596 = vrot.lane.b32.xlu0 %v4532, 64
      %v4597 = vpop.permute.xlu0 %4596
      %4598 = vrot.lane.b32.xlu0 %v4533, 64
      %v4599 = vpop.permute.xlu0 %4598
      %4600 = vrot.lane.b32.xlu0 %v4534, 64
      %v4601 = vpop.permute.xlu0 %4600
      %4602 = vrot.lane.b32.xlu0 %v4535, 64
      %v4603 = vpop.permute.xlu0 %4602
      %4604 = vrot.lane.b32.xlu0 %v4536, 64
      %v4605 = vpop.permute.xlu0 %4604
      %4606 = vrot.lane.b32.xlu0 %v4537, 64
      %v4607 = vpop.permute.xlu0 %4606
      %4608 = vrot.lane.b32.xlu0 %v4538, 64
      %v4609 = vpop.permute.xlu0 %4608
      %4610 = vrot.lane.b32.xlu0 %v4539, 64
      %v4611 = vpop.permute.xlu0 %4610
      %4612 = vrot.lane.b32.xlu0 %v4540, 64
      %v4613 = vpop.permute.xlu0 %4612
      %4614 = vrot.lane.b32.xlu0 %v4541, 64
      %v4615 = vpop.permute.xlu0 %4614
      %4616 = vrot.lane.b32.xlu0 %v4542, 64
      %v4617 = vpop.permute.xlu0 %4616
      %4618 = vrot.lane.b32.xlu0 %v4543, 64
      %v4619 = vpop.permute.xlu0 %4618
      %4620 = vrot.lane.b32.xlu0 %v4544, 64
      %v4621 = vpop.permute.xlu0 %4620
      %4622 = vrot.lane.b32.xlu0 %v4545, 64
      %v4623 = vpop.permute.xlu0 %4622
      %4624 = vrot.lane.b32.xlu0 %v4546, 64
      %v4625 = vpop.permute.xlu0 %4624
      %4626 = vrot.lane.b32.xlu0 %v4547, 64
      %v4627 = vpop.permute.xlu0 %4626
      %4628 = vrot.lane.b32.xlu0 %v4548, 64
      %v4629 = vpop.permute.xlu0 %4628
      %4630 = vrot.lane.b32.xlu0 %v4549, 64
      %v4631 = vpop.permute.xlu0 %4630
      %4632 = vrot.lane.b32.xlu0 %v4550, 64
      %v4633 = vpop.permute.xlu0 %4632
      %4634 = vrot.lane.b32.xlu0 %v4551, 64
      %v4635 = vpop.permute.xlu0 %4634
      %4636 = vrot.lane.b32.xlu0 %v4552, 64
      %v4637 = vpop.permute.xlu0 %4636
      %4638 = vrot.lane.b32.xlu0 %v4553, 64
      %v4639 = vpop.permute.xlu0 %4638
      %4640 = vrot.lane.b32.xlu0 %v4554, 64
      %v4641 = vpop.permute.xlu0 %4640
      %4642 = vrot.lane.b32.xlu0 %v4555, 64
      %v4643 = vpop.permute.xlu0 %4642
      %4644 = vrot.lane.b32.xlu0 %v4556, 64
      %v4645 = vpop.permute.xlu0 %4644
      %4646 = vrot.lane.b32.xlu0 %v4557, 64
      %v4647 = vpop.permute.xlu0 %4646
      %4648 = vrot.lane.b32.xlu0 %v4558, 64
      %v4649 = vpop.permute.xlu0 %4648
      %4650 = vrot.lane.b32.xlu0 %v4559, 64
      %v4651 = vpop.permute.xlu0 %4650
      %4652 = vrot.lane.b32.xlu0 %v4560, 64
      %v4653 = vpop.permute.xlu0 %4652
      %4654 = vrot.lane.b32.xlu0 %v4561, 64
      %v4655 = vpop.permute.xlu0 %4654
      %4656 = vrot.lane.b32.xlu0 %v4562, 64
      %v4657 = vpop.permute.xlu0 %4656
      %4658 = vrot.lane.b32.xlu0 %v4563, 64
      %v4659 = vpop.permute.xlu0 %4658
      %4692 = vst.msk [vmem:[#allocation3] sm:$0xff] %vm2710, %v4597
      %4693 = vst.msk [vmem:[#allocation3 + $0x18] sm:$0xff] %vm2710, %v4599
      %4694 = vst.msk [vmem:[#allocation3 + $0x30] sm:$0xff] %vm2710, %v4601
      %4695 = vst.msk [vmem:[#allocation3 + $0x48] sm:$0xff] %vm2710, %v4603
      %4696 = vst.msk [vmem:[#allocation3 + $0x60] sm:$0xff] %vm2710, %v4605
      %4697 = vst.msk [vmem:[#allocation3 + $0x78] sm:$0xff] %vm2710, %v4607
      %4698 = vst.msk [vmem:[#allocation3 + $0x90] sm:$0xff] %vm2710, %v4609
      %4699 = vst.msk [vmem:[#allocation3 + $0xa8] sm:$0xff] %vm2710, %v4611
      %4700 = vst.msk [vmem:[#allocation3 + $0xc0] sm:$0xff] %vm2710, %v4613
      %4701 = vst.msk [vmem:[#allocation3 + $0xd8] sm:$0xff] %vm2710, %v4615
      %4702 = vst.msk [vmem:[#allocation3 + $0xf0] sm:$0xff] %vm2710, %v4617
      %4703 = vst.msk [vmem:[#allocation3 + $0x108] sm:$0xff] %vm2710, %v4619
      %4704 = vst.msk [vmem:[#allocation3 + $0x120] sm:$0xff] %vm2710, %v4621
      %4705 = vst.msk [vmem:[#allocation3 + $0x138] sm:$0xff] %vm2710, %v4623
      %4706 = vst.msk [vmem:[#allocation3 + $0x150] sm:$0xff] %vm2710, %v4625
      %4707 = vst.msk [vmem:[#allocation3 + $0x168] sm:$0xff] %vm2710, %v4627
      %4708 = vst.msk [vmem:[#allocation3 + $0x180] sm:$0xff] %vm2710, %v4629
      %4709 = vst.msk [vmem:[#allocation3 + $0x198] sm:$0xff] %vm2710, %v4631
      %4710 = vst.msk [vmem:[#allocation3 + $0x1b0] sm:$0xff] %vm2710, %v4633
      %4711 = vst.msk [vmem:[#allocation3 + $0x1c8] sm:$0xff] %vm2710, %v4635
      %4712 = vst.msk [vmem:[#allocation3 + $0x1e0] sm:$0xff] %vm2710, %v4637
      %4713 = vst.msk [vmem:[#allocation3 + $0x1f8] sm:$0xff] %vm2710, %v4639
      %4714 = vst.msk [vmem:[#allocation3 + $0x210] sm:$0xff] %vm2710, %v4641
      %4715 = vst.msk [vmem:[#allocation3 + $0x228] sm:$0xff] %vm2710, %v4643
      %4716 = vst.msk [vmem:[#allocation3 + $0x240] sm:$0xff] %vm2710, %v4645
      %4717 = vst.msk [vmem:[#allocation3 + $0x258] sm:$0xff] %vm2710, %v4647
      %4718 = vst.msk [vmem:[#allocation3 + $0x270] sm:$0xff] %vm2710, %v4649
      %4719 = vst.msk [vmem:[#allocation3 + $0x288] sm:$0xff] %vm2710, %v4651
      %4720 = vst.msk [vmem:[#allocation3 + $0x2a0] sm:$0xff] %vm2710, %v4653
      %4721 = vst.msk [vmem:[#allocation3 + $0x2b8] sm:$0xff] %vm2710, %v4655
      %4722 = vst.msk [vmem:[#allocation3 + $0x2d0] sm:$0xff] %vm2710, %v4657
      %4723 = vst.msk [vmem:[#allocation3 + $0x2e8] sm:$0xff] %vm2710, %v4659
      %v4724 = vld [vmem:[%s2260] sm:$0xff]
      %v4725 = vld [vmem:[%s2260 + $0x8] sm:$0xff]
      %v4726 = vld [vmem:[%s2260 + $0x18] sm:$0xff]
      %v4727 = vld [vmem:[%s2260 + $0x20] sm:$0xff]
      %v4728 = vld [vmem:[%s2260 + $0x30] sm:$0xff]
      %v4729 = vld [vmem:[%s2260 + $0x38] sm:$0xff]
      %v4730 = vld [vmem:[%s2260 + $0x48] sm:$0xff]
      %v4731 = vld [vmem:[%s2260 + $0x50] sm:$0xff]
      %v4732 = vld [vmem:[%s2260 + $0x60] sm:$0xff]
      %v4733 = vld [vmem:[%s2260 + $0x68] sm:$0xff]
      %v4734 = vld [vmem:[%s2260 + $0x78] sm:$0xff]
      %v4735 = vld [vmem:[%s2260 + $0x80] sm:$0xff]
      %v4736 = vld [vmem:[%s2260 + $0x90] sm:$0xff]
      %v4737 = vld [vmem:[%s2260 + $0x98] sm:$0xff]
      %v4738 = vld [vmem:[%s2260 + $0xa8] sm:$0xff]
      %v4739 = vld [vmem:[%s2260 + $0xb0] sm:$0xff]
      %v4740 = vld [vmem:[%s2260 + $0xc0] sm:$0xff]
      %v4741 = vld [vmem:[%s2260 + $0xc8] sm:$0xff]
      %v4742 = vld [vmem:[%s2260 + $0xd8] sm:$0xff]
      %v4743 = vld [vmem:[%s2260 + $0xe0] sm:$0xff]
      %v4744 = vld [vmem:[%s2260 + $0xf0] sm:$0xff]
      %v4745 = vld [vmem:[%s2260 + $0xf8] sm:$0xff]
      %v4746 = vld [vmem:[%s2260 + $0x108] sm:$0xff]
      %v4747 = vld [vmem:[%s2260 + $0x110] sm:$0xff]
      %v4748 = vld [vmem:[%s2260 + $0x120] sm:$0xff]
      %v4749 = vld [vmem:[%s2260 + $0x128] sm:$0xff]
      %v4750 = vld [vmem:[%s2260 + $0x138] sm:$0xff]
      %v4751 = vld [vmem:[%s2260 + $0x140] sm:$0xff]
      %v4752 = vld [vmem:[%s2260 + $0x150] sm:$0xff]
      %v4753 = vld [vmem:[%s2260 + $0x158] sm:$0xff]
      %v4754 = vld [vmem:[%s2260 + $0x168] sm:$0xff]
      %v4755 = vld [vmem:[%s2260 + $0x170] sm:$0xff]
      %4788 = vrot.lane.b32.xlu0 %v4724, 96
      %v4789 = vpop.permute.xlu0 %4788
      %4790 = vrot.lane.b32.xlu0 %v4725, 96
      %v4791 = vpop.permute.xlu0 %4790
      %4792 = vrot.lane.b32.xlu0 %v4726, 96
      %v4793 = vpop.permute.xlu0 %4792
      %4794 = vrot.lane.b32.xlu0 %v4727, 96
      %v4795 = vpop.permute.xlu0 %4794
      %4796 = vrot.lane.b32.xlu0 %v4728, 96
      %v4797 = vpop.permute.xlu0 %4796
      %4798 = vrot.lane.b32.xlu0 %v4729, 96
      %v4799 = vpop.permute.xlu0 %4798
      %4800 = vrot.lane.b32.xlu0 %v4730, 96
      %v4801 = vpop.permute.xlu0 %4800
      %4802 = vrot.lane.b32.xlu0 %v4731, 96
      %v4803 = vpop.permute.xlu0 %4802
      %4804 = vrot.lane.b32.xlu0 %v4732, 96
      %v4805 = vpop.permute.xlu0 %4804
      %4806 = vrot.lane.b32.xlu0 %v4733, 96
      %v4807 = vpop.permute.xlu0 %4806
      %4808 = vrot.lane.b32.xlu0 %v4734, 96
      %v4809 = vpop.permute.xlu0 %4808
      %4810 = vrot.lane.b32.xlu0 %v4735, 96
      %v4811 = vpop.permute.xlu0 %4810
      %4812 = vrot.lane.b32.xlu0 %v4736, 96
      %v4813 = vpop.permute.xlu0 %4812
      %4814 = vrot.lane.b32.xlu0 %v4737, 96
      %v4815 = vpop.permute.xlu0 %4814
      %4816 = vrot.lane.b32.xlu0 %v4738, 96
      %v4817 = vpop.permute.xlu0 %4816
      %4818 = vrot.lane.b32.xlu0 %v4739, 96
      %v4819 = vpop.permute.xlu0 %4818
      %4820 = vrot.lane.b32.xlu0 %v4740, 96
      %v4821 = vpop.permute.xlu0 %4820
      %4822 = vrot.lane.b32.xlu0 %v4741, 96
      %v4823 = vpop.permute.xlu0 %4822
      %4824 = vrot.lane.b32.xlu0 %v4742, 96
      %v4825 = vpop.permute.xlu0 %4824
      %4826 = vrot.lane.b32.xlu0 %v4743, 96
      %v4827 = vpop.permute.xlu0 %4826
      %4828 = vrot.lane.b32.xlu0 %v4744, 96
      %v4829 = vpop.permute.xlu0 %4828
      %4830 = vrot.lane.b32.xlu0 %v4745, 96
      %v4831 = vpop.permute.xlu0 %4830
      %4832 = vrot.lane.b32.xlu0 %v4746, 96
      %v4833 = vpop.permute.xlu0 %4832
      %4834 = vrot.lane.b32.xlu0 %v4747, 96
      %v4835 = vpop.permute.xlu0 %4834
      %4836 = vrot.lane.b32.xlu0 %v4748, 96
      %v4837 = vpop.permute.xlu0 %4836
      %4838 = vrot.lane.b32.xlu0 %v4749, 96
      %v4839 = vpop.permute.xlu0 %4838
      %4840 = vrot.lane.b32.xlu0 %v4750, 96
      %v4841 = vpop.permute.xlu0 %4840
      %4842 = vrot.lane.b32.xlu0 %v4751, 96
      %v4843 = vpop.permute.xlu0 %4842
      %4844 = vrot.lane.b32.xlu0 %v4752, 96
      %v4845 = vpop.permute.xlu0 %4844
      %4846 = vrot.lane.b32.xlu0 %v4753, 96
      %v4847 = vpop.permute.xlu0 %4846
      %4848 = vrot.lane.b32.xlu0 %v4754, 96
      %v4849 = vpop.permute.xlu0 %4848
      %4850 = vrot.lane.b32.xlu0 %v4755, 96
      %v4851 = vpop.permute.xlu0 %4850
      %4884 = vst.msk [vmem:[#allocation3] sm:$0xff] %vm2903, %v4789
      %4885 = vst.msk [vmem:[#allocation3 + $0x18] sm:$0xff] %vm2903, %v4791
      %4886 = vst.msk [vmem:[#allocation3 + $0x30] sm:$0xff] %vm2903, %v4793
      %4887 = vst.msk [vmem:[#allocation3 + $0x48] sm:$0xff] %vm2903, %v4795
      %4888 = vst.msk [vmem:[#allocation3 + $0x60] sm:$0xff] %vm2903, %v4797
      %4889 = vst.msk [vmem:[#allocation3 + $0x78] sm:$0xff] %vm2903, %v4799
      %4890 = vst.msk [vmem:[#allocation3 + $0x90] sm:$0xff] %vm2903, %v4801
      %4891 = vst.msk [vmem:[#allocation3 + $0xa8] sm:$0xff] %vm2903, %v4803
      %4892 = vst.msk [vmem:[#allocation3 + $0xc0] sm:$0xff] %vm2903, %v4805
      %4893 = vst.msk [vmem:[#allocation3 + $0xd8] sm:$0xff] %vm2903, %v4807
      %4894 = vst.msk [vmem:[#allocation3 + $0xf0] sm:$0xff] %vm2903, %v4809
      %4895 = vst.msk [vmem:[#allocation3 + $0x108] sm:$0xff] %vm2903, %v4811
      %4896 = vst.msk [vmem:[#allocation3 + $0x120] sm:$0xff] %vm2903, %v4813
      %4897 = vst.msk [vmem:[#allocation3 + $0x138] sm:$0xff] %vm2903, %v4815
      %4898 = vst.msk [vmem:[#allocation3 + $0x150] sm:$0xff] %vm2903, %v4817
      %4899 = vst.msk [vmem:[#allocation3 + $0x168] sm:$0xff] %vm2903, %v4819
      %4900 = vst.msk [vmem:[#allocation3 + $0x180] sm:$0xff] %vm2903, %v4821
      %4901 = vst.msk [vmem:[#allocation3 + $0x198] sm:$0xff] %vm2903, %v4823
      %4902 = vst.msk [vmem:[#allocation3 + $0x1b0] sm:$0xff] %vm2903, %v4825
      %4903 = vst.msk [vmem:[#allocation3 + $0x1c8] sm:$0xff] %vm2903, %v4827
      %4904 = vst.msk [vmem:[#allocation3 + $0x1e0] sm:$0xff] %vm2903, %v4829
      %4905 = vst.msk [vmem:[#allocation3 + $0x1f8] sm:$0xff] %vm2903, %v4831
      %4906 = vst.msk [vmem:[#allocation3 + $0x210] sm:$0xff] %vm2903, %v4833
      %4907 = vst.msk [vmem:[#allocation3 + $0x228] sm:$0xff] %vm2903, %v4835
      %4908 = vst.msk [vmem:[#allocation3 + $0x240] sm:$0xff] %vm2903, %v4837
      %4909 = vst.msk [vmem:[#allocation3 + $0x258] sm:$0xff] %vm2903, %v4839
      %4910 = vst.msk [vmem:[#allocation3 + $0x270] sm:$0xff] %vm2903, %v4841
      %4911 = vst.msk [vmem:[#allocation3 + $0x288] sm:$0xff] %vm2903, %v4843
      %4912 = vst.msk [vmem:[#allocation3 + $0x2a0] sm:$0xff] %vm2903, %v4845
      %4913 = vst.msk [vmem:[#allocation3 + $0x2b8] sm:$0xff] %vm2903, %v4847
      %4914 = vst.msk [vmem:[#allocation3 + $0x2d0] sm:$0xff] %vm2903, %v4849
      %4915 = vst.msk [vmem:[#allocation3 + $0x2e8] sm:$0xff] %vm2903, %v4851
      %v4916 = vld [vmem:[%s2260 + $0x1] sm:$0xff]
      %v4917 = vld [vmem:[%s2260 + $0x9] sm:$0xff]
      %v4918 = vld [vmem:[%s2260 + $0x19] sm:$0xff]
      %v4919 = vld [vmem:[%s2260 + $0x21] sm:$0xff]
      %v4920 = vld [vmem:[%s2260 + $0x31] sm:$0xff]
      %v4921 = vld [vmem:[%s2260 + $0x39] sm:$0xff]
      %v4922 = vld [vmem:[%s2260 + $0x49] sm:$0xff]
      %v4923 = vld [vmem:[%s2260 + $0x51] sm:$0xff]
      %v4924 = vld [vmem:[%s2260 + $0x61] sm:$0xff]
      %v4925 = vld [vmem:[%s2260 + $0x69] sm:$0xff]
      %v4926 = vld [vmem:[%s2260 + $0x79] sm:$0xff]
      %v4927 = vld [vmem:[%s2260 + $0x81] sm:$0xff]
      %v4928 = vld [vmem:[%s2260 + $0x91] sm:$0xff]
      %v4929 = vld [vmem:[%s2260 + $0x99] sm:$0xff]
      %v4930 = vld [vmem:[%s2260 + $0xa9] sm:$0xff]
      %v4931 = vld [vmem:[%s2260 + $0xb1] sm:$0xff]
      %v4932 = vld [vmem:[%s2260 + $0xc1] sm:$0xff]
      %v4933 = vld [vmem:[%s2260 + $0xc9] sm:$0xff]
      %v4934 = vld [vmem:[%s2260 + $0xd9] sm:$0xff]
      %v4935 = vld [vmem:[%s2260 + $0xe1] sm:$0xff]
      %v4936 = vld [vmem:[%s2260 + $0xf1] sm:$0xff]
      %v4937 = vld [vmem:[%s2260 + $0xf9] sm:$0xff]
      %v4938 = vld [vmem:[%s2260 + $0x109] sm:$0xff]
      %v4939 = vld [vmem:[%s2260 + $0x111] sm:$0xff]
      %v4940 = vld [vmem:[%s2260 + $0x121] sm:$0xff]
      %v4941 = vld [vmem:[%s2260 + $0x129] sm:$0xff]
      %v4942 = vld [vmem:[%s2260 + $0x139] sm:$0xff]
      %v4943 = vld [vmem:[%s2260 + $0x141] sm:$0xff]
      %v4944 = vld [vmem:[%s2260 + $0x151] sm:$0xff]
      %v4945 = vld [vmem:[%s2260 + $0x159] sm:$0xff]
      %v4946 = vld [vmem:[%s2260 + $0x169] sm:$0xff]
      %v4947 = vld [vmem:[%s2260 + $0x171] sm:$0xff]
      %4948 = vst.msk [vmem:[#allocation3 + $0x8] sm:$0xff] %vm2204, %v4916
      %4949 = vst.msk [vmem:[#allocation3 + $0x20] sm:$0xff] %vm2204, %v4917
      %4950 = vst.msk [vmem:[#allocation3 + $0x38] sm:$0xff] %vm2204, %v4918
      %4951 = vst.msk [vmem:[#allocation3 + $0x50] sm:$0xff] %vm2204, %v4919
      %4952 = vst.msk [vmem:[#allocation3 + $0x68] sm:$0xff] %vm2204, %v4920
      %4953 = vst.msk [vmem:[#allocation3 + $0x80] sm:$0xff] %vm2204, %v4921
      %4954 = vst.msk [vmem:[#allocation3 + $0x98] sm:$0xff] %vm2204, %v4922
      %4955 = vst.msk [vmem:[#allocation3 + $0xb0] sm:$0xff] %vm2204, %v4923
      %4956 = vst.msk [vmem:[#allocation3 + $0xc8] sm:$0xff] %vm2204, %v4924
      %4957 = vst.msk [vmem:[#allocation3 + $0xe0] sm:$0xff] %vm2204, %v4925
      %4958 = vst.msk [vmem:[#allocation3 + $0xf8] sm:$0xff] %vm2204, %v4926
      %4959 = vst.msk [vmem:[#allocation3 + $0x110] sm:$0xff] %vm2204, %v4927
      %4960 = vst.msk [vmem:[#allocation3 + $0x128] sm:$0xff] %vm2204, %v4928
      %4961 = vst.msk [vmem:[#allocation3 + $0x140] sm:$0xff] %vm2204, %v4929
      %4962 = vst.msk [vmem:[#allocation3 + $0x158] sm:$0xff] %vm2204, %v4930
      %4963 = vst.msk [vmem:[#allocation3 + $0x170] sm:$0xff] %vm2204, %v4931
      %4964 = vst.msk [vmem:[#allocation3 + $0x188] sm:$0xff] %vm2204, %v4932
      %4965 = vst.msk [vmem:[#allocation3 + $0x1a0] sm:$0xff] %vm2204, %v4933
      %4966 = vst.msk [vmem:[#allocation3 + $0x1b8] sm:$0xff] %vm2204, %v4934
      %4967 = vst.msk [vmem:[#allocation3 + $0x1d0] sm:$0xff] %vm2204, %v4935
      %4968 = vst.msk [vmem:[#allocation3 + $0x1e8] sm:$0xff] %vm2204, %v4936
      %4969 = vst.msk [vmem:[#allocation3 + $0x200] sm:$0xff] %vm2204, %v4937
      %4970 = vst.msk [vmem:[#allocation3 + $0x218] sm:$0xff] %vm2204, %v4938
      %4971 = vst.msk [vmem:[#allocation3 + $0x230] sm:$0xff] %vm2204, %v4939
      %4972 = vst.msk [vmem:[#allocation3 + $0x248] sm:$0xff] %vm2204, %v4940
      %4973 = vst.msk [vmem:[#allocation3 + $0x260] sm:$0xff] %vm2204, %v4941
      %4974 = vst.msk [vmem:[#allocation3 + $0x278] sm:$0xff] %vm2204, %v4942
      %4975 = vst.msk [vmem:[#allocation3 + $0x290] sm:$0xff] %vm2204, %v4943
      %4976 = vst.msk [vmem:[#allocation3 + $0x2a8] sm:$0xff] %vm2204, %v4944
      %4977 = vst.msk [vmem:[#allocation3 + $0x2c0] sm:$0xff] %vm2204, %v4945
      %4978 = vst.msk [vmem:[#allocation3 + $0x2d8] sm:$0xff] %vm2204, %v4946
      %4979 = vst.msk [vmem:[#allocation3 + $0x2f0] sm:$0xff] %vm2204, %v4947
      %v4980 = vld [vmem:[%s2260 + $0x2] sm:$0xff]
      %v4981 = vld [vmem:[%s2260 + $0xa] sm:$0xff]
      %v4982 = vld [vmem:[%s2260 + $0x1a] sm:$0xff]
      %v4983 = vld [vmem:[%s2260 + $0x22] sm:$0xff]
      %v4984 = vld [vmem:[%s2260 + $0x32] sm:$0xff]
      %v4985 = vld [vmem:[%s2260 + $0x3a] sm:$0xff]
      %v4986 = vld [vmem:[%s2260 + $0x4a] sm:$0xff]
      %v4987 = vld [vmem:[%s2260 + $0x52] sm:$0xff]
      %v4988 = vld [vmem:[%s2260 + $0x62] sm:$0xff]
      %v4989 = vld [vmem:[%s2260 + $0x6a] sm:$0xff]
      %v4990 = vld [vmem:[%s2260 + $0x7a] sm:$0xff]
      %v4991 = vld [vmem:[%s2260 + $0x82] sm:$0xff]
      %v4992 = vld [vmem:[%s2260 + $0x92] sm:$0xff]
      %v4993 = vld [vmem:[%s2260 + $0x9a] sm:$0xff]
      %v4994 = vld [vmem:[%s2260 + $0xaa] sm:$0xff]
      %v4995 = vld [vmem:[%s2260 + $0xb2] sm:$0xff]
      %v4996 = vld [vmem:[%s2260 + $0xc2] sm:$0xff]
      %v4997 = vld [vmem:[%s2260 + $0xca] sm:$0xff]
      %v4998 = vld [vmem:[%s2260 + $0xda] sm:$0xff]
      %v4999 = vld [vmem:[%s2260 + $0xe2] sm:$0xff]
      %v5000 = vld [vmem:[%s2260 + $0xf2] sm:$0xff]
      %v5001 = vld [vmem:[%s2260 + $0xfa] sm:$0xff]
      %v5002 = vld [vmem:[%s2260 + $0x10a] sm:$0xff]
      %v5003 = vld [vmem:[%s2260 + $0x112] sm:$0xff]
      %v5004 = vld [vmem:[%s2260 + $0x122] sm:$0xff]
      %v5005 = vld [vmem:[%s2260 + $0x12a] sm:$0xff]
      %v5006 = vld [vmem:[%s2260 + $0x13a] sm:$0xff]
      %v5007 = vld [vmem:[%s2260 + $0x142] sm:$0xff]
      %v5008 = vld [vmem:[%s2260 + $0x152] sm:$0xff]
      %v5009 = vld [vmem:[%s2260 + $0x15a] sm:$0xff]
      %v5010 = vld [vmem:[%s2260 + $0x16a] sm:$0xff]
      %v5011 = vld [vmem:[%s2260 + $0x172] sm:$0xff]
      %5044 = vrot.lane.b32.xlu0 %v4980, 32
      %v5045 = vpop.permute.xlu0 %5044
      %5046 = vrot.lane.b32.xlu0 %v4981, 32
      %v5047 = vpop.permute.xlu0 %5046
      %5048 = vrot.lane.b32.xlu0 %v4982, 32
      %v5049 = vpop.permute.xlu0 %5048
      %5050 = vrot.lane.b32.xlu0 %v4983, 32
      %v5051 = vpop.permute.xlu0 %5050
      %5052 = vrot.lane.b32.xlu0 %v4984, 32
      %v5053 = vpop.permute.xlu0 %5052
      %5054 = vrot.lane.b32.xlu0 %v4985, 32
      %v5055 = vpop.permute.xlu0 %5054
      %5056 = vrot.lane.b32.xlu0 %v4986, 32
      %v5057 = vpop.permute.xlu0 %5056
      %5058 = vrot.lane.b32.xlu0 %v4987, 32
      %v5059 = vpop.permute.xlu0 %5058
      %5060 = vrot.lane.b32.xlu0 %v4988, 32
      %v5061 = vpop.permute.xlu0 %5060
      %5062 = vrot.lane.b32.xlu0 %v4989, 32
      %v5063 = vpop.permute.xlu0 %5062
      %5064 = vrot.lane.b32.xlu0 %v4990, 32
      %v5065 = vpop.permute.xlu0 %5064
      %5066 = vrot.lane.b32.xlu0 %v4991, 32
      %v5067 = vpop.permute.xlu0 %5066
      %5068 = vrot.lane.b32.xlu0 %v4992, 32
      %v5069 = vpop.permute.xlu0 %5068
      %5070 = vrot.lane.b32.xlu0 %v4993, 32
      %v5071 = vpop.permute.xlu0 %5070
      %5072 = vrot.lane.b32.xlu0 %v4994, 32
      %v5073 = vpop.permute.xlu0 %5072
      %5074 = vrot.lane.b32.xlu0 %v4995, 32
      %v5075 = vpop.permute.xlu0 %5074
      %5076 = vrot.lane.b32.xlu0 %v4996, 32
      %v5077 = vpop.permute.xlu0 %5076
      %5078 = vrot.lane.b32.xlu0 %v4997, 32
      %v5079 = vpop.permute.xlu0 %5078
      %5080 = vrot.lane.b32.xlu0 %v4998, 32
      %v5081 = vpop.permute.xlu0 %5080
      %5082 = vrot.lane.b32.xlu0 %v4999, 32
      %v5083 = vpop.permute.xlu0 %5082
      %5084 = vrot.lane.b32.xlu0 %v5000, 32
      %v5085 = vpop.permute.xlu0 %5084
      %5086 = vrot.lane.b32.xlu0 %v5001, 32
      %v5087 = vpop.permute.xlu0 %5086
      %5088 = vrot.lane.b32.xlu0 %v5002, 32
      %v5089 = vpop.permute.xlu0 %5088
      %5090 = vrot.lane.b32.xlu0 %v5003, 32
      %v5091 = vpop.permute.xlu0 %5090
      %5092 = vrot.lane.b32.xlu0 %v5004, 32
      %v5093 = vpop.permute.xlu0 %5092
      %5094 = vrot.lane.b32.xlu0 %v5005, 32
      %v5095 = vpop.permute.xlu0 %5094
      %5096 = vrot.lane.b32.xlu0 %v5006, 32
      %v5097 = vpop.permute.xlu0 %5096
      %5098 = vrot.lane.b32.xlu0 %v5007, 32
      %v5099 = vpop.permute.xlu0 %5098
      %5100 = vrot.lane.b32.xlu0 %v5008, 32
      %v5101 = vpop.permute.xlu0 %5100
      %5102 = vrot.lane.b32.xlu0 %v5009, 32
      %v5103 = vpop.permute.xlu0 %5102
      %5104 = vrot.lane.b32.xlu0 %v5010, 32
      %v5105 = vpop.permute.xlu0 %5104
      %5106 = vrot.lane.b32.xlu0 %v5011, 32
      %v5107 = vpop.permute.xlu0 %5106
      %5140 = vst.msk [vmem:[#allocation3 + $0x8] sm:$0xff] %vm2517, %v5045
      %5141 = vst.msk [vmem:[#allocation3 + $0x20] sm:$0xff] %vm2517, %v5047
      %5142 = vst.msk [vmem:[#allocation3 + $0x38] sm:$0xff] %vm2517, %v5049
      %5143 = vst.msk [vmem:[#allocation3 + $0x50] sm:$0xff] %vm2517, %v5051
      %5144 = vst.msk [vmem:[#allocation3 + $0x68] sm:$0xff] %vm2517, %v5053
      %5145 = vst.msk [vmem:[#allocation3 + $0x80] sm:$0xff] %vm2517, %v5055
      %5146 = vst.msk [vmem:[#allocation3 + $0x98] sm:$0xff] %vm2517, %v5057
      %5147 = vst.msk [vmem:[#allocation3 + $0xb0] sm:$0xff] %vm2517, %v5059
      %5148 = vst.msk [vmem:[#allocation3 + $0xc8] sm:$0xff] %vm2517, %v5061
      %5149 = vst.msk [vmem:[#allocation3 + $0xe0] sm:$0xff] %vm2517, %v5063
      %5150 = vst.msk [vmem:[#allocation3 + $0xf8] sm:$0xff] %vm2517, %v5065
      %5151 = vst.msk [vmem:[#allocation3 + $0x110] sm:$0xff] %vm2517, %v5067
      %5152 = vst.msk [vmem:[#allocation3 + $0x128] sm:$0xff] %vm2517, %v5069
      %5153 = vst.msk [vmem:[#allocation3 + $0x140] sm:$0xff] %vm2517, %v5071
      %5154 = vst.msk [vmem:[#allocation3 + $0x158] sm:$0xff] %vm2517, %v5073
      %5155 = vst.msk [vmem:[#allocation3 + $0x170] sm:$0xff] %vm2517, %v5075
      %5156 = vst.msk [vmem:[#allocation3 + $0x188] sm:$0xff] %vm2517, %v5077
      %5157 = vst.msk [vmem:[#allocation3 + $0x1a0] sm:$0xff] %vm2517, %v5079
      %5158 = vst.msk [vmem:[#allocation3 + $0x1b8] sm:$0xff] %vm2517, %v5081
      %5159 = vst.msk [vmem:[#allocation3 + $0x1d0] sm:$0xff] %vm2517, %v5083
      %5160 = vst.msk [vmem:[#allocation3 + $0x1e8] sm:$0xff] %vm2517, %v5085
      %5161 = vst.msk [vmem:[#allocation3 + $0x200] sm:$0xff] %vm2517, %v5087
      %5162 = vst.msk [vmem:[#allocation3 + $0x218] sm:$0xff] %vm2517, %v5089
      %5163 = vst.msk [vmem:[#allocation3 + $0x230] sm:$0xff] %vm2517, %v5091
      %5164 = vst.msk [vmem:[#allocation3 + $0x248] sm:$0xff] %vm2517, %v5093
      %5165 = vst.msk [vmem:[#allocation3 + $0x260] sm:$0xff] %vm2517, %v5095
      %5166 = vst.msk [vmem:[#allocation3 + $0x278] sm:$0xff] %vm2517, %v5097
      %5167 = vst.msk [vmem:[#allocation3 + $0x290] sm:$0xff] %vm2517, %v5099
      %5168 = vst.msk [vmem:[#allocation3 + $0x2a8] sm:$0xff] %vm2517, %v5101
      %5169 = vst.msk [vmem:[#allocation3 + $0x2c0] sm:$0xff] %vm2517, %v5103
      %5170 = vst.msk [vmem:[#allocation3 + $0x2d8] sm:$0xff] %vm2517, %v5105
      %5171 = vst.msk [vmem:[#allocation3 + $0x2f0] sm:$0xff] %vm2517, %v5107
      %v5172 = vld [vmem:[%s3192] sm:$0xff]
      %v5173 = vld [vmem:[%s3192 + $0x8] sm:$0xff]
      %v5174 = vld [vmem:[%s3192 + $0x18] sm:$0xff]
      %v5175 = vld [vmem:[%s3192 + $0x20] sm:$0xff]
      %v5176 = vld [vmem:[%s3192 + $0x30] sm:$0xff]
      %v5177 = vld [vmem:[%s3192 + $0x38] sm:$0xff]
      %v5178 = vld [vmem:[%s3192 + $0x48] sm:$0xff]
      %v5179 = vld [vmem:[%s3192 + $0x50] sm:$0xff]
      %v5180 = vld [vmem:[%s3192 + $0x60] sm:$0xff]
      %v5181 = vld [vmem:[%s3192 + $0x68] sm:$0xff]
      %v5182 = vld [vmem:[%s3192 + $0x78] sm:$0xff]
      %v5183 = vld [vmem:[%s3192 + $0x80] sm:$0xff]
      %v5184 = vld [vmem:[%s3192 + $0x90] sm:$0xff]
      %v5185 = vld [vmem:[%s3192 + $0x98] sm:$0xff]
      %v5186 = vld [vmem:[%s3192 + $0xa8] sm:$0xff]
      %v5187 = vld [vmem:[%s3192 + $0xb0] sm:$0xff]
      %v5188 = vld [vmem:[%s3192 + $0xc0] sm:$0xff]
      %v5189 = vld [vmem:[%s3192 + $0xc8] sm:$0xff]
      %v5190 = vld [vmem:[%s3192 + $0xd8] sm:$0xff]
      %v5191 = vld [vmem:[%s3192 + $0xe0] sm:$0xff]
      %v5192 = vld [vmem:[%s3192 + $0xf0] sm:$0xff]
      %v5193 = vld [vmem:[%s3192 + $0xf8] sm:$0xff]
      %v5194 = vld [vmem:[%s3192 + $0x108] sm:$0xff]
      %v5195 = vld [vmem:[%s3192 + $0x110] sm:$0xff]
      %v5196 = vld [vmem:[%s3192 + $0x120] sm:$0xff]
      %v5197 = vld [vmem:[%s3192 + $0x128] sm:$0xff]
      %v5198 = vld [vmem:[%s3192 + $0x138] sm:$0xff]
      %v5199 = vld [vmem:[%s3192 + $0x140] sm:$0xff]
      %v5200 = vld [vmem:[%s3192 + $0x150] sm:$0xff]
      %v5201 = vld [vmem:[%s3192 + $0x158] sm:$0xff]
      %v5202 = vld [vmem:[%s3192 + $0x168] sm:$0xff]
      %v5203 = vld [vmem:[%s3192 + $0x170] sm:$0xff]
      %5236 = vrot.lane.b32.xlu0 %v5172, 64
      %v5237 = vpop.permute.xlu0 %5236
      %5238 = vrot.lane.b32.xlu0 %v5173, 64
      %v5239 = vpop.permute.xlu0 %5238
      %5240 = vrot.lane.b32.xlu0 %v5174, 64
      %v5241 = vpop.permute.xlu0 %5240
      %5242 = vrot.lane.b32.xlu0 %v5175, 64
      %v5243 = vpop.permute.xlu0 %5242
      %5244 = vrot.lane.b32.xlu0 %v5176, 64
      %v5245 = vpop.permute.xlu0 %5244
      %5246 = vrot.lane.b32.xlu0 %v5177, 64
      %v5247 = vpop.permute.xlu0 %5246
      %5248 = vrot.lane.b32.xlu0 %v5178, 64
      %v5249 = vpop.permute.xlu0 %5248
      %5250 = vrot.lane.b32.xlu0 %v5179, 64
      %v5251 = vpop.permute.xlu0 %5250
      %5252 = vrot.lane.b32.xlu0 %v5180, 64
      %v5253 = vpop.permute.xlu0 %5252
      %5254 = vrot.lane.b32.xlu0 %v5181, 64
      %v5255 = vpop.permute.xlu0 %5254
      %5256 = vrot.lane.b32.xlu0 %v5182, 64
      %v5257 = vpop.permute.xlu0 %5256
      %5258 = vrot.lane.b32.xlu0 %v5183, 64
      %v5259 = vpop.permute.xlu0 %5258
      %5260 = vrot.lane.b32.xlu0 %v5184, 64
      %v5261 = vpop.permute.xlu0 %5260
      %5262 = vrot.lane.b32.xlu0 %v5185, 64
      %v5263 = vpop.permute.xlu0 %5262
      %5264 = vrot.lane.b32.xlu0 %v5186, 64
      %v5265 = vpop.permute.xlu0 %5264
      %5266 = vrot.lane.b32.xlu0 %v5187, 64
      %v5267 = vpop.permute.xlu0 %5266
      %5268 = vrot.lane.b32.xlu0 %v5188, 64
      %v5269 = vpop.permute.xlu0 %5268
      %5270 = vrot.lane.b32.xlu0 %v5189, 64
      %v5271 = vpop.permute.xlu0 %5270
      %5272 = vrot.lane.b32.xlu0 %v5190, 64
      %v5273 = vpop.permute.xlu0 %5272
      %5274 = vrot.lane.b32.xlu0 %v5191, 64
      %v5275 = vpop.permute.xlu0 %5274
      %5276 = vrot.lane.b32.xlu0 %v5192, 64
      %v5277 = vpop.permute.xlu0 %5276
      %5278 = vrot.lane.b32.xlu0 %v5193, 64
      %v5279 = vpop.permute.xlu0 %5278
      %5280 = vrot.lane.b32.xlu0 %v5194, 64
      %v5281 = vpop.permute.xlu0 %5280
      %5282 = vrot.lane.b32.xlu0 %v5195, 64
      %v5283 = vpop.permute.xlu0 %5282
      %5284 = vrot.lane.b32.xlu0 %v5196, 64
      %v5285 = vpop.permute.xlu0 %5284
      %5286 = vrot.lane.b32.xlu0 %v5197, 64
      %v5287 = vpop.permute.xlu0 %5286
      %5288 = vrot.lane.b32.xlu0 %v5198, 64
      %v5289 = vpop.permute.xlu0 %5288
      %5290 = vrot.lane.b32.xlu0 %v5199, 64
      %v5291 = vpop.permute.xlu0 %5290
      %5292 = vrot.lane.b32.xlu0 %v5200, 64
      %v5293 = vpop.permute.xlu0 %5292
      %5294 = vrot.lane.b32.xlu0 %v5201, 64
      %v5295 = vpop.permute.xlu0 %5294
      %5296 = vrot.lane.b32.xlu0 %v5202, 64
      %v5297 = vpop.permute.xlu0 %5296
      %5298 = vrot.lane.b32.xlu0 %v5203, 64
      %v5299 = vpop.permute.xlu0 %5298
      %5332 = vst.msk [vmem:[#allocation3 + $0x8] sm:$0xff] %vm2710, %v5237
      %5333 = vst.msk [vmem:[#allocation3 + $0x20] sm:$0xff] %vm2710, %v5239
      %5334 = vst.msk [vmem:[#allocation3 + $0x38] sm:$0xff] %vm2710, %v5241
      %5335 = vst.msk [vmem:[#allocation3 + $0x50] sm:$0xff] %vm2710, %v5243
      %5336 = vst.msk [vmem:[#allocation3 + $0x68] sm:$0xff] %vm2710, %v5245
      %5337 = vst.msk [vmem:[#allocation3 + $0x80] sm:$0xff] %vm2710, %v5247
      %5338 = vst.msk [vmem:[#allocation3 + $0x98] sm:$0xff] %vm2710, %v5249
      %5339 = vst.msk [vmem:[#allocation3 + $0xb0] sm:$0xff] %vm2710, %v5251
      %5340 = vst.msk [vmem:[#allocation3 + $0xc8] sm:$0xff] %vm2710, %v5253
      %5341 = vst.msk [vmem:[#allocation3 + $0xe0] sm:$0xff] %vm2710, %v5255
      %5342 = vst.msk [vmem:[#allocation3 + $0xf8] sm:$0xff] %vm2710, %v5257
      %5343 = vst.msk [vmem:[#allocation3 + $0x110] sm:$0xff] %vm2710, %v5259
      %5344 = vst.msk [vmem:[#allocation3 + $0x128] sm:$0xff] %vm2710, %v5261
      %5345 = vst.msk [vmem:[#allocation3 + $0x140] sm:$0xff] %vm2710, %v5263
      %5346 = vst.msk [vmem:[#allocation3 + $0x158] sm:$0xff] %vm2710, %v5265
      %5347 = vst.msk [vmem:[#allocation3 + $0x170] sm:$0xff] %vm2710, %v5267
      %5348 = vst.msk [vmem:[#allocation3 + $0x188] sm:$0xff] %vm2710, %v5269
      %5349 = vst.msk [vmem:[#allocation3 + $0x1a0] sm:$0xff] %vm2710, %v5271
      %5350 = vst.msk [vmem:[#allocation3 + $0x1b8] sm:$0xff] %vm2710, %v5273
      %5351 = vst.msk [vmem:[#allocation3 + $0x1d0] sm:$0xff] %vm2710, %v5275
      %5352 = vst.msk [vmem:[#allocation3 + $0x1e8] sm:$0xff] %vm2710, %v5277
      %5353 = vst.msk [vmem:[#allocation3 + $0x200] sm:$0xff] %vm2710, %v5279
      %5354 = vst.msk [vmem:[#allocation3 + $0x218] sm:$0xff] %vm2710, %v5281
      %5355 = vst.msk [vmem:[#allocation3 + $0x230] sm:$0xff] %vm2710, %v5283
      %5356 = vst.msk [vmem:[#allocation3 + $0x248] sm:$0xff] %vm2710, %v5285
      %5357 = vst.msk [vmem:[#allocation3 + $0x260] sm:$0xff] %vm2710, %v5287
      %5358 = vst.msk [vmem:[#allocation3 + $0x278] sm:$0xff] %vm2710, %v5289
      %5359 = vst.msk [vmem:[#allocation3 + $0x290] sm:$0xff] %vm2710, %v5291
      %5360 = vst.msk [vmem:[#allocation3 + $0x2a8] sm:$0xff] %vm2710, %v5293
      %5361 = vst.msk [vmem:[#allocation3 + $0x2c0] sm:$0xff] %vm2710, %v5295
      %5362 = vst.msk [vmem:[#allocation3 + $0x2d8] sm:$0xff] %vm2710, %v5297
      %5363 = vst.msk [vmem:[#allocation3 + $0x2f0] sm:$0xff] %vm2710, %v5299
      %v5364 = vld [vmem:[%s3192 + $0x1] sm:$0xff]
      %v5365 = vld [vmem:[%s3192 + $0x9] sm:$0xff]
      %v5366 = vld [vmem:[%s3192 + $0x19] sm:$0xff]
      %v5367 = vld [vmem:[%s3192 + $0x21] sm:$0xff]
      %v5368 = vld [vmem:[%s3192 + $0x31] sm:$0xff]
      %v5369 = vld [vmem:[%s3192 + $0x39] sm:$0xff]
      %v5370 = vld [vmem:[%s3192 + $0x49] sm:$0xff]
      %v5371 = vld [vmem:[%s3192 + $0x51] sm:$0xff]
      %v5372 = vld [vmem:[%s3192 + $0x61] sm:$0xff]
      %v5373 = vld [vmem:[%s3192 + $0x69] sm:$0xff]
      %v5374 = vld [vmem:[%s3192 + $0x79] sm:$0xff]
      %v5375 = vld [vmem:[%s3192 + $0x81] sm:$0xff]
      %v5376 = vld [vmem:[%s3192 + $0x91] sm:$0xff]
      %v5377 = vld [vmem:[%s3192 + $0x99] sm:$0xff]
      %v5378 = vld [vmem:[%s3192 + $0xa9] sm:$0xff]
      %v5379 = vld [vmem:[%s3192 + $0xb1] sm:$0xff]
      %v5380 = vld [vmem:[%s3192 + $0xc1] sm:$0xff]
      %v5381 = vld [vmem:[%s3192 + $0xc9] sm:$0xff]
      %v5382 = vld [vmem:[%s3192 + $0xd9] sm:$0xff]
      %v5383 = vld [vmem:[%s3192 + $0xe1] sm:$0xff]
      %v5384 = vld [vmem:[%s3192 + $0xf1] sm:$0xff]
      %v5385 = vld [vmem:[%s3192 + $0xf9] sm:$0xff]
      %v5386 = vld [vmem:[%s3192 + $0x109] sm:$0xff]
      %v5387 = vld [vmem:[%s3192 + $0x111] sm:$0xff]
      %v5388 = vld [vmem:[%s3192 + $0x121] sm:$0xff]
      %v5389 = vld [vmem:[%s3192 + $0x129] sm:$0xff]
      %v5390 = vld [vmem:[%s3192 + $0x139] sm:$0xff]
      %v5391 = vld [vmem:[%s3192 + $0x141] sm:$0xff]
      %v5392 = vld [vmem:[%s3192 + $0x151] sm:$0xff]
      %v5393 = vld [vmem:[%s3192 + $0x159] sm:$0xff]
      %v5394 = vld [vmem:[%s3192 + $0x169] sm:$0xff]
      %v5395 = vld [vmem:[%s3192 + $0x171] sm:$0xff]
      %5428 = vrot.lane.b32.xlu0 %v5364, 96
      %v5429 = vpop.permute.xlu0 %5428
      %5430 = vrot.lane.b32.xlu0 %v5365, 96
      %v5431 = vpop.permute.xlu0 %5430
      %5432 = vrot.lane.b32.xlu0 %v5366, 96
      %v5433 = vpop.permute.xlu0 %5432
      %5434 = vrot.lane.b32.xlu0 %v5367, 96
      %v5435 = vpop.permute.xlu0 %5434
      %5436 = vrot.lane.b32.xlu0 %v5368, 96
      %v5437 = vpop.permute.xlu0 %5436
      %5438 = vrot.lane.b32.xlu0 %v5369, 96
      %v5439 = vpop.permute.xlu0 %5438
      %5440 = vrot.lane.b32.xlu0 %v5370, 96
      %v5441 = vpop.permute.xlu0 %5440
      %5442 = vrot.lane.b32.xlu0 %v5371, 96
      %v5443 = vpop.permute.xlu0 %5442
      %5444 = vrot.lane.b32.xlu0 %v5372, 96
      %v5445 = vpop.permute.xlu0 %5444
      %5446 = vrot.lane.b32.xlu0 %v5373, 96
      %v5447 = vpop.permute.xlu0 %5446
      %5448 = vrot.lane.b32.xlu0 %v5374, 96
      %v5449 = vpop.permute.xlu0 %5448
      %5450 = vrot.lane.b32.xlu0 %v5375, 96
      %v5451 = vpop.permute.xlu0 %5450
      %5452 = vrot.lane.b32.xlu0 %v5376, 96
      %v5453 = vpop.permute.xlu0 %5452
      %5454 = vrot.lane.b32.xlu0 %v5377, 96
      %v5455 = vpop.permute.xlu0 %5454
      %5456 = vrot.lane.b32.xlu0 %v5378, 96
      %v5457 = vpop.permute.xlu0 %5456
      %5458 = vrot.lane.b32.xlu0 %v5379, 96
      %v5459 = vpop.permute.xlu0 %5458
      %5460 = vrot.lane.b32.xlu0 %v5380, 96
      %v5461 = vpop.permute.xlu0 %5460
      %5462 = vrot.lane.b32.xlu0 %v5381, 96
      %v5463 = vpop.permute.xlu0 %5462
      %5464 = vrot.lane.b32.xlu0 %v5382, 96
      %v5465 = vpop.permute.xlu0 %5464
      %5466 = vrot.lane.b32.xlu0 %v5383, 96
      %v5467 = vpop.permute.xlu0 %5466
      %5468 = vrot.lane.b32.xlu0 %v5384, 96
      %v5469 = vpop.permute.xlu0 %5468
      %5470 = vrot.lane.b32.xlu0 %v5385, 96
      %v5471 = vpop.permute.xlu0 %5470
      %5472 = vrot.lane.b32.xlu0 %v5386, 96
      %v5473 = vpop.permute.xlu0 %5472
      %5474 = vrot.lane.b32.xlu0 %v5387, 96
      %v5475 = vpop.permute.xlu0 %5474
      %5476 = vrot.lane.b32.xlu0 %v5388, 96
      %v5477 = vpop.permute.xlu0 %5476
      %5478 = vrot.lane.b32.xlu0 %v5389, 96
      %v5479 = vpop.permute.xlu0 %5478
      %5480 = vrot.lane.b32.xlu0 %v5390, 96
      %v5481 = vpop.permute.xlu0 %5480
      %5482 = vrot.lane.b32.xlu0 %v5391, 96
      %v5483 = vpop.permute.xlu0 %5482
      %5484 = vrot.lane.b32.xlu0 %v5392, 96
      %v5485 = vpop.permute.xlu0 %5484
      %5486 = vrot.lane.b32.xlu0 %v5393, 96
      %v5487 = vpop.permute.xlu0 %5486
      %5488 = vrot.lane.b32.xlu0 %v5394, 96
      %v5489 = vpop.permute.xlu0 %5488
      %5490 = vrot.lane.b32.xlu0 %v5395, 96
      %v5491 = vpop.permute.xlu0 %5490
      %5524 = vst.msk [vmem:[#allocation3 + $0x8] sm:$0xff] %vm2903, %v5429
      %5525 = vst.msk [vmem:[#allocation3 + $0x20] sm:$0xff] %vm2903, %v5431
      %5526 = vst.msk [vmem:[#allocation3 + $0x38] sm:$0xff] %vm2903, %v5433
      %5527 = vst.msk [vmem:[#allocation3 + $0x50] sm:$0xff] %vm2903, %v5435
      %5528 = vst.msk [vmem:[#allocation3 + $0x68] sm:$0xff] %vm2903, %v5437
      %5529 = vst.msk [vmem:[#allocation3 + $0x80] sm:$0xff] %vm2903, %v5439
      %5530 = vst.msk [vmem:[#allocation3 + $0x98] sm:$0xff] %vm2903, %v5441
      %5531 = vst.msk [vmem:[#allocation3 + $0xb0] sm:$0xff] %vm2903, %v5443
      %5532 = vst.msk [vmem:[#allocation3 + $0xc8] sm:$0xff] %vm2903, %v5445
      %5533 = vst.msk [vmem:[#allocation3 + $0xe0] sm:$0xff] %vm2903, %v5447
      %5534 = vst.msk [vmem:[#allocation3 + $0xf8] sm:$0xff] %vm2903, %v5449
      %5535 = vst.msk [vmem:[#allocation3 + $0x110] sm:$0xff] %vm2903, %v5451
      %5536 = vst.msk [vmem:[#allocation3 + $0x128] sm:$0xff] %vm2903, %v5453
      %5537 = vst.msk [vmem:[#allocation3 + $0x140] sm:$0xff] %vm2903, %v5455
      %5538 = vst.msk [vmem:[#allocation3 + $0x158] sm:$0xff] %vm2903, %v5457
      %5539 = vst.msk [vmem:[#allocation3 + $0x170] sm:$0xff] %vm2903, %v5459
      %5540 = vst.msk [vmem:[#allocation3 + $0x188] sm:$0xff] %vm2903, %v5461
      %5541 = vst.msk [vmem:[#allocation3 + $0x1a0] sm:$0xff] %vm2903, %v5463
      %5542 = vst.msk [vmem:[#allocation3 + $0x1b8] sm:$0xff] %vm2903, %v5465
      %5543 = vst.msk [vmem:[#allocation3 + $0x1d0] sm:$0xff] %vm2903, %v5467
      %5544 = vst.msk [vmem:[#allocation3 + $0x1e8] sm:$0xff] %vm2903, %v5469
      %5545 = vst.msk [vmem:[#allocation3 + $0x200] sm:$0xff] %vm2903, %v5471
      %5546 = vst.msk [vmem:[#allocation3 + $0x218] sm:$0xff] %vm2903, %v5473
      %5547 = vst.msk [vmem:[#allocation3 + $0x230] sm:$0xff] %vm2903, %v5475
      %5548 = vst.msk [vmem:[#allocation3 + $0x248] sm:$0xff] %vm2903, %v5477
      %5549 = vst.msk [vmem:[#allocation3 + $0x260] sm:$0xff] %vm2903, %v5479
      %5550 = vst.msk [vmem:[#allocation3 + $0x278] sm:$0xff] %vm2903, %v5481
      %5551 = vst.msk [vmem:[#allocation3 + $0x290] sm:$0xff] %vm2903, %v5483
      %5552 = vst.msk [vmem:[#allocation3 + $0x2a8] sm:$0xff] %vm2903, %v5485
      %5553 = vst.msk [vmem:[#allocation3 + $0x2c0] sm:$0xff] %vm2903, %v5487
      %5554 = vst.msk [vmem:[#allocation3 + $0x2d8] sm:$0xff] %vm2903, %v5489
      %5555 = vst.msk [vmem:[#allocation3 + $0x2f0] sm:$0xff] %vm2903, %v5491
      %v5556 = vld [vmem:[%s3192 + $0x2] sm:$0xff]
      %v5557 = vld [vmem:[%s3192 + $0xa] sm:$0xff]
      %v5558 = vld [vmem:[%s3192 + $0x1a] sm:$0xff]
      %v5559 = vld [vmem:[%s3192 + $0x22] sm:$0xff]
      %v5560 = vld [vmem:[%s3192 + $0x32] sm:$0xff]
      %v5561 = vld [vmem:[%s3192 + $0x3a] sm:$0xff]
      %v5562 = vld [vmem:[%s3192 + $0x4a] sm:$0xff]
      %v5563 = vld [vmem:[%s3192 + $0x52] sm:$0xff]
      %v5564 = vld [vmem:[%s3192 + $0x62] sm:$0xff]
      %v5565 = vld [vmem:[%s3192 + $0x6a] sm:$0xff]
      %v5566 = vld [vmem:[%s3192 + $0x7a] sm:$0xff]
      %v5567 = vld [vmem:[%s3192 + $0x82] sm:$0xff]
      %v5568 = vld [vmem:[%s3192 + $0x92] sm:$0xff]
      %v5569 = vld [vmem:[%s3192 + $0x9a] sm:$0xff]
      %v5570 = vld [vmem:[%s3192 + $0xaa] sm:$0xff]
      %v5571 = vld [vmem:[%s3192 + $0xb2] sm:$0xff]
      %v5572 = vld [vmem:[%s3192 + $0xc2] sm:$0xff]
      %v5573 = vld [vmem:[%s3192 + $0xca] sm:$0xff]
      %v5574 = vld [vmem:[%s3192 + $0xda] sm:$0xff]
      %v5575 = vld [vmem:[%s3192 + $0xe2] sm:$0xff]
      %v5576 = vld [vmem:[%s3192 + $0xf2] sm:$0xff]
      %v5577 = vld [vmem:[%s3192 + $0xfa] sm:$0xff]
      %v5578 = vld [vmem:[%s3192 + $0x10a] sm:$0xff]
      %v5579 = vld [vmem:[%s3192 + $0x112] sm:$0xff]
      %v5580 = vld [vmem:[%s3192 + $0x122] sm:$0xff]
      %v5581 = vld [vmem:[%s3192 + $0x12a] sm:$0xff]
      %v5582 = vld [vmem:[%s3192 + $0x13a] sm:$0xff]
      %v5583 = vld [vmem:[%s3192 + $0x142] sm:$0xff]
      %v5584 = vld [vmem:[%s3192 + $0x152] sm:$0xff]
      %v5585 = vld [vmem:[%s3192 + $0x15a] sm:$0xff]
      %v5586 = vld [vmem:[%s3192 + $0x16a] sm:$0xff]
      %v5587 = vld [vmem:[%s3192 + $0x172] sm:$0xff]
      %5588 = vst.msk [vmem:[#allocation3 + $0x10] sm:$0xff] %vm2204, %v5556
      %5589 = vst.msk [vmem:[#allocation3 + $0x28] sm:$0xff] %vm2204, %v5557
      %5590 = vst.msk [vmem:[#allocation3 + $0x40] sm:$0xff] %vm2204, %v5558
      %5591 = vst.msk [vmem:[#allocation3 + $0x58] sm:$0xff] %vm2204, %v5559
      %5592 = vst.msk [vmem:[#allocation3 + $0x70] sm:$0xff] %vm2204, %v5560
      %5593 = vst.msk [vmem:[#allocation3 + $0x88] sm:$0xff] %vm2204, %v5561
      %5594 = vst.msk [vmem:[#allocation3 + $0xa0] sm:$0xff] %vm2204, %v5562
      %5595 = vst.msk [vmem:[#allocation3 + $0xb8] sm:$0xff] %vm2204, %v5563
      %5596 = vst.msk [vmem:[#allocation3 + $0xd0] sm:$0xff] %vm2204, %v5564
      %5597 = vst.msk [vmem:[#allocation3 + $0xe8] sm:$0xff] %vm2204, %v5565
      %5598 = vst.msk [vmem:[#allocation3 + $0x100] sm:$0xff] %vm2204, %v5566
      %5599 = vst.msk [vmem:[#allocation3 + $0x118] sm:$0xff] %vm2204, %v5567
      %5600 = vst.msk [vmem:[#allocation3 + $0x130] sm:$0xff] %vm2204, %v5568
      %5601 = vst.msk [vmem:[#allocation3 + $0x148] sm:$0xff] %vm2204, %v5569
      %5602 = vst.msk [vmem:[#allocation3 + $0x160] sm:$0xff] %vm2204, %v5570
      %5603 = vst.msk [vmem:[#allocation3 + $0x178] sm:$0xff] %vm2204, %v5571
      %5604 = vst.msk [vmem:[#allocation3 + $0x190] sm:$0xff] %vm2204, %v5572
      %5605 = vst.msk [vmem:[#allocation3 + $0x1a8] sm:$0xff] %vm2204, %v5573
      %5606 = vst.msk [vmem:[#allocation3 + $0x1c0] sm:$0xff] %vm2204, %v5574
      %5607 = vst.msk [vmem:[#allocation3 + $0x1d8] sm:$0xff] %vm2204, %v5575
      %5608 = vst.msk [vmem:[#allocation3 + $0x1f0] sm:$0xff] %vm2204, %v5576
      %5609 = vst.msk [vmem:[#allocation3 + $0x208] sm:$0xff] %vm2204, %v5577
      %5610 = vst.msk [vmem:[#allocation3 + $0x220] sm:$0xff] %vm2204, %v5578
      %5611 = vst.msk [vmem:[#allocation3 + $0x238] sm:$0xff] %vm2204, %v5579
      %5612 = vst.msk [vmem:[#allocation3 + $0x250] sm:$0xff] %vm2204, %v5580
      %5613 = vst.msk [vmem:[#allocation3 + $0x268] sm:$0xff] %vm2204, %v5581
      %5614 = vst.msk [vmem:[#allocation3 + $0x280] sm:$0xff] %vm2204, %v5582
      %5615 = vst.msk [vmem:[#allocation3 + $0x298] sm:$0xff] %vm2204, %v5583
      %5616 = vst.msk [vmem:[#allocation3 + $0x2b0] sm:$0xff] %vm2204, %v5584
      %5617 = vst.msk [vmem:[#allocation3 + $0x2c8] sm:$0xff] %vm2204, %v5585
      %5618 = vst.msk [vmem:[#allocation3 + $0x2e0] sm:$0xff] %vm2204, %v5586
      %5619 = vst.msk [vmem:[#allocation3 + $0x2f8] sm:$0xff] %vm2204, %v5587
      %v5620 = vld [vmem:[#allocation3] sm:$0xff]
      %v5621 = vld [vmem:[#allocation3 + $0x8] sm:$0xff]
      %v5622 = vld [vmem:[#allocation3 + $0x10] sm:$0xff]
      %v5623 = vld [vmem:[#allocation3 + $0x18] sm:$0xff]
      %v5624 = vld [vmem:[#allocation3 + $0x20] sm:$0xff]
      %v5625 = vld [vmem:[#allocation3 + $0x28] sm:$0xff]
      %v5626 = vld [vmem:[#allocation3 + $0x30] sm:$0xff]
      %v5627 = vld [vmem:[#allocation3 + $0x38] sm:$0xff]
      %v5628 = vld [vmem:[#allocation3 + $0x40] sm:$0xff]
      %v5629 = vld [vmem:[#allocation3 + $0x48] sm:$0xff]
      %v5630 = vld [vmem:[#allocation3 + $0x50] sm:$0xff]
      %v5631 = vld [vmem:[#allocation3 + $0x58] sm:$0xff]
      %v5632 = vld [vmem:[#allocation3 + $0x60] sm:$0xff]
      %v5633 = vld [vmem:[#allocation3 + $0x68] sm:$0xff]
      %v5634 = vld [vmem:[#allocation3 + $0x70] sm:$0xff]
      %v5635 = vld [vmem:[#allocation3 + $0x78] sm:$0xff]
      %v5636 = vld [vmem:[#allocation3 + $0x80] sm:$0xff]
      %v5637 = vld [vmem:[#allocation3 + $0x88] sm:$0xff]
      %v5638 = vld [vmem:[#allocation3 + $0x90] sm:$0xff]
      %v5639 = vld [vmem:[#allocation3 + $0x98] sm:$0xff]
      %v5640 = vld [vmem:[#allocation3 + $0xa0] sm:$0xff]
      %v5641 = vld [vmem:[#allocation3 + $0xa8] sm:$0xff]
      %v5642 = vld [vmem:[#allocation3 + $0xb0] sm:$0xff]
      %v5643 = vld [vmem:[#allocation3 + $0xb8] sm:$0xff]
      %v5644 = vld [vmem:[#allocation3 + $0xc0] sm:$0xff]
      %v5645 = vld [vmem:[#allocation3 + $0xc8] sm:$0xff]
      %v5646 = vld [vmem:[#allocation3 + $0xd0] sm:$0xff]
      %v5647 = vld [vmem:[#allocation3 + $0xd8] sm:$0xff]
      %v5648 = vld [vmem:[#allocation3 + $0xe0] sm:$0xff]
      %v5649 = vld [vmem:[#allocation3 + $0xe8] sm:$0xff]
      %v5650 = vld [vmem:[#allocation3 + $0xf0] sm:$0xff]
      %v5651 = vld [vmem:[#allocation3 + $0xf8] sm:$0xff]
      %v5652 = vld [vmem:[#allocation3 + $0x100] sm:$0xff]
      %v5653 = vld [vmem:[#allocation3 + $0x108] sm:$0xff]
      %v5654 = vld [vmem:[#allocation3 + $0x110] sm:$0xff]
      %v5655 = vld [vmem:[#allocation3 + $0x118] sm:$0xff]
      %v5656 = vld [vmem:[#allocation3 + $0x120] sm:$0xff]
      %v5657 = vld [vmem:[#allocation3 + $0x128] sm:$0xff]
      %v5658 = vld [vmem:[#allocation3 + $0x130] sm:$0xff]
      %v5659 = vld [vmem:[#allocation3 + $0x138] sm:$0xff]
      %v5660 = vld [vmem:[#allocation3 + $0x140] sm:$0xff]
      %v5661 = vld [vmem:[#allocation3 + $0x148] sm:$0xff]
      %v5662 = vld [vmem:[#allocation3 + $0x150] sm:$0xff]
      %v5663 = vld [vmem:[#allocation3 + $0x158] sm:$0xff]
      %v5664 = vld [vmem:[#allocation3 + $0x160] sm:$0xff]
      %v5665 = vld [vmem:[#allocation3 + $0x168] sm:$0xff]
      %v5666 = vld [vmem:[#allocation3 + $0x170] sm:$0xff]
      %v5667 = vld [vmem:[#allocation3 + $0x178] sm:$0xff]
      %v5668 = vld [vmem:[#allocation3 + $0x180] sm:$0xff]
      %v5669 = vld [vmem:[#allocation3 + $0x188] sm:$0xff]
      %v5670 = vld [vmem:[#allocation3 + $0x190] sm:$0xff]
      %v5671 = vld [vmem:[#allocation3 + $0x198] sm:$0xff]
      %v5672 = vld [vmem:[#allocation3 + $0x1a0] sm:$0xff]
      %v5673 = vld [vmem:[#allocation3 + $0x1a8] sm:$0xff]
      %v5674 = vld [vmem:[#allocation3 + $0x1b0] sm:$0xff]
      %v5675 = vld [vmem:[#allocation3 + $0x1b8] sm:$0xff]
      %v5676 = vld [vmem:[#allocation3 + $0x1c0] sm:$0xff]
      %v5677 = vld [vmem:[#allocation3 + $0x1c8] sm:$0xff]
      %v5678 = vld [vmem:[#allocation3 + $0x1d0] sm:$0xff]
      %v5679 = vld [vmem:[#allocation3 + $0x1d8] sm:$0xff]
      %v5680 = vld [vmem:[#allocation3 + $0x1e0] sm:$0xff]
      %v5681 = vld [vmem:[#allocation3 + $0x1e8] sm:$0xff]
      %v5682 = vld [vmem:[#allocation3 + $0x1f0] sm:$0xff]
      %v5683 = vld [vmem:[#allocation3 + $0x1f8] sm:$0xff]
      %v5684 = vld [vmem:[#allocation3 + $0x200] sm:$0xff]
      %v5685 = vld [vmem:[#allocation3 + $0x208] sm:$0xff]
      %v5686 = vld [vmem:[#allocation3 + $0x210] sm:$0xff]
      %v5687 = vld [vmem:[#allocation3 + $0x218] sm:$0xff]
      %v5688 = vld [vmem:[#allocation3 + $0x220] sm:$0xff]
      %v5689 = vld [vmem:[#allocation3 + $0x228] sm:$0xff]
      %v5690 = vld [vmem:[#allocation3 + $0x230] sm:$0xff]
      %v5691 = vld [vmem:[#allocation3 + $0x238] sm:$0xff]
      %v5692 = vld [vmem:[#allocation3 + $0x240] sm:$0xff]
      %v5693 = vld [vmem:[#allocation3 + $0x248] sm:$0xff]
      %v5694 = vld [vmem:[#allocation3 + $0x250] sm:$0xff]
      %v5695 = vld [vmem:[#allocation3 + $0x258] sm:$0xff]
      %v5696 = vld [vmem:[#allocation3 + $0x260] sm:$0xff]
      %v5697 = vld [vmem:[#allocation3 + $0x268] sm:$0xff]
      %v5698 = vld [vmem:[#allocation3 + $0x270] sm:$0xff]
      %v5699 = vld [vmem:[#allocation3 + $0x278] sm:$0xff]
      %v5700 = vld [vmem:[#allocation3 + $0x280] sm:$0xff]
      %v5701 = vld [vmem:[#allocation3 + $0x288] sm:$0xff]
      %v5702 = vld [vmem:[#allocation3 + $0x290] sm:$0xff]
      %v5703 = vld [vmem:[#allocation3 + $0x298] sm:$0xff]
      %v5704 = vld [vmem:[#allocation3 + $0x2a0] sm:$0xff]
      %v5705 = vld [vmem:[#allocation3 + $0x2a8] sm:$0xff]
      %v5706 = vld [vmem:[#allocation3 + $0x2b0] sm:$0xff]
      %v5707 = vld [vmem:[#allocation3 + $0x2b8] sm:$0xff]
      %v5708 = vld [vmem:[#allocation3 + $0x2c0] sm:$0xff]
      %v5709 = vld [vmem:[#allocation3 + $0x2c8] sm:$0xff]
      %v5710 = vld [vmem:[#allocation3 + $0x2d0] sm:$0xff]
      %v5711 = vld [vmem:[#allocation3 + $0x2d8] sm:$0xff]
      %v5712 = vld [vmem:[#allocation3 + $0x2e0] sm:$0xff]
      %v5713 = vld [vmem:[#allocation3 + $0x2e8] sm:$0xff]
      %v5714 = vld [vmem:[#allocation3 + $0x2f0] sm:$0xff]
      %v5715 = vld [vmem:[#allocation3 + $0x2f8] sm:$0xff]
      %v5716 = vld [vmem:[%s6] sm:$0xff]
      %v5717 = vld [vmem:[%s6 + $0x8] sm:$0xff]
      %v5718 = vld [vmem:[%s6 + $0x10] sm:$0xff]
      %v5719 = vld [vmem:[%s6 + $0x18] sm:$0xff]
      %v5720 = vld [vmem:[%s6 + $0x20] sm:$0xff]
      %v5721 = vld [vmem:[%s6 + $0x28] sm:$0xff]
      %v5722 = vld [vmem:[%s6 + $0x30] sm:$0xff]
      %v5723 = vld [vmem:[%s6 + $0x38] sm:$0xff]
      %v5724 = vld [vmem:[%s6 + $0x40] sm:$0xff]
      %v5725 = vld [vmem:[%s6 + $0x48] sm:$0xff]
      %v5726 = vld [vmem:[%s6 + $0x50] sm:$0xff]
      %v5727 = vld [vmem:[%s6 + $0x58] sm:$0xff]
      %v5728 = vld [vmem:[%s6 + $0x60] sm:$0xff]
      %v5729 = vld [vmem:[%s6 + $0x68] sm:$0xff]
      %v5730 = vld [vmem:[%s6 + $0x70] sm:$0xff]
      %v5731 = vld [vmem:[%s6 + $0x78] sm:$0xff]
      %v5732 = vld [vmem:[%s6 + $0x80] sm:$0xff]
      %v5733 = vld [vmem:[%s6 + $0x88] sm:$0xff]
      %v5734 = vld [vmem:[%s6 + $0x90] sm:$0xff]
      %v5735 = vld [vmem:[%s6 + $0x98] sm:$0xff]
      %v5736 = vld [vmem:[%s6 + $0xa0] sm:$0xff]
      %v5737 = vld [vmem:[%s6 + $0xa8] sm:$0xff]
      %v5738 = vld [vmem:[%s6 + $0xb0] sm:$0xff]
      %v5739 = vld [vmem:[%s6 + $0xb8] sm:$0xff]
      %v5740 = vld [vmem:[%s6 + $0xc0] sm:$0xff]
      %v5741 = vld [vmem:[%s6 + $0xc8] sm:$0xff]
      %v5742 = vld [vmem:[%s6 + $0xd0] sm:$0xff]
      %v5743 = vld [vmem:[%s6 + $0xd8] sm:$0xff]
      %v5744 = vld [vmem:[%s6 + $0xe0] sm:$0xff]
      %v5745 = vld [vmem:[%s6 + $0xe8] sm:$0xff]
      %v5746 = vld [vmem:[%s6 + $0xf0] sm:$0xff]
      %v5747 = vld [vmem:[%s6 + $0xf8] sm:$0xff]
      %v5748 = vld [vmem:[%s6 + $0x100] sm:$0xff]
      %v5749 = vld [vmem:[%s6 + $0x108] sm:$0xff]
      %v5750 = vld [vmem:[%s6 + $0x110] sm:$0xff]
      %v5751 = vld [vmem:[%s6 + $0x118] sm:$0xff]
      %v5753 = vsel %vm2204, %v5622, 0
      %v5756 = vsel %vm2204, %v5625, 0
      %v5759 = vsel %vm2204, %v5628, 0
      %v5762 = vsel %vm2204, %v5631, 0
      %v5765 = vsel %vm2204, %v5634, 0
      %v5768 = vsel %vm2204, %v5637, 0
      %v5771 = vsel %vm2204, %v5640, 0
      %v5774 = vsel %vm2204, %v5643, 0
      %v5777 = vsel %vm2204, %v5646, 0
      %v5780 = vsel %vm2204, %v5649, 0
      %v5783 = vsel %vm2204, %v5652, 0
      %v5786 = vsel %vm2204, %v5655, 0
      %v5789 = vsel %vm2204, %v5658, 0
      %v5792 = vsel %vm2204, %v5661, 0
      %v5795 = vsel %vm2204, %v5664, 0
      %v5798 = vsel %vm2204, %v5667, 0
      %v5801 = vsel %vm2204, %v5670, 0
      %v5804 = vsel %vm2204, %v5673, 0
      %v5807 = vsel %vm2204, %v5676, 0
      %v5810 = vsel %vm2204, %v5679, 0
      %v5813 = vsel %vm2204, %v5682, 0
      %v5816 = vsel %vm2204, %v5685, 0
      %v5819 = vsel %vm2204, %v5688, 0
      %v5822 = vsel %vm2204, %v5691, 0
      %v5825 = vsel %vm2204, %v5694, 0
      %v5828 = vsel %vm2204, %v5697, 0
      %v5831 = vsel %vm2204, %v5700, 0
      %v5834 = vsel %vm2204, %v5703, 0
      %v5837 = vsel %vm2204, %v5706, 0
      %v5840 = vsel %vm2204, %v5709, 0
      %v5843 = vsel %vm2204, %v5712, 0
      %v5846 = vsel %vm2204, %v5715, 0
      %5848 = vmatpush.msra.mxu0 %v5731
      %5849 = vmatpush.msra.mxu0 %v5730
      %5850 = vmatpush.msra.mxu0 %v5729
      %5851 = vmatpush.msra.mxu0 %v5728
      %5852 = vmatpush.msra.mxu0 %v5727
      %5853 = vmatpush.msra.mxu0 %v5726
      %5854 = vmatpush.msra.mxu0 %v5725
      %5855 = vmatpush.msra.mxu0 %v5724
      %5856 = vmatpush.msra.mxu0 %v5723
      %5857 = vmatpush.msra.mxu0 %v5722
      %5858 = vmatpush.msra.mxu0 %v5721
      %5859 = vmatpush.msra.mxu0 %v5720
      %5860 = vmatpush.msra.mxu0 %v5719
      %5861 = vmatpush.msra.mxu0 %v5718
      %5862 = vmatpush.msra.mxu0 %v5717
      %5863 = vmatpush.msra.mxu0 %v5716
      %5864 = vmatmul.f32.gmra.mxu0 %v5620
      %v5865 = vpop.f32.mrf.mxu0
      %v5866 = vadd.f32 0.0, %v5865
      %5867 = vmatmul.f32.gmra.mxu0 %v5623
      %v5868 = vpop.f32.mrf.mxu0
      %v5869 = vadd.f32 0.0, %v5868
      %5870 = vmatmul.f32.gmra.mxu0 %v5626
      %v5871 = vpop.f32.mrf.mxu0
      %v5872 = vadd.f32 0.0, %v5871
      %5873 = vmatmul.f32.gmra.mxu0 %v5629
      %v5874 = vpop.f32.mrf.mxu0
      %v5875 = vadd.f32 0.0, %v5874
      %5876 = vmatmul.f32.gmra.mxu0 %v5632
      %v5877 = vpop.f32.mrf.mxu0
      %v5878 = vadd.f32 0.0, %v5877
      %5879 = vmatmul.f32.gmra.mxu0 %v5635
      %v5880 = vpop.f32.mrf.mxu0
      %v5881 = vadd.f32 0.0, %v5880
      %5882 = vmatmul.f32.gmra.mxu0 %v5638
      %v5883 = vpop.f32.mrf.mxu0
      %v5884 = vadd.f32 0.0, %v5883
      %5885 = vmatmul.f32.gmra.mxu0 %v5641
      %v5886 = vpop.f32.mrf.mxu0
      %v5887 = vadd.f32 0.0, %v5886
      %5888 = vmatmul.f32.gmra.mxu0 %v5644
      %v5889 = vpop.f32.mrf.mxu0
      %v5890 = vadd.f32 0.0, %v5889
      %5891 = vmatmul.f32.gmra.mxu0 %v5647
      %v5892 = vpop.f32.mrf.mxu0
      %v5893 = vadd.f32 0.0, %v5892
      %5894 = vmatmul.f32.gmra.mxu0 %v5650
      %v5895 = vpop.f32.mrf.mxu0
      %v5896 = vadd.f32 0.0, %v5895
      %5897 = vmatmul.f32.gmra.mxu0 %v5653
      %v5898 = vpop.f32.mrf.mxu0
      %v5899 = vadd.f32 0.0, %v5898
      %5900 = vmatmul.f32.gmra.mxu0 %v5656
      %v5901 = vpop.f32.mrf.mxu0
      %v5902 = vadd.f32 0.0, %v5901
      %5903 = vmatmul.f32.gmra.mxu0 %v5659
      %v5904 = vpop.f32.mrf.mxu0
      %v5905 = vadd.f32 0.0, %v5904
      %5906 = vmatmul.f32.gmra.mxu0 %v5662
      %v5907 = vpop.f32.mrf.mxu0
      %v5908 = vadd.f32 0.0, %v5907
      %5909 = vmatmul.f32.gmra.mxu0 %v5665
      %v5910 = vpop.f32.mrf.mxu0
      %v5911 = vadd.f32 0.0, %v5910
      %5912 = vmatmul.f32.gmra.mxu0 %v5668
      %v5913 = vpop.f32.mrf.mxu0
      %v5914 = vadd.f32 0.0, %v5913
      %5915 = vmatmul.f32.gmra.mxu0 %v5671
      %v5916 = vpop.f32.mrf.mxu0
      %v5917 = vadd.f32 0.0, %v5916
      %5918 = vmatmul.f32.gmra.mxu0 %v5674
      %v5919 = vpop.f32.mrf.mxu0
      %v5920 = vadd.f32 0.0, %v5919
      %5921 = vmatmul.f32.gmra.mxu0 %v5677
      %v5922 = vpop.f32.mrf.mxu0
      %v5923 = vadd.f32 0.0, %v5922
      %5924 = vmatmul.f32.gmra.mxu0 %v5680
      %v5925 = vpop.f32.mrf.mxu0
      %v5926 = vadd.f32 0.0, %v5925
      %5927 = vmatmul.f32.gmra.mxu0 %v5683
      %v5928 = vpop.f32.mrf.mxu0
      %v5929 = vadd.f32 0.0, %v5928
      %5930 = vmatmul.f32.gmra.mxu0 %v5686
      %v5931 = vpop.f32.mrf.mxu0
      %v5932 = vadd.f32 0.0, %v5931
      %5933 = vmatmul.f32.gmra.mxu0 %v5689
      %v5934 = vpop.f32.mrf.mxu0
      %v5935 = vadd.f32 0.0, %v5934
      %5936 = vmatmul.f32.gmra.mxu0 %v5692
      %v5937 = vpop.f32.mrf.mxu0
      %v5938 = vadd.f32 0.0, %v5937
      %5939 = vmatmul.f32.gmra.mxu0 %v5695
      %v5940 = vpop.f32.mrf.mxu0
      %v5941 = vadd.f32 0.0, %v5940
      %5942 = vmatmul.f32.gmra.mxu0 %v5698
      %v5943 = vpop.f32.mrf.mxu0
      %v5944 = vadd.f32 0.0, %v5943
      %5945 = vmatmul.f32.gmra.mxu0 %v5701
      %v5946 = vpop.f32.mrf.mxu0
      %v5947 = vadd.f32 0.0, %v5946
      %5948 = vmatmul.f32.gmra.mxu0 %v5704
      %v5949 = vpop.f32.mrf.mxu0
      %v5950 = vadd.f32 0.0, %v5949
      %5951 = vmatmul.f32.gmra.mxu0 %v5707
      %v5952 = vpop.f32.mrf.mxu0
      %v5953 = vadd.f32 0.0, %v5952
      %5954 = vmatmul.f32.gmra.mxu0 %v5710
      %v5955 = vpop.f32.mrf.mxu0
      %v5956 = vadd.f32 0.0, %v5955
      %5957 = vmatmul.f32.gmra.mxu0 %v5713
      %v5958 = vpop.f32.mrf.mxu0
      %v5959 = vadd.f32 0.0, %v5958
      %5960 = vdwg.mxu0
      %5961 = vmatpush.msra.mxu0 %v5747
      %5962 = vmatpush.msra.mxu0 %v5746
      %5963 = vmatpush.msra.mxu0 %v5745
      %5964 = vmatpush.msra.mxu0 %v5744
      %5965 = vmatpush.msra.mxu0 %v5743
      %5966 = vmatpush.msra.mxu0 %v5742
      %5967 = vmatpush.msra.mxu0 %v5741
      %5968 = vmatpush.msra.mxu0 %v5740
      %5969 = vmatpush.msra.mxu0 %v5739
      %5970 = vmatpush.msra.mxu0 %v5738
      %5971 = vmatpush.msra.mxu0 %v5737
      %5972 = vmatpush.msra.mxu0 %v5736
      %5973 = vmatpush.msra.mxu0 %v5735
      %5974 = vmatpush.msra.mxu0 %v5734
      %5975 = vmatpush.msra.mxu0 %v5733
      %5976 = vmatpush.msra.mxu0 %v5732
      %5977 = vmatmul.f32.gmra.mxu0 %v5621
      %v5978 = vpop.f32.mrf.mxu0
      %v5979 = vadd.f32 %v5866, %v5978
      %5980 = vmatmul.f32.gmra.mxu0 %v5624
      %v5981 = vpop.f32.mrf.mxu0
      %v5982 = vadd.f32 %v5869, %v5981
      %5983 = vmatmul.f32.gmra.mxu0 %v5627
      %v5984 = vpop.f32.mrf.mxu0
      %v5985 = vadd.f32 %v5872, %v5984
      %5986 = vmatmul.f32.gmra.mxu0 %v5630
      %v5987 = vpop.f32.mrf.mxu0
      %v5988 = vadd.f32 %v5875, %v5987
      %5989 = vmatmul.f32.gmra.mxu0 %v5633
      %v5990 = vpop.f32.mrf.mxu0
      %v5991 = vadd.f32 %v5878, %v5990
      %5992 = vmatmul.f32.gmra.mxu0 %v5636
      %v5993 = vpop.f32.mrf.mxu0
      %v5994 = vadd.f32 %v5881, %v5993
      %5995 = vmatmul.f32.gmra.mxu0 %v5639
      %v5996 = vpop.f32.mrf.mxu0
      %v5997 = vadd.f32 %v5884, %v5996
      %5998 = vmatmul.f32.gmra.mxu0 %v5642
      %v5999 = vpop.f32.mrf.mxu0
      %v6000 = vadd.f32 %v5887, %v5999
      %6001 = vmatmul.f32.gmra.mxu0 %v5645
      %v6002 = vpop.f32.mrf.mxu0
      %v6003 = vadd.f32 %v5890, %v6002
      %6004 = vmatmul.f32.gmra.mxu0 %v5648
      %v6005 = vpop.f32.mrf.mxu0
      %v6006 = vadd.f32 %v5893, %v6005
      %6007 = vmatmul.f32.gmra.mxu0 %v5651
      %v6008 = vpop.f32.mrf.mxu0
      %v6009 = vadd.f32 %v5896, %v6008
      %6010 = vmatmul.f32.gmra.mxu0 %v5654
      %v6011 = vpop.f32.mrf.mxu0
      %v6012 = vadd.f32 %v5899, %v6011
      %6013 = vmatmul.f32.gmra.mxu0 %v5657
      %v6014 = vpop.f32.mrf.mxu0
      %v6015 = vadd.f32 %v5902, %v6014
      %6016 = vmatmul.f32.gmra.mxu0 %v5660
      %v6017 = vpop.f32.mrf.mxu0
      %v6018 = vadd.f32 %v5905, %v6017
      %6019 = vmatmul.f32.gmra.mxu0 %v5663
      %v6020 = vpop.f32.mrf.mxu0
      %v6021 = vadd.f32 %v5908, %v6020
      %6022 = vmatmul.f32.gmra.mxu0 %v5666
      %v6023 = vpop.f32.mrf.mxu0
      %v6024 = vadd.f32 %v5911, %v6023
      %6025 = vmatmul.f32.gmra.mxu0 %v5669
      %v6026 = vpop.f32.mrf.mxu0
      %v6027 = vadd.f32 %v5914, %v6026
      %6028 = vmatmul.f32.gmra.mxu0 %v5672
      %v6029 = vpop.f32.mrf.mxu0
      %v6030 = vadd.f32 %v5917, %v6029
      %6031 = vmatmul.f32.gmra.mxu0 %v5675
      %v6032 = vpop.f32.mrf.mxu0
      %v6033 = vadd.f32 %v5920, %v6032
      %6034 = vmatmul.f32.gmra.mxu0 %v5678
      %v6035 = vpop.f32.mrf.mxu0
      %v6036 = vadd.f32 %v5923, %v6035
      %6037 = vmatmul.f32.gmra.mxu0 %v5681
      %v6038 = vpop.f32.mrf.mxu0
      %v6039 = vadd.f32 %v5926, %v6038
      %6040 = vmatmul.f32.gmra.mxu0 %v5684
      %v6041 = vpop.f32.mrf.mxu0
      %v6042 = vadd.f32 %v5929, %v6041
      %6043 = vmatmul.f32.gmra.mxu0 %v5687
      %v6044 = vpop.f32.mrf.mxu0
      %v6045 = vadd.f32 %v5932, %v6044
      %6046 = vmatmul.f32.gmra.mxu0 %v5690
      %v6047 = vpop.f32.mrf.mxu0
      %v6048 = vadd.f32 %v5935, %v6047
      %6049 = vmatmul.f32.gmra.mxu0 %v5693
      %v6050 = vpop.f32.mrf.mxu0
      %v6051 = vadd.f32 %v5938, %v6050
      %6052 = vmatmul.f32.gmra.mxu0 %v5696
      %v6053 = vpop.f32.mrf.mxu0
      %v6054 = vadd.f32 %v5941, %v6053
      %6055 = vmatmul.f32.gmra.mxu0 %v5699
      %v6056 = vpop.f32.mrf.mxu0
      %v6057 = vadd.f32 %v5944, %v6056
      %6058 = vmatmul.f32.gmra.mxu0 %v5702
      %v6059 = vpop.f32.mrf.mxu0
      %v6060 = vadd.f32 %v5947, %v6059
      %6061 = vmatmul.f32.gmra.mxu0 %v5705
      %v6062 = vpop.f32.mrf.mxu0
      %v6063 = vadd.f32 %v5950, %v6062
      %6064 = vmatmul.f32.gmra.mxu0 %v5708
      %v6065 = vpop.f32.mrf.mxu0
      %v6066 = vadd.f32 %v5953, %v6065
      %6067 = vmatmul.f32.gmra.mxu0 %v5711
      %v6068 = vpop.f32.mrf.mxu0
      %v6069 = vadd.f32 %v5956, %v6068
      %6070 = vmatmul.f32.gmra.mxu0 %v5714
      %v6071 = vpop.f32.mrf.mxu0
      %v6072 = vadd.f32 %v5959, %v6071
      %6073 = vdwg.mxu0
      %6074 = vmatpush.msra.mxu0 0.0
      %6075 = vmatpush.msra.mxu0 0.0
      %6076 = vmatpush.msra.mxu0 0.0
      %6077 = vmatpush.msra.mxu0 0.0
      %6078 = vmatpush.msra.mxu0 0.0
      %6079 = vmatpush.msra.mxu0 0.0
      %6080 = vmatpush.msra.mxu0 0.0
      %6081 = vmatpush.msra.mxu0 0.0
      %6082 = vmatpush.msra.mxu0 0.0
      %6083 = vmatpush.msra.mxu0 0.0
      %6084 = vmatpush.msra.mxu0 0.0
      %6085 = vmatpush.msra.mxu0 0.0
      %6086 = vmatpush.msra.mxu0 %v5751
      %6087 = vmatpush.msra.mxu0 %v5750
      %6088 = vmatpush.msra.mxu0 %v5749
      %6089 = vmatpush.msra.mxu0 %v5748
      %6090 = vmatmul.f32.gmra.mxu0 %v5753
      %v6091 = vpop.f32.mrf.mxu0
      %v6092 = vadd.f32 %v5979, %v6091
      %6093 = vmatmul.f32.gmra.mxu0 %v5756
      %v6094 = vpop.f32.mrf.mxu0
      %v6095 = vadd.f32 %v5982, %v6094
      %6096 = vmatmul.f32.gmra.mxu0 %v5759
      %v6097 = vpop.f32.mrf.mxu0
      %v6098 = vadd.f32 %v5985, %v6097
      %6099 = vmatmul.f32.gmra.mxu0 %v5762
      %v6100 = vpop.f32.mrf.mxu0
      %v6101 = vadd.f32 %v5988, %v6100
      %6102 = vmatmul.f32.gmra.mxu0 %v5765
      %v6103 = vpop.f32.mrf.mxu0
      %v6104 = vadd.f32 %v5991, %v6103
      %6105 = vmatmul.f32.gmra.mxu0 %v5768
      %v6106 = vpop.f32.mrf.mxu0
      %v6107 = vadd.f32 %v5994, %v6106
      %6108 = vmatmul.f32.gmra.mxu0 %v5771
      %v6109 = vpop.f32.mrf.mxu0
      %v6110 = vadd.f32 %v5997, %v6109
      %6111 = vmatmul.f32.gmra.mxu0 %v5774
      %v6112 = vpop.f32.mrf.mxu0
      %v6113 = vadd.f32 %v6000, %v6112
      %6114 = vmatmul.f32.gmra.mxu0 %v5777
      %v6115 = vpop.f32.mrf.mxu0
      %v6116 = vadd.f32 %v6003, %v6115
      %6117 = vmatmul.f32.gmra.mxu0 %v5780
      %v6118 = vpop.f32.mrf.mxu0
      %v6119 = vadd.f32 %v6006, %v6118
      %6120 = vmatmul.f32.gmra.mxu0 %v5783
      %v6121 = vpop.f32.mrf.mxu0
      %v6122 = vadd.f32 %v6009, %v6121
      %6123 = vmatmul.f32.gmra.mxu0 %v5786
      %v6124 = vpop.f32.mrf.mxu0
      %v6125 = vadd.f32 %v6012, %v6124
      %6126 = vmatmul.f32.gmra.mxu0 %v5789
      %v6127 = vpop.f32.mrf.mxu0
      %v6128 = vadd.f32 %v6015, %v6127
      %6129 = vmatmul.f32.gmra.mxu0 %v5792
      %v6130 = vpop.f32.mrf.mxu0
      %v6131 = vadd.f32 %v6018, %v6130
      %6132 = vmatmul.f32.gmra.mxu0 %v5795
      %v6133 = vpop.f32.mrf.mxu0
      %v6134 = vadd.f32 %v6021, %v6133
      %6135 = vmatmul.f32.gmra.mxu0 %v5798
      %v6136 = vpop.f32.mrf.mxu0
      %v6137 = vadd.f32 %v6024, %v6136
      %6138 = vmatmul.f32.gmra.mxu0 %v5801
      %v6139 = vpop.f32.mrf.mxu0
      %v6140 = vadd.f32 %v6027, %v6139
      %6141 = vmatmul.f32.gmra.mxu0 %v5804
      %v6142 = vpop.f32.mrf.mxu0
      %v6143 = vadd.f32 %v6030, %v6142
      %6144 = vmatmul.f32.gmra.mxu0 %v5807
      %v6145 = vpop.f32.mrf.mxu0
      %v6146 = vadd.f32 %v6033, %v6145
      %6147 = vmatmul.f32.gmra.mxu0 %v5810
      %v6148 = vpop.f32.mrf.mxu0
      %v6149 = vadd.f32 %v6036, %v6148
      %6150 = vmatmul.f32.gmra.mxu0 %v5813
      %v6151 = vpop.f32.mrf.mxu0
      %v6152 = vadd.f32 %v6039, %v6151
      %6153 = vmatmul.f32.gmra.mxu0 %v5816
      %v6154 = vpop.f32.mrf.mxu0
      %v6155 = vadd.f32 %v6042, %v6154
      %6156 = vmatmul.f32.gmra.mxu0 %v5819
      %v6157 = vpop.f32.mrf.mxu0
      %v6158 = vadd.f32 %v6045, %v6157
      %6159 = vmatmul.f32.gmra.mxu0 %v5822
      %v6160 = vpop.f32.mrf.mxu0
      %v6161 = vadd.f32 %v6048, %v6160
      %6162 = vmatmul.f32.gmra.mxu0 %v5825
      %v6163 = vpop.f32.mrf.mxu0
      %v6164 = vadd.f32 %v6051, %v6163
      %6165 = vmatmul.f32.gmra.mxu0 %v5828
      %v6166 = vpop.f32.mrf.mxu0
      %v6167 = vadd.f32 %v6054, %v6166
      %6168 = vmatmul.f32.gmra.mxu0 %v5831
      %v6169 = vpop.f32.mrf.mxu0
      %v6170 = vadd.f32 %v6057, %v6169
      %6171 = vmatmul.f32.gmra.mxu0 %v5834
      %v6172 = vpop.f32.mrf.mxu0
      %v6173 = vadd.f32 %v6060, %v6172
      %6174 = vmatmul.f32.gmra.mxu0 %v5837
      %v6175 = vpop.f32.mrf.mxu0
      %v6176 = vadd.f32 %v6063, %v6175
      %6177 = vmatmul.f32.gmra.mxu0 %v5840
      %v6178 = vpop.f32.mrf.mxu0
      %v6179 = vadd.f32 %v6066, %v6178
      %6180 = vmatmul.f32.gmra.mxu0 %v5843
      %v6181 = vpop.f32.mrf.mxu0
      %v6182 = vadd.f32 %v6069, %v6181
      %6183 = vmatmul.f32.gmra.mxu0 %v5846
      %v6184 = vpop.f32.mrf.mxu0
      %v6185 = vadd.f32 %v6072, %v6184
      %6186 = vdwg.mxu0
      %v6187 = vld [vmem:[%s1] sm:$0xff]
      %v6188 = vld [vmem:[%s1 + $0x8] sm:$0xff]
      %v6189 = vld [vmem:[%s1 + $0x10] sm:$0xff]
      %v6190 = vld [vmem:[%s1 + $0x18] sm:$0xff]
      %v6191 = vld [vmem:[%s1 + $0x20] sm:$0xff]
      %v6192 = vld [vmem:[%s1 + $0x28] sm:$0xff]
      %v6193 = vld [vmem:[%s1 + $0x30] sm:$0xff]
      %v6194 = vld [vmem:[%s1 + $0x38] sm:$0xff]
      %v6195 = vld [vmem:[%s1 + $0x40] sm:$0xff]
      %v6196 = vld [vmem:[%s1 + $0x48] sm:$0xff]
      %v6197 = vld [vmem:[%s1 + $0x50] sm:$0xff]
      %v6198 = vld [vmem:[%s1 + $0x58] sm:$0xff]
      %v6199 = vld [vmem:[%s1 + $0x60] sm:$0xff]
      %v6200 = vld [vmem:[%s1 + $0x68] sm:$0xff]
      %v6201 = vld [vmem:[%s1 + $0x70] sm:$0xff]
      %v6202 = vld [vmem:[%s1 + $0x78] sm:$0xff]
      %v6203 = vld [vmem:[%s7] sm:$0x1]
      %v6205 = vperm.slane %v6203, 0
      %6207 = vmatpush.msra.mxu0 %v6137
      %6208 = vmatpush.msra.mxu0 %v6134
      %6209 = vmatpush.msra.mxu0 %v6131
      %6210 = vmatpush.msra.mxu0 %v6128
      %6211 = vmatpush.msra.mxu0 %v6125
      %6212 = vmatpush.msra.mxu0 %v6122
      %6213 = vmatpush.msra.mxu0 %v6119
      %6214 = vmatpush.msra.mxu0 %v6116
      %6215 = vmatpush.msra.mxu0 %v6113
      %6216 = vmatpush.msra.mxu0 %v6110
      %6217 = vmatpush.msra.mxu0 %v6107
      %6218 = vmatpush.msra.mxu0 %v6104
      %6219 = vmatpush.msra.mxu0 %v6101
      %6220 = vmatpush.msra.mxu0 %v6098
      %6221 = vmatpush.msra.mxu0 %v6095
      %6222 = vmatpush.msra.mxu0 %v6092
      %6223 = vmatmul.f32.gmra.mxu0 %v6187
      %v6224 = vpop.f32.mrf.mxu0
      %v6225 = vadd.f32 %v6205, %v6224
      %6226 = vmatmul.f32.gmra.mxu0 %v6189
      %v6227 = vpop.f32.mrf.mxu0
      %v6228 = vadd.f32 %v6205, %v6227
      %6229 = vmatmul.f32.gmra.mxu0 %v6191
      %v6230 = vpop.f32.mrf.mxu0
      %v6231 = vadd.f32 %v6205, %v6230
      %6232 = vmatmul.f32.gmra.mxu0 %v6193
      %v6233 = vpop.f32.mrf.mxu0
      %v6234 = vadd.f32 %v6205, %v6233
      %6235 = vmatmul.f32.gmra.mxu0 %v6195
      %v6236 = vpop.f32.mrf.mxu0
      %v6237 = vadd.f32 %v6205, %v6236
      %6238 = vmatmul.f32.gmra.mxu0 %v6197
      %v6239 = vpop.f32.mrf.mxu0
      %v6240 = vadd.f32 %v6205, %v6239
      %6241 = vmatmul.f32.gmra.mxu0 %v6199
      %v6242 = vpop.f32.mrf.mxu0
      %v6243 = vadd.f32 %v6205, %v6242
      %6244 = vmatmul.f32.gmra.mxu0 %v6201
      %v6245 = vpop.f32.mrf.mxu0
      %v6246 = vadd.f32 %v6205, %v6245
      %6247 = vdwg.mxu0
      %6248 = vmatpush.msra.mxu0 %v6185
      %6249 = vmatpush.msra.mxu0 %v6182
      %6250 = vmatpush.msra.mxu0 %v6179
      %6251 = vmatpush.msra.mxu0 %v6176
      %6252 = vmatpush.msra.mxu0 %v6173
      %6253 = vmatpush.msra.mxu0 %v6170
      %6254 = vmatpush.msra.mxu0 %v6167
      %6255 = vmatpush.msra.mxu0 %v6164
      %6256 = vmatpush.msra.mxu0 %v6161
      %6257 = vmatpush.msra.mxu0 %v6158
      %6258 = vmatpush.msra.mxu0 %v6155
      %6259 = vmatpush.msra.mxu0 %v6152
      %6260 = vmatpush.msra.mxu0 %v6149
      %6261 = vmatpush.msra.mxu0 %v6146
      %6262 = vmatpush.msra.mxu0 %v6143
      %6263 = vmatpush.msra.mxu0 %v6140
      %6264 = vmatmul.f32.gmra.mxu0 %v6188
      %v6265 = vpop.f32.mrf.mxu0
      %v6266 = vadd.f32 %v6225, %v6265
      %6267 = vmatmul.f32.gmra.mxu0 %v6190
      %v6268 = vpop.f32.mrf.mxu0
      %v6269 = vadd.f32 %v6228, %v6268
      %6270 = vmatmul.f32.gmra.mxu0 %v6192
      %v6271 = vpop.f32.mrf.mxu0
      %v6272 = vadd.f32 %v6231, %v6271
      %6273 = vmatmul.f32.gmra.mxu0 %v6194
      %v6274 = vpop.f32.mrf.mxu0
      %v6275 = vadd.f32 %v6234, %v6274
      %6276 = vmatmul.f32.gmra.mxu0 %v6196
      %v6277 = vpop.f32.mrf.mxu0
      %v6278 = vadd.f32 %v6237, %v6277
      %6279 = vmatmul.f32.gmra.mxu0 %v6198
      %v6280 = vpop.f32.mrf.mxu0
      %v6281 = vadd.f32 %v6240, %v6280
      %6282 = vmatmul.f32.gmra.mxu0 %v6200
      %v6283 = vpop.f32.mrf.mxu0
      %v6284 = vadd.f32 %v6243, %v6283
      %6285 = vmatmul.f32.gmra.mxu0 %v6202
      %v6286 = vpop.f32.mrf.mxu0
      %v6287 = vadd.f32 %v6246, %v6286
      %6288 = vdwg.mxu0
      %v6289 = vmax.f32 %v6266, 0.0
      %v6290 = vmax.f32 %v6269, 0.0
      %v6291 = vmax.f32 %v6272, 0.0
      %v6292 = vmax.f32 %v6275, 0.0
      %v6293 = vmax.f32 %v6278, 0.0
      %v6294 = vmax.f32 %v6281, 0.0
      %v6295 = vmax.f32 %v6284, 0.0
      %v6296 = vmax.f32 %v6287, 0.0
      %6297 = vst.msk [vmem:[%s305] sm:$0xff] %vm2204, %v6289
      %6298 = vst.msk [vmem:[%s305 + $0x8] sm:$0xff] %vm2204, %v6290
      %6299 = vst.msk [vmem:[%s305 + $0x10] sm:$0xff] %vm2204, %v6291
      %6300 = vst.msk [vmem:[%s305 + $0x18] sm:$0xff] %vm2204, %v6292
      %6301 = vst.msk [vmem:[%s305 + $0x20] sm:$0xff] %vm2204, %v6293
      %6302 = vst.msk [vmem:[%s305 + $0x28] sm:$0xff] %vm2204, %v6294
      %6303 = vst.msk [vmem:[%s305 + $0x30] sm:$0xff] %vm2204, %v6295
      %6304 = vst.msk [vmem:[%s305 + $0x38] sm:$0xff] %vm2204, %v6296
      %p6305 = scmp.lt.s32.totalorder %s19, 1
      %s6306 = scalar_select %p6305, %s19, 1
      %s6307 = smul.addr %s6306, 8
      %s6308 = smul.addr %s6307, 8
      %s6309 = scalar_lea.vmem %s8, %s6308
      // Predicated region
      $region53: #{encoder_forward.2} parent=51 // pred_check
        %p6310 = pneg %p210
      $region54: #{encoder_forward.2} parent=51 // pred_check_branch
        %6312 = sbr.rel (%p6310) target = $region56
      $region55: #{encoder_forward.2} parent=51 // pred_region
        _
      $region56: #{encoder_forward.2} parent=51 // pred_fallthru
        _
    $region52: #{encoder_forward.2} parent=5 // pred_fallthru
      _
    %p6313 = scmp.le.s32.totalorder 2, %s14
    // Predicated region
    $region57: #{encoder_forward.2} parent=5 // pred_check
      %p6314 = pneg %p6313
    $region58: #{encoder_forward.2} parent=5 // pred_check_branch
      %6316 = sbr.rel (%p6314) target = $region60
    $region59: #{encoder_forward.2} parent=5 // pred_region
      %s6317 = ssub.s32 %s14, 2
      // Predicated region
      $region61: #{encoder_forward.2} parent=59 // pred_check
        %p6318 = pneg %p216
      $region62: #{encoder_forward.2} parent=59 // pred_check_branch
        %6320 = sbr.rel (%p6318) target = $region64
      $region63: #{encoder_forward.2} parent=59 // pred_region
        %p6321 = scmp.lt.s32.totalorder %s20, 1
        %s6322 = scalar_select %p6321, %s20, 1
        %s6323 = smul.addr %s6322, 8
        %s6324 = smul.addr %s6323, 8
        %s6325 = scalar_lea.vmem %s8, %s6324
      $region64: #{encoder_forward.2} parent=59 // pred_fallthru
        _
    $region60: #{encoder_forward.2} parent=5 // pred_fallthru
      _
  $region6: #{encoder_forward.2} parent=0 // loop_footer
    %s18 = sadd.s32 1, %s14
  $region7: #{encoder_forward.2} parent=0 // loop_footer_branch
    %13 = sbr.rel target = $region3
  $region8: #{encoder_forward.2} parent=0 // loop_exit
    _

</llo_original>
